<compile_context>
chip_gen: v6e
topology: v6e:2x2x1
jax: 0.10.0
libtpu: 0.0.40
codegen_flags: <defaults>
</compile_context>

<pallas_src>
import jax
import jax.numpy as jnp
import numpy as np
from jax import lax
from jax.experimental import pallas as pl
from jax.experimental.pallas import tpu as pltpu


def _round_up(x, m):
    return ((x + m - 1) // m) * m


# ----------------------------------------------------------------------------
# Kernel 1: ConvTranspose2d(k=2, s=2) expressed as a tiled matmul + bias.
#   out[n, 2h+kh, 2w+kw, oc] = sum_c x[n,h,w,c] * W[c,oc,kh,kw] + b[oc]
# x is flattened to (N*H*W, Cin) and W to (Cin, 4*Cout); the matmul is tiled
# over the M dimension so the pipeline double-buffers HBM<->VMEM.
# ----------------------------------------------------------------------------
def _matmul_bias_kernel(x_ref, w_ref, b_ref, o_ref):
    acc = jnp.dot(x_ref[...], w_ref[...], preferred_element_type=jnp.float32)
    o_ref[...] = (acc + b_ref[...]).astype(o_ref.dtype)


def conv_transpose_2x2(x_nhwc, w_pt, bias):
    """x_nhwc: (N,H,W,Cin); w_pt: (Cin,Cout,2,2) (PyTorch layout); bias: (Cout,)."""
    N, H, W, Cin = x_nhwc.shape
    Cout = w_pt.shape[1]
    # (Cin, kh, kw, Cout) -> (Cin, 4*Cout), last axis ordered (kh, kw, oc)
    w_flat = jnp.transpose(w_pt, (0, 2, 3, 1)).reshape(Cin, 4 * Cout)
    b_flat = jnp.tile(bias, 4).reshape(1, 4 * Cout)

    M = N * H * W
    TM = min(512, 8 * pl.cdiv(M, 8))          # M-tile (multiple of 8 sublanes)
    M_pad = _round_up(M, TM)
    x_flat = x_nhwc.reshape(M, Cin)
    if M_pad != M:
        x_flat = jnp.pad(x_flat, ((0, M_pad - M), (0, 0)))

    y = pl.pallas_call(
        _matmul_bias_kernel,
        out_shape=jax.ShapeDtypeStruct((M_pad, 4 * Cout), jnp.float32),
        grid=(M_pad // TM,),
        in_specs=[
            pl.BlockSpec((TM, Cin), lambda i: (i, 0)),
            pl.BlockSpec((Cin, 4 * Cout), lambda i: (0, 0)),
            pl.BlockSpec((1, 4 * Cout), lambda i: (0, 0)),
        ],
        out_specs=pl.BlockSpec((TM, 4 * Cout), lambda i: (i, 0)),
        compiler_params=pltpu.CompilerParams(
            dimension_semantics=("parallel",)),
    )(x_flat, w_flat, b_flat)

    if M_pad != M:
        y = y[:M]
    # scatter the 2x2 sub-pixel pattern: (N,H,W,kh,kw,Cout) -> (N,2H,2W,Cout)
    y = y.reshape(N, H, W, 2, 2, Cout)
    y = jnp.transpose(y, (0, 1, 3, 2, 4, 5)).reshape(N, 2 * H, 2 * W, Cout)
    return y


# ----------------------------------------------------------------------------
# Kernel 2: fused DoubleConv (two 3x3 convs, BN scale folded into weights,
#           shift + LeakyReLU after each), with implicit channel concat.
#
# Inputs are pre-padded to (H+3, W+2) -- the 3x3 halo plus one spare bottom
# row -- and flattened to ((H+3)*(W+2), Cin).  Each of the 9 taps is a
# *contiguous* slice of that slab at offset kh*(W+2)+kw ("wide conv" trick);
# conv1 produces a wide (H*(W+2), Cout) result whose 2 wrap-around columns per
# row are zeroed by a mask and written (sublane-aligned) into a zero VMEM
# slab, from which conv2's 9 taps are read the same way.  Only conv2's wide
# output goes back to HBM; the wrapper crops the 2 contaminated columns.
# ----------------------------------------------------------------------------
def _make_double_conv_kernel(n_in, H, W, S):
    Wp = W + 2
    HWp = H * Wp
    delta = S - (Wp + 1)          # conv2 tap offset correction (alignment pad)

    def kernel(*refs):
        idx = 0
        x_refs = refs[idx:idx + n_in]; idx += n_in
        mask_ref = refs[idx]; idx += 1
        w1_refs = refs[idx:idx + n_in]; idx += n_in
        b1_ref = refs[idx]; idx += 1
        w2_ref = refs[idx]; idx += 1
        b2_ref = refs[idx]; idx += 1
        o_ref = refs[idx]; idx += 1
        slab_ref = refs[idx]
        Cout = o_ref.shape[-1]

        # ---- conv1 (implicit channel concat over x_refs) + shift + LeakyReLU
        acc = jnp.zeros((HWp, Cout), jnp.float32)
        for x_ref, w_ref in zip(x_refs, w1_refs):
            for kh in range(3):
                for kw in range(3):
                    patch = x_ref[0, pl.ds(kh * Wp + kw, HWp), :]
                    acc = acc + jnp.dot(patch, w_ref[kh, kw],
                                        preferred_element_type=jnp.float32)
        y1 = acc + b1_ref[...]                      # folded-BN shift
        y1 = jnp.maximum(y1, 0.01 * y1)             # LeakyReLU (slope 0.01)
        y1 = y1 * mask_ref[...]                     # zero wrap-around columns

        # ---- place y1 into a zero halo-slab kept entirely in VMEM ----
        slab_ref[...] = jnp.zeros_like(slab_ref)
        slab_ref[pl.ds(S, HWp), :] = y1             # S is a multiple of 8

        # ---- conv2 + shift + LeakyReLU ----
        acc2 = jnp.zeros((HWp, Cout), jnp.float32)
        for kh in range(3):
            for kw in range(3):
                patch = slab_ref[pl.ds(kh * Wp + kw + delta, HWp), :]
                acc2 = acc2 + jnp.dot(patch, w2_ref[kh, kw],
                                      preferred_element_type=jnp.float32)
        y2 = acc2 + b2_ref[...]
        y2 = jnp.maximum(y2, 0.01 * y2)
        o_ref[0] = y2.astype(o_ref.dtype)

    return kernel


def _pad_flatten(x_nhwc, extra_top=0, extra_bottom=0, extra_left=0, extra_right=0):
    """Pad NHWC by the 3x3 halo (+1 spare bottom row for the slab trick) plus
    any extra size-matching padding, then flatten the spatial dims."""
    N = x_nhwc.shape[0]
    xp = jnp.pad(x_nhwc, ((0, 0),
                          (1 + extra_top, 2 + extra_bottom),
                          (1 + extra_left, 1 + extra_right),
                          (0, 0)))
    Hp, Wp = xp.shape[1], xp.shape[2]
    return xp.reshape(N, Hp * Wp, x_nhwc.shape[-1])


def fused_double_conv(x_flat_list, w1_list, shift1, w2, shift2, H, W):
    """x_flat_list[i]: (N, (H+3)*(W+2), C_i)   w1_list[i]: (3,3,C_i,Cout)
       w2: (3,3,Cout,Cout)   shift*: (Cout,).   Returns (N, H, W, Cout)."""
    N = x_flat_list[0].shape[0]
    Cout = w2.shape[-1]
    Wp = W + 2
    HpWp = (H + 3) * Wp
    HWp = H * Wp
    n_in = len(x_flat_list)

    # sublane-aligned offset of the conv1 result inside the VMEM slab
    S = _round_up(Wp + 1, 8)
    slab_len = S + (H + 2) * Wp                  # covers max conv2 tap offset

    # zero-mask for the 2 wrap-around columns of every wide conv1 row
    mask = (jnp.arange(HWp) % Wp < W).astype(jnp.float32).reshape(HWp, 1)

    in_specs = (
        [pl.BlockSpec((1, HpWp, x.shape[-1]), lambda n: (n, 0, 0))
         for x in x_flat_list]
        + [pl.BlockSpec((HWp, 1), lambda n: (0, 0))]
        + [pl.BlockSpec(w.shape, lambda n: (0, 0, 0, 0)) for w in w1_list]
        + [pl.BlockSpec((1, Cout), lambda n: (0, 0))]
        + [pl.BlockSpec(w2.shape, lambda n: (0, 0, 0, 0))]
        + [pl.BlockSpec((1, Cout), lambda n: (0, 0))]
    )

    y_wide = pl.pallas_call(
        _make_double_conv_kernel(n_in, H, W, S),
        out_shape=jax.ShapeDtypeStruct((N, HWp, Cout), jnp.float32),
        grid=(N,),
        in_specs=in_specs,
        out_specs=pl.BlockSpec((1, HWp, Cout), lambda n: (n, 0, 0)),
        scratch_shapes=[pltpu.VMEM((slab_len, Cout), jnp.float32)],
        compiler_params=pltpu.CompilerParams(
            dimension_semantics=("parallel",)),
    )(*x_flat_list, mask, *w1_list, shift1.reshape(1, Cout),
      w2, shift2.reshape(1, Cout))

    # drop the 2 contaminated columns per row (fuses with the final transpose)
    return y_wide.reshape(N, H, Wp, Cout)[:, :, :W, :]


# ----------------------------------------------------------------------------
# Parameter setup (deterministic, mirrors the PyTorch module's shapes).
# ----------------------------------------------------------------------------
def _bn_fold(gamma, beta, rmean, rvar, eps=1e-5):
    scale = gamma / jnp.sqrt(rvar + eps)
    shift = beta - rmean * scale
    return scale, shift


def init_up_params(key, in_channels, out_channels):
    ks = jax.random.split(key, 12)
    c_half = in_channels // 2
    p = {
        # ConvTranspose2d(in, in//2, 2, 2): weight (Cin, Cout, 2, 2), bias (Cout,)
        "w_up": 0.1 * jax.random.normal(ks[0], (in_channels, c_half, 2, 2), jnp.float32),
        "b_up": 0.1 * jax.random.normal(ks[1], (c_half,), jnp.float32),
        # Conv2d(in, out, 3, pad=1, bias=False): PyTorch (Cout, Cin, 3, 3)
        "w1": 0.1 * jax.random.normal(ks[2], (out_channels, in_channels, 3, 3), jnp.float32),
        "bn1_gamma": jax.random.uniform(ks[3], (out_channels,), jnp.float32, 0.5, 1.5),
        "bn1_beta": 0.1 * jax.random.normal(ks[4], (out_channels,), jnp.float32),
        "bn1_mean": 0.1 * jax.random.normal(ks[5], (out_channels,), jnp.float32),
        "bn1_var": jax.random.uniform(ks[6], (out_channels,), jnp.float32, 0.5, 1.5),
        # Conv2d(out, out, 3, pad=1, bias=False)
        "w2": 0.1 * jax.random.normal(ks[7], (out_channels, out_channels, 3, 3), jnp.float32),
        "bn2_gamma": jax.random.uniform(ks[8], (out_channels,), jnp.float32, 0.5, 1.5),
        "bn2_beta": 0.1 * jax.random.normal(ks[9], (out_channels,), jnp.float32),
        "bn2_mean": 0.1 * jax.random.normal(ks[10], (out_channels,), jnp.float32),
        "bn2_var": jax.random.uniform(ks[11], (out_channels,), jnp.float32, 0.5, 1.5),
    }
    return p


# ----------------------------------------------------------------------------
# Full Up.forward — Pallas path.
# ----------------------------------------------------------------------------
@jax.jit
def up_forward_pallas(x1_nchw, x2_nchw, p):
    x1 = jnp.transpose(x1_nchw, (0, 2, 3, 1))       # NCHW -> NHWC
    x2 = jnp.transpose(x2_nchw, (0, 2, 3, 1))

    # 1) transposed conv upsample (tiled matmul kernel)
    x1u = conv_transpose_2x2(x1, p["w_up"], p["b_up"])     # (N, 2H1, 2W1, C2)

    N, H2, W2, C2 = x2.shape
    # 2) "pad to match x2" is folded into the conv halo padding below.
    # TODO(synk): assumes x2 is spatially >= upsampled x1 (diff >= 0), as in UNet.
    dy = H2 - x1u.shape[1]
    dx = W2 - x1u.shape[2]
    x1u_f = _pad_flatten(x1u, extra_top=dy // 2, extra_bottom=dy - dy // 2,
                         extra_left=dx // 2, extra_right=dx - dx // 2)
    x2_f = _pad_flatten(x2)

    # 3)+4) channel concat [x2, x1u] is implicit: the fused kernel takes both
    #        inputs and the weight split along the input-channel axis; the two
    #        conv+BN+LeakyReLU layers run back-to-back with the intermediate
    #        kept in VMEM.
    s1, b1 = _bn_fold(p["bn1_gamma"], p["bn1_beta"], p["bn1_mean"], p["bn1_var"])
    w1 = jnp.transpose(p["w1"], (2, 3, 1, 0)) * s1          # OIHW -> HWIO, BN folded
    w1_a = w1[:, :, :C2, :]                                  # x2 channels
    w1_b = w1[:, :, C2:, :]                                  # upsampled x1 channels

    s2, b2 = _bn_fold(p["bn2_gamma"], p["bn2_beta"], p["bn2_mean"], p["bn2_var"])
    w2 = jnp.transpose(p["w2"], (2, 3, 1, 0)) * s2

    y = fused_double_conv([x2_f, x1u_f], [w1_a, w1_b], b1, w2, b2, H2, W2)

    return jnp.transpose(y, (0, 3, 1, 2))            # NHWC -> NCHW


# ----------------------------------------------------------------------------
# Pure-JAX reference (for a correctness spot-check).
# ----------------------------------------------------------------------------
def up_forward_ref(x1_nchw, x2_nchw, p):
    x1 = jnp.transpose(x1_nchw, (0, 2, 3, 1))
    x2 = jnp.transpose(x2_nchw, (0, 2, 3, 1))
    N, H, W, _ = x1.shape
    Co = p["w_up"].shape[1]
    up = jnp.einsum("nhwc,cokl->nhkwlo", x1, p["w_up"]).reshape(N, 2 * H, 2 * W, Co)
    up = up + p["b_up"]
    dy = x2.shape[1] - up.shape[1]
    dx = x2.shape[2] - up.shape[2]
    up = jnp.pad(up, ((0, 0), (dy // 2, dy - dy // 2), (dx // 2, dx - dx // 2), (0, 0)))
    x = jnp.concatenate([x2, up], axis=-1)

    def block(x, w_oihw, g, b, m, v):
        w = jnp.transpose(w_oihw, (2, 3, 1, 0))
        y = lax.conv_general_dilated(x, w, (1, 1), "SAME",
                                     dimension_numbers=("NHWC", "HWIO", "NHWC"))
        s, sh = _bn_fold(g, b, m, v)
        y = y * s + sh
        return jnp.where(y >= 0, y, 0.01 * y)

    x = block(x, p["w1"], p["bn1_gamma"], p["bn1_beta"], p["bn1_mean"], p["bn1_var"])
    x = block(x, p["w2"], p["bn2_gamma"], p["bn2_beta"], p["bn2_mean"], p["bn2_var"])
    return jnp.transpose(x, (0, 3, 1, 2))


if __name__ == "__main__":
    key = jax.random.PRNGKey(0)
    k_p, k_x1, k_x2 = jax.random.split(key, 3)

    in_channels, out_channels = 8, 4
    N, H1, W1 = 2, 8, 8                              # x1 (low-res feature map)
    H2, W2 = 2 * H1, 2 * W1                          # x2 (skip connection)

    params = init_up_params(k_p, in_channels, out_channels)
    x1 = jax.random.normal(k_x1, (N, in_channels, H1, W1), jnp.float32)        # NCHW
    x2 = jax.random.normal(k_x2, (N, in_channels // 2, H2, W2), jnp.float32)   # NCHW

    out = up_forward_pallas(x1, x2, params)
    out = jax.block_until_ready(out)

    ref = jax.block_until_ready(up_forward_ref(x1, x2, params))
    assert out.shape == (N, out_channels, H2, W2), out.shape
    np.testing.assert_allclose(np.asarray(out), np.asarray(ref), rtol=1e-4, atol=1e-4)

    print("KERNEL_OK")
</pallas_src>

<mosaic_0001>
module attributes {stable_mosaic.version = 11 : i64} {
  func.func @_matmul_bias_kernel(%arg0: i32, %arg1: memref<128x8xf32, #tpu.memory_space<vmem>>, %arg2: memref<8x16xf32, #tpu.memory_space<vmem>>, %arg3: memref<1x16xf32, #tpu.memory_space<vmem>>, %arg4: memref<128x16xf32, #tpu.memory_space<vmem>>) attributes {dimension_semantics = [#tpu.dimension_semantics<parallel>], iteration_bounds = array<i64: 1>, scalar_prefetch = 0 : i64, scratch_operands = 0 : i64, tpu.core_type = #tpu.core_type<tc>, window_params = [{transform_indices = @transform_0, window_bounds = array<i64: 128, 8>}, {pipeline_mode = #tpu.pipeline_mode<synchronous>, transform_indices = @transform_1, window_bounds = array<i64: 8, 16>}, {pipeline_mode = #tpu.pipeline_mode<synchronous>, transform_indices = @transform_2, window_bounds = array<i64: 1, 16>}, {transform_indices = @transform_3, window_bounds = array<i64: 128, 16>}]} {
    %c0 = arith.constant 0 : index
    %c0_0 = arith.constant 0 : index
    %0 = vector.load %arg1[%c0, %c0_0] : memref<128x8xf32, #tpu.memory_space<vmem>>, vector<128x8xf32>
    %c0_1 = arith.constant 0 : index
    %c0_2 = arith.constant 0 : index
    %1 = vector.load %arg2[%c0_1, %c0_2] : memref<8x16xf32, #tpu.memory_space<vmem>>, vector<8x16xf32>
    %cst = arith.constant dense<0.000000e+00> : vector<128x16xf32>
    %2 = tpu.matmul %0, %1, %cst {dimension_numbers = #tpu.dot_dimension_numbers<[1], [0], [0], [1], [0, 0, 1, 1], [], []>} : vector<128x8xf32>, vector<8x16xf32>, vector<128x16xf32> -> vector<128x16xf32>
    %c0_3 = arith.constant 0 : index
    %c0_4 = arith.constant 0 : index
    %3 = vector.load %arg3[%c0_3, %c0_4] : memref<1x16xf32, #tpu.memory_space<vmem>>, vector<1x16xf32>
    %4 = vector.broadcast %3 : vector<1x16xf32> to vector<128x16xf32>
    %5 = arith.addf %2, %4 : vector<128x16xf32>
    %c0_5 = arith.constant 0 : index
    %c0_6 = arith.constant 0 : index
    %6 = vector.load %arg4[%c0_5, %c0_6] : memref<128x16xf32, #tpu.memory_space<vmem>>, vector<128x16xf32>
    tpu.vector_store %arg4[%c0_5, %c0_6], %5 {strides = array<i32>} : memref<128x16xf32, #tpu.memory_space<vmem>>, vector<128x16xf32>,
    return
  }
  func.func @transform_0(%arg0: i32) -> (i32, i32) {
    %c0_i32 = arith.constant 0 : i32
    %c0_i32_0 = arith.constant 0 : i32
    return %arg0, %c0_i32 : i32, i32
  }
  func.func @transform_1(%arg0: i32) -> (i32, i32) {
    %c0_i32 = arith.constant 0 : i32
    %c0_i32_0 = arith.constant 0 : i32
    %c0_i32_1 = arith.constant 0 : i32
    return %c0_i32, %c0_i32_0 : i32, i32
  }
  func.func @transform_2(%arg0: i32) -> (i32, i32) {
    %c0_i32 = arith.constant 0 : i32
    %c0_i32_0 = arith.constant 0 : i32
    %c0_i32_1 = arith.constant 0 : i32
    return %c0_i32, %c0_i32_0 : i32, i32
  }
  func.func @transform_3(%arg0: i32) -> (i32, i32) {
    %c0_i32 = arith.constant 0 : i32
    %c0_i32_0 = arith.constant 0 : i32
    return %arg0, %c0_i32 : i32, i32
  }
}

module attributes {stable_mosaic.version = 11 : i64} {
  func.func @kernel(%arg0: i32, %arg1: memref<1x342x4xf32, #tpu.memory_space<vmem>>, %arg2: memref<1x342x4xf32, #tpu.memory_space<vmem>>, %arg3: memref<288x1xf32, #tpu.memory_space<vmem>>, %arg4: memref<3x3x4x4xf32, #tpu.memory_space<vmem>>, %arg5: memref<3x3x4x4xf32, #tpu.memory_space<vmem>>, %arg6: memref<1x4xf32, #tpu.memory_space<vmem>>, %arg7: memref<3x3x4x4xf32, #tpu.memory_space<vmem>>, %arg8: memref<1x4xf32, #tpu.memory_space<vmem>>, %arg9: memref<1x288x4xf32, #tpu.memory_space<vmem>>, %arg10: memref<348x4xf32, #tpu.memory_space<vmem>>) attributes {dimension_semantics = [#tpu.dimension_semantics<parallel>], iteration_bounds = array<i64: 2>, scalar_prefetch = 0 : i64, scratch_operands = 1 : i64, tpu.core_type = #tpu.core_type<tc>, window_params = [{transform_indices = @transform_0, window_bounds = array<i64: 1, 342, 4>}, {transform_indices = @transform_1, window_bounds = array<i64: 1, 342, 4>}, {pipeline_mode = #tpu.pipeline_mode<synchronous>, transform_indices = @transform_2, window_bounds = array<i64: 288, 1>}, {pipeline_mode = #tpu.pipeline_mode<synchronous>, transform_indices = @transform_3, window_bounds = array<i64: 3, 3, 4, 4>}, {pipeline_mode = #tpu.pipeline_mode<synchronous>, transform_indices = @transform_4, window_bounds = array<i64: 3, 3, 4, 4>}, {pipeline_mode = #tpu.pipeline_mode<synchronous>, transform_indices = @transform_5, window_bounds = array<i64: 1, 4>}, {pipeline_mode = #tpu.pipeline_mode<synchronous>, transform_indices = @transform_6, window_bounds = array<i64: 3, 3, 4, 4>}, {pipeline_mode = #tpu.pipeline_mode<synchronous>, transform_indices = @transform_7, window_bounds = array<i64: 1, 4>}, {transform_indices = @transform_8, window_bounds = array<i64: 1, 288, 4>}]} {
    %cst = arith.constant 0.000000e+00 : f32
    %0 = vector.broadcast %cst : f32 to vector<288x4xf32>
    %c0 = arith.constant 0 : index
    %c0_0 = arith.constant 0 : index
    %c0_1 = arith.constant 0 : index
    %1 = vector.load %arg1[%c0, %c0_0, %c0_1] : memref<1x342x4xf32, #tpu.memory_space<vmem>>, vector<1x288x4xf32>
    %2 = vector.shape_cast %1 : vector<1x288x4xf32> to vector<288x4xf32>
    %c0_2 = arith.constant 0 : index
    %c0_3 = arith.constant 0 : index
    %c0_4 = arith.constant 0 : index
    %c0_5 = arith.constant 0 : index
    %3 = vector.load %arg4[%c0_2, %c0_3, %c0_4, %c0_5] : memref<3x3x4x4xf32, #tpu.memory_space<vmem>>, vector<1x1x4x4xf32>
    %4 = vector.shape_cast %3 : vector<1x1x4x4xf32> to vector<4x4xf32>
    %cst_6 = arith.constant dense<0.000000e+00> : vector<288x4xf32>
    %5 = tpu.matmul %2, %4, %cst_6 {dimension_numbers = #tpu.dot_dimension_numbers<[1], [0], [0], [1], [0, 0, 1, 1], [], []>} : vector<288x4xf32>, vector<4x4xf32>, vector<288x4xf32> -> vector<288x4xf32>
    %6 = arith.addf %0, %5 : vector<288x4xf32>
    %c0_7 = arith.constant 0 : index
    %c1 = arith.constant 1 : index
    %c0_8 = arith.constant 0 : index
    %7 = vector.load %arg1[%c0_7, %c1, %c0_8] : memref<1x342x4xf32, #tpu.memory_space<vmem>>, vector<1x288x4xf32>
    %8 = vector.shape_cast %7 : vector<1x288x4xf32> to vector<288x4xf32>
    %c0_9 = arith.constant 0 : index
    %c1_10 = arith.constant 1 : index
    %c0_11 = arith.constant 0 : index
    %c0_12 = arith.constant 0 : index
    %9 = vector.load %arg4[%c0_9, %c1_10, %c0_11, %c0_12] : memref<3x3x4x4xf32, #tpu.memory_space<vmem>>, vector<1x1x4x4xf32>
    %10 = vector.shape_cast %9 : vector<1x1x4x4xf32> to vector<4x4xf32>
    %cst_13 = arith.constant dense<0.000000e+00> : vector<288x4xf32>
    %11 = tpu.matmul %8, %10, %cst_13 {dimension_numbers = #tpu.dot_dimension_numbers<[1], [0], [0], [1], [0, 0, 1, 1], [], []>} : vector<288x4xf32>, vector<4x4xf32>, vector<288x4xf32> -> vector<288x4xf32>
    %12 = arith.addf %6, %11 : vector<288x4xf32>
    %c0_14 = arith.constant 0 : index
    %c2 = arith.constant 2 : index
    %c0_15 = arith.constant 0 : index
    %13 = vector.load %arg1[%c0_14, %c2, %c0_15] : memref<1x342x4xf32, #tpu.memory_space<vmem>>, vector<1x288x4xf32>
    %14 = vector.shape_cast %13 : vector<1x288x4xf32> to vector<288x4xf32>
    %c0_16 = arith.constant 0 : index
    %c2_17 = arith.constant 2 : index
    %c0_18 = arith.constant 0 : index
    %c0_19 = arith.constant 0 : index
    %15 = vector.load %arg4[%c0_16, %c2_17, %c0_18, %c0_19] : memref<3x3x4x4xf32, #tpu.memory_space<vmem>>, vector<1x1x4x4xf32>
    %16 = vector.shape_cast %15 : vector<1x1x4x4xf32> to vector<4x4xf32>
    %cst_20 = arith.constant dense<0.000000e+00> : vector<288x4xf32>
    %17 = tpu.matmul %14, %16, %cst_20 {dimension_numbers = #tpu.dot_dimension_numbers<[1], [0], [0], [1], [0, 0, 1, 1], [], []>} : vector<288x4xf32>, vector<4x4xf32>, vector<288x4xf32> -> vector<288x4xf32>
    %18 = arith.addf %12, %17 : vector<288x4xf32>
    %c0_21 = arith.constant 0 : index
    %c18 = arith.constant 18 : index
    %c0_22 = arith.constant 0 : index
    %19 = vector.load %arg1[%c0_21, %c18, %c0_22] : memref<1x342x4xf32, #tpu.memory_space<vmem>>, vector<1x288x4xf32>
    %20 = vector.shape_cast %19 : vector<1x288x4xf32> to vector<288x4xf32>
    %c1_23 = arith.constant 1 : index
    %c0_24 = arith.constant 0 : index
    %c0_25 = arith.constant 0 : index
    %c0_26 = arith.constant 0 : index
    %21 = vector.load %arg4[%c1_23, %c0_24, %c0_25, %c0_26] : memref<3x3x4x4xf32, #tpu.memory_space<vmem>>, vector<1x1x4x4xf32>
    %22 = vector.shape_cast %21 : vector<1x1x4x4xf32> to vector<4x4xf32>
    %cst_27 = arith.constant dense<0.000000e+00> : vector<288x4xf32>
    %23 = tpu.matmul %20, %22, %cst_27 {dimension_numbers = #tpu.dot_dimension_numbers<[1], [0], [0], [1], [0, 0, 1, 1], [], []>} : vector<288x4xf32>, vector<4x4xf32>, vector<288x4xf32> -> vector<288x4xf32>
    %24 = arith.addf %18, %23 : vector<288x4xf32>
    %c0_28 = arith.constant 0 : index
    %c19 = arith.constant 19 : index
    %c0_29 = arith.constant 0 : index
    %25 = vector.load %arg1[%c0_28, %c19, %c0_29] : memref<1x342x4xf32, #tpu.memory_space<vmem>>, vector<1x288x4xf32>
    %26 = vector.shape_cast %25 : vector<1x288x4xf32> to vector<288x4xf32>
    %c1_30 = arith.constant 1 : index
    %c1_31 = arith.constant 1 : index
    %c0_32 = arith.constant 0 : index
    %c0_33 = arith.constant 0 : index
    %27 = vector.load %arg4[%c1_30, %c1_31, %c0_32, %c0_33] : memref<3x3x4x4xf32, #tpu.memory_space<vmem>>, vector<1x1x4x4xf32>
    %28 = vector.shape_cast %27 : vector<1x1x4x4xf32> to vector<4x4xf32>
    %cst_34 = arith.constant dense<0.000000e+00> : vector<288x4xf32>
    %29 = tpu.matmul %26, %28, %cst_34 {dimension_numbers = #tpu.dot_dimension_numbers<[1], [0], [0], [1], [0, 0, 1, 1], [], []>} : vector<288x4xf32>, vector<4x4xf32>, vector<288x4xf32> -> vector<288x4xf32>
    %30 = arith.addf %24, %29 : vector<288x4xf32>
    %c0_35 = arith.constant 0 : index
    %c20 = arith.constant 20 : index
    %c0_36 = arith.constant 0 : index
    %31 = vector.load %arg1[%c0_35, %c20, %c0_36] : memref<1x342x4xf32, #tpu.memory_space<vmem>>, vector<1x288x4xf32>
    %32 = vector.shape_cast %31 : vector<1x288x4xf32> to vector<288x4xf32>
    %c1_37 = arith.constant 1 : index
    %c2_38 = arith.constant 2 : index
    %c0_39 = arith.constant 0 : index
    %c0_40 = arith.constant 0 : index
    %33 = vector.load %arg4[%c1_37, %c2_38, %c0_39, %c0_40] : memref<3x3x4x4xf32, #tpu.memory_space<vmem>>, vector<1x1x4x4xf32>
    %34 = vector.shape_cast %33 : vector<1x1x4x4xf32> to vector<4x4xf32>
    %cst_41 = arith.constant dense<0.000000e+00> : vector<288x4xf32>
    %35 = tpu.matmul %32, %34, %cst_41 {dimension_numbers = #tpu.dot_dimension_numbers<[1], [0], [0], [1], [0, 0, 1, 1], [], []>} : vector<288x4xf32>, vector<4x4xf32>, vector<288x4xf32> -> vector<288x4xf32>
    %36 = arith.addf %30, %35 : vector<288x4xf32>
    %c0_42 = arith.constant 0 : index
    %c36 = arith.constant 36 : index
    %c0_43 = arith.constant 0 : index
    %37 = vector.load %arg1[%c0_42, %c36, %c0_43] : memref<1x342x4xf32, #tpu.memory_space<vmem>>, vector<1x288x4xf32>
    %38 = vector.shape_cast %37 : vector<1x288x4xf32> to vector<288x4xf32>
    %c2_44 = arith.constant 2 : index
    %c0_45 = arith.constant 0 : index
    %c0_46 = arith.constant 0 : index
    %c0_47 = arith.constant 0 : index
    %39 = vector.load %arg4[%c2_44, %c0_45, %c0_46, %c0_47] : memref<3x3x4x4xf32, #tpu.memory_space<vmem>>, vector<1x1x4x4xf32>
    %40 = vector.shape_cast %39 : vector<1x1x4x4xf32> to vector<4x4xf32>
    %cst_48 = arith.constant dense<0.000000e+00> : vector<288x4xf32>
    %41 = tpu.matmul %38, %40, %cst_48 {dimension_numbers = #tpu.dot_dimension_numbers<[1], [0], [0], [1], [0, 0, 1, 1], [], []>} : vector<288x4xf32>, vector<4x4xf32>, vector<288x4xf32> -> vector<288x4xf32>
    %42 = arith.addf %36, %41 : vector<288x4xf32>
    %c0_49 = arith.constant 0 : index
    %c37 = arith.constant 37 : index
    %c0_50 = arith.constant 0 : index
    %43 = vector.load %arg1[%c0_49, %c37, %c0_50] : memref<1x342x4xf32, #tpu.memory_space<vmem>>, vector<1x288x4xf32>
    %44 = vector.shape_cast %43 : vector<1x288x4xf32> to vector<288x4xf32>
    %c2_51 = arith.constant 2 : index
    %c1_52 = arith.constant 1 : index
    %c0_53 = arith.constant 0 : index
    %c0_54 = arith.constant 0 : index
    %45 = vector.load %arg4[%c2_51, %c1_52, %c0_53, %c0_54] : memref<3x3x4x4xf32, #tpu.memory_space<vmem>>, vector<1x1x4x4xf32>
    %46 = vector.shape_cast %45 : vector<1x1x4x4xf32> to vector<4x4xf32>
    %cst_55 = arith.constant dense<0.000000e+00> : vector<288x4xf32>
    %47 = tpu.matmul %44, %46, %cst_55 {dimension_numbers = #tpu.dot_dimension_numbers<[1], [0], [0], [1], [0, 0, 1, 1], [], []>} : vector<288x4xf32>, vector<4x4xf32>, vector<288x4xf32> -> vector<288x4xf32>
    %48 = arith.addf %42, %47 : vector<288x4xf32>
    %c0_56 = arith.constant 0 : index
    %c38 = arith.constant 38 : index
    %c0_57 = arith.constant 0 : index
    %49 = vector.load %arg1[%c0_56, %c38, %c0_57] : memref<1x342x4xf32, #tpu.memory_space<vmem>>, vector<1x288x4xf32>
    %50 = vector.shape_cast %49 : vector<1x288x4xf32> to vector<288x4xf32>
    %c2_58 = arith.constant 2 : index
    %c2_59 = arith.constant 2 : index
    %c0_60 = arith.constant 0 : index
    %c0_61 = arith.constant 0 : index
    %51 = vector.load %arg4[%c2_58, %c2_59, %c0_60, %c0_61] : memref<3x3x4x4xf32, #tpu.memory_space<vmem>>, vector<1x1x4x4xf32>
    %52 = vector.shape_cast %51 : vector<1x1x4x4xf32> to vector<4x4xf32>
    %cst_62 = arith.constant dense<0.000000e+00> : vector<288x4xf32>
    %53 = tpu.matmul %50, %52, %cst_62 {dimension_numbers = #tpu.dot_dimension_numbers<[1], [0], [0], [1], [0, 0, 1, 1], [], []>} : vector<288x4xf32>, vector<4x4xf32>, vector<288x4xf32> -> vector<288x4xf32>
    %54 = arith.addf %48, %53 : vector<288x4xf32>
    %c0_63 = arith.constant 0 : index
    %c0_64 = arith.constant 0 : index
    %c0_65 = arith.constant 0 : index
    %55 = vector.load %arg2[%c0_63, %c0_64, %c0_65] : memref<1x342x4xf32, #tpu.memory_space<vmem>>, vector<1x288x4xf32>
    %56 = vector.shape_cast %55 : vector<1x288x4xf32> to vector<288x4xf32>
    %c0_66 = arith.constant 0 : index
    %c0_67 = arith.constant 0 : index
    %c0_68 = arith.constant 0 : index
    %c0_69 = arith.constant 0 : index
    %57 = vector.load %arg5[%c0_66, %c0_67, %c0_68, %c0_69] : memref<3x3x4x4xf32, #tpu.memory_space<vmem>>, vector<1x1x4x4xf32>
    %58 = vector.shape_cast %57 : vector<1x1x4x4xf32> to vector<4x4xf32>
    %cst_70 = arith.constant dense<0.000000e+00> : vector<288x4xf32>
    %59 = tpu.matmul %56, %58, %cst_70 {dimension_numbers = #tpu.dot_dimension_numbers<[1], [0], [0], [1], [0, 0, 1, 1], [], []>} : vector<288x4xf32>, vector<4x4xf32>, vector<288x4xf32> -> vector<288x4xf32>
    %60 = arith.addf %54, %59 : vector<288x4xf32>
    %c0_71 = arith.constant 0 : index
    %c1_72 = arith.constant 1 : index
    %c0_73 = arith.constant 0 : index
    %61 = vector.load %arg2[%c0_71, %c1_72, %c0_73] : memref<1x342x4xf32, #tpu.memory_space<vmem>>, vector<1x288x4xf32>
    %62 = vector.shape_cast %61 : vector<1x288x4xf32> to vector<288x4xf32>
    %c0_74 = arith.constant 0 : index
    %c1_75 = arith.constant 1 : index
    %c0_76 = arith.constant 0 : index
    %c0_77 = arith.constant 0 : index
    %63 = vector.load %arg5[%c0_74, %c1_75, %c0_76, %c0_77] : memref<3x3x4x4xf32, #tpu.memory_space<vmem>>, vector<1x1x4x4xf32>
    %64 = vector.shape_cast %63 : vector<1x1x4x4xf32> to vector<4x4xf32>
    %cst_78 = arith.constant dense<0.000000e+00> : vector<288x4xf32>
    %65 = tpu.matmul %62, %64, %cst_78 {dimension_numbers = #tpu.dot_dimension_numbers<[1], [0], [0], [1], [0, 0, 1, 1], [], []>} : vector<288x4xf32>, vector<4x4xf32>, vector<288x4xf32> -> vector<288x4xf32>
    %66 = arith.addf %60, %65 : vector<288x4xf32>
    %c0_79 = arith.constant 0 : index
    %c2_80 = arith.constant 2 : index
    %c0_81 = arith.constant 0 : index
    %67 = vector.load %arg2[%c0_79, %c2_80, %c0_81] : memref<1x342x4xf32, #tpu.memory_space<vmem>>, vector<1x288x4xf32>
    %68 = vector.shape_cast %67 : vector<1x288x4xf32> to vector<288x4xf32>
    %c0_82 = arith.constant 0 : index
    %c2_83 = arith.constant 2 : index
    %c0_84 = arith.constant 0 : index
    %c0_85 = arith.constant 0 : index
    %69 = vector.load %arg5[%c0_82, %c2_83, %c0_84, %c0_85] : memref<3x3x4x4xf32, #tpu.memory_space<vmem>>, vector<1x1x4x4xf32>
    %70 = vector.shape_cast %69 : vector<1x1x4x4xf32> to vector<4x4xf32>
    %cst_86 = arith.constant dense<0.000000e+00> : vector<288x4xf32>
    %71 = tpu.matmul %68, %70, %cst_86 {dimension_numbers = #tpu.dot_dimension_numbers<[1], [0], [0], [1], [0, 0, 1, 1], [], []>} : vector<288x4xf32>, vector<4x4xf32>, vector<288x4xf32> -> vector<288x4xf32>
    %72 = arith.addf %66, %71 : vector<288x4xf32>
    %c0_87 = arith.constant 0 : index
    %c18_88 = arith.constant 18 : index
    %c0_89 = arith.constant 0 : index
    %73 = vector.load %arg2[%c0_87, %c18_88, %c0_89] : memref<1x342x4xf32, #tpu.memory_space<vmem>>, vector<1x288x4xf32>
    %74 = vector.shape_cast %73 : vector<1x288x4xf32> to vector<288x4xf32>
    %c1_90 = arith.constant 1 : index
    %c0_91 = arith.constant 0 : index
    %c0_92 = arith.constant 0 : index
    %c0_93 = arith.constant 0 : index
    %75 = vector.load %arg5[%c1_90, %c0_91, %c0_92, %c0_93] : memref<3x3x4x4xf32, #tpu.memory_space<vmem>>, vector<1x1x4x4xf32>
    %76 = vector.shape_cast %75 : vector<1x1x4x4xf32> to vector<4x4xf32>
    %cst_94 = arith.constant dense<0.000000e+00> : vector<288x4xf32>
    %77 = tpu.matmul %74, %76, %cst_94 {dimension_numbers = #tpu.dot_dimension_numbers<[1], [0], [0], [1], [0, 0, 1, 1], [], []>} : vector<288x4xf32>, vector<4x4xf32>, vector<288x4xf32> -> vector<288x4xf32>
    %78 = arith.addf %72, %77 : vector<288x4xf32>
    %c0_95 = arith.constant 0 : index
    %c19_96 = arith.constant 19 : index
    %c0_97 = arith.constant 0 : index
    %79 = vector.load %arg2[%c0_95, %c19_96, %c0_97] : memref<1x342x4xf32, #tpu.memory_space<vmem>>, vector<1x288x4xf32>
    %80 = vector.shape_cast %79 : vector<1x288x4xf32> to vector<288x4xf32>
    %c1_98 = arith.constant 1 : index
    %c1_99 = arith.constant 1 : index
    %c0_100 = arith.constant 0 : index
    %c0_101 = arith.constant 0 : index
    %81 = vector.load %arg5[%c1_98, %c1_99, %c0_100, %c0_101] : memref<3x3x4x4xf32, #tpu.memory_space<vmem>>, vector<1x1x4x4xf32>
    %82 = vector.shape_cast %81 : vector<1x1x4x4xf32> to vector<4x4xf32>
    %cst_102 = arith.constant dense<0.000000e+00> : vector<288x4xf32>
    %83 = tpu.matmul %80, %82, %cst_102 {dimension_numbers = #tpu.dot_dimension_numbers<[1], [0], [0], [1], [0, 0, 1, 1], [], []>} : vector<288x4xf32>, vector<4x4xf32>, vector<288x4xf32> -> vector<288x4xf32>
    %84 = arith.addf %78, %83 : vector<288x4xf32>
    %c0_103 = arith.constant 0 : index
    %c20_104 = arith.constant 20 : index
    %c0_105 = arith.constant 0 : index
    %85 = vector.load %arg2[%c0_103, %c20_104, %c0_105] : memref<1x342x4xf32, #tpu.memory_space<vmem>>, vector<1x288x4xf32>
    %86 = vector.shape_cast %85 : vector<1x288x4xf32> to vector<288x4xf32>
    %c1_106 = arith.constant 1 : index
    %c2_107 = arith.constant 2 : index
    %c0_108 = arith.constant 0 : index
    %c0_109 = arith.constant 0 : index
    %87 = vector.load %arg5[%c1_106, %c2_107, %c0_108, %c0_109] : memref<3x3x4x4xf32, #tpu.memory_space<vmem>>, vector<1x1x4x4xf32>
    %88 = vector.shape_cast %87 : vector<1x1x4x4xf32> to vector<4x4xf32>
    %cst_110 = arith.constant dense<0.000000e+00> : vector<288x4xf32>
    %89 = tpu.matmul %86, %88, %cst_110 {dimension_numbers = #tpu.dot_dimension_numbers<[1], [0], [0], [1], [0, 0, 1, 1], [], []>} : vector<288x4xf32>, vector<4x4xf32>, vector<288x4xf32> -> vector<288x4xf32>
    %90 = arith.addf %84, %89 : vector<288x4xf32>
    %c0_111 = arith.constant 0 : index
    %c36_112 = arith.constant 36 : index
    %c0_113 = arith.constant 0 : index
    %91 = vector.load %arg2[%c0_111, %c36_112, %c0_113] : memref<1x342x4xf32, #tpu.memory_space<vmem>>, vector<1x288x4xf32>
    %92 = vector.shape_cast %91 : vector<1x288x4xf32> to vector<288x4xf32>
    %c2_114 = arith.constant 2 : index
    %c0_115 = arith.constant 0 : index
    %c0_116 = arith.constant 0 : index
    %c0_117 = arith.constant 0 : index
    %93 = vector.load %arg5[%c2_114, %c0_115, %c0_116, %c0_117] : memref<3x3x4x4xf32, #tpu.memory_space<vmem>>, vector<1x1x4x4xf32>
    %94 = vector.shape_cast %93 : vector<1x1x4x4xf32> to vector<4x4xf32>
    %cst_118 = arith.constant dense<0.000000e+00> : vector<288x4xf32>
    %95 = tpu.matmul %92, %94, %cst_118 {dimension_numbers = #tpu.dot_dimension_numbers<[1], [0], [0], [1], [0, 0, 1, 1], [], []>} : vector<288x4xf32>, vector<4x4xf32>, vector<288x4xf32> -> vector<288x4xf32>
    %96 = arith.addf %90, %95 : vector<288x4xf32>
    %c0_119 = arith.constant 0 : index
    %c37_120 = arith.constant 37 : index
    %c0_121 = arith.constant 0 : index
    %97 = vector.load %arg2[%c0_119, %c37_120, %c0_121] : memref<1x342x4xf32, #tpu.memory_space<vmem>>, vector<1x288x4xf32>
    %98 = vector.shape_cast %97 : vector<1x288x4xf32> to vector<288x4xf32>
    %c2_122 = arith.constant 2 : index
    %c1_123 = arith.constant 1 : index
    %c0_124 = arith.constant 0 : index
    %c0_125 = arith.constant 0 : index
    %99 = vector.load %arg5[%c2_122, %c1_123, %c0_124, %c0_125] : memref<3x3x4x4xf32, #tpu.memory_space<vmem>>, vector<1x1x4x4xf32>
    %100 = vector.shape_cast %99 : vector<1x1x4x4xf32> to vector<4x4xf32>
    %cst_126 = arith.constant dense<0.000000e+00> : vector<288x4xf32>
    %101 = tpu.matmul %98, %100, %cst_126 {dimension_numbers = #tpu.dot_dimension_numbers<[1], [0], [0], [1], [0, 0, 1, 1], [], []>} : vector<288x4xf32>, vector<4x4xf32>, vector<288x4xf32> -> vector<288x4xf32>
    %102 = arith.addf %96, %101 : vector<288x4xf32>
    %c0_127 = arith.constant 0 : index
    %c38_128 = arith.constant 38 : index
    %c0_129 = arith.constant 0 : index
    %103 = vector.load %arg2[%c0_127, %c38_128, %c0_129] : memref<1x342x4xf32, #tpu.memory_space<vmem>>, vector<1x288x4xf32>
    %104 = vector.shape_cast %103 : vector<1x288x4xf32> to vector<288x4xf32>
    %c2_130 = arith.constant 2 : index
    %c2_131 = arith.constant 2 : index
    %c0_132 = arith.constant 0 : index
    %c0_133 = arith.constant 0 : index
    %105 = vector.load %arg5[%c2_130, %c2_131, %c0_132, %c0_133] : memref<3x3x4x4xf32, #tpu.memory_space<vmem>>, vector<1x1x4x4xf32>
    %106 = vector.shape_cast %105 : vector<1x1x4x4xf32> to vector<4x4xf32>
    %cst_134 = arith.constant dense<0.000000e+00> : vector<288x4xf32>
    %107 = tpu.matmul %104, %106, %cst_134 {dimension_numbers = #tpu.dot_dimension_numbers<[1], [0], [0], [1], [0, 0, 1, 1], [], []>} : vector<288x4xf32>, vector<4x4xf32>, vector<288x4xf32> -> vector<288x4xf32>
    %108 = arith.addf %102, %107 : vector<288x4xf32>
    %c0_135 = arith.constant 0 : index
    %c0_136 = arith.constant 0 : index
    %109 = vector.load %arg6[%c0_135, %c0_136] : memref<1x4xf32, #tpu.memory_space<vmem>>, vector<1x4xf32>
    %110 = vector.broadcast %109 : vector<1x4xf32> to vector<288x4xf32>
    %111 = arith.addf %108, %110 : vector<288x4xf32>
    %cst_137 = arith.constant 0.00999999977 : f32
    %112 = vector.broadcast %cst_137 : f32 to vector<288x4xf32>
    %113 = arith.mulf %112, %111 : vector<288x4xf32>
    %114 = arith.maximumf %111, %113 : vector<288x4xf32>
    %c0_138 = arith.constant 0 : index
    %c0_139 = arith.constant 0 : index
    %115 = vector.load %arg3[%c0_138, %c0_139] : memref<288x1xf32, #tpu.memory_space<vmem>>, vector<288x1xf32>
    %116 = vector.broadcast %115 : vector<288x1xf32> to vector<288x4xf32>
    %117 = arith.mulf %114, %116 : vector<288x4xf32>
    %cst_140 = arith.constant 0.000000e+00 : f32
    %118 = vector.broadcast %cst_140 : f32 to vector<348x4xf32>
    %c0_141 = arith.constant 0 : index
    %c0_142 = arith.constant 0 : index
    %119 = vector.load %arg10[%c0_141, %c0_142] : memref<348x4xf32, #tpu.memory_space<vmem>>, vector<348x4xf32>
    tpu.vector_store %arg10[%c0_141, %c0_142], %118 {strides = array<i32>} : memref<348x4xf32, #tpu.memory_space<vmem>>, vector<348x4xf32>,
    %c24 = arith.constant 24 : index
    %c0_143 = arith.constant 0 : index
    %120 = vector.load %arg10[%c24, %c0_143] : memref<348x4xf32, #tpu.memory_space<vmem>>, vector<288x4xf32>
    tpu.vector_store %arg10[%c24, %c0_143], %117 {strides = array<i32>} : memref<348x4xf32, #tpu.memory_space<vmem>>, vector<288x4xf32>,
    %cst_144 = arith.constant 0.000000e+00 : f32
    %121 = vector.broadcast %cst_144 : f32 to vector<288x4xf32>
    %c5 = arith.constant 5 : index
    %c0_145 = arith.constant 0 : index
    %122 = vector.load %arg10[%c5, %c0_145] : memref<348x4xf32, #tpu.memory_space<vmem>>, vector<288x4xf32>
    %c0_146 = arith.constant 0 : index
    %c0_147 = arith.constant 0 : index
    %c0_148 = arith.constant 0 : index
    %c0_149 = arith.constant 0 : index
    %123 = vector.load %arg7[%c0_146, %c0_147, %c0_148, %c0_149] : memref<3x3x4x4xf32, #tpu.memory_space<vmem>>, vector<1x1x4x4xf32>
    %124 = vector.shape_cast %123 : vector<1x1x4x4xf32> to vector<4x4xf32>
    %cst_150 = arith.constant dense<0.000000e+00> : vector<288x4xf32>
    %125 = tpu.matmul %122, %124, %cst_150 {dimension_numbers = #tpu.dot_dimension_numbers<[1], [0], [0], [1], [0, 0, 1, 1], [], []>} : vector<288x4xf32>, vector<4x4xf32>, vector<288x4xf32> -> vector<288x4xf32>
    %126 = arith.addf %121, %125 : vector<288x4xf32>
    %c6 = arith.constant 6 : index
    %c0_151 = arith.constant 0 : index
    %127 = vector.load %arg10[%c6, %c0_151] : memref<348x4xf32, #tpu.memory_space<vmem>>, vector<288x4xf32>
    %c0_152 = arith.constant 0 : index
    %c1_153 = arith.constant 1 : index
    %c0_154 = arith.constant 0 : index
    %c0_155 = arith.constant 0 : index
    %128 = vector.load %arg7[%c0_152, %c1_153, %c0_154, %c0_155] : memref<3x3x4x4xf32, #tpu.memory_space<vmem>>, vector<1x1x4x4xf32>
    %129 = vector.shape_cast %128 : vector<1x1x4x4xf32> to vector<4x4xf32>
    %cst_156 = arith.constant dense<0.000000e+00> : vector<288x4xf32>
    %130 = tpu.matmul %127, %129, %cst_156 {dimension_numbers = #tpu.dot_dimension_numbers<[1], [0], [0], [1], [0, 0, 1, 1], [], []>} : vector<288x4xf32>, vector<4x4xf32>, vector<288x4xf32> -> vector<288x4xf32>
    %131 = arith.addf %126, %130 : vector<288x4xf32>
    %c7 = arith.constant 7 : index
    %c0_157 = arith.constant 0 : index
    %132 = vector.load %arg10[%c7, %c0_157] : memref<348x4xf32, #tpu.memory_space<vmem>>, vector<288x4xf32>
    %c0_158 = arith.constant 0 : index
    %c2_159 = arith.constant 2 : index
    %c0_160 = arith.constant 0 : index
    %c0_161 = arith.constant 0 : index
    %133 = vector.load %arg7[%c0_158, %c2_159, %c0_160, %c0_161] : memref<3x3x4x4xf32, #tpu.memory_space<vmem>>, vector<1x1x4x4xf32>
    %134 = vector.shape_cast %133 : vector<1x1x4x4xf32> to vector<4x4xf32>
    %cst_162 = arith.constant dense<0.000000e+00> : vector<288x4xf32>
    %135 = tpu.matmul %132, %134, %cst_162 {dimension_numbers = #tpu.dot_dimension_numbers<[1], [0], [0], [1], [0, 0, 1, 1], [], []>} : vector<288x4xf32>, vector<4x4xf32>, vector<288x4xf32> -> vector<288x4xf32>
    %136 = arith.addf %131, %135 : vector<288x4xf32>
    %c23 = arith.constant 23 : index
    %c0_163 = arith.constant 0 : index
    %137 = vector.load %arg10[%c23, %c0_163] : memref<348x4xf32, #tpu.memory_space<vmem>>, vector<288x4xf32>
    %c1_164 = arith.constant 1 : index
    %c0_165 = arith.constant 0 : index
    %c0_166 = arith.constant 0 : index
    %c0_167 = arith.constant 0 : index
    %138 = vector.load %arg7[%c1_164, %c0_165, %c0_166, %c0_167] : memref<3x3x4x4xf32, #tpu.memory_space<vmem>>, vector<1x1x4x4xf32>
    %139 = vector.shape_cast %138 : vector<1x1x4x4xf32> to vector<4x4xf32>
    %cst_168 = arith.constant dense<0.000000e+00> : vector<288x4xf32>
    %140 = tpu.matmul %137, %139, %cst_168 {dimension_numbers = #tpu.dot_dimension_numbers<[1], [0], [0], [1], [0, 0, 1, 1], [], []>} : vector<288x4xf32>, vector<4x4xf32>, vector<288x4xf32> -> vector<288x4xf32>
    %141 = arith.addf %136, %140 : vector<288x4xf32>
    %c24_169 = arith.constant 24 : index
    %c0_170 = arith.constant 0 : index
    %142 = vector.load %arg10[%c24_169, %c0_170] : memref<348x4xf32, #tpu.memory_space<vmem>>, vector<288x4xf32>
    %c1_171 = arith.constant 1 : index
    %c1_172 = arith.constant 1 : index
    %c0_173 = arith.constant 0 : index
    %c0_174 = arith.constant 0 : index
    %143 = vector.load %arg7[%c1_171, %c1_172, %c0_173, %c0_174] : memref<3x3x4x4xf32, #tpu.memory_space<vmem>>, vector<1x1x4x4xf32>
    %144 = vector.shape_cast %143 : vector<1x1x4x4xf32> to vector<4x4xf32>
    %cst_175 = arith.constant dense<0.000000e+00> : vector<288x4xf32>
    %145 = tpu.matmul %142, %144, %cst_175 {dimension_numbers = #tpu.dot_dimension_numbers<[1], [0], [0], [1], [0, 0, 1, 1], [], []>} : vector<288x4xf32>, vector<4x4xf32>, vector<288x4xf32> -> vector<288x4xf32>
    %146 = arith.addf %141, %145 : vector<288x4xf32>
    %c25 = arith.constant 25 : index
    %c0_176 = arith.constant 0 : index
    %147 = vector.load %arg10[%c25, %c0_176] : memref<348x4xf32, #tpu.memory_space<vmem>>, vector<288x4xf32>
    %c1_177 = arith.constant 1 : index
    %c2_178 = arith.constant 2 : index
    %c0_179 = arith.constant 0 : index
    %c0_180 = arith.constant 0 : index
    %148 = vector.load %arg7[%c1_177, %c2_178, %c0_179, %c0_180] : memref<3x3x4x4xf32, #tpu.memory_space<vmem>>, vector<1x1x4x4xf32>
    %149 = vector.shape_cast %148 : vector<1x1x4x4xf32> to vector<4x4xf32>
    %cst_181 = arith.constant dense<0.000000e+00> : vector<288x4xf32>
    %150 = tpu.matmul %147, %149, %cst_181 {dimension_numbers = #tpu.dot_dimension_numbers<[1], [0], [0], [1], [0, 0, 1, 1], [], []>} : vector<288x4xf32>, vector<4x4xf32>, vector<288x4xf32> -> vector<288x4xf32>
    %151 = arith.addf %146, %150 : vector<288x4xf32>
    %c41 = arith.constant 41 : index
    %c0_182 = arith.constant 0 : index
    %152 = vector.load %arg10[%c41, %c0_182] : memref<348x4xf32, #tpu.memory_space<vmem>>, vector<288x4xf32>
    %c2_183 = arith.constant 2 : index
    %c0_184 = arith.constant 0 : index
    %c0_185 = arith.constant 0 : index
    %c0_186 = arith.constant 0 : index
    %153 = vector.load %arg7[%c2_183, %c0_184, %c0_185, %c0_186] : memref<3x3x4x4xf32, #tpu.memory_space<vmem>>, vector<1x1x4x4xf32>
    %154 = vector.shape_cast %153 : vector<1x1x4x4xf32> to vector<4x4xf32>
    %cst_187 = arith.constant dense<0.000000e+00> : vector<288x4xf32>
    %155 = tpu.matmul %152, %154, %cst_187 {dimension_numbers = #tpu.dot_dimension_numbers<[1], [0], [0], [1], [0, 0, 1, 1], [], []>} : vector<288x4xf32>, vector<4x4xf32>, vector<288x4xf32> -> vector<288x4xf32>
    %156 = arith.addf %151, %155 : vector<288x4xf32>
    %c42 = arith.constant 42 : index
    %c0_188 = arith.constant 0 : index
    %157 = vector.load %arg10[%c42, %c0_188] : memref<348x4xf32, #tpu.memory_space<vmem>>, vector<288x4xf32>
    %c2_189 = arith.constant 2 : index
    %c1_190 = arith.constant 1 : index
    %c0_191 = arith.constant 0 : index
    %c0_192 = arith.constant 0 : index
    %158 = vector.load %arg7[%c2_189, %c1_190, %c0_191, %c0_192] : memref<3x3x4x4xf32, #tpu.memory_space<vmem>>, vector<1x1x4x4xf32>
    %159 = vector.shape_cast %158 : vector<1x1x4x4xf32> to vector<4x4xf32>
    %cst_193 = arith.constant dense<0.000000e+00> : vector<288x4xf32>
    %160 = tpu.matmul %157, %159, %cst_193 {dimension_numbers = #tpu.dot_dimension_numbers<[1], [0], [0], [1], [0, 0, 1, 1], [], []>} : vector<288x4xf32>, vector<4x4xf32>, vector<288x4xf32> -> vector<288x4xf32>
    %161 = arith.addf %156, %160 : vector<288x4xf32>
    %c43 = arith.constant 43 : index
    %c0_194 = arith.constant 0 : index
    %162 = vector.load %arg10[%c43, %c0_194] : memref<348x4xf32, #tpu.memory_space<vmem>>, vector<288x4xf32>
    %c2_195 = arith.constant 2 : index
    %c2_196 = arith.constant 2 : index
    %c0_197 = arith.constant 0 : index
    %c0_198 = arith.constant 0 : index
    %163 = vector.load %arg7[%c2_195, %c2_196, %c0_197, %c0_198] : memref<3x3x4x4xf32, #tpu.memory_space<vmem>>, vector<1x1x4x4xf32>
    %164 = vector.shape_cast %163 : vector<1x1x4x4xf32> to vector<4x4xf32>
    %cst_199 = arith.constant dense<0.000000e+00> : vector<288x4xf32>
    %165 = tpu.matmul %162, %164, %cst_199 {dimension_numbers = #tpu.dot_dimension_numbers<[1], [0], [0], [1], [0, 0, 1, 1], [], []>} : vector<288x4xf32>, vector<4x4xf32>, vector<288x4xf32> -> vector<288x4xf32>
    %166 = arith.addf %161, %165 : vector<288x4xf32>
    %c0_200 = arith.constant 0 : index
    %c0_201 = arith.constant 0 : index
    %167 = vector.load %arg8[%c0_200, %c0_201] : memref<1x4xf32, #tpu.memory_space<vmem>>, vector<1x4xf32>
    %168 = vector.broadcast %167 : vector<1x4xf32> to vector<288x4xf32>
    %169 = arith.addf %166, %168 : vector<288x4xf32>
    %cst_202 = arith.constant 0.00999999977 : f32
    %170 = vector.broadcast %cst_202 : f32 to vector<288x4xf32>
    %171 = arith.mulf %170, %169 : vector<288x4xf32>
    %172 = arith.maximumf %169, %171 : vector<288x4xf32>
    %c0_203 = arith.constant 0 : index
    %c0_204 = arith.constant 0 : index
    %c0_205 = arith.constant 0 : index
    %173 = vector.load %arg9[%c0_203, %c0_204, %c0_205] : memref<1x288x4xf32, #tpu.memory_space<vmem>>, vector<1x288x4xf32>
    %174 = vector.shape_cast %173 : vector<1x288x4xf32> to vector<288x4xf32>
    %175 = vector.shape_cast %172 : vector<288x4xf32> to vector<1x288x4xf32>
    tpu.vector_store %arg9[%c0_203, %c0_204, %c0_205], %175 {strides = array<i32>} : memref<1x288x4xf32, #tpu.memory_space<vmem>>, vector<1x288x4xf32>,
    return
  }
  func.func @transform_0(%arg0: i32) -> (i32, i32, i32) {
    %c0_i32 = arith.constant 0 : i32
    %c0_i32_0 = arith.constant 0 : i32
    %c0_i32_1 = arith.constant 0 : i32
    return %arg0, %c0_i32, %c0_i32_0 : i32, i32, i32
  }
  func.func @transform_1(%arg0: i32) -> (i32, i32, i32) {
    %c0_i32 = arith.constant 0 : i32
    %c0_i32_0 = arith.constant 0 : i32
    %c0_i32_1 = arith.constant 0 : i32
    return %arg0, %c0_i32, %c0_i32_0 : i32, i32, i32
  }
  func.func @transform_2(%arg0: i32) -> (i32, i32) {
    %c0_i32 = arith.constant 0 : i32
    %c0_i32_0 = arith.constant 0 : i32
    %c0_i32_1 = arith.constant 0 : i32
    return %c0_i32, %c0_i32_0 : i32, i32
  }
  func.func @transform_3(%arg0: i32) -> (i32, i32, i32, i32) {
    %c0_i32 = arith.constant 0 : i32
    %c0_i32_0 = arith.constant 0 : i32
    %c0_i32_1 = arith.constant 0 : i32
    %c0_i32_2 = arith.constant 0 : i32
    %c0_i32_3 = arith.constant 0 : i32
    return %c0_i32, %c0_i32_0, %c0_i32_1, %c0_i32_2 : i32, i32, i32, i32
  }
  func.func @transform_4(%arg0: i32) -> (i32, i32, i32, i32) {
    %c0_i32 = arith.constant 0 : i32
    %c0_i32_0 = arith.constant 0 : i32
    %c0_i32_1 = arith.constant 0 : i32
    %c0_i32_2 = arith.constant 0 : i32
    %c0_i32_3 = arith.constant 0 : i32
    return %c0_i32, %c0_i32_0, %c0_i32_1, %c0_i32_2 : i32, i32, i32, i32
  }
  func.func @transform_5(%arg0: i32) -> (i32, i32) {
    %c0_i32 = arith.constant 0 : i32
    %c0_i32_0 = arith.constant 0 : i32
    %c0_i32_1 = arith.constant 0 : i32
    return %c0_i32, %c0_i32_0 : i32, i32
  }
  func.func @transform_6(%arg0: i32) -> (i32, i32, i32, i32) {
    %c0_i32 = arith.constant 0 : i32
    %c0_i32_0 = arith.constant 0 : i32
    %c0_i32_1 = arith.constant 0 : i32
    %c0_i32_2 = arith.constant 0 : i32
    %c0_i32_3 = arith.constant 0 : i32
    return %c0_i32, %c0_i32_0, %c0_i32_1, %c0_i32_2 : i32, i32, i32, i32
  }
  func.func @transform_7(%arg0: i32) -> (i32, i32) {
    %c0_i32 = arith.constant 0 : i32
    %c0_i32_0 = arith.constant 0 : i32
    %c0_i32_1 = arith.constant 0 : i32
    return %c0_i32, %c0_i32_0 : i32, i32
  }
  func.func @transform_8(%arg0: i32) -> (i32, i32, i32) {
    %c0_i32 = arith.constant 0 : i32
    %c0_i32_0 = arith.constant 0 : i32
    %c0_i32_1 = arith.constant 0 : i32
    return %arg0, %c0_i32, %c0_i32_0 : i32, i32, i32
  }
}

</mosaic_0001>

<llo_original>
// kernel: tile.9
$region0: #{tile.9}
  %s0 = inlined_call_operand.vmem [shape: f32[4,4], index: 0, kind: input, shape index: {}]
  %s1 = inlined_call_operand.vmem [shape: f32[1,16], index: 1, kind: output, shape index: {}]
  $region1: #{tile.9} parent=0
    #allocation0 [shape = 'u8[4096]{0}', space=vmem, size = 0x1000, scoped, tag = 'scoped mem for output reshape']
    #allocation1 [shape = 'u8[4096]{0}', space=vmem, size = 0x1000, scoped, tag = 'scoped mem for input reshape']
    %s3 = sshll.u32 1, 4
    %s4 = ssub.s32 %s3, 1
    %v5 = vld [vmem:[%s0] sm:%s4]
    %6 = vst [vmem:[#allocation1] sm:%s4] %v5
    %v7 = vld [vmem:[#allocation1] sm:$0x1]
    %vm8 = vcmask 31744
    %9 = vst.msk [vmem:[#allocation0] sm:$0x1] %vm8, %v7
    %s10 = scalar_lea.vmem [#allocation1], 3
    %v11 = vld [vmem:[%s10] sm:$0x1]
    %12 = vrot.lane.b32.xlu0 %v11, 12
    %v13 = vpop.permute.xlu0 %12
    %vm14 = vcmask 130144
    %15 = vst.msk [vmem:[#allocation0] sm:$0x1] %vm14, %v13
    %s16 = scalar_lea.vmem [#allocation1], 2
    %v17 = vld [vmem:[%s16] sm:$0x1]
    %18 = vrot.lane.b32.xlu0 %v17, 8
    %v19 = vpop.permute.xlu0 %18
    %vm20 = vcmask 97344
    %21 = vst.msk [vmem:[#allocation0] sm:$0x1] %vm20, %v19
    %s22 = scalar_lea.vmem [#allocation1], 1
    %v23 = vld [vmem:[%s22] sm:$0x1]
    %24 = vrot.lane.b32.xlu0 %v23, 4
    %v25 = vpop.permute.xlu0 %24
    %vm26 = vcmask 64544
    %27 = vst.msk [vmem:[#allocation0] sm:$0x1] %vm26, %v25
    %s29 = sshll.u32 1, 1
    %s30 = ssub.s32 %s29, 1
    %v32 = vld [vmem:[#allocation0] sm:%s30]
    %s33 = sshll.u32 1, 1
    %s34 = ssub.s32 %s33, 1
    %35 = vst [vmem:[%s1] sm:%s34] %v32

// kernel: tile.8
$region0: #{tile.8}
  #allocation0 [shape = 's32[1]{0}', space=sflag, size = 0x4, scoped, tag = 'scoped memory for tile.8']
  %s0 = inlined_call_operand.vmem [shape: f32[4], index: 0, kind: input, shape index: {}]
  %s1 = inlined_call_operand.vmem [shape: f32[4,4], index: 1, kind: output, shape index: {}]
  // Predicated region
  $region2: #{tile.8} parent=0 // pred_check
    _
  $region3: #{tile.8} parent=0 // pred_check_branch
    %3 = sbr.rel (0) target = $region5
  $region4: #{tile.8} parent=0 // pred_region
    _
  $region5: #{tile.8} parent=0 // pred_fallthru
    _
  %v4 = vld [vmem:[%s0] ss:$0 sm:$0xff]
  %5 = vst [vmem:[%s1] sm:$0xf] %v4

// kernel: up_forward_pallas.2
$region0: #{up_forward_pallas.2}
  #allocation0 [shape = 'u32[]', space=smem, size = 0x4, offset = 0x4, fixed_abs, tag = 'smem constant byte address 0x4 - core index']
  #allocation1 [shape = 'u32[144,128]{1,0:T(1,128)}', space=vmem, size = 0x12000, scoped, tag = 'internal scratch']
  %s0 = inlined_call_operand.vmem [shape: f32[128,8], index: 0, kind: input, shape index: {}]
  %s1 = inlined_call_operand.vmem [shape: f32[8,16], index: 1, kind: input, shape index: {}]
  %s2 = inlined_call_operand.vmem [shape: f32[1,16], index: 2, kind: input, shape index: {}]
  %s3 = inlined_call_operand.vmem [shape: f32[128,16], index: 3, kind: output, shape index: {}]
  %s4 = sld [smem:[#allocation0]]
  $region22: #{up_forward_pallas.2} parent=0
    _
  %s6 = ssub.s32 1, %s4
  %s7 = scalar_select 0, %s6, %s4
  // Predicated region
  $region2: #{up_forward_pallas.2} parent=0 // pred_check
    _
  $region3: #{up_forward_pallas.2} parent=0 // pred_check_branch
    %9 = sbr.rel (0) target = $region5
  $region4: #{up_forward_pallas.2} parent=0 // pred_region
    _
  $region5: #{up_forward_pallas.2} parent=0 // pred_fallthru
    _
  // Predicated region
  $region6: #{up_forward_pallas.2} parent=0 // pred_check
    _
  $region7: #{up_forward_pallas.2} parent=0 // pred_check_branch
    %11 = sbr.rel (0) target = $region9
  $region8: #{up_forward_pallas.2} parent=0 // pred_region
    _
  $region9: #{up_forward_pallas.2} parent=0 // pred_fallthru
    _
  // Predicated region
  $region10: #{up_forward_pallas.2} parent=0 // pred_check
    _
  $region11: #{up_forward_pallas.2} parent=0 // pred_check_branch
    %13 = sbr.rel (0) target = $region13
  $region12: #{up_forward_pallas.2} parent=0 // pred_region
    _
  $region13: #{up_forward_pallas.2} parent=0 // pred_fallthru
    _
  %v14 = vld [vmem:[%s0] sm:$0xff]
  %v15 = vld [vmem:[%s0 + $0x8] sm:$0xff]
  %v16 = vld [vmem:[%s0 + $0x10] sm:$0xff]
  %v17 = vld [vmem:[%s0 + $0x18] sm:$0xff]
  %v18 = vld [vmem:[%s0 + $0x20] sm:$0xff]
  %v19 = vld [vmem:[%s0 + $0x28] sm:$0xff]
  %v20 = vld [vmem:[%s0 + $0x30] sm:$0xff]
  %v21 = vld [vmem:[%s0 + $0x38] sm:$0xff]
  %v22 = vld [vmem:[%s0 + $0x40] sm:$0xff]
  %v23 = vld [vmem:[%s0 + $0x48] sm:$0xff]
  %v24 = vld [vmem:[%s0 + $0x50] sm:$0xff]
  %v25 = vld [vmem:[%s0 + $0x58] sm:$0xff]
  %v26 = vld [vmem:[%s0 + $0x60] sm:$0xff]
  %v27 = vld [vmem:[%s0 + $0x68] sm:$0xff]
  %v28 = vld [vmem:[%s0 + $0x70] sm:$0xff]
  %v29 = vld [vmem:[%s0 + $0x78] sm:$0xff]
  %v30 = vld [vmem:[%s1] sm:$0xff]
  %v31 = vld [vmem:[%s2] sm:$0x1]
  %v33 = vlaneseq
  %v34 = vshrl.u32 %v33, 7
  %v35 = vsub.s32 0, %v34
  %v36 = vrot.slane %v31, %v35
  %vm38 = vcmask 64512
  %v40 = vsel %vm38, %v14, 0
  %v43 = vsel %vm38, %v15, 0
  %v46 = vsel %vm38, %v16, 0
  %v49 = vsel %vm38, %v17, 0
  %v52 = vsel %vm38, %v18, 0
  %v55 = vsel %vm38, %v19, 0
  %v58 = vsel %vm38, %v20, 0
  %v61 = vsel %vm38, %v21, 0
  %v64 = vsel %vm38, %v22, 0
  %v67 = vsel %vm38, %v23, 0
  %v70 = vsel %vm38, %v24, 0
  %v73 = vsel %vm38, %v25, 0
  %v76 = vsel %vm38, %v26, 0
  %v79 = vsel %vm38, %v27, 0
  %v82 = vsel %vm38, %v28, 0
  %v85 = vsel %vm38, %v29, 0
  %87 = vmatprep.subr.mxu0 0.0
  %88 = vmatpush1.msra.mxu0 0.0
  %89 = vmatprep.subr.mxu0 0.0
  %90 = vmatpush1.msra.mxu0 0.0
  %91 = vmatprep.subr.mxu0 0.0
  %92 = vmatpush1.msra.mxu0 0.0
  %93 = vmatprep.subr.mxu0 0.0
  %94 = vmatpush1.msra.mxu0 0.0
  %95 = vmatprep.subr.mxu0 0.0
  %96 = vmatpush1.msra.mxu0 0.0
  %97 = vmatprep.subr.mxu0 0.0
  %98 = vmatpush1.msra.mxu0 0.0
  %99 = vmatprep.subr.mxu0 0.0
  %100 = vmatpush1.msra.mxu0 0.0
  %101 = vmatprep.subr.mxu0 0.0
  %102 = vmatpush1.msra.mxu0 0.0
  %103 = vmatprep.subr.mxu0 0.0
  %104 = vmatpush1.msra.mxu0 0.0
  %105 = vmatprep.subr.mxu0 0.0
  %106 = vmatpush1.msra.mxu0 0.0
  %107 = vmatprep.subr.mxu0 0.0
  %108 = vmatpush1.msra.mxu0 0.0
  %109 = vmatprep.subr.mxu0 0.0
  %110 = vmatpush1.msra.mxu0 0.0
  %111 = vmatprep.subr.mxu0 0.0
  %112 = vmatpush1.msra.mxu0 0.0
  %113 = vmatprep.subr.mxu0 0.0
  %114 = vmatpush1.msra.mxu0 0.0
  %115 = vmatprep.subr.mxu0 0.0
  %116 = vmatpush1.msra.mxu0 0.0
  %117 = vmatprep.subr.mxu0 0.0
  %118 = vmatpush1.msra.mxu0 %v30
  %119 = vmatprep.subr.mxu0 0.0
  %120 = vmatpush2.msra.mxu0 0.0
  %121 = vmatprep.subr.mxu0 0.0
  %122 = vmatpush2.msra.mxu0 0.0
  %123 = vmatprep.subr.mxu0 0.0
  %124 = vmatpush2.msra.mxu0 0.0
  %125 = vmatprep.subr.mxu0 0.0
  %126 = vmatpush2.msra.mxu0 0.0
  %127 = vmatprep.subr.mxu0 0.0
  %128 = vmatpush2.msra.mxu0 0.0
  %129 = vmatprep.subr.mxu0 0.0
  %130 = vmatpush2.msra.mxu0 0.0
  %131 = vmatprep.subr.mxu0 0.0
  %132 = vmatpush2.msra.mxu0 0.0
  %133 = vmatprep.subr.mxu0 0.0
  %134 = vmatpush2.msra.mxu0 0.0
  %135 = vmatprep.subr.mxu0 0.0
  %136 = vmatpush2.msra.mxu0 0.0
  %137 = vmatprep.subr.mxu0 0.0
  %138 = vmatpush2.msra.mxu0 0.0
  %139 = vmatprep.subr.mxu0 0.0
  %140 = vmatpush2.msra.mxu0 0.0
  %141 = vmatprep.subr.mxu0 0.0
  %142 = vmatpush2.msra.mxu0 0.0
  %143 = vmatprep.subr.mxu0 0.0
  %144 = vmatpush2.msra.mxu0 0.0
  %145 = vmatprep.subr.mxu0 0.0
  %146 = vmatpush2.msra.mxu0 0.0
  %147 = vmatprep.subr.mxu0 0.0
  %148 = vmatpush2.msra.mxu0 0.0
  %149 = vmatprep.subr.mxu0 0.0
  %150 = vmatpush2.msra.mxu0 0.0
  %151 = vmatprep.mubr.f32.mxu0 0.0
  %152 = vmatmul.mubr.f32.gmra.mxu0 %v40
  %v153 = vpop.f32.mrf.mxu0
  %v154 = vadd.f32 %v36, %v153
  %v155 = vpop.f32.mrf.mxu0
  %156 = vmatprep.mubr.f32.mxu0 0.0
  %157 = vmatmul.mubr.f32.gmra.mxu0 %v43
  %v158 = vpop.f32.mrf.mxu0
  %v159 = vadd.f32 %v36, %v158
  %v160 = vpop.f32.mrf.mxu0
  %161 = vmatprep.mubr.f32.mxu0 0.0
  %162 = vmatmul.mubr.f32.gmra.mxu0 %v46
  %v163 = vpop.f32.mrf.mxu0
  %v164 = vadd.f32 %v36, %v163
  %v165 = vpop.f32.mrf.mxu0
  %166 = vmatprep.mubr.f32.mxu0 0.0
  %167 = vmatmul.mubr.f32.gmra.mxu0 %v49
  %v168 = vpop.f32.mrf.mxu0
  %v169 = vadd.f32 %v36, %v168
  %v170 = vpop.f32.mrf.mxu0
  %171 = vmatprep.mubr.f32.mxu0 0.0
  %172 = vmatmul.mubr.f32.gmra.mxu0 %v52
  %v173 = vpop.f32.mrf.mxu0
  %v174 = vadd.f32 %v36, %v173
  %v175 = vpop.f32.mrf.mxu0
  %176 = vmatprep.mubr.f32.mxu0 0.0
  %177 = vmatmul.mubr.f32.gmra.mxu0 %v55
  %v178 = vpop.f32.mrf.mxu0
  %v179 = vadd.f32 %v36, %v178
  %v180 = vpop.f32.mrf.mxu0
  %181 = vmatprep.mubr.f32.mxu0 0.0
  %182 = vmatmul.mubr.f32.gmra.mxu0 %v58
  %v183 = vpop.f32.mrf.mxu0
  %v184 = vadd.f32 %v36, %v183
  %v185 = vpop.f32.mrf.mxu0
  %186 = vmatprep.mubr.f32.mxu0 0.0
  %187 = vmatmul.mubr.f32.gmra.mxu0 %v61
  %v188 = vpop.f32.mrf.mxu0
  %v189 = vadd.f32 %v36, %v188
  %v190 = vpop.f32.mrf.mxu0
  %191 = vmatprep.mubr.f32.mxu0 0.0
  %192 = vmatmul.mubr.f32.gmra.mxu0 %v64
  %v193 = vpop.f32.mrf.mxu0
  %v194 = vadd.f32 %v36, %v193
  %v195 = vpop.f32.mrf.mxu0
  %196 = vmatprep.mubr.f32.mxu0 0.0
  %197 = vmatmul.mubr.f32.gmra.mxu0 %v67
  %v198 = vpop.f32.mrf.mxu0
  %v199 = vadd.f32 %v36, %v198
  %v200 = vpop.f32.mrf.mxu0
  %201 = vmatprep.mubr.f32.mxu0 0.0
  %202 = vmatmul.mubr.f32.gmra.mxu0 %v70
  %v203 = vpop.f32.mrf.mxu0
  %v204 = vadd.f32 %v36, %v203
  %v205 = vpop.f32.mrf.mxu0
  %206 = vmatprep.mubr.f32.mxu0 0.0
  %207 = vmatmul.mubr.f32.gmra.mxu0 %v73
  %v208 = vpop.f32.mrf.mxu0
  %v209 = vadd.f32 %v36, %v208
  %v210 = vpop.f32.mrf.mxu0
  %211 = vmatprep.mubr.f32.mxu0 0.0
  %212 = vmatmul.mubr.f32.gmra.mxu0 %v76
  %v213 = vpop.f32.mrf.mxu0
  %v214 = vadd.f32 %v36, %v213
  %v215 = vpop.f32.mrf.mxu0
  %216 = vmatprep.mubr.f32.mxu0 0.0
  %217 = vmatmul.mubr.f32.gmra.mxu0 %v79
  %v218 = vpop.f32.mrf.mxu0
  %v219 = vadd.f32 %v36, %v218
  %v220 = vpop.f32.mrf.mxu0
  %221 = vmatprep.mubr.f32.mxu0 0.0
  %222 = vmatmul.mubr.f32.gmra.mxu0 %v82
  %v223 = vpop.f32.mrf.mxu0
  %v224 = vadd.f32 %v36, %v223
  %v225 = vpop.f32.mrf.mxu0
  %226 = vmatprep.mubr.f32.mxu0 0.0
  %227 = vmatmul.mubr.f32.gmra.mxu0 %v85
  %v228 = vpop.f32.mrf.mxu0
  %v229 = vadd.f32 %v36, %v228
  %v230 = vpop.f32.mrf.mxu0
  %231 = vdwg.mxu0
  %vm232 = vcmask 130048
  %233 = vst.msk [vmem:[%s3] sm:$0xff] %vm232, %v154
  %234 = vst.msk [vmem:[%s3 + $0x8] sm:$0xff] %vm232, %v159
  %235 = vst.msk [vmem:[%s3 + $0x10] sm:$0xff] %vm232, %v164
  %236 = vst.msk [vmem:[%s3 + $0x18] sm:$0xff] %vm232, %v169
  %237 = vst.msk [vmem:[%s3 + $0x20] sm:$0xff] %vm232, %v174
  %238 = vst.msk [vmem:[%s3 + $0x28] sm:$0xff] %vm232, %v179
  %239 = vst.msk [vmem:[%s3 + $0x30] sm:$0xff] %vm232, %v184
  %240 = vst.msk [vmem:[%s3 + $0x38] sm:$0xff] %vm232, %v189
  %241 = vst.msk [vmem:[%s3 + $0x40] sm:$0xff] %vm232, %v194
  %242 = vst.msk [vmem:[%s3 + $0x48] sm:$0xff] %vm232, %v199
  %243 = vst.msk [vmem:[%s3 + $0x50] sm:$0xff] %vm232, %v204
  %244 = vst.msk [vmem:[%s3 + $0x58] sm:$0xff] %vm232, %v209
  %245 = vst.msk [vmem:[%s3 + $0x60] sm:$0xff] %vm232, %v214
  %246 = vst.msk [vmem:[%s3 + $0x68] sm:$0xff] %vm232, %v219
  %247 = vst.msk [vmem:[%s3 + $0x70] sm:$0xff] %vm232, %v224
  %248 = vst.msk [vmem:[%s3 + $0x78] sm:$0xff] %vm232, %v229
  // Predicated region
  $region14: #{up_forward_pallas.2} parent=0 // pred_check
    _
  $region15: #{up_forward_pallas.2} parent=0 // pred_check_branch
    %250 = sbr.rel (0) target = $region17
  $region16: #{up_forward_pallas.2} parent=0 // pred_region
    _
  $region17: #{up_forward_pallas.2} parent=0 // pred_fallthru
    _
  // Predicated region
  $region18: #{up_forward_pallas.2} parent=0 // pred_check
    _
  $region19: #{up_forward_pallas.2} parent=0 // pred_check_branch
    %252 = sbr.rel (0) target = $region21
  $region20: #{up_forward_pallas.2} parent=0 // pred_region
    _
  $region21: #{up_forward_pallas.2} parent=0 // pred_fallthru
    _

// kernel: up_forward_pallas.3
$region0: #{up_forward_pallas.3}
  #allocation0 [shape = 'u32[]', space=smem, size = 0x4, offset = 0x4, fixed_abs, tag = 'smem constant byte address 0x4 - core index']
  #allocation1 [shape = 'u32[144,128]{1,0:T(1,128)}', space=vmem, size = 0x12000, scoped, tag = 'internal scratch']
  #allocation2 [shape = 'f32[348,4]{1,0:T(8,128)}', space=vmem, size = 0x2c000, scoped, tag = 'scratch operand']
  %s0 = inlined_call_operand.vmem [shape: f32[2,342,4], index: 0, kind: input, shape index: {}]
  %s1 = inlined_call_operand.vmem [shape: f32[2,342,4], index: 1, kind: input, shape index: {}]
  %s2 = inlined_call_operand.vmem [shape: f32[288,1], index: 2, kind: input, shape index: {}]
  %s3 = inlined_call_operand.vmem [shape: f32[3,3,4,4], index: 3, kind: input, shape index: {}]
  %s4 = inlined_call_operand.vmem [shape: f32[3,3,4,4], index: 4, kind: input, shape index: {}]
  %s5 = inlined_call_operand.vmem [shape: f32[1,4], index: 5, kind: input, shape index: {}]
  %s6 = inlined_call_operand.vmem [shape: f32[3,3,4,4], index: 6, kind: input, shape index: {}]
  %s7 = inlined_call_operand.vmem [shape: f32[1,4], index: 7, kind: input, shape index: {}]
  %s8 = inlined_call_operand.vmem [shape: f32[2,288,4], index: 8, kind: output, shape index: {}]
  %s9 = sld [smem:[#allocation0]]
  $region65: #{up_forward_pallas.3} parent=0
    _
  %s11 = ssub.s32 1, %s9
  %s12 = scalar_select 0, %s11, %s9
  loop: start=0, step=1, limit=4
  $region2: #{up_forward_pallas.3} parent=0 // loop_pre_header
    _
  $region3: #{up_forward_pallas.3} parent=0 // loop_header
    %s14 = sphi 0, %s18
    %p15 = scmp.ge.s32.totalorder %s14, 4
    %s24 = sphi 0, %s26
    %s27 = sphi 0, %s24
    %s28 = sphi 0, %s27
    %s44 = sphi 0, %s28
    %s50 = sphi 0, %s52
    %s53 = sphi 0, %s50
    %s54 = sphi 0, %s53
    %s70 = sphi 0, %s54
    %s74 = sphi 0, %s74
    %s76 = sphi 0, %s74
    %s77 = sphi 0, %s76
    %s91 = sphi 0, %s77
    %s95 = sphi 0, %s95
    %s97 = sphi 0, %s95
    %s98 = sphi 0, %s97
    %s112 = sphi 0, %s98
    %s116 = sphi 0, %s116
    %s118 = sphi 0, %s116
    %s119 = sphi 0, %s118
    %s133 = sphi 0, %s119
    %s137 = sphi 0, %s137
    %s139 = sphi 0, %s137
    %s140 = sphi 0, %s139
    %s154 = sphi 0, %s140
    %s158 = sphi 0, %s158
    %s160 = sphi 0, %s158
    %s161 = sphi 0, %s160
    %s175 = sphi 0, %s161
    %s179 = sphi 0, %s179
    %s181 = sphi 0, %s179
    %s182 = sphi 0, %s181
    %s196 = sphi 0, %s182
    %s202 = sphi 0, %s204
    %s205 = sphi 0, %s202
    %s206 = sphi 0, %s205
    %s222 = sphi 0, %s206
  $region4: #{up_forward_pallas.3} parent=0 // loop_header_branch
    %17 = sbr.rel (%p15) target = $region8
  $region5: #{up_forward_pallas.3} parent=0 // loop_body
    %s19 = ssub.s32 %s14, 1
    %s20 = ssub.s32 %s14, 2
    %s21 = sadd.s32 %s14, 1
    %s22 = ssub.s32 %s14, %s21
    %p23 = scmp.eq.s32.totalorder %s22, 0
    %s25 = sadd.s32 %s24, 1
    %s26 = scalar_select %p23, %s24, %s25
    %p29 = pneg %p23
    %p30 = scmp.eq.s32.totalorder %s14, 1
    %p31 = por %p29, %p30
    %p32 = scmp.ne.s32.totalorder %s24, %s27
    %p33 = scmp.eq.s32.totalorder %s14, 0
    %p34 = por %p32, %p33
    %p35 = scmp.ne.s32.totalorder %s24, %s27
    %p36 = scmp.eq.s32.totalorder %s19, 1
    %p37 = por %p35, %p36
    %p38 = scmp.ne.s32.totalorder %s27, %s28
    %p39 = scmp.eq.s32.totalorder %s19, 0
    %p40 = por %p38, %p39
    %p41 = scmp.ne.s32.totalorder %s27, %s28
    %p42 = scmp.eq.s32.totalorder %s20, 1
    %p43 = por %p41, %p42
    %p45 = scmp.ne.s32.totalorder %s28, %s44
    %p46 = scmp.eq.s32.totalorder %s20, 0
    %p47 = por %p45, %p46
    %s48 = ssub.s32 %s14, %s21
    %p49 = scmp.eq.s32.totalorder %s48, 0
    %s51 = sadd.s32 %s50, 1
    %s52 = scalar_select %p49, %s50, %s51
    %p55 = pneg %p49
    %p56 = scmp.eq.s32.totalorder %s14, 1
    %p57 = por %p55, %p56
    %p58 = scmp.ne.s32.totalorder %s50, %s53
    %p59 = scmp.eq.s32.totalorder %s14, 0
    %p60 = por %p58, %p59
    %p61 = scmp.ne.s32.totalorder %s50, %s53
    %p62 = scmp.eq.s32.totalorder %s19, 1
    %p63 = por %p61, %p62
    %p64 = scmp.ne.s32.totalorder %s53, %s54
    %p65 = scmp.eq.s32.totalorder %s19, 0
    %p66 = por %p64, %p65
    %p67 = scmp.ne.s32.totalorder %s53, %s54
    %p68 = scmp.eq.s32.totalorder %s20, 1
    %p69 = por %p67, %p68
    %p71 = scmp.ne.s32.totalorder %s54, %s70
    %p72 = scmp.eq.s32.totalorder %s20, 0
    %p73 = por %p71, %p72
    %s75 = sadd.s32 %s74, 1
    %p78 = scmp.eq.s32.totalorder %s14, 1
    %p79 = scmp.ne.s32.totalorder %s74, %s76
    %p80 = scmp.eq.s32.totalorder %s14, 0
    %p81 = por %p79, %p80
    %p82 = scmp.ne.s32.totalorder %s74, %s76
    %p83 = scmp.eq.s32.totalorder %s19, 1
    %p84 = por %p82, %p83
    %p85 = scmp.ne.s32.totalorder %s76, %s77
    %p86 = scmp.eq.s32.totalorder %s19, 0
    %p87 = por %p85, %p86
    %p88 = scmp.ne.s32.totalorder %s76, %s77
    %p89 = scmp.eq.s32.totalorder %s20, 1
    %p90 = por %p88, %p89
    %p92 = scmp.ne.s32.totalorder %s77, %s91
    %p93 = scmp.eq.s32.totalorder %s20, 0
    %p94 = por %p92, %p93
    %s96 = sadd.s32 %s95, 1
    %p99 = scmp.eq.s32.totalorder %s14, 1
    %p100 = scmp.ne.s32.totalorder %s95, %s97
    %p101 = scmp.eq.s32.totalorder %s14, 0
    %p102 = por %p100, %p101
    %p103 = scmp.ne.s32.totalorder %s95, %s97
    %p104 = scmp.eq.s32.totalorder %s19, 1
    %p105 = por %p103, %p104
    %p106 = scmp.ne.s32.totalorder %s97, %s98
    %p107 = scmp.eq.s32.totalorder %s19, 0
    %p108 = por %p106, %p107
    %p109 = scmp.ne.s32.totalorder %s97, %s98
    %p110 = scmp.eq.s32.totalorder %s20, 1
    %p111 = por %p109, %p110
    %p113 = scmp.ne.s32.totalorder %s98, %s112
    %p114 = scmp.eq.s32.totalorder %s20, 0
    %p115 = por %p113, %p114
    %s117 = sadd.s32 %s116, 1
    %p120 = scmp.eq.s32.totalorder %s14, 1
    %p121 = scmp.ne.s32.totalorder %s116, %s118
    %p122 = scmp.eq.s32.totalorder %s14, 0
    %p123 = por %p121, %p122
    %p124 = scmp.ne.s32.totalorder %s116, %s118
    %p125 = scmp.eq.s32.totalorder %s19, 1
    %p126 = por %p124, %p125
    %p127 = scmp.ne.s32.totalorder %s118, %s119
    %p128 = scmp.eq.s32.totalorder %s19, 0
    %p129 = por %p127, %p128
    %p130 = scmp.ne.s32.totalorder %s118, %s119
    %p131 = scmp.eq.s32.totalorder %s20, 1
    %p132 = por %p130, %p131
    %p134 = scmp.ne.s32.totalorder %s119, %s133
    %p135 = scmp.eq.s32.totalorder %s20, 0
    %p136 = por %p134, %p135
    %s138 = sadd.s32 %s137, 1
    %p141 = scmp.eq.s32.totalorder %s14, 1
    %p142 = scmp.ne.s32.totalorder %s137, %s139
    %p143 = scmp.eq.s32.totalorder %s14, 0
    %p144 = por %p142, %p143
    %p145 = scmp.ne.s32.totalorder %s137, %s139
    %p146 = scmp.eq.s32.totalorder %s19, 1
    %p147 = por %p145, %p146
    %p148 = scmp.ne.s32.totalorder %s139, %s140
    %p149 = scmp.eq.s32.totalorder %s19, 0
    %p150 = por %p148, %p149
    %p151 = scmp.ne.s32.totalorder %s139, %s140
    %p152 = scmp.eq.s32.totalorder %s20, 1
    %p153 = por %p151, %p152
    %p155 = scmp.ne.s32.totalorder %s140, %s154
    %p156 = scmp.eq.s32.totalorder %s20, 0
    %p157 = por %p155, %p156
    %s159 = sadd.s32 %s158, 1
    %p162 = scmp.eq.s32.totalorder %s14, 1
    %p163 = scmp.ne.s32.totalorder %s158, %s160
    %p164 = scmp.eq.s32.totalorder %s14, 0
    %p165 = por %p163, %p164
    %p166 = scmp.ne.s32.totalorder %s158, %s160
    %p167 = scmp.eq.s32.totalorder %s19, 1
    %p168 = por %p166, %p167
    %p169 = scmp.ne.s32.totalorder %s160, %s161
    %p170 = scmp.eq.s32.totalorder %s19, 0
    %p171 = por %p169, %p170
    %p172 = scmp.ne.s32.totalorder %s160, %s161
    %p173 = scmp.eq.s32.totalorder %s20, 1
    %p174 = por %p172, %p173
    %p176 = scmp.ne.s32.totalorder %s161, %s175
    %p177 = scmp.eq.s32.totalorder %s20, 0
    %p178 = por %p176, %p177
    %s180 = sadd.s32 %s179, 1
    %p183 = scmp.eq.s32.totalorder %s14, 1
    %p184 = scmp.ne.s32.totalorder %s179, %s181
    %p185 = scmp.eq.s32.totalorder %s14, 0
    %p186 = por %p184, %p185
    %p187 = scmp.ne.s32.totalorder %s179, %s181
    %p188 = scmp.eq.s32.totalorder %s19, 1
    %p189 = por %p187, %p188
    %p190 = scmp.ne.s32.totalorder %s181, %s182
    %p191 = scmp.eq.s32.totalorder %s19, 0
    %p192 = por %p190, %p191
    %p193 = scmp.ne.s32.totalorder %s181, %s182
    %p194 = scmp.eq.s32.totalorder %s20, 1
    %p195 = por %p193, %p194
    %p197 = scmp.ne.s32.totalorder %s182, %s196
    %p198 = scmp.eq.s32.totalorder %s20, 0
    %p199 = por %p197, %p198
    %s200 = ssub.s32 %s14, %s21
    %p201 = scmp.eq.s32.totalorder %s200, 0
    %s203 = sadd.s32 %s202, 1
    %s204 = scalar_select %p201, %s202, %s203
    %p207 = pneg %p201
    %p208 = scmp.eq.s32.totalorder %s14, 1
    %p209 = por %p207, %p208
    %p210 = scmp.ne.s32.totalorder %s202, %s205
    %p211 = scmp.eq.s32.totalorder %s14, 0
    %p212 = por %p210, %p211
    %p213 = scmp.ne.s32.totalorder %s202, %s205
    %p214 = scmp.eq.s32.totalorder %s19, 1
    %p215 = por %p213, %p214
    %p216 = scmp.ne.s32.totalorder %s205, %s206
    %p217 = scmp.eq.s32.totalorder %s19, 0
    %p218 = por %p216, %p217
    %p219 = scmp.ne.s32.totalorder %s205, %s206
    %p220 = scmp.eq.s32.totalorder %s20, 1
    %p221 = por %p219, %p220
    %p223 = scmp.ne.s32.totalorder %s206, %s222
    %p224 = scmp.eq.s32.totalorder %s20, 0
    %p225 = por %p223, %p224
    %p226 = scmp.le.s32.totalorder 1, %s14
    %p227 = scmp.lt.s32.totalorder %s14, 3
    %p228 = pnand %p226, %p227
    %p229 = pneg %p228
    // Predicated region
    $region9: #{up_forward_pallas.3} parent=5 // pred_check
      _
    $region10: #{up_forward_pallas.3} parent=5 // pred_check_branch
      %231 = sbr.rel (%p228) target = $region12
    $region11: #{up_forward_pallas.3} parent=5 // pred_region
      %s232 = ssub.s32 %s14, 1
      // Predicated region
      $region13: #{up_forward_pallas.3} parent=11 // pred_check
        %p233 = pneg %p87
      $region14: #{up_forward_pallas.3} parent=11 // pred_check_branch
        %235 = sbr.rel (%p233) target = $region16
      $region15: #{up_forward_pallas.3} parent=11 // pred_region
        _
      $region16: #{up_forward_pallas.3} parent=11 // pred_fallthru
        _
      // Predicated region
      $region17: #{up_forward_pallas.3} parent=11 // pred_check
        %p236 = pneg %p108
      $region18: #{up_forward_pallas.3} parent=11 // pred_check_branch
        %238 = sbr.rel (%p236) target = $region20
      $region19: #{up_forward_pallas.3} parent=11 // pred_region
        _
      $region20: #{up_forward_pallas.3} parent=11 // pred_fallthru
        _
      // Predicated region
      $region21: #{up_forward_pallas.3} parent=11 // pred_check
        %p239 = pneg %p129
      $region22: #{up_forward_pallas.3} parent=11 // pred_check_branch
        %241 = sbr.rel (%p239) target = $region24
      $region23: #{up_forward_pallas.3} parent=11 // pred_region
        _
      $region24: #{up_forward_pallas.3} parent=11 // pred_fallthru
        _
      // Predicated region
      $region25: #{up_forward_pallas.3} parent=11 // pred_check
        %p242 = pneg %p150
      $region26: #{up_forward_pallas.3} parent=11 // pred_check_branch
        %244 = sbr.rel (%p242) target = $region28
      $region27: #{up_forward_pallas.3} parent=11 // pred_region
        _
      $region28: #{up_forward_pallas.3} parent=11 // pred_fallthru
        _
      // Predicated region
      $region29: #{up_forward_pallas.3} parent=11 // pred_check
        %p245 = pneg %p171
      $region30: #{up_forward_pallas.3} parent=11 // pred_check_branch
        %247 = sbr.rel (%p245) target = $region32
      $region31: #{up_forward_pallas.3} parent=11 // pred_region
        _
      $region32: #{up_forward_pallas.3} parent=11 // pred_fallthru
        _
      // Predicated region
      $region33: #{up_forward_pallas.3} parent=11 // pred_check
        %p248 = pneg %p192
      $region34: #{up_forward_pallas.3} parent=11 // pred_check_branch
        %250 = sbr.rel (%p248) target = $region36
      $region35: #{up_forward_pallas.3} parent=11 // pred_region
        _
      $region36: #{up_forward_pallas.3} parent=11 // pred_fallthru
        _
    $region12: #{up_forward_pallas.3} parent=5 // pred_fallthru
      _
    %p251 = scmp.lt.s32.totalorder %s14, 2
    // Predicated region
    $region37: #{up_forward_pallas.3} parent=5 // pred_check
      %p252 = pneg %p251
    $region38: #{up_forward_pallas.3} parent=5 // pred_check_branch
      %254 = sbr.rel (%p252) target = $region40
    $region39: #{up_forward_pallas.3} parent=5 // pred_region
      // Predicated region
      $region41: #{up_forward_pallas.3} parent=39 // pred_check
        %p255 = pneg %p34
      $region42: #{up_forward_pallas.3} parent=39 // pred_check_branch
        %257 = sbr.rel (%p255) target = $region44
      $region43: #{up_forward_pallas.3} parent=39 // pred_region
        %p258 = scmp.lt.s32.totalorder %s14, 1
        %s259 = scalar_select %p258, %s14, 1
        %s260 = smul.addr %s259, 43
        %s261 = smul.addr %s260, 8
        %s262 = scalar_lea.vmem %s0, %s261
      $region44: #{up_forward_pallas.3} parent=39 // pred_fallthru
        _
      // Predicated region
      $region45: #{up_forward_pallas.3} parent=39 // pred_check
        %p263 = pneg %p60
      $region46: #{up_forward_pallas.3} parent=39 // pred_check_branch
        %265 = sbr.rel (%p263) target = $region48
      $region47: #{up_forward_pallas.3} parent=39 // pred_region
        %p266 = scmp.lt.s32.totalorder %s14, 1
        %s267 = scalar_select %p266, %s14, 1
        %s268 = smul.addr %s267, 43
        %s269 = smul.addr %s268, 8
        %s270 = scalar_lea.vmem %s1, %s269
      $region48: #{up_forward_pallas.3} parent=39 // pred_fallthru
        _
    $region40: #{up_forward_pallas.3} parent=5 // pred_fallthru
      _
    %p271 = scmp.le.s32.totalorder 1, %s14
    %p272 = scmp.lt.s32.totalorder %s14, 3
    %p273 = pnand %p271, %p272
    %p274 = pneg %p273
    // Predicated region
    $region49: #{up_forward_pallas.3} parent=5 // pred_check
      _
    $region50: #{up_forward_pallas.3} parent=5 // pred_check_branch
      %276 = sbr.rel (%p273) target = $region52
    $region51: #{up_forward_pallas.3} parent=5 // pred_region
      %s277 = ssub.s32 %s14, 1
      %p278 = scmp.lt.s32.totalorder %s19, 1
      %s279 = scalar_select %p278, %s19, 1
      %s280 = smul.addr %s279, 43
      %s281 = smul.addr %s280, 8
      %s282 = scalar_lea.vmem %s0, %s281
      %p283 = pneg %p40
      %p284 = pneg %p37
      %p285 = scmp.lt.s32.totalorder %s19, 1
      %s286 = scalar_select %p285, %s19, 1
      %s287 = smul.addr %s286, 43
      %s288 = smul.addr %s287, 8
      %s289 = scalar_lea.vmem %s1, %s288
      %p290 = pneg %p66
      %p291 = pneg %p63
      %p292 = pneg %p87
      %p293 = pneg %p84
      %p294 = pneg %p108
      %p295 = pneg %p105
      %p296 = pneg %p129
      %p297 = pneg %p126
      %p298 = pneg %p150
      %p299 = pneg %p147
      %p300 = pneg %p171
      %p301 = pneg %p168
      %p302 = pneg %p192
      %p303 = pneg %p189
      %p304 = pneg %p218
      %p305 = pneg %p215
      %p306 = scmp.lt.s32.totalorder %s19, 1
      %s307 = scalar_select %p306, %s19, 1
      %s308 = smul.addr %s307, 36
      %s309 = smul.addr %s308, 8
      %s310 = scalar_lea.vmem %s8, %s309
      %p311 = scmp.lt.s32.totalorder %s19, 1
      %s312 = scalar_select %p311, %s19, 1
      %s313 = smul.addr %s312, 43
      %s314 = smul.addr %s313, 8
      %s315 = scalar_lea.vmem %s0, %s314
      %p316 = scmp.lt.s32.totalorder %s19, 1
      %s317 = scalar_select %p316, %s19, 1
      %s318 = smul.addr %s317, 43
      %s319 = smul.addr %s318, 8
      %s320 = scalar_lea.vmem %s1, %s319
      %p321 = scmp.lt.s32.totalorder %s19, 1
      %s322 = scalar_select %p321, %s19, 1
      %s323 = smul.addr %s322, 36
      %s324 = smul.addr %s323, 8
      %s325 = scalar_lea.vmem %s8, %s324
      %v326 = vld [vmem:[%s315] sm:$0xff]
      %v327 = vld [vmem:[%s315 + $0x8] sm:$0xff]
      %v328 = vld [vmem:[%s315 + $0x10] sm:$0xff]
      %v329 = vld [vmem:[%s315 + $0x18] sm:$0xff]
      %v330 = vld [vmem:[%s315 + $0x20] sm:$0xff]
      %v331 = vld [vmem:[%s315 + $0x28] sm:$0xff]
      %v332 = vld [vmem:[%s315 + $0x30] sm:$0xff]
      %v333 = vld [vmem:[%s315 + $0x38] sm:$0xff]
      %v334 = vld [vmem:[%s315 + $0x40] sm:$0xff]
      %v335 = vld [vmem:[%s315 + $0x48] sm:$0xff]
      %v336 = vld [vmem:[%s315 + $0x50] sm:$0xff]
      %v337 = vld [vmem:[%s315 + $0x58] sm:$0xff]
      %v338 = vld [vmem:[%s315 + $0x60] sm:$0xff]
      %v339 = vld [vmem:[%s315 + $0x68] sm:$0xff]
      %v340 = vld [vmem:[%s315 + $0x70] sm:$0xff]
      %v341 = vld [vmem:[%s315 + $0x78] sm:$0xff]
      %v342 = vld [vmem:[%s315 + $0x80] sm:$0xff]
      %v343 = vld [vmem:[%s315 + $0x88] sm:$0xff]
      %v344 = vld [vmem:[%s315 + $0x90] sm:$0xff]
      %v345 = vld [vmem:[%s315 + $0x98] sm:$0xff]
      %v346 = vld [vmem:[%s315 + $0xa0] sm:$0xff]
      %v347 = vld [vmem:[%s315 + $0xa8] sm:$0xff]
      %v348 = vld [vmem:[%s315 + $0xb0] sm:$0xff]
      %v349 = vld [vmem:[%s315 + $0xb8] sm:$0xff]
      %v350 = vld [vmem:[%s315 + $0xc0] sm:$0xff]
      %v351 = vld [vmem:[%s315 + $0xc8] sm:$0xff]
      %v352 = vld [vmem:[%s315 + $0xd0] sm:$0xff]
      %v353 = vld [vmem:[%s315 + $0xd8] sm:$0xff]
      %v354 = vld [vmem:[%s315 + $0xe0] sm:$0xff]
      %v355 = vld [vmem:[%s315 + $0xe8] sm:$0xff]
      %v356 = vld [vmem:[%s315 + $0xf0] sm:$0xff]
      %v357 = vld [vmem:[%s315 + $0xf8] sm:$0xff]
      %v358 = vld [vmem:[%s315 + $0x100] sm:$0xff]
      %v359 = vld [vmem:[%s315 + $0x108] sm:$0xff]
      %v360 = vld [vmem:[%s315 + $0x110] sm:$0xff]
      %v361 = vld [vmem:[%s315 + $0x118] sm:$0xff]
      %v362 = vld [vmem:[%s3] sm:$0xf]
      %v363 = vld [vmem:[%s315 + $0x1] sm:$0xff]
      %v364 = vld [vmem:[%s315 + $0x9] sm:$0xff]
      %v365 = vld [vmem:[%s315 + $0x11] sm:$0xff]
      %v366 = vld [vmem:[%s315 + $0x19] sm:$0xff]
      %v367 = vld [vmem:[%s315 + $0x21] sm:$0xff]
      %v368 = vld [vmem:[%s315 + $0x29] sm:$0xff]
      %v369 = vld [vmem:[%s315 + $0x31] sm:$0xff]
      %v370 = vld [vmem:[%s315 + $0x39] sm:$0xff]
      %v371 = vld [vmem:[%s315 + $0x41] sm:$0xff]
      %v372 = vld [vmem:[%s315 + $0x49] sm:$0xff]
      %v373 = vld [vmem:[%s315 + $0x51] sm:$0xff]
      %v374 = vld [vmem:[%s315 + $0x59] sm:$0xff]
      %v375 = vld [vmem:[%s315 + $0x61] sm:$0xff]
      %v376 = vld [vmem:[%s315 + $0x69] sm:$0xff]
      %v377 = vld [vmem:[%s315 + $0x71] sm:$0xff]
      %v378 = vld [vmem:[%s315 + $0x79] sm:$0xff]
      %v379 = vld [vmem:[%s315 + $0x81] sm:$0xff]
      %v380 = vld [vmem:[%s315 + $0x89] sm:$0xff]
      %v381 = vld [vmem:[%s315 + $0x91] sm:$0xff]
      %v382 = vld [vmem:[%s315 + $0x99] sm:$0xff]
      %v383 = vld [vmem:[%s315 + $0xa1] sm:$0xff]
      %v384 = vld [vmem:[%s315 + $0xa9] sm:$0xff]
      %v385 = vld [vmem:[%s315 + $0xb1] sm:$0xff]
      %v386 = vld [vmem:[%s315 + $0xb9] sm:$0xff]
      %v387 = vld [vmem:[%s315 + $0xc1] sm:$0xff]
      %v388 = vld [vmem:[%s315 + $0xc9] sm:$0xff]
      %v389 = vld [vmem:[%s315 + $0xd1] sm:$0xff]
      %v390 = vld [vmem:[%s315 + $0xd9] sm:$0xff]
      %v391 = vld [vmem:[%s315 + $0xe1] sm:$0xff]
      %v392 = vld [vmem:[%s315 + $0xe9] sm:$0xff]
      %v393 = vld [vmem:[%s315 + $0xf1] sm:$0xff]
      %v394 = vld [vmem:[%s315 + $0xf9] sm:$0xff]
      %v395 = vld [vmem:[%s315 + $0x101] sm:$0xff]
      %v396 = vld [vmem:[%s315 + $0x109] sm:$0xff]
      %v397 = vld [vmem:[%s315 + $0x111] sm:$0xff]
      %v398 = vld [vmem:[%s315 + $0x119] sm:$0xff]
      %s399 = scalar_lea.vmem %s3, 4
      %v400 = vld [vmem:[%s399] sm:$0xf]
      %vm401 = vcmask 31744
      %v403 = vsel %vm401, %v363, 0
      %v406 = vsel %vm401, %v364, 0
      %v409 = vsel %vm401, %v365, 0
      %v412 = vsel %vm401, %v366, 0
      %v415 = vsel %vm401, %v367, 0
      %v418 = vsel %vm401, %v368, 0
      %v421 = vsel %vm401, %v369, 0
      %v424 = vsel %vm401, %v370, 0
      %v427 = vsel %vm401, %v371, 0
      %v430 = vsel %vm401, %v372, 0
      %v433 = vsel %vm401, %v373, 0
      %v436 = vsel %vm401, %v374, 0
      %v439 = vsel %vm401, %v375, 0
      %v442 = vsel %vm401, %v376, 0
      %v445 = vsel %vm401, %v377, 0
      %v448 = vsel %vm401, %v378, 0
      %v451 = vsel %vm401, %v379, 0
      %v454 = vsel %vm401, %v380, 0
      %v457 = vsel %vm401, %v381, 0
      %v460 = vsel %vm401, %v382, 0
      %v463 = vsel %vm401, %v383, 0
      %v466 = vsel %vm401, %v384, 0
      %v469 = vsel %vm401, %v385, 0
      %v472 = vsel %vm401, %v386, 0
      %v475 = vsel %vm401, %v387, 0
      %v478 = vsel %vm401, %v388, 0
      %v481 = vsel %vm401, %v389, 0
      %v484 = vsel %vm401, %v390, 0
      %v487 = vsel %vm401, %v391, 0
      %v490 = vsel %vm401, %v392, 0
      %v493 = vsel %vm401, %v393, 0
      %v496 = vsel %vm401, %v394, 0
      %v499 = vsel %vm401, %v395, 0
      %v502 = vsel %vm401, %v396, 0
      %v505 = vsel %vm401, %v397, 0
      %v508 = vsel %vm401, %v398, 0
      %vm510 = vcmask 1043456
      %v512 = vsel %vm510, %v400, 0
      %514 = vmatprep.subr.mxu0 0.0
      %515 = vmatpush1.msra.mxu0 0.0
      %516 = vmatprep.subr.mxu0 0.0
      %517 = vmatpush1.msra.mxu0 0.0
      %518 = vmatprep.subr.mxu0 0.0
      %519 = vmatpush1.msra.mxu0 0.0
      %520 = vmatprep.subr.mxu0 0.0
      %521 = vmatpush1.msra.mxu0 0.0
      %522 = vmatprep.subr.mxu0 0.0
      %523 = vmatpush1.msra.mxu0 0.0
      %524 = vmatprep.subr.mxu0 0.0
      %525 = vmatpush1.msra.mxu0 0.0
      %526 = vmatprep.subr.mxu0 0.0
      %527 = vmatpush1.msra.mxu0 0.0
      %528 = vmatprep.subr.mxu0 0.0
      %529 = vmatpush1.msra.mxu0 0.0
      %530 = vmatprep.subr.mxu0 0.0
      %531 = vmatpush1.msra.mxu0 0.0
      %532 = vmatprep.subr.mxu0 0.0
      %533 = vmatpush1.msra.mxu0 0.0
      %534 = vmatprep.subr.mxu0 0.0
      %535 = vmatpush1.msra.mxu0 0.0
      %536 = vmatprep.subr.mxu0 0.0
      %537 = vmatpush1.msra.mxu0 0.0
      %538 = vmatprep.subr.mxu0 0.0
      %539 = vmatpush1.msra.mxu0 0.0
      %540 = vmatprep.subr.mxu0 0.0
      %541 = vmatpush1.msra.mxu0 0.0
      %542 = vmatprep.subr.mxu0 0.0
      %543 = vmatpush1.msra.mxu0 0.0
      %544 = vmatprep.subr.mxu0 0.0
      %545 = vmatpush1.msra.mxu0 %v512
      %546 = vmatprep.subr.mxu0 0.0
      %547 = vmatpush2.msra.mxu0 0.0
      %548 = vmatprep.subr.mxu0 0.0
      %549 = vmatpush2.msra.mxu0 0.0
      %550 = vmatprep.subr.mxu0 0.0
      %551 = vmatpush2.msra.mxu0 0.0
      %552 = vmatprep.subr.mxu0 0.0
      %553 = vmatpush2.msra.mxu0 0.0
      %554 = vmatprep.subr.mxu0 0.0
      %555 = vmatpush2.msra.mxu0 0.0
      %556 = vmatprep.subr.mxu0 0.0
      %557 = vmatpush2.msra.mxu0 0.0
      %558 = vmatprep.subr.mxu0 0.0
      %559 = vmatpush2.msra.mxu0 0.0
      %560 = vmatprep.subr.mxu0 0.0
      %561 = vmatpush2.msra.mxu0 0.0
      %562 = vmatprep.subr.mxu0 0.0
      %563 = vmatpush2.msra.mxu0 0.0
      %564 = vmatprep.subr.mxu0 0.0
      %565 = vmatpush2.msra.mxu0 0.0
      %566 = vmatprep.subr.mxu0 0.0
      %567 = vmatpush2.msra.mxu0 0.0
      %568 = vmatprep.subr.mxu0 0.0
      %569 = vmatpush2.msra.mxu0 0.0
      %570 = vmatprep.subr.mxu0 0.0
      %571 = vmatpush2.msra.mxu0 0.0
      %572 = vmatprep.subr.mxu0 0.0
      %573 = vmatpush2.msra.mxu0 0.0
      %574 = vmatprep.subr.mxu0 0.0
      %575 = vmatpush2.msra.mxu0 0.0
      %576 = vmatprep.subr.mxu0 0.0
      %577 = vmatpush2.msra.mxu0 0.0
      %578 = vmatprep.mubr.f32.mxu0 0.0
      %579 = vmatmul.mubr.f32.gmra.mxu0 %v403
      %v580 = vpop.f32.mrf.mxu0
      %v581 = vadd.f32 0.0, %v580
      %v582 = vpop.f32.mrf.mxu0
      %583 = vmatprep.mubr.f32.mxu0 0.0
      %584 = vmatmul.mubr.f32.gmra.mxu0 %v406
      %v585 = vpop.f32.mrf.mxu0
      %v586 = vadd.f32 0.0, %v585
      %v587 = vpop.f32.mrf.mxu0
      %588 = vmatprep.mubr.f32.mxu0 0.0
      %589 = vmatmul.mubr.f32.gmra.mxu0 %v409
      %v590 = vpop.f32.mrf.mxu0
      %v591 = vadd.f32 0.0, %v590
      %v592 = vpop.f32.mrf.mxu0
      %593 = vmatprep.mubr.f32.mxu0 0.0
      %594 = vmatmul.mubr.f32.gmra.mxu0 %v412
      %v595 = vpop.f32.mrf.mxu0
      %v596 = vadd.f32 0.0, %v595
      %v597 = vpop.f32.mrf.mxu0
      %598 = vmatprep.mubr.f32.mxu0 0.0
      %599 = vmatmul.mubr.f32.gmra.mxu0 %v415
      %v600 = vpop.f32.mrf.mxu0
      %v601 = vadd.f32 0.0, %v600
      %v602 = vpop.f32.mrf.mxu0
      %603 = vmatprep.mubr.f32.mxu0 0.0
      %604 = vmatmul.mubr.f32.gmra.mxu0 %v418
      %v605 = vpop.f32.mrf.mxu0
      %v606 = vadd.f32 0.0, %v605
      %v607 = vpop.f32.mrf.mxu0
      %608 = vmatprep.mubr.f32.mxu0 0.0
      %609 = vmatmul.mubr.f32.gmra.mxu0 %v421
      %v610 = vpop.f32.mrf.mxu0
      %v611 = vadd.f32 0.0, %v610
      %v612 = vpop.f32.mrf.mxu0
      %613 = vmatprep.mubr.f32.mxu0 0.0
      %614 = vmatmul.mubr.f32.gmra.mxu0 %v424
      %v615 = vpop.f32.mrf.mxu0
      %v616 = vadd.f32 0.0, %v615
      %v617 = vpop.f32.mrf.mxu0
      %618 = vmatprep.mubr.f32.mxu0 0.0
      %619 = vmatmul.mubr.f32.gmra.mxu0 %v427
      %v620 = vpop.f32.mrf.mxu0
      %v621 = vadd.f32 0.0, %v620
      %v622 = vpop.f32.mrf.mxu0
      %623 = vmatprep.mubr.f32.mxu0 0.0
      %624 = vmatmul.mubr.f32.gmra.mxu0 %v430
      %v625 = vpop.f32.mrf.mxu0
      %v626 = vadd.f32 0.0, %v625
      %v627 = vpop.f32.mrf.mxu0
      %628 = vmatprep.mubr.f32.mxu0 0.0
      %629 = vmatmul.mubr.f32.gmra.mxu0 %v433
      %v630 = vpop.f32.mrf.mxu0
      %v631 = vadd.f32 0.0, %v630
      %v632 = vpop.f32.mrf.mxu0
      %633 = vmatprep.mubr.f32.mxu0 0.0
      %634 = vmatmul.mubr.f32.gmra.mxu0 %v436
      %v635 = vpop.f32.mrf.mxu0
      %v636 = vadd.f32 0.0, %v635
      %v637 = vpop.f32.mrf.mxu0
      %638 = vmatprep.mubr.f32.mxu0 0.0
      %639 = vmatmul.mubr.f32.gmra.mxu0 %v439
      %v640 = vpop.f32.mrf.mxu0
      %v641 = vadd.f32 0.0, %v640
      %v642 = vpop.f32.mrf.mxu0
      %643 = vmatprep.mubr.f32.mxu0 0.0
      %644 = vmatmul.mubr.f32.gmra.mxu0 %v442
      %v645 = vpop.f32.mrf.mxu0
      %v646 = vadd.f32 0.0, %v645
      %v647 = vpop.f32.mrf.mxu0
      %648 = vmatprep.mubr.f32.mxu0 0.0
      %649 = vmatmul.mubr.f32.gmra.mxu0 %v445
      %v650 = vpop.f32.mrf.mxu0
      %v651 = vadd.f32 0.0, %v650
      %v652 = vpop.f32.mrf.mxu0
      %653 = vmatprep.mubr.f32.mxu0 0.0
      %654 = vmatmul.mubr.f32.gmra.mxu0 %v448
      %v655 = vpop.f32.mrf.mxu0
      %v656 = vadd.f32 0.0, %v655
      %v657 = vpop.f32.mrf.mxu0
      %658 = vmatprep.mubr.f32.mxu0 0.0
      %659 = vmatmul.mubr.f32.gmra.mxu0 %v451
      %v660 = vpop.f32.mrf.mxu0
      %v661 = vadd.f32 0.0, %v660
      %v662 = vpop.f32.mrf.mxu0
      %663 = vmatprep.mubr.f32.mxu0 0.0
      %664 = vmatmul.mubr.f32.gmra.mxu0 %v454
      %v665 = vpop.f32.mrf.mxu0
      %v666 = vadd.f32 0.0, %v665
      %v667 = vpop.f32.mrf.mxu0
      %668 = vmatprep.mubr.f32.mxu0 0.0
      %669 = vmatmul.mubr.f32.gmra.mxu0 %v457
      %v670 = vpop.f32.mrf.mxu0
      %v671 = vadd.f32 0.0, %v670
      %v672 = vpop.f32.mrf.mxu0
      %673 = vmatprep.mubr.f32.mxu0 0.0
      %674 = vmatmul.mubr.f32.gmra.mxu0 %v460
      %v675 = vpop.f32.mrf.mxu0
      %v676 = vadd.f32 0.0, %v675
      %v677 = vpop.f32.mrf.mxu0
      %678 = vmatprep.mubr.f32.mxu0 0.0
      %679 = vmatmul.mubr.f32.gmra.mxu0 %v463
      %v680 = vpop.f32.mrf.mxu0
      %v681 = vadd.f32 0.0, %v680
      %v682 = vpop.f32.mrf.mxu0
      %683 = vmatprep.mubr.f32.mxu0 0.0
      %684 = vmatmul.mubr.f32.gmra.mxu0 %v466
      %v685 = vpop.f32.mrf.mxu0
      %v686 = vadd.f32 0.0, %v685
      %v687 = vpop.f32.mrf.mxu0
      %688 = vmatprep.mubr.f32.mxu0 0.0
      %689 = vmatmul.mubr.f32.gmra.mxu0 %v469
      %v690 = vpop.f32.mrf.mxu0
      %v691 = vadd.f32 0.0, %v690
      %v692 = vpop.f32.mrf.mxu0
      %693 = vmatprep.mubr.f32.mxu0 0.0
      %694 = vmatmul.mubr.f32.gmra.mxu0 %v472
      %v695 = vpop.f32.mrf.mxu0
      %v696 = vadd.f32 0.0, %v695
      %v697 = vpop.f32.mrf.mxu0
      %698 = vmatprep.mubr.f32.mxu0 0.0
      %699 = vmatmul.mubr.f32.gmra.mxu0 %v475
      %v700 = vpop.f32.mrf.mxu0
      %v701 = vadd.f32 0.0, %v700
      %v702 = vpop.f32.mrf.mxu0
      %703 = vmatprep.mubr.f32.mxu0 0.0
      %704 = vmatmul.mubr.f32.gmra.mxu0 %v478
      %v705 = vpop.f32.mrf.mxu0
      %v706 = vadd.f32 0.0, %v705
      %v707 = vpop.f32.mrf.mxu0
      %708 = vmatprep.mubr.f32.mxu0 0.0
      %709 = vmatmul.mubr.f32.gmra.mxu0 %v481
      %v710 = vpop.f32.mrf.mxu0
      %v711 = vadd.f32 0.0, %v710
      %v712 = vpop.f32.mrf.mxu0
      %713 = vmatprep.mubr.f32.mxu0 0.0
      %714 = vmatmul.mubr.f32.gmra.mxu0 %v484
      %v715 = vpop.f32.mrf.mxu0
      %v716 = vadd.f32 0.0, %v715
      %v717 = vpop.f32.mrf.mxu0
      %718 = vmatprep.mubr.f32.mxu0 0.0
      %719 = vmatmul.mubr.f32.gmra.mxu0 %v487
      %v720 = vpop.f32.mrf.mxu0
      %v721 = vadd.f32 0.0, %v720
      %v722 = vpop.f32.mrf.mxu0
      %723 = vmatprep.mubr.f32.mxu0 0.0
      %724 = vmatmul.mubr.f32.gmra.mxu0 %v490
      %v725 = vpop.f32.mrf.mxu0
      %v726 = vadd.f32 0.0, %v725
      %v727 = vpop.f32.mrf.mxu0
      %728 = vmatprep.mubr.f32.mxu0 0.0
      %729 = vmatmul.mubr.f32.gmra.mxu0 %v493
      %v730 = vpop.f32.mrf.mxu0
      %v731 = vadd.f32 0.0, %v730
      %v732 = vpop.f32.mrf.mxu0
      %733 = vmatprep.mubr.f32.mxu0 0.0
      %734 = vmatmul.mubr.f32.gmra.mxu0 %v496
      %v735 = vpop.f32.mrf.mxu0
      %v736 = vadd.f32 0.0, %v735
      %v737 = vpop.f32.mrf.mxu0
      %738 = vmatprep.mubr.f32.mxu0 0.0
      %739 = vmatmul.mubr.f32.gmra.mxu0 %v499
      %v740 = vpop.f32.mrf.mxu0
      %v741 = vadd.f32 0.0, %v740
      %v742 = vpop.f32.mrf.mxu0
      %743 = vmatprep.mubr.f32.mxu0 0.0
      %744 = vmatmul.mubr.f32.gmra.mxu0 %v502
      %v745 = vpop.f32.mrf.mxu0
      %v746 = vadd.f32 0.0, %v745
      %v747 = vpop.f32.mrf.mxu0
      %748 = vmatprep.mubr.f32.mxu0 0.0
      %749 = vmatmul.mubr.f32.gmra.mxu0 %v505
      %v750 = vpop.f32.mrf.mxu0
      %v751 = vadd.f32 0.0, %v750
      %v752 = vpop.f32.mrf.mxu0
      %753 = vmatprep.mubr.f32.mxu0 0.0
      %754 = vmatmul.mubr.f32.gmra.mxu0 %v508
      %v755 = vpop.f32.mrf.mxu0
      %v756 = vadd.f32 0.0, %v755
      %v757 = vpop.f32.mrf.mxu0
      %758 = vdwg.mxu0
      %v760 = vsel %vm401, %v326, 0
      %v763 = vsel %vm401, %v327, 0
      %v766 = vsel %vm401, %v328, 0
      %v769 = vsel %vm401, %v329, 0
      %v772 = vsel %vm401, %v330, 0
      %v775 = vsel %vm401, %v331, 0
      %v778 = vsel %vm401, %v332, 0
      %v781 = vsel %vm401, %v333, 0
      %v784 = vsel %vm401, %v334, 0
      %v787 = vsel %vm401, %v335, 0
      %v790 = vsel %vm401, %v336, 0
      %v793 = vsel %vm401, %v337, 0
      %v796 = vsel %vm401, %v338, 0
      %v799 = vsel %vm401, %v339, 0
      %v802 = vsel %vm401, %v340, 0
      %v805 = vsel %vm401, %v341, 0
      %v808 = vsel %vm401, %v342, 0
      %v811 = vsel %vm401, %v343, 0
      %v814 = vsel %vm401, %v344, 0
      %v817 = vsel %vm401, %v345, 0
      %v820 = vsel %vm401, %v346, 0
      %v823 = vsel %vm401, %v347, 0
      %v826 = vsel %vm401, %v348, 0
      %v829 = vsel %vm401, %v349, 0
      %v832 = vsel %vm401, %v350, 0
      %v835 = vsel %vm401, %v351, 0
      %v838 = vsel %vm401, %v352, 0
      %v841 = vsel %vm401, %v353, 0
      %v844 = vsel %vm401, %v354, 0
      %v847 = vsel %vm401, %v355, 0
      %v850 = vsel %vm401, %v356, 0
      %v853 = vsel %vm401, %v357, 0
      %v856 = vsel %vm401, %v358, 0
      %v859 = vsel %vm401, %v359, 0
      %v862 = vsel %vm401, %v360, 0
      %v865 = vsel %vm401, %v361, 0
      %v868 = vsel %vm510, %v362, 0
      %870 = vmatprep.subr.mxu0 0.0
      %871 = vmatpush1.msra.mxu0 0.0
      %872 = vmatprep.subr.mxu0 0.0
      %873 = vmatpush1.msra.mxu0 0.0
      %874 = vmatprep.subr.mxu0 0.0
      %875 = vmatpush1.msra.mxu0 0.0
      %876 = vmatprep.subr.mxu0 0.0
      %877 = vmatpush1.msra.mxu0 0.0
      %878 = vmatprep.subr.mxu0 0.0
      %879 = vmatpush1.msra.mxu0 0.0
      %880 = vmatprep.subr.mxu0 0.0
      %881 = vmatpush1.msra.mxu0 0.0
      %882 = vmatprep.subr.mxu0 0.0
      %883 = vmatpush1.msra.mxu0 0.0
      %884 = vmatprep.subr.mxu0 0.0
      %885 = vmatpush1.msra.mxu0 0.0
      %886 = vmatprep.subr.mxu0 0.0
      %887 = vmatpush1.msra.mxu0 0.0
      %888 = vmatprep.subr.mxu0 0.0
      %889 = vmatpush1.msra.mxu0 0.0
      %890 = vmatprep.subr.mxu0 0.0
      %891 = vmatpush1.msra.mxu0 0.0
      %892 = vmatprep.subr.mxu0 0.0
      %893 = vmatpush1.msra.mxu0 0.0
      %894 = vmatprep.subr.mxu0 0.0
      %895 = vmatpush1.msra.mxu0 0.0
      %896 = vmatprep.subr.mxu0 0.0
      %897 = vmatpush1.msra.mxu0 0.0
      %898 = vmatprep.subr.mxu0 0.0
      %899 = vmatpush1.msra.mxu0 0.0
      %900 = vmatprep.subr.mxu0 0.0
      %901 = vmatpush1.msra.mxu0 %v868
      %902 = vmatprep.subr.mxu0 0.0
      %903 = vmatpush2.msra.mxu0 0.0
      %904 = vmatprep.subr.mxu0 0.0
      %905 = vmatpush2.msra.mxu0 0.0
      %906 = vmatprep.subr.mxu0 0.0
      %907 = vmatpush2.msra.mxu0 0.0
      %908 = vmatprep.subr.mxu0 0.0
      %909 = vmatpush2.msra.mxu0 0.0
      %910 = vmatprep.subr.mxu0 0.0
      %911 = vmatpush2.msra.mxu0 0.0
      %912 = vmatprep.subr.mxu0 0.0
      %913 = vmatpush2.msra.mxu0 0.0
      %914 = vmatprep.subr.mxu0 0.0
      %915 = vmatpush2.msra.mxu0 0.0
      %916 = vmatprep.subr.mxu0 0.0
      %917 = vmatpush2.msra.mxu0 0.0
      %918 = vmatprep.subr.mxu0 0.0
      %919 = vmatpush2.msra.mxu0 0.0
      %920 = vmatprep.subr.mxu0 0.0
      %921 = vmatpush2.msra.mxu0 0.0
      %922 = vmatprep.subr.mxu0 0.0
      %923 = vmatpush2.msra.mxu0 0.0
      %924 = vmatprep.subr.mxu0 0.0
      %925 = vmatpush2.msra.mxu0 0.0
      %926 = vmatprep.subr.mxu0 0.0
      %927 = vmatpush2.msra.mxu0 0.0
      %928 = vmatprep.subr.mxu0 0.0
      %929 = vmatpush2.msra.mxu0 0.0
      %930 = vmatprep.subr.mxu0 0.0
      %931 = vmatpush2.msra.mxu0 0.0
      %932 = vmatprep.subr.mxu0 0.0
      %933 = vmatpush2.msra.mxu0 0.0
      %934 = vmatprep.mubr.f32.mxu0 0.0
      %935 = vmatmul.mubr.f32.gmra.mxu0 %v760
      %v936 = vpop.f32.mrf.mxu0
      %v937 = vadd.f32 %v581, %v936
      %v938 = vpop.f32.mrf.mxu0
      %939 = vmatprep.mubr.f32.mxu0 0.0
      %940 = vmatmul.mubr.f32.gmra.mxu0 %v763
      %v941 = vpop.f32.mrf.mxu0
      %v942 = vadd.f32 %v586, %v941
      %v943 = vpop.f32.mrf.mxu0
      %944 = vmatprep.mubr.f32.mxu0 0.0
      %945 = vmatmul.mubr.f32.gmra.mxu0 %v766
      %v946 = vpop.f32.mrf.mxu0
      %v947 = vadd.f32 %v591, %v946
      %v948 = vpop.f32.mrf.mxu0
      %949 = vmatprep.mubr.f32.mxu0 0.0
      %950 = vmatmul.mubr.f32.gmra.mxu0 %v769
      %v951 = vpop.f32.mrf.mxu0
      %v952 = vadd.f32 %v596, %v951
      %v953 = vpop.f32.mrf.mxu0
      %954 = vmatprep.mubr.f32.mxu0 0.0
      %955 = vmatmul.mubr.f32.gmra.mxu0 %v772
      %v956 = vpop.f32.mrf.mxu0
      %v957 = vadd.f32 %v601, %v956
      %v958 = vpop.f32.mrf.mxu0
      %959 = vmatprep.mubr.f32.mxu0 0.0
      %960 = vmatmul.mubr.f32.gmra.mxu0 %v775
      %v961 = vpop.f32.mrf.mxu0
      %v962 = vadd.f32 %v606, %v961
      %v963 = vpop.f32.mrf.mxu0
      %964 = vmatprep.mubr.f32.mxu0 0.0
      %965 = vmatmul.mubr.f32.gmra.mxu0 %v778
      %v966 = vpop.f32.mrf.mxu0
      %v967 = vadd.f32 %v611, %v966
      %v968 = vpop.f32.mrf.mxu0
      %969 = vmatprep.mubr.f32.mxu0 0.0
      %970 = vmatmul.mubr.f32.gmra.mxu0 %v781
      %v971 = vpop.f32.mrf.mxu0
      %v972 = vadd.f32 %v616, %v971
      %v973 = vpop.f32.mrf.mxu0
      %974 = vmatprep.mubr.f32.mxu0 0.0
      %975 = vmatmul.mubr.f32.gmra.mxu0 %v784
      %v976 = vpop.f32.mrf.mxu0
      %v977 = vadd.f32 %v621, %v976
      %v978 = vpop.f32.mrf.mxu0
      %979 = vmatprep.mubr.f32.mxu0 0.0
      %980 = vmatmul.mubr.f32.gmra.mxu0 %v787
      %v981 = vpop.f32.mrf.mxu0
      %v982 = vadd.f32 %v626, %v981
      %v983 = vpop.f32.mrf.mxu0
      %984 = vmatprep.mubr.f32.mxu0 0.0
      %985 = vmatmul.mubr.f32.gmra.mxu0 %v790
      %v986 = vpop.f32.mrf.mxu0
      %v987 = vadd.f32 %v631, %v986
      %v988 = vpop.f32.mrf.mxu0
      %989 = vmatprep.mubr.f32.mxu0 0.0
      %990 = vmatmul.mubr.f32.gmra.mxu0 %v793
      %v991 = vpop.f32.mrf.mxu0
      %v992 = vadd.f32 %v636, %v991
      %v993 = vpop.f32.mrf.mxu0
      %994 = vmatprep.mubr.f32.mxu0 0.0
      %995 = vmatmul.mubr.f32.gmra.mxu0 %v796
      %v996 = vpop.f32.mrf.mxu0
      %v997 = vadd.f32 %v641, %v996
      %v998 = vpop.f32.mrf.mxu0
      %999 = vmatprep.mubr.f32.mxu0 0.0
      %1000 = vmatmul.mubr.f32.gmra.mxu0 %v799
      %v1001 = vpop.f32.mrf.mxu0
      %v1002 = vadd.f32 %v646, %v1001
      %v1003 = vpop.f32.mrf.mxu0
      %1004 = vmatprep.mubr.f32.mxu0 0.0
      %1005 = vmatmul.mubr.f32.gmra.mxu0 %v802
      %v1006 = vpop.f32.mrf.mxu0
      %v1007 = vadd.f32 %v651, %v1006
      %v1008 = vpop.f32.mrf.mxu0
      %1009 = vmatprep.mubr.f32.mxu0 0.0
      %1010 = vmatmul.mubr.f32.gmra.mxu0 %v805
      %v1011 = vpop.f32.mrf.mxu0
      %v1012 = vadd.f32 %v656, %v1011
      %v1013 = vpop.f32.mrf.mxu0
      %1014 = vmatprep.mubr.f32.mxu0 0.0
      %1015 = vmatmul.mubr.f32.gmra.mxu0 %v808
      %v1016 = vpop.f32.mrf.mxu0
      %v1017 = vadd.f32 %v661, %v1016
      %v1018 = vpop.f32.mrf.mxu0
      %1019 = vmatprep.mubr.f32.mxu0 0.0
      %1020 = vmatmul.mubr.f32.gmra.mxu0 %v811
      %v1021 = vpop.f32.mrf.mxu0
      %v1022 = vadd.f32 %v666, %v1021
      %v1023 = vpop.f32.mrf.mxu0
      %1024 = vmatprep.mubr.f32.mxu0 0.0
      %1025 = vmatmul.mubr.f32.gmra.mxu0 %v814
      %v1026 = vpop.f32.mrf.mxu0
      %v1027 = vadd.f32 %v671, %v1026
      %v1028 = vpop.f32.mrf.mxu0
      %1029 = vmatprep.mubr.f32.mxu0 0.0
      %1030 = vmatmul.mubr.f32.gmra.mxu0 %v817
      %v1031 = vpop.f32.mrf.mxu0
      %v1032 = vadd.f32 %v676, %v1031
      %v1033 = vpop.f32.mrf.mxu0
      %1034 = vmatprep.mubr.f32.mxu0 0.0
      %1035 = vmatmul.mubr.f32.gmra.mxu0 %v820
      %v1036 = vpop.f32.mrf.mxu0
      %v1037 = vadd.f32 %v681, %v1036
      %v1038 = vpop.f32.mrf.mxu0
      %1039 = vmatprep.mubr.f32.mxu0 0.0
      %1040 = vmatmul.mubr.f32.gmra.mxu0 %v823
      %v1041 = vpop.f32.mrf.mxu0
      %v1042 = vadd.f32 %v686, %v1041
      %v1043 = vpop.f32.mrf.mxu0
      %1044 = vmatprep.mubr.f32.mxu0 0.0
      %1045 = vmatmul.mubr.f32.gmra.mxu0 %v826
      %v1046 = vpop.f32.mrf.mxu0
      %v1047 = vadd.f32 %v691, %v1046
      %v1048 = vpop.f32.mrf.mxu0
      %1049 = vmatprep.mubr.f32.mxu0 0.0
      %1050 = vmatmul.mubr.f32.gmra.mxu0 %v829
      %v1051 = vpop.f32.mrf.mxu0
      %v1052 = vadd.f32 %v696, %v1051
      %v1053 = vpop.f32.mrf.mxu0
      %1054 = vmatprep.mubr.f32.mxu0 0.0
      %1055 = vmatmul.mubr.f32.gmra.mxu0 %v832
      %v1056 = vpop.f32.mrf.mxu0
      %v1057 = vadd.f32 %v701, %v1056
      %v1058 = vpop.f32.mrf.mxu0
      %1059 = vmatprep.mubr.f32.mxu0 0.0
      %1060 = vmatmul.mubr.f32.gmra.mxu0 %v835
      %v1061 = vpop.f32.mrf.mxu0
      %v1062 = vadd.f32 %v706, %v1061
      %v1063 = vpop.f32.mrf.mxu0
      %1064 = vmatprep.mubr.f32.mxu0 0.0
      %1065 = vmatmul.mubr.f32.gmra.mxu0 %v838
      %v1066 = vpop.f32.mrf.mxu0
      %v1067 = vadd.f32 %v711, %v1066
      %v1068 = vpop.f32.mrf.mxu0
      %1069 = vmatprep.mubr.f32.mxu0 0.0
      %1070 = vmatmul.mubr.f32.gmra.mxu0 %v841
      %v1071 = vpop.f32.mrf.mxu0
      %v1072 = vadd.f32 %v716, %v1071
      %v1073 = vpop.f32.mrf.mxu0
      %1074 = vmatprep.mubr.f32.mxu0 0.0
      %1075 = vmatmul.mubr.f32.gmra.mxu0 %v844
      %v1076 = vpop.f32.mrf.mxu0
      %v1077 = vadd.f32 %v721, %v1076
      %v1078 = vpop.f32.mrf.mxu0
      %1079 = vmatprep.mubr.f32.mxu0 0.0
      %1080 = vmatmul.mubr.f32.gmra.mxu0 %v847
      %v1081 = vpop.f32.mrf.mxu0
      %v1082 = vadd.f32 %v726, %v1081
      %v1083 = vpop.f32.mrf.mxu0
      %1084 = vmatprep.mubr.f32.mxu0 0.0
      %1085 = vmatmul.mubr.f32.gmra.mxu0 %v850
      %v1086 = vpop.f32.mrf.mxu0
      %v1087 = vadd.f32 %v731, %v1086
      %v1088 = vpop.f32.mrf.mxu0
      %1089 = vmatprep.mubr.f32.mxu0 0.0
      %1090 = vmatmul.mubr.f32.gmra.mxu0 %v853
      %v1091 = vpop.f32.mrf.mxu0
      %v1092 = vadd.f32 %v736, %v1091
      %v1093 = vpop.f32.mrf.mxu0
      %1094 = vmatprep.mubr.f32.mxu0 0.0
      %1095 = vmatmul.mubr.f32.gmra.mxu0 %v856
      %v1096 = vpop.f32.mrf.mxu0
      %v1097 = vadd.f32 %v741, %v1096
      %v1098 = vpop.f32.mrf.mxu0
      %1099 = vmatprep.mubr.f32.mxu0 0.0
      %1100 = vmatmul.mubr.f32.gmra.mxu0 %v859
      %v1101 = vpop.f32.mrf.mxu0
      %v1102 = vadd.f32 %v746, %v1101
      %v1103 = vpop.f32.mrf.mxu0
      %1104 = vmatprep.mubr.f32.mxu0 0.0
      %1105 = vmatmul.mubr.f32.gmra.mxu0 %v862
      %v1106 = vpop.f32.mrf.mxu0
      %v1107 = vadd.f32 %v751, %v1106
      %v1108 = vpop.f32.mrf.mxu0
      %1109 = vmatprep.mubr.f32.mxu0 0.0
      %1110 = vmatmul.mubr.f32.gmra.mxu0 %v865
      %v1111 = vpop.f32.mrf.mxu0
      %v1112 = vadd.f32 %v756, %v1111
      %v1113 = vpop.f32.mrf.mxu0
      %1114 = vdwg.mxu0
      %v1115 = vld [vmem:[%s315 + $0x2] sm:$0xff]
      %v1116 = vld [vmem:[%s315 + $0xa] sm:$0xff]
      %v1117 = vld [vmem:[%s315 + $0x12] sm:$0xff]
      %v1118 = vld [vmem:[%s315 + $0x1a] sm:$0xff]
      %v1119 = vld [vmem:[%s315 + $0x22] sm:$0xff]
      %v1120 = vld [vmem:[%s315 + $0x2a] sm:$0xff]
      %v1121 = vld [vmem:[%s315 + $0x32] sm:$0xff]
      %v1122 = vld [vmem:[%s315 + $0x3a] sm:$0xff]
      %v1123 = vld [vmem:[%s315 + $0x42] sm:$0xff]
      %v1124 = vld [vmem:[%s315 + $0x4a] sm:$0xff]
      %v1125 = vld [vmem:[%s315 + $0x52] sm:$0xff]
      %v1126 = vld [vmem:[%s315 + $0x5a] sm:$0xff]
      %v1127 = vld [vmem:[%s315 + $0x62] sm:$0xff]
      %v1128 = vld [vmem:[%s315 + $0x6a] sm:$0xff]
      %v1129 = vld [vmem:[%s315 + $0x72] sm:$0xff]
      %v1130 = vld [vmem:[%s315 + $0x7a] sm:$0xff]
      %v1131 = vld [vmem:[%s315 + $0x82] sm:$0xff]
      %v1132 = vld [vmem:[%s315 + $0x8a] sm:$0xff]
      %v1133 = vld [vmem:[%s315 + $0x92] sm:$0xff]
      %v1134 = vld [vmem:[%s315 + $0x9a] sm:$0xff]
      %v1135 = vld [vmem:[%s315 + $0xa2] sm:$0xff]
      %v1136 = vld [vmem:[%s315 + $0xaa] sm:$0xff]
      %v1137 = vld [vmem:[%s315 + $0xb2] sm:$0xff]
      %v1138 = vld [vmem:[%s315 + $0xba] sm:$0xff]
      %v1139 = vld [vmem:[%s315 + $0xc2] sm:$0xff]
      %v1140 = vld [vmem:[%s315 + $0xca] sm:$0xff]
      %v1141 = vld [vmem:[%s315 + $0xd2] sm:$0xff]
      %v1142 = vld [vmem:[%s315 + $0xda] sm:$0xff]
      %v1143 = vld [vmem:[%s315 + $0xe2] sm:$0xff]
      %v1144 = vld [vmem:[%s315 + $0xea] sm:$0xff]
      %v1145 = vld [vmem:[%s315 + $0xf2] sm:$0xff]
      %v1146 = vld [vmem:[%s315 + $0xfa] sm:$0xff]
      %v1147 = vld [vmem:[%s315 + $0x102] sm:$0xff]
      %v1148 = vld [vmem:[%s315 + $0x10a] sm:$0xff]
      %v1149 = vld [vmem:[%s315 + $0x112] sm:$0xff]
      %v1150 = vld [vmem:[%s315 + $0x11a] sm:$0xff]
      %s1151 = scalar_lea.vmem %s3, 8
      %v1152 = vld [vmem:[%s1151] sm:$0xf]
      %v1154 = vsel %vm401, %v1115, 0
      %v1157 = vsel %vm401, %v1116, 0
      %v1160 = vsel %vm401, %v1117, 0
      %v1163 = vsel %vm401, %v1118, 0
      %v1166 = vsel %vm401, %v1119, 0
      %v1169 = vsel %vm401, %v1120, 0
      %v1172 = vsel %vm401, %v1121, 0
      %v1175 = vsel %vm401, %v1122, 0
      %v1178 = vsel %vm401, %v1123, 0
      %v1181 = vsel %vm401, %v1124, 0
      %v1184 = vsel %vm401, %v1125, 0
      %v1187 = vsel %vm401, %v1126, 0
      %v1190 = vsel %vm401, %v1127, 0
      %v1193 = vsel %vm401, %v1128, 0
      %v1196 = vsel %vm401, %v1129, 0
      %v1199 = vsel %vm401, %v1130, 0
      %v1202 = vsel %vm401, %v1131, 0
      %v1205 = vsel %vm401, %v1132, 0
      %v1208 = vsel %vm401, %v1133, 0
      %v1211 = vsel %vm401, %v1134, 0
      %v1214 = vsel %vm401, %v1135, 0
      %v1217 = vsel %vm401, %v1136, 0
      %v1220 = vsel %vm401, %v1137, 0
      %v1223 = vsel %vm401, %v1138, 0
      %v1226 = vsel %vm401, %v1139, 0
      %v1229 = vsel %vm401, %v1140, 0
      %v1232 = vsel %vm401, %v1141, 0
      %v1235 = vsel %vm401, %v1142, 0
      %v1238 = vsel %vm401, %v1143, 0
      %v1241 = vsel %vm401, %v1144, 0
      %v1244 = vsel %vm401, %v1145, 0
      %v1247 = vsel %vm401, %v1146, 0
      %v1250 = vsel %vm401, %v1147, 0
      %v1253 = vsel %vm401, %v1148, 0
      %v1256 = vsel %vm401, %v1149, 0
      %v1259 = vsel %vm401, %v1150, 0
      %v1262 = vsel %vm510, %v1152, 0
      %1264 = vmatprep.subr.mxu0 0.0
      %1265 = vmatpush1.msra.mxu0 0.0
      %1266 = vmatprep.subr.mxu0 0.0
      %1267 = vmatpush1.msra.mxu0 0.0
      %1268 = vmatprep.subr.mxu0 0.0
      %1269 = vmatpush1.msra.mxu0 0.0
      %1270 = vmatprep.subr.mxu0 0.0
      %1271 = vmatpush1.msra.mxu0 0.0
      %1272 = vmatprep.subr.mxu0 0.0
      %1273 = vmatpush1.msra.mxu0 0.0
      %1274 = vmatprep.subr.mxu0 0.0
      %1275 = vmatpush1.msra.mxu0 0.0
      %1276 = vmatprep.subr.mxu0 0.0
      %1277 = vmatpush1.msra.mxu0 0.0
      %1278 = vmatprep.subr.mxu0 0.0
      %1279 = vmatpush1.msra.mxu0 0.0
      %1280 = vmatprep.subr.mxu0 0.0
      %1281 = vmatpush1.msra.mxu0 0.0
      %1282 = vmatprep.subr.mxu0 0.0
      %1283 = vmatpush1.msra.mxu0 0.0
      %1284 = vmatprep.subr.mxu0 0.0
      %1285 = vmatpush1.msra.mxu0 0.0
      %1286 = vmatprep.subr.mxu0 0.0
      %1287 = vmatpush1.msra.mxu0 0.0
      %1288 = vmatprep.subr.mxu0 0.0
      %1289 = vmatpush1.msra.mxu0 0.0
      %1290 = vmatprep.subr.mxu0 0.0
      %1291 = vmatpush1.msra.mxu0 0.0
      %1292 = vmatprep.subr.mxu0 0.0
      %1293 = vmatpush1.msra.mxu0 0.0
      %1294 = vmatprep.subr.mxu0 0.0
      %1295 = vmatpush1.msra.mxu0 %v1262
      %1296 = vmatprep.subr.mxu0 0.0
      %1297 = vmatpush2.msra.mxu0 0.0
      %1298 = vmatprep.subr.mxu0 0.0
      %1299 = vmatpush2.msra.mxu0 0.0
      %1300 = vmatprep.subr.mxu0 0.0
      %1301 = vmatpush2.msra.mxu0 0.0
      %1302 = vmatprep.subr.mxu0 0.0
      %1303 = vmatpush2.msra.mxu0 0.0
      %1304 = vmatprep.subr.mxu0 0.0
      %1305 = vmatpush2.msra.mxu0 0.0
      %1306 = vmatprep.subr.mxu0 0.0
      %1307 = vmatpush2.msra.mxu0 0.0
      %1308 = vmatprep.subr.mxu0 0.0
      %1309 = vmatpush2.msra.mxu0 0.0
      %1310 = vmatprep.subr.mxu0 0.0
      %1311 = vmatpush2.msra.mxu0 0.0
      %1312 = vmatprep.subr.mxu0 0.0
      %1313 = vmatpush2.msra.mxu0 0.0
      %1314 = vmatprep.subr.mxu0 0.0
      %1315 = vmatpush2.msra.mxu0 0.0
      %1316 = vmatprep.subr.mxu0 0.0
      %1317 = vmatpush2.msra.mxu0 0.0
      %1318 = vmatprep.subr.mxu0 0.0
      %1319 = vmatpush2.msra.mxu0 0.0
      %1320 = vmatprep.subr.mxu0 0.0
      %1321 = vmatpush2.msra.mxu0 0.0
      %1322 = vmatprep.subr.mxu0 0.0
      %1323 = vmatpush2.msra.mxu0 0.0
      %1324 = vmatprep.subr.mxu0 0.0
      %1325 = vmatpush2.msra.mxu0 0.0
      %1326 = vmatprep.subr.mxu0 0.0
      %1327 = vmatpush2.msra.mxu0 0.0
      %1328 = vmatprep.mubr.f32.mxu0 0.0
      %1329 = vmatmul.mubr.f32.gmra.mxu0 %v1154
      %v1330 = vpop.f32.mrf.mxu0
      %v1331 = vadd.f32 0.0, %v1330
      %v1332 = vpop.f32.mrf.mxu0
      %1333 = vmatprep.mubr.f32.mxu0 0.0
      %1334 = vmatmul.mubr.f32.gmra.mxu0 %v1157
      %v1335 = vpop.f32.mrf.mxu0
      %v1336 = vadd.f32 0.0, %v1335
      %v1337 = vpop.f32.mrf.mxu0
      %1338 = vmatprep.mubr.f32.mxu0 0.0
      %1339 = vmatmul.mubr.f32.gmra.mxu0 %v1160
      %v1340 = vpop.f32.mrf.mxu0
      %v1341 = vadd.f32 0.0, %v1340
      %v1342 = vpop.f32.mrf.mxu0
      %1343 = vmatprep.mubr.f32.mxu0 0.0
      %1344 = vmatmul.mubr.f32.gmra.mxu0 %v1163
      %v1345 = vpop.f32.mrf.mxu0
      %v1346 = vadd.f32 0.0, %v1345
      %v1347 = vpop.f32.mrf.mxu0
      %1348 = vmatprep.mubr.f32.mxu0 0.0
      %1349 = vmatmul.mubr.f32.gmra.mxu0 %v1166
      %v1350 = vpop.f32.mrf.mxu0
      %v1351 = vadd.f32 0.0, %v1350
      %v1352 = vpop.f32.mrf.mxu0
      %1353 = vmatprep.mubr.f32.mxu0 0.0
      %1354 = vmatmul.mubr.f32.gmra.mxu0 %v1169
      %v1355 = vpop.f32.mrf.mxu0
      %v1356 = vadd.f32 0.0, %v1355
      %v1357 = vpop.f32.mrf.mxu0
      %1358 = vmatprep.mubr.f32.mxu0 0.0
      %1359 = vmatmul.mubr.f32.gmra.mxu0 %v1172
      %v1360 = vpop.f32.mrf.mxu0
      %v1361 = vadd.f32 0.0, %v1360
      %v1362 = vpop.f32.mrf.mxu0
      %1363 = vmatprep.mubr.f32.mxu0 0.0
      %1364 = vmatmul.mubr.f32.gmra.mxu0 %v1175
      %v1365 = vpop.f32.mrf.mxu0
      %v1366 = vadd.f32 0.0, %v1365
      %v1367 = vpop.f32.mrf.mxu0
      %1368 = vmatprep.mubr.f32.mxu0 0.0
      %1369 = vmatmul.mubr.f32.gmra.mxu0 %v1178
      %v1370 = vpop.f32.mrf.mxu0
      %v1371 = vadd.f32 0.0, %v1370
      %v1372 = vpop.f32.mrf.mxu0
      %1373 = vmatprep.mubr.f32.mxu0 0.0
      %1374 = vmatmul.mubr.f32.gmra.mxu0 %v1181
      %v1375 = vpop.f32.mrf.mxu0
      %v1376 = vadd.f32 0.0, %v1375
      %v1377 = vpop.f32.mrf.mxu0
      %1378 = vmatprep.mubr.f32.mxu0 0.0
      %1379 = vmatmul.mubr.f32.gmra.mxu0 %v1184
      %v1380 = vpop.f32.mrf.mxu0
      %v1381 = vadd.f32 0.0, %v1380
      %v1382 = vpop.f32.mrf.mxu0
      %1383 = vmatprep.mubr.f32.mxu0 0.0
      %1384 = vmatmul.mubr.f32.gmra.mxu0 %v1187
      %v1385 = vpop.f32.mrf.mxu0
      %v1386 = vadd.f32 0.0, %v1385
      %v1387 = vpop.f32.mrf.mxu0
      %1388 = vmatprep.mubr.f32.mxu0 0.0
      %1389 = vmatmul.mubr.f32.gmra.mxu0 %v1190
      %v1390 = vpop.f32.mrf.mxu0
      %v1391 = vadd.f32 0.0, %v1390
      %v1392 = vpop.f32.mrf.mxu0
      %1393 = vmatprep.mubr.f32.mxu0 0.0
      %1394 = vmatmul.mubr.f32.gmra.mxu0 %v1193
      %v1395 = vpop.f32.mrf.mxu0
      %v1396 = vadd.f32 0.0, %v1395
      %v1397 = vpop.f32.mrf.mxu0
      %1398 = vmatprep.mubr.f32.mxu0 0.0
      %1399 = vmatmul.mubr.f32.gmra.mxu0 %v1196
      %v1400 = vpop.f32.mrf.mxu0
      %v1401 = vadd.f32 0.0, %v1400
      %v1402 = vpop.f32.mrf.mxu0
      %1403 = vmatprep.mubr.f32.mxu0 0.0
      %1404 = vmatmul.mubr.f32.gmra.mxu0 %v1199
      %v1405 = vpop.f32.mrf.mxu0
      %v1406 = vadd.f32 0.0, %v1405
      %v1407 = vpop.f32.mrf.mxu0
      %1408 = vmatprep.mubr.f32.mxu0 0.0
      %1409 = vmatmul.mubr.f32.gmra.mxu0 %v1202
      %v1410 = vpop.f32.mrf.mxu0
      %v1411 = vadd.f32 0.0, %v1410
      %v1412 = vpop.f32.mrf.mxu0
      %1413 = vmatprep.mubr.f32.mxu0 0.0
      %1414 = vmatmul.mubr.f32.gmra.mxu0 %v1205
      %v1415 = vpop.f32.mrf.mxu0
      %v1416 = vadd.f32 0.0, %v1415
      %v1417 = vpop.f32.mrf.mxu0
      %1418 = vmatprep.mubr.f32.mxu0 0.0
      %1419 = vmatmul.mubr.f32.gmra.mxu0 %v1208
      %v1420 = vpop.f32.mrf.mxu0
      %v1421 = vadd.f32 0.0, %v1420
      %v1422 = vpop.f32.mrf.mxu0
      %1423 = vmatprep.mubr.f32.mxu0 0.0
      %1424 = vmatmul.mubr.f32.gmra.mxu0 %v1211
      %v1425 = vpop.f32.mrf.mxu0
      %v1426 = vadd.f32 0.0, %v1425
      %v1427 = vpop.f32.mrf.mxu0
      %1428 = vmatprep.mubr.f32.mxu0 0.0
      %1429 = vmatmul.mubr.f32.gmra.mxu0 %v1214
      %v1430 = vpop.f32.mrf.mxu0
      %v1431 = vadd.f32 0.0, %v1430
      %v1432 = vpop.f32.mrf.mxu0
      %1433 = vmatprep.mubr.f32.mxu0 0.0
      %1434 = vmatmul.mubr.f32.gmra.mxu0 %v1217
      %v1435 = vpop.f32.mrf.mxu0
      %v1436 = vadd.f32 0.0, %v1435
      %v1437 = vpop.f32.mrf.mxu0
      %1438 = vmatprep.mubr.f32.mxu0 0.0
      %1439 = vmatmul.mubr.f32.gmra.mxu0 %v1220
      %v1440 = vpop.f32.mrf.mxu0
      %v1441 = vadd.f32 0.0, %v1440
      %v1442 = vpop.f32.mrf.mxu0
      %1443 = vmatprep.mubr.f32.mxu0 0.0
      %1444 = vmatmul.mubr.f32.gmra.mxu0 %v1223
      %v1445 = vpop.f32.mrf.mxu0
      %v1446 = vadd.f32 0.0, %v1445
      %v1447 = vpop.f32.mrf.mxu0
      %1448 = vmatprep.mubr.f32.mxu0 0.0
      %1449 = vmatmul.mubr.f32.gmra.mxu0 %v1226
      %v1450 = vpop.f32.mrf.mxu0
      %v1451 = vadd.f32 0.0, %v1450
      %v1452 = vpop.f32.mrf.mxu0
      %1453 = vmatprep.mubr.f32.mxu0 0.0
      %1454 = vmatmul.mubr.f32.gmra.mxu0 %v1229
      %v1455 = vpop.f32.mrf.mxu0
      %v1456 = vadd.f32 0.0, %v1455
      %v1457 = vpop.f32.mrf.mxu0
      %1458 = vmatprep.mubr.f32.mxu0 0.0
      %1459 = vmatmul.mubr.f32.gmra.mxu0 %v1232
      %v1460 = vpop.f32.mrf.mxu0
      %v1461 = vadd.f32 0.0, %v1460
      %v1462 = vpop.f32.mrf.mxu0
      %1463 = vmatprep.mubr.f32.mxu0 0.0
      %1464 = vmatmul.mubr.f32.gmra.mxu0 %v1235
      %v1465 = vpop.f32.mrf.mxu0
      %v1466 = vadd.f32 0.0, %v1465
      %v1467 = vpop.f32.mrf.mxu0
      %1468 = vmatprep.mubr.f32.mxu0 0.0
      %1469 = vmatmul.mubr.f32.gmra.mxu0 %v1238
      %v1470 = vpop.f32.mrf.mxu0
      %v1471 = vadd.f32 0.0, %v1470
      %v1472 = vpop.f32.mrf.mxu0
      %1473 = vmatprep.mubr.f32.mxu0 0.0
      %1474 = vmatmul.mubr.f32.gmra.mxu0 %v1241
      %v1475 = vpop.f32.mrf.mxu0
      %v1476 = vadd.f32 0.0, %v1475
      %v1477 = vpop.f32.mrf.mxu0
      %1478 = vmatprep.mubr.f32.mxu0 0.0
      %1479 = vmatmul.mubr.f32.gmra.mxu0 %v1244
      %v1480 = vpop.f32.mrf.mxu0
      %v1481 = vadd.f32 0.0, %v1480
      %v1482 = vpop.f32.mrf.mxu0
      %1483 = vmatprep.mubr.f32.mxu0 0.0
      %1484 = vmatmul.mubr.f32.gmra.mxu0 %v1247
      %v1485 = vpop.f32.mrf.mxu0
      %v1486 = vadd.f32 0.0, %v1485
      %v1487 = vpop.f32.mrf.mxu0
      %1488 = vmatprep.mubr.f32.mxu0 0.0
      %1489 = vmatmul.mubr.f32.gmra.mxu0 %v1250
      %v1490 = vpop.f32.mrf.mxu0
      %v1491 = vadd.f32 0.0, %v1490
      %v1492 = vpop.f32.mrf.mxu0
      %1493 = vmatprep.mubr.f32.mxu0 0.0
      %1494 = vmatmul.mubr.f32.gmra.mxu0 %v1253
      %v1495 = vpop.f32.mrf.mxu0
      %v1496 = vadd.f32 0.0, %v1495
      %v1497 = vpop.f32.mrf.mxu0
      %1498 = vmatprep.mubr.f32.mxu0 0.0
      %1499 = vmatmul.mubr.f32.gmra.mxu0 %v1256
      %v1500 = vpop.f32.mrf.mxu0
      %v1501 = vadd.f32 0.0, %v1500
      %v1502 = vpop.f32.mrf.mxu0
      %1503 = vmatprep.mubr.f32.mxu0 0.0
      %1504 = vmatmul.mubr.f32.gmra.mxu0 %v1259
      %v1505 = vpop.f32.mrf.mxu0
      %v1506 = vadd.f32 0.0, %v1505
      %v1507 = vpop.f32.mrf.mxu0
      %1508 = vdwg.mxu0
      %v1509 = vadd.f32 %v937, %v1331
      %v1510 = vadd.f32 %v942, %v1336
      %v1511 = vadd.f32 %v947, %v1341
      %v1512 = vadd.f32 %v952, %v1346
      %v1513 = vadd.f32 %v957, %v1351
      %v1514 = vadd.f32 %v962, %v1356
      %v1515 = vadd.f32 %v967, %v1361
      %v1516 = vadd.f32 %v972, %v1366
      %v1517 = vadd.f32 %v977, %v1371
      %v1518 = vadd.f32 %v982, %v1376
      %v1519 = vadd.f32 %v987, %v1381
      %v1520 = vadd.f32 %v992, %v1386
      %v1521 = vadd.f32 %v997, %v1391
      %v1522 = vadd.f32 %v1002, %v1396
      %v1523 = vadd.f32 %v1007, %v1401
      %v1524 = vadd.f32 %v1012, %v1406
      %v1525 = vadd.f32 %v1017, %v1411
      %v1526 = vadd.f32 %v1022, %v1416
      %v1527 = vadd.f32 %v1027, %v1421
      %v1528 = vadd.f32 %v1032, %v1426
      %v1529 = vadd.f32 %v1037, %v1431
      %v1530 = vadd.f32 %v1042, %v1436
      %v1531 = vadd.f32 %v1047, %v1441
      %v1532 = vadd.f32 %v1052, %v1446
      %v1533 = vadd.f32 %v1057, %v1451
      %v1534 = vadd.f32 %v1062, %v1456
      %v1535 = vadd.f32 %v1067, %v1461
      %v1536 = vadd.f32 %v1072, %v1466
      %v1537 = vadd.f32 %v1077, %v1471
      %v1538 = vadd.f32 %v1082, %v1476
      %v1539 = vadd.f32 %v1087, %v1481
      %v1540 = vadd.f32 %v1092, %v1486
      %v1541 = vadd.f32 %v1097, %v1491
      %v1542 = vadd.f32 %v1102, %v1496
      %v1543 = vadd.f32 %v1107, %v1501
      %v1544 = vadd.f32 %v1112, %v1506
      %v1545 = vld [vmem:[%s315 + $0x12] sm:$0xff]
      %v1546 = vld [vmem:[%s315 + $0x1a] sm:$0xff]
      %v1547 = vld [vmem:[%s315 + $0x22] sm:$0xff]
      %v1548 = vld [vmem:[%s315 + $0x2a] sm:$0xff]
      %v1549 = vld [vmem:[%s315 + $0x32] sm:$0xff]
      %v1550 = vld [vmem:[%s315 + $0x3a] sm:$0xff]
      %v1551 = vld [vmem:[%s315 + $0x42] sm:$0xff]
      %v1552 = vld [vmem:[%s315 + $0x4a] sm:$0xff]
      %v1553 = vld [vmem:[%s315 + $0x52] sm:$0xff]
      %v1554 = vld [vmem:[%s315 + $0x5a] sm:$0xff]
      %v1555 = vld [vmem:[%s315 + $0x62] sm:$0xff]
      %v1556 = vld [vmem:[%s315 + $0x6a] sm:$0xff]
      %v1557 = vld [vmem:[%s315 + $0x72] sm:$0xff]
      %v1558 = vld [vmem:[%s315 + $0x7a] sm:$0xff]
      %v1559 = vld [vmem:[%s315 + $0x82] sm:$0xff]
      %v1560 = vld [vmem:[%s315 + $0x8a] sm:$0xff]
      %v1561 = vld [vmem:[%s315 + $0x92] sm:$0xff]
      %v1562 = vld [vmem:[%s315 + $0x9a] sm:$0xff]
      %v1563 = vld [vmem:[%s315 + $0xa2] sm:$0xff]
      %v1564 = vld [vmem:[%s315 + $0xaa] sm:$0xff]
      %v1565 = vld [vmem:[%s315 + $0xb2] sm:$0xff]
      %v1566 = vld [vmem:[%s315 + $0xba] sm:$0xff]
      %v1567 = vld [vmem:[%s315 + $0xc2] sm:$0xff]
      %v1568 = vld [vmem:[%s315 + $0xca] sm:$0xff]
      %v1569 = vld [vmem:[%s315 + $0xd2] sm:$0xff]
      %v1570 = vld [vmem:[%s315 + $0xda] sm:$0xff]
      %v1571 = vld [vmem:[%s315 + $0xe2] sm:$0xff]
      %v1572 = vld [vmem:[%s315 + $0xea] sm:$0xff]
      %v1573 = vld [vmem:[%s315 + $0xf2] sm:$0xff]
      %v1574 = vld [vmem:[%s315 + $0xfa] sm:$0xff]
      %v1575 = vld [vmem:[%s315 + $0x102] sm:$0xff]
      %v1576 = vld [vmem:[%s315 + $0x10a] sm:$0xff]
      %v1577 = vld [vmem:[%s315 + $0x112] sm:$0xff]
      %v1578 = vld [vmem:[%s315 + $0x11a] sm:$0xff]
      %v1579 = vld [vmem:[%s315 + $0x122] sm:$0xff]
      %v1580 = vld [vmem:[%s315 + $0x12a] sm:$0xff]
      %s1581 = scalar_lea.vmem %s3, 12
      %v1582 = vld [vmem:[%s1581] sm:$0xf]
      %v1584 = vsel %vm401, %v1545, 0
      %v1587 = vsel %vm401, %v1546, 0
      %v1590 = vsel %vm401, %v1547, 0
      %v1593 = vsel %vm401, %v1548, 0
      %v1596 = vsel %vm401, %v1549, 0
      %v1599 = vsel %vm401, %v1550, 0
      %v1602 = vsel %vm401, %v1551, 0
      %v1605 = vsel %vm401, %v1552, 0
      %v1608 = vsel %vm401, %v1553, 0
      %v1611 = vsel %vm401, %v1554, 0
      %v1614 = vsel %vm401, %v1555, 0
      %v1617 = vsel %vm401, %v1556, 0
      %v1620 = vsel %vm401, %v1557, 0
      %v1623 = vsel %vm401, %v1558, 0
      %v1626 = vsel %vm401, %v1559, 0
      %v1629 = vsel %vm401, %v1560, 0
      %v1632 = vsel %vm401, %v1561, 0
      %v1635 = vsel %vm401, %v1562, 0
      %v1638 = vsel %vm401, %v1563, 0
      %v1641 = vsel %vm401, %v1564, 0
      %v1644 = vsel %vm401, %v1565, 0
      %v1647 = vsel %vm401, %v1566, 0
      %v1650 = vsel %vm401, %v1567, 0
      %v1653 = vsel %vm401, %v1568, 0
      %v1656 = vsel %vm401, %v1569, 0
      %v1659 = vsel %vm401, %v1570, 0
      %v1662 = vsel %vm401, %v1571, 0
      %v1665 = vsel %vm401, %v1572, 0
      %v1668 = vsel %vm401, %v1573, 0
      %v1671 = vsel %vm401, %v1574, 0
      %v1674 = vsel %vm401, %v1575, 0
      %v1677 = vsel %vm401, %v1576, 0
      %v1680 = vsel %vm401, %v1577, 0
      %v1683 = vsel %vm401, %v1578, 0
      %v1686 = vsel %vm401, %v1579, 0
      %v1689 = vsel %vm401, %v1580, 0
      %v1692 = vsel %vm510, %v1582, 0
      %1694 = vmatprep.subr.mxu0 0.0
      %1695 = vmatpush1.msra.mxu0 0.0
      %1696 = vmatprep.subr.mxu0 0.0
      %1697 = vmatpush1.msra.mxu0 0.0
      %1698 = vmatprep.subr.mxu0 0.0
      %1699 = vmatpush1.msra.mxu0 0.0
      %1700 = vmatprep.subr.mxu0 0.0
      %1701 = vmatpush1.msra.mxu0 0.0
      %1702 = vmatprep.subr.mxu0 0.0
      %1703 = vmatpush1.msra.mxu0 0.0
      %1704 = vmatprep.subr.mxu0 0.0
      %1705 = vmatpush1.msra.mxu0 0.0
      %1706 = vmatprep.subr.mxu0 0.0
      %1707 = vmatpush1.msra.mxu0 0.0
      %1708 = vmatprep.subr.mxu0 0.0
      %1709 = vmatpush1.msra.mxu0 0.0
      %1710 = vmatprep.subr.mxu0 0.0
      %1711 = vmatpush1.msra.mxu0 0.0
      %1712 = vmatprep.subr.mxu0 0.0
      %1713 = vmatpush1.msra.mxu0 0.0
      %1714 = vmatprep.subr.mxu0 0.0
      %1715 = vmatpush1.msra.mxu0 0.0
      %1716 = vmatprep.subr.mxu0 0.0
      %1717 = vmatpush1.msra.mxu0 0.0
      %1718 = vmatprep.subr.mxu0 0.0
      %1719 = vmatpush1.msra.mxu0 0.0
      %1720 = vmatprep.subr.mxu0 0.0
      %1721 = vmatpush1.msra.mxu0 0.0
      %1722 = vmatprep.subr.mxu0 0.0
      %1723 = vmatpush1.msra.mxu0 0.0
      %1724 = vmatprep.subr.mxu0 0.0
      %1725 = vmatpush1.msra.mxu0 %v1692
      %1726 = vmatprep.subr.mxu0 0.0
      %1727 = vmatpush2.msra.mxu0 0.0
      %1728 = vmatprep.subr.mxu0 0.0
      %1729 = vmatpush2.msra.mxu0 0.0
      %1730 = vmatprep.subr.mxu0 0.0
      %1731 = vmatpush2.msra.mxu0 0.0
      %1732 = vmatprep.subr.mxu0 0.0
      %1733 = vmatpush2.msra.mxu0 0.0
      %1734 = vmatprep.subr.mxu0 0.0
      %1735 = vmatpush2.msra.mxu0 0.0
      %1736 = vmatprep.subr.mxu0 0.0
      %1737 = vmatpush2.msra.mxu0 0.0
      %1738 = vmatprep.subr.mxu0 0.0
      %1739 = vmatpush2.msra.mxu0 0.0
      %1740 = vmatprep.subr.mxu0 0.0
      %1741 = vmatpush2.msra.mxu0 0.0
      %1742 = vmatprep.subr.mxu0 0.0
      %1743 = vmatpush2.msra.mxu0 0.0
      %1744 = vmatprep.subr.mxu0 0.0
      %1745 = vmatpush2.msra.mxu0 0.0
      %1746 = vmatprep.subr.mxu0 0.0
      %1747 = vmatpush2.msra.mxu0 0.0
      %1748 = vmatprep.subr.mxu0 0.0
      %1749 = vmatpush2.msra.mxu0 0.0
      %1750 = vmatprep.subr.mxu0 0.0
      %1751 = vmatpush2.msra.mxu0 0.0
      %1752 = vmatprep.subr.mxu0 0.0
      %1753 = vmatpush2.msra.mxu0 0.0
      %1754 = vmatprep.subr.mxu0 0.0
      %1755 = vmatpush2.msra.mxu0 0.0
      %1756 = vmatprep.subr.mxu0 0.0
      %1757 = vmatpush2.msra.mxu0 0.0
      %1758 = vmatprep.mubr.f32.mxu0 0.0
      %1759 = vmatmul.mubr.f32.gmra.mxu0 %v1584
      %v1760 = vpop.f32.mrf.mxu0
      %v1761 = vadd.f32 0.0, %v1760
      %v1762 = vpop.f32.mrf.mxu0
      %1763 = vmatprep.mubr.f32.mxu0 0.0
      %1764 = vmatmul.mubr.f32.gmra.mxu0 %v1587
      %v1765 = vpop.f32.mrf.mxu0
      %v1766 = vadd.f32 0.0, %v1765
      %v1767 = vpop.f32.mrf.mxu0
      %1768 = vmatprep.mubr.f32.mxu0 0.0
      %1769 = vmatmul.mubr.f32.gmra.mxu0 %v1590
      %v1770 = vpop.f32.mrf.mxu0
      %v1771 = vadd.f32 0.0, %v1770
      %v1772 = vpop.f32.mrf.mxu0
      %1773 = vmatprep.mubr.f32.mxu0 0.0
      %1774 = vmatmul.mubr.f32.gmra.mxu0 %v1593
      %v1775 = vpop.f32.mrf.mxu0
      %v1776 = vadd.f32 0.0, %v1775
      %v1777 = vpop.f32.mrf.mxu0
      %1778 = vmatprep.mubr.f32.mxu0 0.0
      %1779 = vmatmul.mubr.f32.gmra.mxu0 %v1596
      %v1780 = vpop.f32.mrf.mxu0
      %v1781 = vadd.f32 0.0, %v1780
      %v1782 = vpop.f32.mrf.mxu0
      %1783 = vmatprep.mubr.f32.mxu0 0.0
      %1784 = vmatmul.mubr.f32.gmra.mxu0 %v1599
      %v1785 = vpop.f32.mrf.mxu0
      %v1786 = vadd.f32 0.0, %v1785
      %v1787 = vpop.f32.mrf.mxu0
      %1788 = vmatprep.mubr.f32.mxu0 0.0
      %1789 = vmatmul.mubr.f32.gmra.mxu0 %v1602
      %v1790 = vpop.f32.mrf.mxu0
      %v1791 = vadd.f32 0.0, %v1790
      %v1792 = vpop.f32.mrf.mxu0
      %1793 = vmatprep.mubr.f32.mxu0 0.0
      %1794 = vmatmul.mubr.f32.gmra.mxu0 %v1605
      %v1795 = vpop.f32.mrf.mxu0
      %v1796 = vadd.f32 0.0, %v1795
      %v1797 = vpop.f32.mrf.mxu0
      %1798 = vmatprep.mubr.f32.mxu0 0.0
      %1799 = vmatmul.mubr.f32.gmra.mxu0 %v1608
      %v1800 = vpop.f32.mrf.mxu0
      %v1801 = vadd.f32 0.0, %v1800
      %v1802 = vpop.f32.mrf.mxu0
      %1803 = vmatprep.mubr.f32.mxu0 0.0
      %1804 = vmatmul.mubr.f32.gmra.mxu0 %v1611
      %v1805 = vpop.f32.mrf.mxu0
      %v1806 = vadd.f32 0.0, %v1805
      %v1807 = vpop.f32.mrf.mxu0
      %1808 = vmatprep.mubr.f32.mxu0 0.0
      %1809 = vmatmul.mubr.f32.gmra.mxu0 %v1614
      %v1810 = vpop.f32.mrf.mxu0
      %v1811 = vadd.f32 0.0, %v1810
      %v1812 = vpop.f32.mrf.mxu0
      %1813 = vmatprep.mubr.f32.mxu0 0.0
      %1814 = vmatmul.mubr.f32.gmra.mxu0 %v1617
      %v1815 = vpop.f32.mrf.mxu0
      %v1816 = vadd.f32 0.0, %v1815
      %v1817 = vpop.f32.mrf.mxu0
      %1818 = vmatprep.mubr.f32.mxu0 0.0
      %1819 = vmatmul.mubr.f32.gmra.mxu0 %v1620
      %v1820 = vpop.f32.mrf.mxu0
      %v1821 = vadd.f32 0.0, %v1820
      %v1822 = vpop.f32.mrf.mxu0
      %1823 = vmatprep.mubr.f32.mxu0 0.0
      %1824 = vmatmul.mubr.f32.gmra.mxu0 %v1623
      %v1825 = vpop.f32.mrf.mxu0
      %v1826 = vadd.f32 0.0, %v1825
      %v1827 = vpop.f32.mrf.mxu0
      %1828 = vmatprep.mubr.f32.mxu0 0.0
      %1829 = vmatmul.mubr.f32.gmra.mxu0 %v1626
      %v1830 = vpop.f32.mrf.mxu0
      %v1831 = vadd.f32 0.0, %v1830
      %v1832 = vpop.f32.mrf.mxu0
      %1833 = vmatprep.mubr.f32.mxu0 0.0
      %1834 = vmatmul.mubr.f32.gmra.mxu0 %v1629
      %v1835 = vpop.f32.mrf.mxu0
      %v1836 = vadd.f32 0.0, %v1835
      %v1837 = vpop.f32.mrf.mxu0
      %1838 = vmatprep.mubr.f32.mxu0 0.0
      %1839 = vmatmul.mubr.f32.gmra.mxu0 %v1632
      %v1840 = vpop.f32.mrf.mxu0
      %v1841 = vadd.f32 0.0, %v1840
      %v1842 = vpop.f32.mrf.mxu0
      %1843 = vmatprep.mubr.f32.mxu0 0.0
      %1844 = vmatmul.mubr.f32.gmra.mxu0 %v1635
      %v1845 = vpop.f32.mrf.mxu0
      %v1846 = vadd.f32 0.0, %v1845
      %v1847 = vpop.f32.mrf.mxu0
      %1848 = vmatprep.mubr.f32.mxu0 0.0
      %1849 = vmatmul.mubr.f32.gmra.mxu0 %v1638
      %v1850 = vpop.f32.mrf.mxu0
      %v1851 = vadd.f32 0.0, %v1850
      %v1852 = vpop.f32.mrf.mxu0
      %1853 = vmatprep.mubr.f32.mxu0 0.0
      %1854 = vmatmul.mubr.f32.gmra.mxu0 %v1641
      %v1855 = vpop.f32.mrf.mxu0
      %v1856 = vadd.f32 0.0, %v1855
      %v1857 = vpop.f32.mrf.mxu0
      %1858 = vmatprep.mubr.f32.mxu0 0.0
      %1859 = vmatmul.mubr.f32.gmra.mxu0 %v1644
      %v1860 = vpop.f32.mrf.mxu0
      %v1861 = vadd.f32 0.0, %v1860
      %v1862 = vpop.f32.mrf.mxu0
      %1863 = vmatprep.mubr.f32.mxu0 0.0
      %1864 = vmatmul.mubr.f32.gmra.mxu0 %v1647
      %v1865 = vpop.f32.mrf.mxu0
      %v1866 = vadd.f32 0.0, %v1865
      %v1867 = vpop.f32.mrf.mxu0
      %1868 = vmatprep.mubr.f32.mxu0 0.0
      %1869 = vmatmul.mubr.f32.gmra.mxu0 %v1650
      %v1870 = vpop.f32.mrf.mxu0
      %v1871 = vadd.f32 0.0, %v1870
      %v1872 = vpop.f32.mrf.mxu0
      %1873 = vmatprep.mubr.f32.mxu0 0.0
      %1874 = vmatmul.mubr.f32.gmra.mxu0 %v1653
      %v1875 = vpop.f32.mrf.mxu0
      %v1876 = vadd.f32 0.0, %v1875
      %v1877 = vpop.f32.mrf.mxu0
      %1878 = vmatprep.mubr.f32.mxu0 0.0
      %1879 = vmatmul.mubr.f32.gmra.mxu0 %v1656
      %v1880 = vpop.f32.mrf.mxu0
      %v1881 = vadd.f32 0.0, %v1880
      %v1882 = vpop.f32.mrf.mxu0
      %1883 = vmatprep.mubr.f32.mxu0 0.0
      %1884 = vmatmul.mubr.f32.gmra.mxu0 %v1659
      %v1885 = vpop.f32.mrf.mxu0
      %v1886 = vadd.f32 0.0, %v1885
      %v1887 = vpop.f32.mrf.mxu0
      %1888 = vmatprep.mubr.f32.mxu0 0.0
      %1889 = vmatmul.mubr.f32.gmra.mxu0 %v1662
      %v1890 = vpop.f32.mrf.mxu0
      %v1891 = vadd.f32 0.0, %v1890
      %v1892 = vpop.f32.mrf.mxu0
      %1893 = vmatprep.mubr.f32.mxu0 0.0
      %1894 = vmatmul.mubr.f32.gmra.mxu0 %v1665
      %v1895 = vpop.f32.mrf.mxu0
      %v1896 = vadd.f32 0.0, %v1895
      %v1897 = vpop.f32.mrf.mxu0
      %1898 = vmatprep.mubr.f32.mxu0 0.0
      %1899 = vmatmul.mubr.f32.gmra.mxu0 %v1668
      %v1900 = vpop.f32.mrf.mxu0
      %v1901 = vadd.f32 0.0, %v1900
      %v1902 = vpop.f32.mrf.mxu0
      %1903 = vmatprep.mubr.f32.mxu0 0.0
      %1904 = vmatmul.mubr.f32.gmra.mxu0 %v1671
      %v1905 = vpop.f32.mrf.mxu0
      %v1906 = vadd.f32 0.0, %v1905
      %v1907 = vpop.f32.mrf.mxu0
      %1908 = vmatprep.mubr.f32.mxu0 0.0
      %1909 = vmatmul.mubr.f32.gmra.mxu0 %v1674
      %v1910 = vpop.f32.mrf.mxu0
      %v1911 = vadd.f32 0.0, %v1910
      %v1912 = vpop.f32.mrf.mxu0
      %1913 = vmatprep.mubr.f32.mxu0 0.0
      %1914 = vmatmul.mubr.f32.gmra.mxu0 %v1677
      %v1915 = vpop.f32.mrf.mxu0
      %v1916 = vadd.f32 0.0, %v1915
      %v1917 = vpop.f32.mrf.mxu0
      %1918 = vmatprep.mubr.f32.mxu0 0.0
      %1919 = vmatmul.mubr.f32.gmra.mxu0 %v1680
      %v1920 = vpop.f32.mrf.mxu0
      %v1921 = vadd.f32 0.0, %v1920
      %v1922 = vpop.f32.mrf.mxu0
      %1923 = vmatprep.mubr.f32.mxu0 0.0
      %1924 = vmatmul.mubr.f32.gmra.mxu0 %v1683
      %v1925 = vpop.f32.mrf.mxu0
      %v1926 = vadd.f32 0.0, %v1925
      %v1927 = vpop.f32.mrf.mxu0
      %1928 = vmatprep.mubr.f32.mxu0 0.0
      %1929 = vmatmul.mubr.f32.gmra.mxu0 %v1686
      %v1930 = vpop.f32.mrf.mxu0
      %v1931 = vadd.f32 0.0, %v1930
      %v1932 = vpop.f32.mrf.mxu0
      %1933 = vmatprep.mubr.f32.mxu0 0.0
      %1934 = vmatmul.mubr.f32.gmra.mxu0 %v1689
      %v1935 = vpop.f32.mrf.mxu0
      %v1936 = vadd.f32 0.0, %v1935
      %v1937 = vpop.f32.mrf.mxu0
      %1938 = vdwg.mxu0
      %v1939 = vadd.f32 %v1509, %v1761
      %v1940 = vadd.f32 %v1510, %v1766
      %v1941 = vadd.f32 %v1511, %v1771
      %v1942 = vadd.f32 %v1512, %v1776
      %v1943 = vadd.f32 %v1513, %v1781
      %v1944 = vadd.f32 %v1514, %v1786
      %v1945 = vadd.f32 %v1515, %v1791
      %v1946 = vadd.f32 %v1516, %v1796
      %v1947 = vadd.f32 %v1517, %v1801
      %v1948 = vadd.f32 %v1518, %v1806
      %v1949 = vadd.f32 %v1519, %v1811
      %v1950 = vadd.f32 %v1520, %v1816
      %v1951 = vadd.f32 %v1521, %v1821
      %v1952 = vadd.f32 %v1522, %v1826
      %v1953 = vadd.f32 %v1523, %v1831
      %v1954 = vadd.f32 %v1524, %v1836
      %v1955 = vadd.f32 %v1525, %v1841
      %v1956 = vadd.f32 %v1526, %v1846
      %v1957 = vadd.f32 %v1527, %v1851
      %v1958 = vadd.f32 %v1528, %v1856
      %v1959 = vadd.f32 %v1529, %v1861
      %v1960 = vadd.f32 %v1530, %v1866
      %v1961 = vadd.f32 %v1531, %v1871
      %v1962 = vadd.f32 %v1532, %v1876
      %v1963 = vadd.f32 %v1533, %v1881
      %v1964 = vadd.f32 %v1534, %v1886
      %v1965 = vadd.f32 %v1535, %v1891
      %v1966 = vadd.f32 %v1536, %v1896
      %v1967 = vadd.f32 %v1537, %v1901
      %v1968 = vadd.f32 %v1538, %v1906
      %v1969 = vadd.f32 %v1539, %v1911
      %v1970 = vadd.f32 %v1540, %v1916
      %v1971 = vadd.f32 %v1541, %v1921
      %v1972 = vadd.f32 %v1542, %v1926
      %v1973 = vadd.f32 %v1543, %v1931
      %v1974 = vadd.f32 %v1544, %v1936
      %v1975 = vld [vmem:[%s315 + $0x13] sm:$0xff]
      %v1976 = vld [vmem:[%s315 + $0x1b] sm:$0xff]
      %v1977 = vld [vmem:[%s315 + $0x23] sm:$0xff]
      %v1978 = vld [vmem:[%s315 + $0x2b] sm:$0xff]
      %v1979 = vld [vmem:[%s315 + $0x33] sm:$0xff]
      %v1980 = vld [vmem:[%s315 + $0x3b] sm:$0xff]
      %v1981 = vld [vmem:[%s315 + $0x43] sm:$0xff]
      %v1982 = vld [vmem:[%s315 + $0x4b] sm:$0xff]
      %v1983 = vld [vmem:[%s315 + $0x53] sm:$0xff]
      %v1984 = vld [vmem:[%s315 + $0x5b] sm:$0xff]
      %v1985 = vld [vmem:[%s315 + $0x63] sm:$0xff]
      %v1986 = vld [vmem:[%s315 + $0x6b] sm:$0xff]
      %v1987 = vld [vmem:[%s315 + $0x73] sm:$0xff]
      %v1988 = vld [vmem:[%s315 + $0x7b] sm:$0xff]
      %v1989 = vld [vmem:[%s315 + $0x83] sm:$0xff]
      %v1990 = vld [vmem:[%s315 + $0x8b] sm:$0xff]
      %v1991 = vld [vmem:[%s315 + $0x93] sm:$0xff]
      %v1992 = vld [vmem:[%s315 + $0x9b] sm:$0xff]
      %v1993 = vld [vmem:[%s315 + $0xa3] sm:$0xff]
      %v1994 = vld [vmem:[%s315 + $0xab] sm:$0xff]
      %v1995 = vld [vmem:[%s315 + $0xb3] sm:$0xff]
      %v1996 = vld [vmem:[%s315 + $0xbb] sm:$0xff]
      %v1997 = vld [vmem:[%s315 + $0xc3] sm:$0xff]
      %v1998 = vld [vmem:[%s315 + $0xcb] sm:$0xff]
      %v1999 = vld [vmem:[%s315 + $0xd3] sm:$0xff]
      %v2000 = vld [vmem:[%s315 + $0xdb] sm:$0xff]
      %v2001 = vld [vmem:[%s315 + $0xe3] sm:$0xff]
      %v2002 = vld [vmem:[%s315 + $0xeb] sm:$0xff]
      %v2003 = vld [vmem:[%s315 + $0xf3] sm:$0xff]
      %v2004 = vld [vmem:[%s315 + $0xfb] sm:$0xff]
      %v2005 = vld [vmem:[%s315 + $0x103] sm:$0xff]
      %v2006 = vld [vmem:[%s315 + $0x10b] sm:$0xff]
      %v2007 = vld [vmem:[%s315 + $0x113] sm:$0xff]
      %v2008 = vld [vmem:[%s315 + $0x11b] sm:$0xff]
      %v2009 = vld [vmem:[%s315 + $0x123] sm:$0xff]
      %v2010 = vld [vmem:[%s315 + $0x12b] sm:$0xff]
      %s2011 = scalar_lea.vmem %s3, 16
      %v2012 = vld [vmem:[%s2011] sm:$0xf]
      %v2014 = vsel %vm401, %v1975, 0
      %v2017 = vsel %vm401, %v1976, 0
      %v2020 = vsel %vm401, %v1977, 0
      %v2023 = vsel %vm401, %v1978, 0
      %v2026 = vsel %vm401, %v1979, 0
      %v2029 = vsel %vm401, %v1980, 0
      %v2032 = vsel %vm401, %v1981, 0
      %v2035 = vsel %vm401, %v1982, 0
      %v2038 = vsel %vm401, %v1983, 0
      %v2041 = vsel %vm401, %v1984, 0
      %v2044 = vsel %vm401, %v1985, 0
      %v2047 = vsel %vm401, %v1986, 0
      %v2050 = vsel %vm401, %v1987, 0
      %v2053 = vsel %vm401, %v1988, 0
      %v2056 = vsel %vm401, %v1989, 0
      %v2059 = vsel %vm401, %v1990, 0
      %v2062 = vsel %vm401, %v1991, 0
      %v2065 = vsel %vm401, %v1992, 0
      %v2068 = vsel %vm401, %v1993, 0
      %v2071 = vsel %vm401, %v1994, 0
      %v2074 = vsel %vm401, %v1995, 0
      %v2077 = vsel %vm401, %v1996, 0
      %v2080 = vsel %vm401, %v1997, 0
      %v2083 = vsel %vm401, %v1998, 0
      %v2086 = vsel %vm401, %v1999, 0
      %v2089 = vsel %vm401, %v2000, 0
      %v2092 = vsel %vm401, %v2001, 0
      %v2095 = vsel %vm401, %v2002, 0
      %v2098 = vsel %vm401, %v2003, 0
      %v2101 = vsel %vm401, %v2004, 0
      %v2104 = vsel %vm401, %v2005, 0
      %v2107 = vsel %vm401, %v2006, 0
      %v2110 = vsel %vm401, %v2007, 0
      %v2113 = vsel %vm401, %v2008, 0
      %v2116 = vsel %vm401, %v2009, 0
      %v2119 = vsel %vm401, %v2010, 0
      %v2122 = vsel %vm510, %v2012, 0
      %2124 = vmatprep.subr.mxu0 0.0
      %2125 = vmatpush1.msra.mxu0 0.0
      %2126 = vmatprep.subr.mxu0 0.0
      %2127 = vmatpush1.msra.mxu0 0.0
      %2128 = vmatprep.subr.mxu0 0.0
      %2129 = vmatpush1.msra.mxu0 0.0
      %2130 = vmatprep.subr.mxu0 0.0
      %2131 = vmatpush1.msra.mxu0 0.0
      %2132 = vmatprep.subr.mxu0 0.0
      %2133 = vmatpush1.msra.mxu0 0.0
      %2134 = vmatprep.subr.mxu0 0.0
      %2135 = vmatpush1.msra.mxu0 0.0
      %2136 = vmatprep.subr.mxu0 0.0
      %2137 = vmatpush1.msra.mxu0 0.0
      %2138 = vmatprep.subr.mxu0 0.0
      %2139 = vmatpush1.msra.mxu0 0.0
      %2140 = vmatprep.subr.mxu0 0.0
      %2141 = vmatpush1.msra.mxu0 0.0
      %2142 = vmatprep.subr.mxu0 0.0
      %2143 = vmatpush1.msra.mxu0 0.0
      %2144 = vmatprep.subr.mxu0 0.0
      %2145 = vmatpush1.msra.mxu0 0.0
      %2146 = vmatprep.subr.mxu0 0.0
      %2147 = vmatpush1.msra.mxu0 0.0
      %2148 = vmatprep.subr.mxu0 0.0
      %2149 = vmatpush1.msra.mxu0 0.0
      %2150 = vmatprep.subr.mxu0 0.0
      %2151 = vmatpush1.msra.mxu0 0.0
      %2152 = vmatprep.subr.mxu0 0.0
      %2153 = vmatpush1.msra.mxu0 0.0
      %2154 = vmatprep.subr.mxu0 0.0
      %2155 = vmatpush1.msra.mxu0 %v2122
      %2156 = vmatprep.subr.mxu0 0.0
      %2157 = vmatpush2.msra.mxu0 0.0
      %2158 = vmatprep.subr.mxu0 0.0
      %2159 = vmatpush2.msra.mxu0 0.0
      %2160 = vmatprep.subr.mxu0 0.0
      %2161 = vmatpush2.msra.mxu0 0.0
      %2162 = vmatprep.subr.mxu0 0.0
      %2163 = vmatpush2.msra.mxu0 0.0
      %2164 = vmatprep.subr.mxu0 0.0
      %2165 = vmatpush2.msra.mxu0 0.0
      %2166 = vmatprep.subr.mxu0 0.0
      %2167 = vmatpush2.msra.mxu0 0.0
      %2168 = vmatprep.subr.mxu0 0.0
      %2169 = vmatpush2.msra.mxu0 0.0
      %2170 = vmatprep.subr.mxu0 0.0
      %2171 = vmatpush2.msra.mxu0 0.0
      %2172 = vmatprep.subr.mxu0 0.0
      %2173 = vmatpush2.msra.mxu0 0.0
      %2174 = vmatprep.subr.mxu0 0.0
      %2175 = vmatpush2.msra.mxu0 0.0
      %2176 = vmatprep.subr.mxu0 0.0
      %2177 = vmatpush2.msra.mxu0 0.0
      %2178 = vmatprep.subr.mxu0 0.0
      %2179 = vmatpush2.msra.mxu0 0.0
      %2180 = vmatprep.subr.mxu0 0.0
      %2181 = vmatpush2.msra.mxu0 0.0
      %2182 = vmatprep.subr.mxu0 0.0
      %2183 = vmatpush2.msra.mxu0 0.0
      %2184 = vmatprep.subr.mxu0 0.0
      %2185 = vmatpush2.msra.mxu0 0.0
      %2186 = vmatprep.subr.mxu0 0.0
      %2187 = vmatpush2.msra.mxu0 0.0
      %2188 = vmatprep.mubr.f32.mxu0 0.0
      %2189 = vmatmul.mubr.f32.gmra.mxu0 %v2014
      %v2190 = vpop.f32.mrf.mxu0
      %v2191 = vadd.f32 0.0, %v2190
      %v2192 = vpop.f32.mrf.mxu0
      %2193 = vmatprep.mubr.f32.mxu0 0.0
      %2194 = vmatmul.mubr.f32.gmra.mxu0 %v2017
      %v2195 = vpop.f32.mrf.mxu0
      %v2196 = vadd.f32 0.0, %v2195
      %v2197 = vpop.f32.mrf.mxu0
      %2198 = vmatprep.mubr.f32.mxu0 0.0
      %2199 = vmatmul.mubr.f32.gmra.mxu0 %v2020
      %v2200 = vpop.f32.mrf.mxu0
      %v2201 = vadd.f32 0.0, %v2200
      %v2202 = vpop.f32.mrf.mxu0
      %2203 = vmatprep.mubr.f32.mxu0 0.0
      %2204 = vmatmul.mubr.f32.gmra.mxu0 %v2023
      %v2205 = vpop.f32.mrf.mxu0
      %v2206 = vadd.f32 0.0, %v2205
      %v2207 = vpop.f32.mrf.mxu0
      %2208 = vmatprep.mubr.f32.mxu0 0.0
      %2209 = vmatmul.mubr.f32.gmra.mxu0 %v2026
      %v2210 = vpop.f32.mrf.mxu0
      %v2211 = vadd.f32 0.0, %v2210
      %v2212 = vpop.f32.mrf.mxu0
      %2213 = vmatprep.mubr.f32.mxu0 0.0
      %2214 = vmatmul.mubr.f32.gmra.mxu0 %v2029
      %v2215 = vpop.f32.mrf.mxu0
      %v2216 = vadd.f32 0.0, %v2215
      %v2217 = vpop.f32.mrf.mxu0
      %2218 = vmatprep.mubr.f32.mxu0 0.0
      %2219 = vmatmul.mubr.f32.gmra.mxu0 %v2032
      %v2220 = vpop.f32.mrf.mxu0
      %v2221 = vadd.f32 0.0, %v2220
      %v2222 = vpop.f32.mrf.mxu0
      %2223 = vmatprep.mubr.f32.mxu0 0.0
      %2224 = vmatmul.mubr.f32.gmra.mxu0 %v2035
      %v2225 = vpop.f32.mrf.mxu0
      %v2226 = vadd.f32 0.0, %v2225
      %v2227 = vpop.f32.mrf.mxu0
      %2228 = vmatprep.mubr.f32.mxu0 0.0
      %2229 = vmatmul.mubr.f32.gmra.mxu0 %v2038
      %v2230 = vpop.f32.mrf.mxu0
      %v2231 = vadd.f32 0.0, %v2230
      %v2232 = vpop.f32.mrf.mxu0
      %2233 = vmatprep.mubr.f32.mxu0 0.0
      %2234 = vmatmul.mubr.f32.gmra.mxu0 %v2041
      %v2235 = vpop.f32.mrf.mxu0
      %v2236 = vadd.f32 0.0, %v2235
      %v2237 = vpop.f32.mrf.mxu0
      %2238 = vmatprep.mubr.f32.mxu0 0.0
      %2239 = vmatmul.mubr.f32.gmra.mxu0 %v2044
      %v2240 = vpop.f32.mrf.mxu0
      %v2241 = vadd.f32 0.0, %v2240
      %v2242 = vpop.f32.mrf.mxu0
      %2243 = vmatprep.mubr.f32.mxu0 0.0
      %2244 = vmatmul.mubr.f32.gmra.mxu0 %v2047
      %v2245 = vpop.f32.mrf.mxu0
      %v2246 = vadd.f32 0.0, %v2245
      %v2247 = vpop.f32.mrf.mxu0
      %2248 = vmatprep.mubr.f32.mxu0 0.0
      %2249 = vmatmul.mubr.f32.gmra.mxu0 %v2050
      %v2250 = vpop.f32.mrf.mxu0
      %v2251 = vadd.f32 0.0, %v2250
      %v2252 = vpop.f32.mrf.mxu0
      %2253 = vmatprep.mubr.f32.mxu0 0.0
      %2254 = vmatmul.mubr.f32.gmra.mxu0 %v2053
      %v2255 = vpop.f32.mrf.mxu0
      %v2256 = vadd.f32 0.0, %v2255
      %v2257 = vpop.f32.mrf.mxu0
      %2258 = vmatprep.mubr.f32.mxu0 0.0
      %2259 = vmatmul.mubr.f32.gmra.mxu0 %v2056
      %v2260 = vpop.f32.mrf.mxu0
      %v2261 = vadd.f32 0.0, %v2260
      %v2262 = vpop.f32.mrf.mxu0
      %2263 = vmatprep.mubr.f32.mxu0 0.0
      %2264 = vmatmul.mubr.f32.gmra.mxu0 %v2059
      %v2265 = vpop.f32.mrf.mxu0
      %v2266 = vadd.f32 0.0, %v2265
      %v2267 = vpop.f32.mrf.mxu0
      %2268 = vmatprep.mubr.f32.mxu0 0.0
      %2269 = vmatmul.mubr.f32.gmra.mxu0 %v2062
      %v2270 = vpop.f32.mrf.mxu0
      %v2271 = vadd.f32 0.0, %v2270
      %v2272 = vpop.f32.mrf.mxu0
      %2273 = vmatprep.mubr.f32.mxu0 0.0
      %2274 = vmatmul.mubr.f32.gmra.mxu0 %v2065
      %v2275 = vpop.f32.mrf.mxu0
      %v2276 = vadd.f32 0.0, %v2275
      %v2277 = vpop.f32.mrf.mxu0
      %2278 = vmatprep.mubr.f32.mxu0 0.0
      %2279 = vmatmul.mubr.f32.gmra.mxu0 %v2068
      %v2280 = vpop.f32.mrf.mxu0
      %v2281 = vadd.f32 0.0, %v2280
      %v2282 = vpop.f32.mrf.mxu0
      %2283 = vmatprep.mubr.f32.mxu0 0.0
      %2284 = vmatmul.mubr.f32.gmra.mxu0 %v2071
      %v2285 = vpop.f32.mrf.mxu0
      %v2286 = vadd.f32 0.0, %v2285
      %v2287 = vpop.f32.mrf.mxu0
      %2288 = vmatprep.mubr.f32.mxu0 0.0
      %2289 = vmatmul.mubr.f32.gmra.mxu0 %v2074
      %v2290 = vpop.f32.mrf.mxu0
      %v2291 = vadd.f32 0.0, %v2290
      %v2292 = vpop.f32.mrf.mxu0
      %2293 = vmatprep.mubr.f32.mxu0 0.0
      %2294 = vmatmul.mubr.f32.gmra.mxu0 %v2077
      %v2295 = vpop.f32.mrf.mxu0
      %v2296 = vadd.f32 0.0, %v2295
      %v2297 = vpop.f32.mrf.mxu0
      %2298 = vmatprep.mubr.f32.mxu0 0.0
      %2299 = vmatmul.mubr.f32.gmra.mxu0 %v2080
      %v2300 = vpop.f32.mrf.mxu0
      %v2301 = vadd.f32 0.0, %v2300
      %v2302 = vpop.f32.mrf.mxu0
      %2303 = vmatprep.mubr.f32.mxu0 0.0
      %2304 = vmatmul.mubr.f32.gmra.mxu0 %v2083
      %v2305 = vpop.f32.mrf.mxu0
      %v2306 = vadd.f32 0.0, %v2305
      %v2307 = vpop.f32.mrf.mxu0
      %2308 = vmatprep.mubr.f32.mxu0 0.0
      %2309 = vmatmul.mubr.f32.gmra.mxu0 %v2086
      %v2310 = vpop.f32.mrf.mxu0
      %v2311 = vadd.f32 0.0, %v2310
      %v2312 = vpop.f32.mrf.mxu0
      %2313 = vmatprep.mubr.f32.mxu0 0.0
      %2314 = vmatmul.mubr.f32.gmra.mxu0 %v2089
      %v2315 = vpop.f32.mrf.mxu0
      %v2316 = vadd.f32 0.0, %v2315
      %v2317 = vpop.f32.mrf.mxu0
      %2318 = vmatprep.mubr.f32.mxu0 0.0
      %2319 = vmatmul.mubr.f32.gmra.mxu0 %v2092
      %v2320 = vpop.f32.mrf.mxu0
      %v2321 = vadd.f32 0.0, %v2320
      %v2322 = vpop.f32.mrf.mxu0
      %2323 = vmatprep.mubr.f32.mxu0 0.0
      %2324 = vmatmul.mubr.f32.gmra.mxu0 %v2095
      %v2325 = vpop.f32.mrf.mxu0
      %v2326 = vadd.f32 0.0, %v2325
      %v2327 = vpop.f32.mrf.mxu0
      %2328 = vmatprep.mubr.f32.mxu0 0.0
      %2329 = vmatmul.mubr.f32.gmra.mxu0 %v2098
      %v2330 = vpop.f32.mrf.mxu0
      %v2331 = vadd.f32 0.0, %v2330
      %v2332 = vpop.f32.mrf.mxu0
      %2333 = vmatprep.mubr.f32.mxu0 0.0
      %2334 = vmatmul.mubr.f32.gmra.mxu0 %v2101
      %v2335 = vpop.f32.mrf.mxu0
      %v2336 = vadd.f32 0.0, %v2335
      %v2337 = vpop.f32.mrf.mxu0
      %2338 = vmatprep.mubr.f32.mxu0 0.0
      %2339 = vmatmul.mubr.f32.gmra.mxu0 %v2104
      %v2340 = vpop.f32.mrf.mxu0
      %v2341 = vadd.f32 0.0, %v2340
      %v2342 = vpop.f32.mrf.mxu0
      %2343 = vmatprep.mubr.f32.mxu0 0.0
      %2344 = vmatmul.mubr.f32.gmra.mxu0 %v2107
      %v2345 = vpop.f32.mrf.mxu0
      %v2346 = vadd.f32 0.0, %v2345
      %v2347 = vpop.f32.mrf.mxu0
      %2348 = vmatprep.mubr.f32.mxu0 0.0
      %2349 = vmatmul.mubr.f32.gmra.mxu0 %v2110
      %v2350 = vpop.f32.mrf.mxu0
      %v2351 = vadd.f32 0.0, %v2350
      %v2352 = vpop.f32.mrf.mxu0
      %2353 = vmatprep.mubr.f32.mxu0 0.0
      %2354 = vmatmul.mubr.f32.gmra.mxu0 %v2113
      %v2355 = vpop.f32.mrf.mxu0
      %v2356 = vadd.f32 0.0, %v2355
      %v2357 = vpop.f32.mrf.mxu0
      %2358 = vmatprep.mubr.f32.mxu0 0.0
      %2359 = vmatmul.mubr.f32.gmra.mxu0 %v2116
      %v2360 = vpop.f32.mrf.mxu0
      %v2361 = vadd.f32 0.0, %v2360
      %v2362 = vpop.f32.mrf.mxu0
      %2363 = vmatprep.mubr.f32.mxu0 0.0
      %2364 = vmatmul.mubr.f32.gmra.mxu0 %v2119
      %v2365 = vpop.f32.mrf.mxu0
      %v2366 = vadd.f32 0.0, %v2365
      %v2367 = vpop.f32.mrf.mxu0
      %2368 = vdwg.mxu0
      %v2369 = vadd.f32 %v1939, %v2191
      %v2370 = vadd.f32 %v1940, %v2196
      %v2371 = vadd.f32 %v1941, %v2201
      %v2372 = vadd.f32 %v1942, %v2206
      %v2373 = vadd.f32 %v1943, %v2211
      %v2374 = vadd.f32 %v1944, %v2216
      %v2375 = vadd.f32 %v1945, %v2221
      %v2376 = vadd.f32 %v1946, %v2226
      %v2377 = vadd.f32 %v1947, %v2231
      %v2378 = vadd.f32 %v1948, %v2236
      %v2379 = vadd.f32 %v1949, %v2241
      %v2380 = vadd.f32 %v1950, %v2246
      %v2381 = vadd.f32 %v1951, %v2251
      %v2382 = vadd.f32 %v1952, %v2256
      %v2383 = vadd.f32 %v1953, %v2261
      %v2384 = vadd.f32 %v1954, %v2266
      %v2385 = vadd.f32 %v1955, %v2271
      %v2386 = vadd.f32 %v1956, %v2276
      %v2387 = vadd.f32 %v1957, %v2281
      %v2388 = vadd.f32 %v1958, %v2286
      %v2389 = vadd.f32 %v1959, %v2291
      %v2390 = vadd.f32 %v1960, %v2296
      %v2391 = vadd.f32 %v1961, %v2301
      %v2392 = vadd.f32 %v1962, %v2306
      %v2393 = vadd.f32 %v1963, %v2311
      %v2394 = vadd.f32 %v1964, %v2316
      %v2395 = vadd.f32 %v1965, %v2321
      %v2396 = vadd.f32 %v1966, %v2326
      %v2397 = vadd.f32 %v1967, %v2331
      %v2398 = vadd.f32 %v1968, %v2336
      %v2399 = vadd.f32 %v1969, %v2341
      %v2400 = vadd.f32 %v1970, %v2346
      %v2401 = vadd.f32 %v1971, %v2351
      %v2402 = vadd.f32 %v1972, %v2356
      %v2403 = vadd.f32 %v1973, %v2361
      %v2404 = vadd.f32 %v1974, %v2366
      %v2405 = vld [vmem:[%s315 + $0x14] sm:$0xff]
      %v2406 = vld [vmem:[%s315 + $0x1c] sm:$0xff]
      %v2407 = vld [vmem:[%s315 + $0x24] sm:$0xff]
      %v2408 = vld [vmem:[%s315 + $0x2c] sm:$0xff]
      %v2409 = vld [vmem:[%s315 + $0x34] sm:$0xff]
      %v2410 = vld [vmem:[%s315 + $0x3c] sm:$0xff]
      %v2411 = vld [vmem:[%s315 + $0x44] sm:$0xff]
      %v2412 = vld [vmem:[%s315 + $0x4c] sm:$0xff]
      %v2413 = vld [vmem:[%s315 + $0x54] sm:$0xff]
      %v2414 = vld [vmem:[%s315 + $0x5c] sm:$0xff]
      %v2415 = vld [vmem:[%s315 + $0x64] sm:$0xff]
      %v2416 = vld [vmem:[%s315 + $0x6c] sm:$0xff]
      %v2417 = vld [vmem:[%s315 + $0x74] sm:$0xff]
      %v2418 = vld [vmem:[%s315 + $0x7c] sm:$0xff]
      %v2419 = vld [vmem:[%s315 + $0x84] sm:$0xff]
      %v2420 = vld [vmem:[%s315 + $0x8c] sm:$0xff]
      %v2421 = vld [vmem:[%s315 + $0x94] sm:$0xff]
      %v2422 = vld [vmem:[%s315 + $0x9c] sm:$0xff]
      %v2423 = vld [vmem:[%s315 + $0xa4] sm:$0xff]
      %v2424 = vld [vmem:[%s315 + $0xac] sm:$0xff]
      %v2425 = vld [vmem:[%s315 + $0xb4] sm:$0xff]
      %v2426 = vld [vmem:[%s315 + $0xbc] sm:$0xff]
      %v2427 = vld [vmem:[%s315 + $0xc4] sm:$0xff]
      %v2428 = vld [vmem:[%s315 + $0xcc] sm:$0xff]
      %v2429 = vld [vmem:[%s315 + $0xd4] sm:$0xff]
      %v2430 = vld [vmem:[%s315 + $0xdc] sm:$0xff]
      %v2431 = vld [vmem:[%s315 + $0xe4] sm:$0xff]
      %v2432 = vld [vmem:[%s315 + $0xec] sm:$0xff]
      %v2433 = vld [vmem:[%s315 + $0xf4] sm:$0xff]
      %v2434 = vld [vmem:[%s315 + $0xfc] sm:$0xff]
      %v2435 = vld [vmem:[%s315 + $0x104] sm:$0xff]
      %v2436 = vld [vmem:[%s315 + $0x10c] sm:$0xff]
      %v2437 = vld [vmem:[%s315 + $0x114] sm:$0xff]
      %v2438 = vld [vmem:[%s315 + $0x11c] sm:$0xff]
      %v2439 = vld [vmem:[%s315 + $0x124] sm:$0xff]
      %v2440 = vld [vmem:[%s315 + $0x12c] sm:$0xff]
      %s2441 = scalar_lea.vmem %s3, 20
      %v2442 = vld [vmem:[%s2441] sm:$0xf]
      %v2444 = vsel %vm401, %v2405, 0
      %v2447 = vsel %vm401, %v2406, 0
      %v2450 = vsel %vm401, %v2407, 0
      %v2453 = vsel %vm401, %v2408, 0
      %v2456 = vsel %vm401, %v2409, 0
      %v2459 = vsel %vm401, %v2410, 0
      %v2462 = vsel %vm401, %v2411, 0
      %v2465 = vsel %vm401, %v2412, 0
      %v2468 = vsel %vm401, %v2413, 0
      %v2471 = vsel %vm401, %v2414, 0
      %v2474 = vsel %vm401, %v2415, 0
      %v2477 = vsel %vm401, %v2416, 0
      %v2480 = vsel %vm401, %v2417, 0
      %v2483 = vsel %vm401, %v2418, 0
      %v2486 = vsel %vm401, %v2419, 0
      %v2489 = vsel %vm401, %v2420, 0
      %v2492 = vsel %vm401, %v2421, 0
      %v2495 = vsel %vm401, %v2422, 0
      %v2498 = vsel %vm401, %v2423, 0
      %v2501 = vsel %vm401, %v2424, 0
      %v2504 = vsel %vm401, %v2425, 0
      %v2507 = vsel %vm401, %v2426, 0
      %v2510 = vsel %vm401, %v2427, 0
      %v2513 = vsel %vm401, %v2428, 0
      %v2516 = vsel %vm401, %v2429, 0
      %v2519 = vsel %vm401, %v2430, 0
      %v2522 = vsel %vm401, %v2431, 0
      %v2525 = vsel %vm401, %v2432, 0
      %v2528 = vsel %vm401, %v2433, 0
      %v2531 = vsel %vm401, %v2434, 0
      %v2534 = vsel %vm401, %v2435, 0
      %v2537 = vsel %vm401, %v2436, 0
      %v2540 = vsel %vm401, %v2437, 0
      %v2543 = vsel %vm401, %v2438, 0
      %v2546 = vsel %vm401, %v2439, 0
      %v2549 = vsel %vm401, %v2440, 0
      %v2552 = vsel %vm510, %v2442, 0
      %2554 = vmatprep.subr.mxu0 0.0
      %2555 = vmatpush1.msra.mxu0 0.0
      %2556 = vmatprep.subr.mxu0 0.0
      %2557 = vmatpush1.msra.mxu0 0.0
      %2558 = vmatprep.subr.mxu0 0.0
      %2559 = vmatpush1.msra.mxu0 0.0
      %2560 = vmatprep.subr.mxu0 0.0
      %2561 = vmatpush1.msra.mxu0 0.0
      %2562 = vmatprep.subr.mxu0 0.0
      %2563 = vmatpush1.msra.mxu0 0.0
      %2564 = vmatprep.subr.mxu0 0.0
      %2565 = vmatpush1.msra.mxu0 0.0
      %2566 = vmatprep.subr.mxu0 0.0
      %2567 = vmatpush1.msra.mxu0 0.0
      %2568 = vmatprep.subr.mxu0 0.0
      %2569 = vmatpush1.msra.mxu0 0.0
      %2570 = vmatprep.subr.mxu0 0.0
      %2571 = vmatpush1.msra.mxu0 0.0
      %2572 = vmatprep.subr.mxu0 0.0
      %2573 = vmatpush1.msra.mxu0 0.0
      %2574 = vmatprep.subr.mxu0 0.0
      %2575 = vmatpush1.msra.mxu0 0.0
      %2576 = vmatprep.subr.mxu0 0.0
      %2577 = vmatpush1.msra.mxu0 0.0
      %2578 = vmatprep.subr.mxu0 0.0
      %2579 = vmatpush1.msra.mxu0 0.0
      %2580 = vmatprep.subr.mxu0 0.0
      %2581 = vmatpush1.msra.mxu0 0.0
      %2582 = vmatprep.subr.mxu0 0.0
      %2583 = vmatpush1.msra.mxu0 0.0
      %2584 = vmatprep.subr.mxu0 0.0
      %2585 = vmatpush1.msra.mxu0 %v2552
      %2586 = vmatprep.subr.mxu0 0.0
      %2587 = vmatpush2.msra.mxu0 0.0
      %2588 = vmatprep.subr.mxu0 0.0
      %2589 = vmatpush2.msra.mxu0 0.0
      %2590 = vmatprep.subr.mxu0 0.0
      %2591 = vmatpush2.msra.mxu0 0.0
      %2592 = vmatprep.subr.mxu0 0.0
      %2593 = vmatpush2.msra.mxu0 0.0
      %2594 = vmatprep.subr.mxu0 0.0
      %2595 = vmatpush2.msra.mxu0 0.0
      %2596 = vmatprep.subr.mxu0 0.0
      %2597 = vmatpush2.msra.mxu0 0.0
      %2598 = vmatprep.subr.mxu0 0.0
      %2599 = vmatpush2.msra.mxu0 0.0
      %2600 = vmatprep.subr.mxu0 0.0
      %2601 = vmatpush2.msra.mxu0 0.0
      %2602 = vmatprep.subr.mxu0 0.0
      %2603 = vmatpush2.msra.mxu0 0.0
      %2604 = vmatprep.subr.mxu0 0.0
      %2605 = vmatpush2.msra.mxu0 0.0
      %2606 = vmatprep.subr.mxu0 0.0
      %2607 = vmatpush2.msra.mxu0 0.0
      %2608 = vmatprep.subr.mxu0 0.0
      %2609 = vmatpush2.msra.mxu0 0.0
      %2610 = vmatprep.subr.mxu0 0.0
      %2611 = vmatpush2.msra.mxu0 0.0
      %2612 = vmatprep.subr.mxu0 0.0
      %2613 = vmatpush2.msra.mxu0 0.0
      %2614 = vmatprep.subr.mxu0 0.0
      %2615 = vmatpush2.msra.mxu0 0.0
      %2616 = vmatprep.subr.mxu0 0.0
      %2617 = vmatpush2.msra.mxu0 0.0
      %2618 = vmatprep.mubr.f32.mxu0 0.0
      %2619 = vmatmul.mubr.f32.gmra.mxu0 %v2444
      %v2620 = vpop.f32.mrf.mxu0
      %v2621 = vadd.f32 0.0, %v2620
      %v2622 = vpop.f32.mrf.mxu0
      %2623 = vmatprep.mubr.f32.mxu0 0.0
      %2624 = vmatmul.mubr.f32.gmra.mxu0 %v2447
      %v2625 = vpop.f32.mrf.mxu0
      %v2626 = vadd.f32 0.0, %v2625
      %v2627 = vpop.f32.mrf.mxu0
      %2628 = vmatprep.mubr.f32.mxu0 0.0
      %2629 = vmatmul.mubr.f32.gmra.mxu0 %v2450
      %v2630 = vpop.f32.mrf.mxu0
      %v2631 = vadd.f32 0.0, %v2630
      %v2632 = vpop.f32.mrf.mxu0
      %2633 = vmatprep.mubr.f32.mxu0 0.0
      %2634 = vmatmul.mubr.f32.gmra.mxu0 %v2453
      %v2635 = vpop.f32.mrf.mxu0
      %v2636 = vadd.f32 0.0, %v2635
      %v2637 = vpop.f32.mrf.mxu0
      %2638 = vmatprep.mubr.f32.mxu0 0.0
      %2639 = vmatmul.mubr.f32.gmra.mxu0 %v2456
      %v2640 = vpop.f32.mrf.mxu0
      %v2641 = vadd.f32 0.0, %v2640
      %v2642 = vpop.f32.mrf.mxu0
      %2643 = vmatprep.mubr.f32.mxu0 0.0
      %2644 = vmatmul.mubr.f32.gmra.mxu0 %v2459
      %v2645 = vpop.f32.mrf.mxu0
      %v2646 = vadd.f32 0.0, %v2645
      %v2647 = vpop.f32.mrf.mxu0
      %2648 = vmatprep.mubr.f32.mxu0 0.0
      %2649 = vmatmul.mubr.f32.gmra.mxu0 %v2462
      %v2650 = vpop.f32.mrf.mxu0
      %v2651 = vadd.f32 0.0, %v2650
      %v2652 = vpop.f32.mrf.mxu0
      %2653 = vmatprep.mubr.f32.mxu0 0.0
      %2654 = vmatmul.mubr.f32.gmra.mxu0 %v2465
      %v2655 = vpop.f32.mrf.mxu0
      %v2656 = vadd.f32 0.0, %v2655
      %v2657 = vpop.f32.mrf.mxu0
      %2658 = vmatprep.mubr.f32.mxu0 0.0
      %2659 = vmatmul.mubr.f32.gmra.mxu0 %v2468
      %v2660 = vpop.f32.mrf.mxu0
      %v2661 = vadd.f32 0.0, %v2660
      %v2662 = vpop.f32.mrf.mxu0
      %2663 = vmatprep.mubr.f32.mxu0 0.0
      %2664 = vmatmul.mubr.f32.gmra.mxu0 %v2471
      %v2665 = vpop.f32.mrf.mxu0
      %v2666 = vadd.f32 0.0, %v2665
      %v2667 = vpop.f32.mrf.mxu0
      %2668 = vmatprep.mubr.f32.mxu0 0.0
      %2669 = vmatmul.mubr.f32.gmra.mxu0 %v2474
      %v2670 = vpop.f32.mrf.mxu0
      %v2671 = vadd.f32 0.0, %v2670
      %v2672 = vpop.f32.mrf.mxu0
      %2673 = vmatprep.mubr.f32.mxu0 0.0
      %2674 = vmatmul.mubr.f32.gmra.mxu0 %v2477
      %v2675 = vpop.f32.mrf.mxu0
      %v2676 = vadd.f32 0.0, %v2675
      %v2677 = vpop.f32.mrf.mxu0
      %2678 = vmatprep.mubr.f32.mxu0 0.0
      %2679 = vmatmul.mubr.f32.gmra.mxu0 %v2480
      %v2680 = vpop.f32.mrf.mxu0
      %v2681 = vadd.f32 0.0, %v2680
      %v2682 = vpop.f32.mrf.mxu0
      %2683 = vmatprep.mubr.f32.mxu0 0.0
      %2684 = vmatmul.mubr.f32.gmra.mxu0 %v2483
      %v2685 = vpop.f32.mrf.mxu0
      %v2686 = vadd.f32 0.0, %v2685
      %v2687 = vpop.f32.mrf.mxu0
      %2688 = vmatprep.mubr.f32.mxu0 0.0
      %2689 = vmatmul.mubr.f32.gmra.mxu0 %v2486
      %v2690 = vpop.f32.mrf.mxu0
      %v2691 = vadd.f32 0.0, %v2690
      %v2692 = vpop.f32.mrf.mxu0
      %2693 = vmatprep.mubr.f32.mxu0 0.0
      %2694 = vmatmul.mubr.f32.gmra.mxu0 %v2489
      %v2695 = vpop.f32.mrf.mxu0
      %v2696 = vadd.f32 0.0, %v2695
      %v2697 = vpop.f32.mrf.mxu0
      %2698 = vmatprep.mubr.f32.mxu0 0.0
      %2699 = vmatmul.mubr.f32.gmra.mxu0 %v2492
      %v2700 = vpop.f32.mrf.mxu0
      %v2701 = vadd.f32 0.0, %v2700
      %v2702 = vpop.f32.mrf.mxu0
      %2703 = vmatprep.mubr.f32.mxu0 0.0
      %2704 = vmatmul.mubr.f32.gmra.mxu0 %v2495
      %v2705 = vpop.f32.mrf.mxu0
      %v2706 = vadd.f32 0.0, %v2705
      %v2707 = vpop.f32.mrf.mxu0
      %2708 = vmatprep.mubr.f32.mxu0 0.0
      %2709 = vmatmul.mubr.f32.gmra.mxu0 %v2498
      %v2710 = vpop.f32.mrf.mxu0
      %v2711 = vadd.f32 0.0, %v2710
      %v2712 = vpop.f32.mrf.mxu0
      %2713 = vmatprep.mubr.f32.mxu0 0.0
      %2714 = vmatmul.mubr.f32.gmra.mxu0 %v2501
      %v2715 = vpop.f32.mrf.mxu0
      %v2716 = vadd.f32 0.0, %v2715
      %v2717 = vpop.f32.mrf.mxu0
      %2718 = vmatprep.mubr.f32.mxu0 0.0
      %2719 = vmatmul.mubr.f32.gmra.mxu0 %v2504
      %v2720 = vpop.f32.mrf.mxu0
      %v2721 = vadd.f32 0.0, %v2720
      %v2722 = vpop.f32.mrf.mxu0
      %2723 = vmatprep.mubr.f32.mxu0 0.0
      %2724 = vmatmul.mubr.f32.gmra.mxu0 %v2507
      %v2725 = vpop.f32.mrf.mxu0
      %v2726 = vadd.f32 0.0, %v2725
      %v2727 = vpop.f32.mrf.mxu0
      %2728 = vmatprep.mubr.f32.mxu0 0.0
      %2729 = vmatmul.mubr.f32.gmra.mxu0 %v2510
      %v2730 = vpop.f32.mrf.mxu0
      %v2731 = vadd.f32 0.0, %v2730
      %v2732 = vpop.f32.mrf.mxu0
      %2733 = vmatprep.mubr.f32.mxu0 0.0
      %2734 = vmatmul.mubr.f32.gmra.mxu0 %v2513
      %v2735 = vpop.f32.mrf.mxu0
      %v2736 = vadd.f32 0.0, %v2735
      %v2737 = vpop.f32.mrf.mxu0
      %2738 = vmatprep.mubr.f32.mxu0 0.0
      %2739 = vmatmul.mubr.f32.gmra.mxu0 %v2516
      %v2740 = vpop.f32.mrf.mxu0
      %v2741 = vadd.f32 0.0, %v2740
      %v2742 = vpop.f32.mrf.mxu0
      %2743 = vmatprep.mubr.f32.mxu0 0.0
      %2744 = vmatmul.mubr.f32.gmra.mxu0 %v2519
      %v2745 = vpop.f32.mrf.mxu0
      %v2746 = vadd.f32 0.0, %v2745
      %v2747 = vpop.f32.mrf.mxu0
      %2748 = vmatprep.mubr.f32.mxu0 0.0
      %2749 = vmatmul.mubr.f32.gmra.mxu0 %v2522
      %v2750 = vpop.f32.mrf.mxu0
      %v2751 = vadd.f32 0.0, %v2750
      %v2752 = vpop.f32.mrf.mxu0
      %2753 = vmatprep.mubr.f32.mxu0 0.0
      %2754 = vmatmul.mubr.f32.gmra.mxu0 %v2525
      %v2755 = vpop.f32.mrf.mxu0
      %v2756 = vadd.f32 0.0, %v2755
      %v2757 = vpop.f32.mrf.mxu0
      %2758 = vmatprep.mubr.f32.mxu0 0.0
      %2759 = vmatmul.mubr.f32.gmra.mxu0 %v2528
      %v2760 = vpop.f32.mrf.mxu0
      %v2761 = vadd.f32 0.0, %v2760
      %v2762 = vpop.f32.mrf.mxu0
      %2763 = vmatprep.mubr.f32.mxu0 0.0
      %2764 = vmatmul.mubr.f32.gmra.mxu0 %v2531
      %v2765 = vpop.f32.mrf.mxu0
      %v2766 = vadd.f32 0.0, %v2765
      %v2767 = vpop.f32.mrf.mxu0
      %2768 = vmatprep.mubr.f32.mxu0 0.0
      %2769 = vmatmul.mubr.f32.gmra.mxu0 %v2534
      %v2770 = vpop.f32.mrf.mxu0
      %v2771 = vadd.f32 0.0, %v2770
      %v2772 = vpop.f32.mrf.mxu0
      %2773 = vmatprep.mubr.f32.mxu0 0.0
      %2774 = vmatmul.mubr.f32.gmra.mxu0 %v2537
      %v2775 = vpop.f32.mrf.mxu0
      %v2776 = vadd.f32 0.0, %v2775
      %v2777 = vpop.f32.mrf.mxu0
      %2778 = vmatprep.mubr.f32.mxu0 0.0
      %2779 = vmatmul.mubr.f32.gmra.mxu0 %v2540
      %v2780 = vpop.f32.mrf.mxu0
      %v2781 = vadd.f32 0.0, %v2780
      %v2782 = vpop.f32.mrf.mxu0
      %2783 = vmatprep.mubr.f32.mxu0 0.0
      %2784 = vmatmul.mubr.f32.gmra.mxu0 %v2543
      %v2785 = vpop.f32.mrf.mxu0
      %v2786 = vadd.f32 0.0, %v2785
      %v2787 = vpop.f32.mrf.mxu0
      %2788 = vmatprep.mubr.f32.mxu0 0.0
      %2789 = vmatmul.mubr.f32.gmra.mxu0 %v2546
      %v2790 = vpop.f32.mrf.mxu0
      %v2791 = vadd.f32 0.0, %v2790
      %v2792 = vpop.f32.mrf.mxu0
      %2793 = vmatprep.mubr.f32.mxu0 0.0
      %2794 = vmatmul.mubr.f32.gmra.mxu0 %v2549
      %v2795 = vpop.f32.mrf.mxu0
      %v2796 = vadd.f32 0.0, %v2795
      %v2797 = vpop.f32.mrf.mxu0
      %2798 = vdwg.mxu0
      %v2799 = vadd.f32 %v2369, %v2621
      %v2800 = vadd.f32 %v2370, %v2626
      %v2801 = vadd.f32 %v2371, %v2631
      %v2802 = vadd.f32 %v2372, %v2636
      %v2803 = vadd.f32 %v2373, %v2641
      %v2804 = vadd.f32 %v2374, %v2646
      %v2805 = vadd.f32 %v2375, %v2651
      %v2806 = vadd.f32 %v2376, %v2656
      %v2807 = vadd.f32 %v2377, %v2661
      %v2808 = vadd.f32 %v2378, %v2666
      %v2809 = vadd.f32 %v2379, %v2671
      %v2810 = vadd.f32 %v2380, %v2676
      %v2811 = vadd.f32 %v2381, %v2681
      %v2812 = vadd.f32 %v2382, %v2686
      %v2813 = vadd.f32 %v2383, %v2691
      %v2814 = vadd.f32 %v2384, %v2696
      %v2815 = vadd.f32 %v2385, %v2701
      %v2816 = vadd.f32 %v2386, %v2706
      %v2817 = vadd.f32 %v2387, %v2711
      %v2818 = vadd.f32 %v2388, %v2716
      %v2819 = vadd.f32 %v2389, %v2721
      %v2820 = vadd.f32 %v2390, %v2726
      %v2821 = vadd.f32 %v2391, %v2731
      %v2822 = vadd.f32 %v2392, %v2736
      %v2823 = vadd.f32 %v2393, %v2741
      %v2824 = vadd.f32 %v2394, %v2746
      %v2825 = vadd.f32 %v2395, %v2751
      %v2826 = vadd.f32 %v2396, %v2756
      %v2827 = vadd.f32 %v2397, %v2761
      %v2828 = vadd.f32 %v2398, %v2766
      %v2829 = vadd.f32 %v2399, %v2771
      %v2830 = vadd.f32 %v2400, %v2776
      %v2831 = vadd.f32 %v2401, %v2781
      %v2832 = vadd.f32 %v2402, %v2786
      %v2833 = vadd.f32 %v2403, %v2791
      %v2834 = vadd.f32 %v2404, %v2796
      %v2835 = vld [vmem:[%s315 + $0x24] sm:$0xff]
      %v2836 = vld [vmem:[%s315 + $0x2c] sm:$0xff]
      %v2837 = vld [vmem:[%s315 + $0x34] sm:$0xff]
      %v2838 = vld [vmem:[%s315 + $0x3c] sm:$0xff]
      %v2839 = vld [vmem:[%s315 + $0x44] sm:$0xff]
      %v2840 = vld [vmem:[%s315 + $0x4c] sm:$0xff]
      %v2841 = vld [vmem:[%s315 + $0x54] sm:$0xff]
      %v2842 = vld [vmem:[%s315 + $0x5c] sm:$0xff]
      %v2843 = vld [vmem:[%s315 + $0x64] sm:$0xff]
      %v2844 = vld [vmem:[%s315 + $0x6c] sm:$0xff]
      %v2845 = vld [vmem:[%s315 + $0x74] sm:$0xff]
      %v2846 = vld [vmem:[%s315 + $0x7c] sm:$0xff]
      %v2847 = vld [vmem:[%s315 + $0x84] sm:$0xff]
      %v2848 = vld [vmem:[%s315 + $0x8c] sm:$0xff]
      %v2849 = vld [vmem:[%s315 + $0x94] sm:$0xff]
      %v2850 = vld [vmem:[%s315 + $0x9c] sm:$0xff]
      %v2851 = vld [vmem:[%s315 + $0xa4] sm:$0xff]
      %v2852 = vld [vmem:[%s315 + $0xac] sm:$0xff]
      %v2853 = vld [vmem:[%s315 + $0xb4] sm:$0xff]
      %v2854 = vld [vmem:[%s315 + $0xbc] sm:$0xff]
      %v2855 = vld [vmem:[%s315 + $0xc4] sm:$0xff]
      %v2856 = vld [vmem:[%s315 + $0xcc] sm:$0xff]
      %v2857 = vld [vmem:[%s315 + $0xd4] sm:$0xff]
      %v2858 = vld [vmem:[%s315 + $0xdc] sm:$0xff]
      %v2859 = vld [vmem:[%s315 + $0xe4] sm:$0xff]
      %v2860 = vld [vmem:[%s315 + $0xec] sm:$0xff]
      %v2861 = vld [vmem:[%s315 + $0xf4] sm:$0xff]
      %v2862 = vld [vmem:[%s315 + $0xfc] sm:$0xff]
      %v2863 = vld [vmem:[%s315 + $0x104] sm:$0xff]
      %v2864 = vld [vmem:[%s315 + $0x10c] sm:$0xff]
      %v2865 = vld [vmem:[%s315 + $0x114] sm:$0xff]
      %v2866 = vld [vmem:[%s315 + $0x11c] sm:$0xff]
      %v2867 = vld [vmem:[%s315 + $0x124] sm:$0xff]
      %v2868 = vld [vmem:[%s315 + $0x12c] sm:$0xff]
      %v2869 = vld [vmem:[%s315 + $0x134] sm:$0xff]
      %v2870 = vld [vmem:[%s315 + $0x13c] sm:$0xff]
      %s2871 = scalar_lea.vmem %s3, 24
      %v2872 = vld [vmem:[%s2871] sm:$0xf]
      %v2874 = vsel %vm401, %v2835, 0
      %v2877 = vsel %vm401, %v2836, 0
      %v2880 = vsel %vm401, %v2837, 0
      %v2883 = vsel %vm401, %v2838, 0
      %v2886 = vsel %vm401, %v2839, 0
      %v2889 = vsel %vm401, %v2840, 0
      %v2892 = vsel %vm401, %v2841, 0
      %v2895 = vsel %vm401, %v2842, 0
      %v2898 = vsel %vm401, %v2843, 0
      %v2901 = vsel %vm401, %v2844, 0
      %v2904 = vsel %vm401, %v2845, 0
      %v2907 = vsel %vm401, %v2846, 0
      %v2910 = vsel %vm401, %v2847, 0
      %v2913 = vsel %vm401, %v2848, 0
      %v2916 = vsel %vm401, %v2849, 0
      %v2919 = vsel %vm401, %v2850, 0
      %v2922 = vsel %vm401, %v2851, 0
      %v2925 = vsel %vm401, %v2852, 0
      %v2928 = vsel %vm401, %v2853, 0
      %v2931 = vsel %vm401, %v2854, 0
      %v2934 = vsel %vm401, %v2855, 0
      %v2937 = vsel %vm401, %v2856, 0
      %v2940 = vsel %vm401, %v2857, 0
      %v2943 = vsel %vm401, %v2858, 0
      %v2946 = vsel %vm401, %v2859, 0
      %v2949 = vsel %vm401, %v2860, 0
      %v2952 = vsel %vm401, %v2861, 0
      %v2955 = vsel %vm401, %v2862, 0
      %v2958 = vsel %vm401, %v2863, 0
      %v2961 = vsel %vm401, %v2864, 0
      %v2964 = vsel %vm401, %v2865, 0
      %v2967 = vsel %vm401, %v2866, 0
      %v2970 = vsel %vm401, %v2867, 0
      %v2973 = vsel %vm401, %v2868, 0
      %v2976 = vsel %vm401, %v2869, 0
      %v2979 = vsel %vm401, %v2870, 0
      %v2982 = vsel %vm510, %v2872, 0
      %2984 = vmatprep.subr.mxu0 0.0
      %2985 = vmatpush1.msra.mxu0 0.0
      %2986 = vmatprep.subr.mxu0 0.0
      %2987 = vmatpush1.msra.mxu0 0.0
      %2988 = vmatprep.subr.mxu0 0.0
      %2989 = vmatpush1.msra.mxu0 0.0
      %2990 = vmatprep.subr.mxu0 0.0
      %2991 = vmatpush1.msra.mxu0 0.0
      %2992 = vmatprep.subr.mxu0 0.0
      %2993 = vmatpush1.msra.mxu0 0.0
      %2994 = vmatprep.subr.mxu0 0.0
      %2995 = vmatpush1.msra.mxu0 0.0
      %2996 = vmatprep.subr.mxu0 0.0
      %2997 = vmatpush1.msra.mxu0 0.0
      %2998 = vmatprep.subr.mxu0 0.0
      %2999 = vmatpush1.msra.mxu0 0.0
      %3000 = vmatprep.subr.mxu0 0.0
      %3001 = vmatpush1.msra.mxu0 0.0
      %3002 = vmatprep.subr.mxu0 0.0
      %3003 = vmatpush1.msra.mxu0 0.0
      %3004 = vmatprep.subr.mxu0 0.0
      %3005 = vmatpush1.msra.mxu0 0.0
      %3006 = vmatprep.subr.mxu0 0.0
      %3007 = vmatpush1.msra.mxu0 0.0
      %3008 = vmatprep.subr.mxu0 0.0
      %3009 = vmatpush1.msra.mxu0 0.0
      %3010 = vmatprep.subr.mxu0 0.0
      %3011 = vmatpush1.msra.mxu0 0.0
      %3012 = vmatprep.subr.mxu0 0.0
      %3013 = vmatpush1.msra.mxu0 0.0
      %3014 = vmatprep.subr.mxu0 0.0
      %3015 = vmatpush1.msra.mxu0 %v2982
      %3016 = vmatprep.subr.mxu0 0.0
      %3017 = vmatpush2.msra.mxu0 0.0
      %3018 = vmatprep.subr.mxu0 0.0
      %3019 = vmatpush2.msra.mxu0 0.0
      %3020 = vmatprep.subr.mxu0 0.0
      %3021 = vmatpush2.msra.mxu0 0.0
      %3022 = vmatprep.subr.mxu0 0.0
      %3023 = vmatpush2.msra.mxu0 0.0
      %3024 = vmatprep.subr.mxu0 0.0
      %3025 = vmatpush2.msra.mxu0 0.0
      %3026 = vmatprep.subr.mxu0 0.0
      %3027 = vmatpush2.msra.mxu0 0.0
      %3028 = vmatprep.subr.mxu0 0.0
      %3029 = vmatpush2.msra.mxu0 0.0
      %3030 = vmatprep.subr.mxu0 0.0
      %3031 = vmatpush2.msra.mxu0 0.0
      %3032 = vmatprep.subr.mxu0 0.0
      %3033 = vmatpush2.msra.mxu0 0.0
      %3034 = vmatprep.subr.mxu0 0.0
      %3035 = vmatpush2.msra.mxu0 0.0
      %3036 = vmatprep.subr.mxu0 0.0
      %3037 = vmatpush2.msra.mxu0 0.0
      %3038 = vmatprep.subr.mxu0 0.0
      %3039 = vmatpush2.msra.mxu0 0.0
      %3040 = vmatprep.subr.mxu0 0.0
      %3041 = vmatpush2.msra.mxu0 0.0
      %3042 = vmatprep.subr.mxu0 0.0
      %3043 = vmatpush2.msra.mxu0 0.0
      %3044 = vmatprep.subr.mxu0 0.0
      %3045 = vmatpush2.msra.mxu0 0.0
      %3046 = vmatprep.subr.mxu0 0.0
      %3047 = vmatpush2.msra.mxu0 0.0
      %3048 = vmatprep.mubr.f32.mxu0 0.0
      %3049 = vmatmul.mubr.f32.gmra.mxu0 %v2874
      %v3050 = vpop.f32.mrf.mxu0
      %v3051 = vadd.f32 0.0, %v3050
      %v3052 = vpop.f32.mrf.mxu0
      %3053 = vmatprep.mubr.f32.mxu0 0.0
      %3054 = vmatmul.mubr.f32.gmra.mxu0 %v2877
      %v3055 = vpop.f32.mrf.mxu0
      %v3056 = vadd.f32 0.0, %v3055
      %v3057 = vpop.f32.mrf.mxu0
      %3058 = vmatprep.mubr.f32.mxu0 0.0
      %3059 = vmatmul.mubr.f32.gmra.mxu0 %v2880
      %v3060 = vpop.f32.mrf.mxu0
      %v3061 = vadd.f32 0.0, %v3060
      %v3062 = vpop.f32.mrf.mxu0
      %3063 = vmatprep.mubr.f32.mxu0 0.0
      %3064 = vmatmul.mubr.f32.gmra.mxu0 %v2883
      %v3065 = vpop.f32.mrf.mxu0
      %v3066 = vadd.f32 0.0, %v3065
      %v3067 = vpop.f32.mrf.mxu0
      %3068 = vmatprep.mubr.f32.mxu0 0.0
      %3069 = vmatmul.mubr.f32.gmra.mxu0 %v2886
      %v3070 = vpop.f32.mrf.mxu0
      %v3071 = vadd.f32 0.0, %v3070
      %v3072 = vpop.f32.mrf.mxu0
      %3073 = vmatprep.mubr.f32.mxu0 0.0
      %3074 = vmatmul.mubr.f32.gmra.mxu0 %v2889
      %v3075 = vpop.f32.mrf.mxu0
      %v3076 = vadd.f32 0.0, %v3075
      %v3077 = vpop.f32.mrf.mxu0
      %3078 = vmatprep.mubr.f32.mxu0 0.0
      %3079 = vmatmul.mubr.f32.gmra.mxu0 %v2892
      %v3080 = vpop.f32.mrf.mxu0
      %v3081 = vadd.f32 0.0, %v3080
      %v3082 = vpop.f32.mrf.mxu0
      %3083 = vmatprep.mubr.f32.mxu0 0.0
      %3084 = vmatmul.mubr.f32.gmra.mxu0 %v2895
      %v3085 = vpop.f32.mrf.mxu0
      %v3086 = vadd.f32 0.0, %v3085
      %v3087 = vpop.f32.mrf.mxu0
      %3088 = vmatprep.mubr.f32.mxu0 0.0
      %3089 = vmatmul.mubr.f32.gmra.mxu0 %v2898
      %v3090 = vpop.f32.mrf.mxu0
      %v3091 = vadd.f32 0.0, %v3090
      %v3092 = vpop.f32.mrf.mxu0
      %3093 = vmatprep.mubr.f32.mxu0 0.0
      %3094 = vmatmul.mubr.f32.gmra.mxu0 %v2901
      %v3095 = vpop.f32.mrf.mxu0
      %v3096 = vadd.f32 0.0, %v3095
      %v3097 = vpop.f32.mrf.mxu0
      %3098 = vmatprep.mubr.f32.mxu0 0.0
      %3099 = vmatmul.mubr.f32.gmra.mxu0 %v2904
      %v3100 = vpop.f32.mrf.mxu0
      %v3101 = vadd.f32 0.0, %v3100
      %v3102 = vpop.f32.mrf.mxu0
      %3103 = vmatprep.mubr.f32.mxu0 0.0
      %3104 = vmatmul.mubr.f32.gmra.mxu0 %v2907
      %v3105 = vpop.f32.mrf.mxu0
      %v3106 = vadd.f32 0.0, %v3105
      %v3107 = vpop.f32.mrf.mxu0
      %3108 = vmatprep.mubr.f32.mxu0 0.0
      %3109 = vmatmul.mubr.f32.gmra.mxu0 %v2910
      %v3110 = vpop.f32.mrf.mxu0
      %v3111 = vadd.f32 0.0, %v3110
      %v3112 = vpop.f32.mrf.mxu0
      %3113 = vmatprep.mubr.f32.mxu0 0.0
      %3114 = vmatmul.mubr.f32.gmra.mxu0 %v2913
      %v3115 = vpop.f32.mrf.mxu0
      %v3116 = vadd.f32 0.0, %v3115
      %v3117 = vpop.f32.mrf.mxu0
      %3118 = vmatprep.mubr.f32.mxu0 0.0
      %3119 = vmatmul.mubr.f32.gmra.mxu0 %v2916
      %v3120 = vpop.f32.mrf.mxu0
      %v3121 = vadd.f32 0.0, %v3120
      %v3122 = vpop.f32.mrf.mxu0
      %3123 = vmatprep.mubr.f32.mxu0 0.0
      %3124 = vmatmul.mubr.f32.gmra.mxu0 %v2919
      %v3125 = vpop.f32.mrf.mxu0
      %v3126 = vadd.f32 0.0, %v3125
      %v3127 = vpop.f32.mrf.mxu0
      %3128 = vmatprep.mubr.f32.mxu0 0.0
      %3129 = vmatmul.mubr.f32.gmra.mxu0 %v2922
      %v3130 = vpop.f32.mrf.mxu0
      %v3131 = vadd.f32 0.0, %v3130
      %v3132 = vpop.f32.mrf.mxu0
      %3133 = vmatprep.mubr.f32.mxu0 0.0
      %3134 = vmatmul.mubr.f32.gmra.mxu0 %v2925
      %v3135 = vpop.f32.mrf.mxu0
      %v3136 = vadd.f32 0.0, %v3135
      %v3137 = vpop.f32.mrf.mxu0
      %3138 = vmatprep.mubr.f32.mxu0 0.0
      %3139 = vmatmul.mubr.f32.gmra.mxu0 %v2928
      %v3140 = vpop.f32.mrf.mxu0
      %v3141 = vadd.f32 0.0, %v3140
      %v3142 = vpop.f32.mrf.mxu0
      %3143 = vmatprep.mubr.f32.mxu0 0.0
      %3144 = vmatmul.mubr.f32.gmra.mxu0 %v2931
      %v3145 = vpop.f32.mrf.mxu0
      %v3146 = vadd.f32 0.0, %v3145
      %v3147 = vpop.f32.mrf.mxu0
      %3148 = vmatprep.mubr.f32.mxu0 0.0
      %3149 = vmatmul.mubr.f32.gmra.mxu0 %v2934
      %v3150 = vpop.f32.mrf.mxu0
      %v3151 = vadd.f32 0.0, %v3150
      %v3152 = vpop.f32.mrf.mxu0
      %3153 = vmatprep.mubr.f32.mxu0 0.0
      %3154 = vmatmul.mubr.f32.gmra.mxu0 %v2937
      %v3155 = vpop.f32.mrf.mxu0
      %v3156 = vadd.f32 0.0, %v3155
      %v3157 = vpop.f32.mrf.mxu0
      %3158 = vmatprep.mubr.f32.mxu0 0.0
      %3159 = vmatmul.mubr.f32.gmra.mxu0 %v2940
      %v3160 = vpop.f32.mrf.mxu0
      %v3161 = vadd.f32 0.0, %v3160
      %v3162 = vpop.f32.mrf.mxu0
      %3163 = vmatprep.mubr.f32.mxu0 0.0
      %3164 = vmatmul.mubr.f32.gmra.mxu0 %v2943
      %v3165 = vpop.f32.mrf.mxu0
      %v3166 = vadd.f32 0.0, %v3165
      %v3167 = vpop.f32.mrf.mxu0
      %3168 = vmatprep.mubr.f32.mxu0 0.0
      %3169 = vmatmul.mubr.f32.gmra.mxu0 %v2946
      %v3170 = vpop.f32.mrf.mxu0
      %v3171 = vadd.f32 0.0, %v3170
      %v3172 = vpop.f32.mrf.mxu0
      %3173 = vmatprep.mubr.f32.mxu0 0.0
      %3174 = vmatmul.mubr.f32.gmra.mxu0 %v2949
      %v3175 = vpop.f32.mrf.mxu0
      %v3176 = vadd.f32 0.0, %v3175
      %v3177 = vpop.f32.mrf.mxu0
      %3178 = vmatprep.mubr.f32.mxu0 0.0
      %3179 = vmatmul.mubr.f32.gmra.mxu0 %v2952
      %v3180 = vpop.f32.mrf.mxu0
      %v3181 = vadd.f32 0.0, %v3180
      %v3182 = vpop.f32.mrf.mxu0
      %3183 = vmatprep.mubr.f32.mxu0 0.0
      %3184 = vmatmul.mubr.f32.gmra.mxu0 %v2955
      %v3185 = vpop.f32.mrf.mxu0
      %v3186 = vadd.f32 0.0, %v3185
      %v3187 = vpop.f32.mrf.mxu0
      %3188 = vmatprep.mubr.f32.mxu0 0.0
      %3189 = vmatmul.mubr.f32.gmra.mxu0 %v2958
      %v3190 = vpop.f32.mrf.mxu0
      %v3191 = vadd.f32 0.0, %v3190
      %v3192 = vpop.f32.mrf.mxu0
      %3193 = vmatprep.mubr.f32.mxu0 0.0
      %3194 = vmatmul.mubr.f32.gmra.mxu0 %v2961
      %v3195 = vpop.f32.mrf.mxu0
      %v3196 = vadd.f32 0.0, %v3195
      %v3197 = vpop.f32.mrf.mxu0
      %3198 = vmatprep.mubr.f32.mxu0 0.0
      %3199 = vmatmul.mubr.f32.gmra.mxu0 %v2964
      %v3200 = vpop.f32.mrf.mxu0
      %v3201 = vadd.f32 0.0, %v3200
      %v3202 = vpop.f32.mrf.mxu0
      %3203 = vmatprep.mubr.f32.mxu0 0.0
      %3204 = vmatmul.mubr.f32.gmra.mxu0 %v2967
      %v3205 = vpop.f32.mrf.mxu0
      %v3206 = vadd.f32 0.0, %v3205
      %v3207 = vpop.f32.mrf.mxu0
      %3208 = vmatprep.mubr.f32.mxu0 0.0
      %3209 = vmatmul.mubr.f32.gmra.mxu0 %v2970
      %v3210 = vpop.f32.mrf.mxu0
      %v3211 = vadd.f32 0.0, %v3210
      %v3212 = vpop.f32.mrf.mxu0
      %3213 = vmatprep.mubr.f32.mxu0 0.0
      %3214 = vmatmul.mubr.f32.gmra.mxu0 %v2973
      %v3215 = vpop.f32.mrf.mxu0
      %v3216 = vadd.f32 0.0, %v3215
      %v3217 = vpop.f32.mrf.mxu0
      %3218 = vmatprep.mubr.f32.mxu0 0.0
      %3219 = vmatmul.mubr.f32.gmra.mxu0 %v2976
      %v3220 = vpop.f32.mrf.mxu0
      %v3221 = vadd.f32 0.0, %v3220
      %v3222 = vpop.f32.mrf.mxu0
      %3223 = vmatprep.mubr.f32.mxu0 0.0
      %3224 = vmatmul.mubr.f32.gmra.mxu0 %v2979
      %v3225 = vpop.f32.mrf.mxu0
      %v3226 = vadd.f32 0.0, %v3225
      %v3227 = vpop.f32.mrf.mxu0
      %3228 = vdwg.mxu0
      %v3229 = vadd.f32 %v2799, %v3051
      %v3230 = vadd.f32 %v2800, %v3056
      %v3231 = vadd.f32 %v2801, %v3061
      %v3232 = vadd.f32 %v2802, %v3066
      %v3233 = vadd.f32 %v2803, %v3071
      %v3234 = vadd.f32 %v2804, %v3076
      %v3235 = vadd.f32 %v2805, %v3081
      %v3236 = vadd.f32 %v2806, %v3086
      %v3237 = vadd.f32 %v2807, %v3091
      %v3238 = vadd.f32 %v2808, %v3096
      %v3239 = vadd.f32 %v2809, %v3101
      %v3240 = vadd.f32 %v2810, %v3106
      %v3241 = vadd.f32 %v2811, %v3111
      %v3242 = vadd.f32 %v2812, %v3116
      %v3243 = vadd.f32 %v2813, %v3121
      %v3244 = vadd.f32 %v2814, %v3126
      %v3245 = vadd.f32 %v2815, %v3131
      %v3246 = vadd.f32 %v2816, %v3136
      %v3247 = vadd.f32 %v2817, %v3141
      %v3248 = vadd.f32 %v2818, %v3146
      %v3249 = vadd.f32 %v2819, %v3151
      %v3250 = vadd.f32 %v2820, %v3156
      %v3251 = vadd.f32 %v2821, %v3161
      %v3252 = vadd.f32 %v2822, %v3166
      %v3253 = vadd.f32 %v2823, %v3171
      %v3254 = vadd.f32 %v2824, %v3176
      %v3255 = vadd.f32 %v2825, %v3181
      %v3256 = vadd.f32 %v2826, %v3186
      %v3257 = vadd.f32 %v2827, %v3191
      %v3258 = vadd.f32 %v2828, %v3196
      %v3259 = vadd.f32 %v2829, %v3201
      %v3260 = vadd.f32 %v2830, %v3206
      %v3261 = vadd.f32 %v2831, %v3211
      %v3262 = vadd.f32 %v2832, %v3216
      %v3263 = vadd.f32 %v2833, %v3221
      %v3264 = vadd.f32 %v2834, %v3226
      %v3265 = vld [vmem:[%s315 + $0x25] sm:$0xff]
      %v3266 = vld [vmem:[%s315 + $0x2d] sm:$0xff]
      %v3267 = vld [vmem:[%s315 + $0x35] sm:$0xff]
      %v3268 = vld [vmem:[%s315 + $0x3d] sm:$0xff]
      %v3269 = vld [vmem:[%s315 + $0x45] sm:$0xff]
      %v3270 = vld [vmem:[%s315 + $0x4d] sm:$0xff]
      %v3271 = vld [vmem:[%s315 + $0x55] sm:$0xff]
      %v3272 = vld [vmem:[%s315 + $0x5d] sm:$0xff]
      %v3273 = vld [vmem:[%s315 + $0x65] sm:$0xff]
      %v3274 = vld [vmem:[%s315 + $0x6d] sm:$0xff]
      %v3275 = vld [vmem:[%s315 + $0x75] sm:$0xff]
      %v3276 = vld [vmem:[%s315 + $0x7d] sm:$0xff]
      %v3277 = vld [vmem:[%s315 + $0x85] sm:$0xff]
      %v3278 = vld [vmem:[%s315 + $0x8d] sm:$0xff]
      %v3279 = vld [vmem:[%s315 + $0x95] sm:$0xff]
      %v3280 = vld [vmem:[%s315 + $0x9d] sm:$0xff]
      %v3281 = vld [vmem:[%s315 + $0xa5] sm:$0xff]
      %v3282 = vld [vmem:[%s315 + $0xad] sm:$0xff]
      %v3283 = vld [vmem:[%s315 + $0xb5] sm:$0xff]
      %v3284 = vld [vmem:[%s315 + $0xbd] sm:$0xff]
      %v3285 = vld [vmem:[%s315 + $0xc5] sm:$0xff]
      %v3286 = vld [vmem:[%s315 + $0xcd] sm:$0xff]
      %v3287 = vld [vmem:[%s315 + $0xd5] sm:$0xff]
      %v3288 = vld [vmem:[%s315 + $0xdd] sm:$0xff]
      %v3289 = vld [vmem:[%s315 + $0xe5] sm:$0xff]
      %v3290 = vld [vmem:[%s315 + $0xed] sm:$0xff]
      %v3291 = vld [vmem:[%s315 + $0xf5] sm:$0xff]
      %v3292 = vld [vmem:[%s315 + $0xfd] sm:$0xff]
      %v3293 = vld [vmem:[%s315 + $0x105] sm:$0xff]
      %v3294 = vld [vmem:[%s315 + $0x10d] sm:$0xff]
      %v3295 = vld [vmem:[%s315 + $0x115] sm:$0xff]
      %v3296 = vld [vmem:[%s315 + $0x11d] sm:$0xff]
      %v3297 = vld [vmem:[%s315 + $0x125] sm:$0xff]
      %v3298 = vld [vmem:[%s315 + $0x12d] sm:$0xff]
      %v3299 = vld [vmem:[%s315 + $0x135] sm:$0xff]
      %v3300 = vld [vmem:[%s315 + $0x13d] sm:$0xff]
      %s3301 = scalar_lea.vmem %s3, 28
      %v3302 = vld [vmem:[%s3301] sm:$0xf]
      %v3304 = vsel %vm401, %v3265, 0
      %v3307 = vsel %vm401, %v3266, 0
      %v3310 = vsel %vm401, %v3267, 0
      %v3313 = vsel %vm401, %v3268, 0
      %v3316 = vsel %vm401, %v3269, 0
      %v3319 = vsel %vm401, %v3270, 0
      %v3322 = vsel %vm401, %v3271, 0
      %v3325 = vsel %vm401, %v3272, 0
      %v3328 = vsel %vm401, %v3273, 0
      %v3331 = vsel %vm401, %v3274, 0
      %v3334 = vsel %vm401, %v3275, 0
      %v3337 = vsel %vm401, %v3276, 0
      %v3340 = vsel %vm401, %v3277, 0
      %v3343 = vsel %vm401, %v3278, 0
      %v3346 = vsel %vm401, %v3279, 0
      %v3349 = vsel %vm401, %v3280, 0
      %v3352 = vsel %vm401, %v3281, 0
      %v3355 = vsel %vm401, %v3282, 0
      %v3358 = vsel %vm401, %v3283, 0
      %v3361 = vsel %vm401, %v3284, 0
      %v3364 = vsel %vm401, %v3285, 0
      %v3367 = vsel %vm401, %v3286, 0
      %v3370 = vsel %vm401, %v3287, 0
      %v3373 = vsel %vm401, %v3288, 0
      %v3376 = vsel %vm401, %v3289, 0
      %v3379 = vsel %vm401, %v3290, 0
      %v3382 = vsel %vm401, %v3291, 0
      %v3385 = vsel %vm401, %v3292, 0
      %v3388 = vsel %vm401, %v3293, 0
      %v3391 = vsel %vm401, %v3294, 0
      %v3394 = vsel %vm401, %v3295, 0
      %v3397 = vsel %vm401, %v3296, 0
      %v3400 = vsel %vm401, %v3297, 0
      %v3403 = vsel %vm401, %v3298, 0
      %v3406 = vsel %vm401, %v3299, 0
      %v3409 = vsel %vm401, %v3300, 0
      %v3412 = vsel %vm510, %v3302, 0
      %3414 = vmatprep.subr.mxu0 0.0
      %3415 = vmatpush1.msra.mxu0 0.0
      %3416 = vmatprep.subr.mxu0 0.0
      %3417 = vmatpush1.msra.mxu0 0.0
      %3418 = vmatprep.subr.mxu0 0.0
      %3419 = vmatpush1.msra.mxu0 0.0
      %3420 = vmatprep.subr.mxu0 0.0
      %3421 = vmatpush1.msra.mxu0 0.0
      %3422 = vmatprep.subr.mxu0 0.0
      %3423 = vmatpush1.msra.mxu0 0.0
      %3424 = vmatprep.subr.mxu0 0.0
      %3425 = vmatpush1.msra.mxu0 0.0
      %3426 = vmatprep.subr.mxu0 0.0
      %3427 = vmatpush1.msra.mxu0 0.0
      %3428 = vmatprep.subr.mxu0 0.0
      %3429 = vmatpush1.msra.mxu0 0.0
      %3430 = vmatprep.subr.mxu0 0.0
      %3431 = vmatpush1.msra.mxu0 0.0
      %3432 = vmatprep.subr.mxu0 0.0
      %3433 = vmatpush1.msra.mxu0 0.0
      %3434 = vmatprep.subr.mxu0 0.0
      %3435 = vmatpush1.msra.mxu0 0.0
      %3436 = vmatprep.subr.mxu0 0.0
      %3437 = vmatpush1.msra.mxu0 0.0
      %3438 = vmatprep.subr.mxu0 0.0
      %3439 = vmatpush1.msra.mxu0 0.0
      %3440 = vmatprep.subr.mxu0 0.0
      %3441 = vmatpush1.msra.mxu0 0.0
      %3442 = vmatprep.subr.mxu0 0.0
      %3443 = vmatpush1.msra.mxu0 0.0
      %3444 = vmatprep.subr.mxu0 0.0
      %3445 = vmatpush1.msra.mxu0 %v3412
      %3446 = vmatprep.subr.mxu0 0.0
      %3447 = vmatpush2.msra.mxu0 0.0
      %3448 = vmatprep.subr.mxu0 0.0
      %3449 = vmatpush2.msra.mxu0 0.0
      %3450 = vmatprep.subr.mxu0 0.0
      %3451 = vmatpush2.msra.mxu0 0.0
      %3452 = vmatprep.subr.mxu0 0.0
      %3453 = vmatpush2.msra.mxu0 0.0
      %3454 = vmatprep.subr.mxu0 0.0
      %3455 = vmatpush2.msra.mxu0 0.0
      %3456 = vmatprep.subr.mxu0 0.0
      %3457 = vmatpush2.msra.mxu0 0.0
      %3458 = vmatprep.subr.mxu0 0.0
      %3459 = vmatpush2.msra.mxu0 0.0
      %3460 = vmatprep.subr.mxu0 0.0
      %3461 = vmatpush2.msra.mxu0 0.0
      %3462 = vmatprep.subr.mxu0 0.0
      %3463 = vmatpush2.msra.mxu0 0.0
      %3464 = vmatprep.subr.mxu0 0.0
      %3465 = vmatpush2.msra.mxu0 0.0
      %3466 = vmatprep.subr.mxu0 0.0
      %3467 = vmatpush2.msra.mxu0 0.0
      %3468 = vmatprep.subr.mxu0 0.0
      %3469 = vmatpush2.msra.mxu0 0.0
      %3470 = vmatprep.subr.mxu0 0.0
      %3471 = vmatpush2.msra.mxu0 0.0
      %3472 = vmatprep.subr.mxu0 0.0
      %3473 = vmatpush2.msra.mxu0 0.0
      %3474 = vmatprep.subr.mxu0 0.0
      %3475 = vmatpush2.msra.mxu0 0.0
      %3476 = vmatprep.subr.mxu0 0.0
      %3477 = vmatpush2.msra.mxu0 0.0
      %3478 = vmatprep.mubr.f32.mxu0 0.0
      %3479 = vmatmul.mubr.f32.gmra.mxu0 %v3304
      %v3480 = vpop.f32.mrf.mxu0
      %v3481 = vadd.f32 0.0, %v3480
      %v3482 = vpop.f32.mrf.mxu0
      %3483 = vmatprep.mubr.f32.mxu0 0.0
      %3484 = vmatmul.mubr.f32.gmra.mxu0 %v3307
      %v3485 = vpop.f32.mrf.mxu0
      %v3486 = vadd.f32 0.0, %v3485
      %v3487 = vpop.f32.mrf.mxu0
      %3488 = vmatprep.mubr.f32.mxu0 0.0
      %3489 = vmatmul.mubr.f32.gmra.mxu0 %v3310
      %v3490 = vpop.f32.mrf.mxu0
      %v3491 = vadd.f32 0.0, %v3490
      %v3492 = vpop.f32.mrf.mxu0
      %3493 = vmatprep.mubr.f32.mxu0 0.0
      %3494 = vmatmul.mubr.f32.gmra.mxu0 %v3313
      %v3495 = vpop.f32.mrf.mxu0
      %v3496 = vadd.f32 0.0, %v3495
      %v3497 = vpop.f32.mrf.mxu0
      %3498 = vmatprep.mubr.f32.mxu0 0.0
      %3499 = vmatmul.mubr.f32.gmra.mxu0 %v3316
      %v3500 = vpop.f32.mrf.mxu0
      %v3501 = vadd.f32 0.0, %v3500
      %v3502 = vpop.f32.mrf.mxu0
      %3503 = vmatprep.mubr.f32.mxu0 0.0
      %3504 = vmatmul.mubr.f32.gmra.mxu0 %v3319
      %v3505 = vpop.f32.mrf.mxu0
      %v3506 = vadd.f32 0.0, %v3505
      %v3507 = vpop.f32.mrf.mxu0
      %3508 = vmatprep.mubr.f32.mxu0 0.0
      %3509 = vmatmul.mubr.f32.gmra.mxu0 %v3322
      %v3510 = vpop.f32.mrf.mxu0
      %v3511 = vadd.f32 0.0, %v3510
      %v3512 = vpop.f32.mrf.mxu0
      %3513 = vmatprep.mubr.f32.mxu0 0.0
      %3514 = vmatmul.mubr.f32.gmra.mxu0 %v3325
      %v3515 = vpop.f32.mrf.mxu0
      %v3516 = vadd.f32 0.0, %v3515
      %v3517 = vpop.f32.mrf.mxu0
      %3518 = vmatprep.mubr.f32.mxu0 0.0
      %3519 = vmatmul.mubr.f32.gmra.mxu0 %v3328
      %v3520 = vpop.f32.mrf.mxu0
      %v3521 = vadd.f32 0.0, %v3520
      %v3522 = vpop.f32.mrf.mxu0
      %3523 = vmatprep.mubr.f32.mxu0 0.0
      %3524 = vmatmul.mubr.f32.gmra.mxu0 %v3331
      %v3525 = vpop.f32.mrf.mxu0
      %v3526 = vadd.f32 0.0, %v3525
      %v3527 = vpop.f32.mrf.mxu0
      %3528 = vmatprep.mubr.f32.mxu0 0.0
      %3529 = vmatmul.mubr.f32.gmra.mxu0 %v3334
      %v3530 = vpop.f32.mrf.mxu0
      %v3531 = vadd.f32 0.0, %v3530
      %v3532 = vpop.f32.mrf.mxu0
      %3533 = vmatprep.mubr.f32.mxu0 0.0
      %3534 = vmatmul.mubr.f32.gmra.mxu0 %v3337
      %v3535 = vpop.f32.mrf.mxu0
      %v3536 = vadd.f32 0.0, %v3535
      %v3537 = vpop.f32.mrf.mxu0
      %3538 = vmatprep.mubr.f32.mxu0 0.0
      %3539 = vmatmul.mubr.f32.gmra.mxu0 %v3340
      %v3540 = vpop.f32.mrf.mxu0
      %v3541 = vadd.f32 0.0, %v3540
      %v3542 = vpop.f32.mrf.mxu0
      %3543 = vmatprep.mubr.f32.mxu0 0.0
      %3544 = vmatmul.mubr.f32.gmra.mxu0 %v3343
      %v3545 = vpop.f32.mrf.mxu0
      %v3546 = vadd.f32 0.0, %v3545
      %v3547 = vpop.f32.mrf.mxu0
      %3548 = vmatprep.mubr.f32.mxu0 0.0
      %3549 = vmatmul.mubr.f32.gmra.mxu0 %v3346
      %v3550 = vpop.f32.mrf.mxu0
      %v3551 = vadd.f32 0.0, %v3550
      %v3552 = vpop.f32.mrf.mxu0
      %3553 = vmatprep.mubr.f32.mxu0 0.0
      %3554 = vmatmul.mubr.f32.gmra.mxu0 %v3349
      %v3555 = vpop.f32.mrf.mxu0
      %v3556 = vadd.f32 0.0, %v3555
      %v3557 = vpop.f32.mrf.mxu0
      %3558 = vmatprep.mubr.f32.mxu0 0.0
      %3559 = vmatmul.mubr.f32.gmra.mxu0 %v3352
      %v3560 = vpop.f32.mrf.mxu0
      %v3561 = vadd.f32 0.0, %v3560
      %v3562 = vpop.f32.mrf.mxu0
      %3563 = vmatprep.mubr.f32.mxu0 0.0
      %3564 = vmatmul.mubr.f32.gmra.mxu0 %v3355
      %v3565 = vpop.f32.mrf.mxu0
      %v3566 = vadd.f32 0.0, %v3565
      %v3567 = vpop.f32.mrf.mxu0
      %3568 = vmatprep.mubr.f32.mxu0 0.0
      %3569 = vmatmul.mubr.f32.gmra.mxu0 %v3358
      %v3570 = vpop.f32.mrf.mxu0
      %v3571 = vadd.f32 0.0, %v3570
      %v3572 = vpop.f32.mrf.mxu0
      %3573 = vmatprep.mubr.f32.mxu0 0.0
      %3574 = vmatmul.mubr.f32.gmra.mxu0 %v3361
      %v3575 = vpop.f32.mrf.mxu0
      %v3576 = vadd.f32 0.0, %v3575
      %v3577 = vpop.f32.mrf.mxu0
      %3578 = vmatprep.mubr.f32.mxu0 0.0
      %3579 = vmatmul.mubr.f32.gmra.mxu0 %v3364
      %v3580 = vpop.f32.mrf.mxu0
      %v3581 = vadd.f32 0.0, %v3580
      %v3582 = vpop.f32.mrf.mxu0
      %3583 = vmatprep.mubr.f32.mxu0 0.0
      %3584 = vmatmul.mubr.f32.gmra.mxu0 %v3367
      %v3585 = vpop.f32.mrf.mxu0
      %v3586 = vadd.f32 0.0, %v3585
      %v3587 = vpop.f32.mrf.mxu0
      %3588 = vmatprep.mubr.f32.mxu0 0.0
      %3589 = vmatmul.mubr.f32.gmra.mxu0 %v3370
      %v3590 = vpop.f32.mrf.mxu0
      %v3591 = vadd.f32 0.0, %v3590
      %v3592 = vpop.f32.mrf.mxu0
      %3593 = vmatprep.mubr.f32.mxu0 0.0
      %3594 = vmatmul.mubr.f32.gmra.mxu0 %v3373
      %v3595 = vpop.f32.mrf.mxu0
      %v3596 = vadd.f32 0.0, %v3595
      %v3597 = vpop.f32.mrf.mxu0
      %3598 = vmatprep.mubr.f32.mxu0 0.0
      %3599 = vmatmul.mubr.f32.gmra.mxu0 %v3376
      %v3600 = vpop.f32.mrf.mxu0
      %v3601 = vadd.f32 0.0, %v3600
      %v3602 = vpop.f32.mrf.mxu0
      %3603 = vmatprep.mubr.f32.mxu0 0.0
      %3604 = vmatmul.mubr.f32.gmra.mxu0 %v3379
      %v3605 = vpop.f32.mrf.mxu0
      %v3606 = vadd.f32 0.0, %v3605
      %v3607 = vpop.f32.mrf.mxu0
      %3608 = vmatprep.mubr.f32.mxu0 0.0
      %3609 = vmatmul.mubr.f32.gmra.mxu0 %v3382
      %v3610 = vpop.f32.mrf.mxu0
      %v3611 = vadd.f32 0.0, %v3610
      %v3612 = vpop.f32.mrf.mxu0
      %3613 = vmatprep.mubr.f32.mxu0 0.0
      %3614 = vmatmul.mubr.f32.gmra.mxu0 %v3385
      %v3615 = vpop.f32.mrf.mxu0
      %v3616 = vadd.f32 0.0, %v3615
      %v3617 = vpop.f32.mrf.mxu0
      %3618 = vmatprep.mubr.f32.mxu0 0.0
      %3619 = vmatmul.mubr.f32.gmra.mxu0 %v3388
      %v3620 = vpop.f32.mrf.mxu0
      %v3621 = vadd.f32 0.0, %v3620
      %v3622 = vpop.f32.mrf.mxu0
      %3623 = vmatprep.mubr.f32.mxu0 0.0
      %3624 = vmatmul.mubr.f32.gmra.mxu0 %v3391
      %v3625 = vpop.f32.mrf.mxu0
      %v3626 = vadd.f32 0.0, %v3625
      %v3627 = vpop.f32.mrf.mxu0
      %3628 = vmatprep.mubr.f32.mxu0 0.0
      %3629 = vmatmul.mubr.f32.gmra.mxu0 %v3394
      %v3630 = vpop.f32.mrf.mxu0
      %v3631 = vadd.f32 0.0, %v3630
      %v3632 = vpop.f32.mrf.mxu0
      %3633 = vmatprep.mubr.f32.mxu0 0.0
      %3634 = vmatmul.mubr.f32.gmra.mxu0 %v3397
      %v3635 = vpop.f32.mrf.mxu0
      %v3636 = vadd.f32 0.0, %v3635
      %v3637 = vpop.f32.mrf.mxu0
      %3638 = vmatprep.mubr.f32.mxu0 0.0
      %3639 = vmatmul.mubr.f32.gmra.mxu0 %v3400
      %v3640 = vpop.f32.mrf.mxu0
      %v3641 = vadd.f32 0.0, %v3640
      %v3642 = vpop.f32.mrf.mxu0
      %3643 = vmatprep.mubr.f32.mxu0 0.0
      %3644 = vmatmul.mubr.f32.gmra.mxu0 %v3403
      %v3645 = vpop.f32.mrf.mxu0
      %v3646 = vadd.f32 0.0, %v3645
      %v3647 = vpop.f32.mrf.mxu0
      %3648 = vmatprep.mubr.f32.mxu0 0.0
      %3649 = vmatmul.mubr.f32.gmra.mxu0 %v3406
      %v3650 = vpop.f32.mrf.mxu0
      %v3651 = vadd.f32 0.0, %v3650
      %v3652 = vpop.f32.mrf.mxu0
      %3653 = vmatprep.mubr.f32.mxu0 0.0
      %3654 = vmatmul.mubr.f32.gmra.mxu0 %v3409
      %v3655 = vpop.f32.mrf.mxu0
      %v3656 = vadd.f32 0.0, %v3655
      %v3657 = vpop.f32.mrf.mxu0
      %3658 = vdwg.mxu0
      %v3659 = vadd.f32 %v3229, %v3481
      %v3660 = vadd.f32 %v3230, %v3486
      %v3661 = vadd.f32 %v3231, %v3491
      %v3662 = vadd.f32 %v3232, %v3496
      %v3663 = vadd.f32 %v3233, %v3501
      %v3664 = vadd.f32 %v3234, %v3506
      %v3665 = vadd.f32 %v3235, %v3511
      %v3666 = vadd.f32 %v3236, %v3516
      %v3667 = vadd.f32 %v3237, %v3521
      %v3668 = vadd.f32 %v3238, %v3526
      %v3669 = vadd.f32 %v3239, %v3531
      %v3670 = vadd.f32 %v3240, %v3536
      %v3671 = vadd.f32 %v3241, %v3541
      %v3672 = vadd.f32 %v3242, %v3546
      %v3673 = vadd.f32 %v3243, %v3551
      %v3674 = vadd.f32 %v3244, %v3556
      %v3675 = vadd.f32 %v3245, %v3561
      %v3676 = vadd.f32 %v3246, %v3566
      %v3677 = vadd.f32 %v3247, %v3571
      %v3678 = vadd.f32 %v3248, %v3576
      %v3679 = vadd.f32 %v3249, %v3581
      %v3680 = vadd.f32 %v3250, %v3586
      %v3681 = vadd.f32 %v3251, %v3591
      %v3682 = vadd.f32 %v3252, %v3596
      %v3683 = vadd.f32 %v3253, %v3601
      %v3684 = vadd.f32 %v3254, %v3606
      %v3685 = vadd.f32 %v3255, %v3611
      %v3686 = vadd.f32 %v3256, %v3616
      %v3687 = vadd.f32 %v3257, %v3621
      %v3688 = vadd.f32 %v3258, %v3626
      %v3689 = vadd.f32 %v3259, %v3631
      %v3690 = vadd.f32 %v3260, %v3636
      %v3691 = vadd.f32 %v3261, %v3641
      %v3692 = vadd.f32 %v3262, %v3646
      %v3693 = vadd.f32 %v3263, %v3651
      %v3694 = vadd.f32 %v3264, %v3656
      %v3695 = vld [vmem:[%s315 + $0x26] sm:$0xff]
      %v3696 = vld [vmem:[%s315 + $0x2e] sm:$0xff]
      %v3697 = vld [vmem:[%s315 + $0x36] sm:$0xff]
      %v3698 = vld [vmem:[%s315 + $0x3e] sm:$0xff]
      %v3699 = vld [vmem:[%s315 + $0x46] sm:$0xff]
      %v3700 = vld [vmem:[%s315 + $0x4e] sm:$0xff]
      %v3701 = vld [vmem:[%s315 + $0x56] sm:$0xff]
      %v3702 = vld [vmem:[%s315 + $0x5e] sm:$0xff]
      %v3703 = vld [vmem:[%s315 + $0x66] sm:$0xff]
      %v3704 = vld [vmem:[%s315 + $0x6e] sm:$0xff]
      %v3705 = vld [vmem:[%s315 + $0x76] sm:$0xff]
      %v3706 = vld [vmem:[%s315 + $0x7e] sm:$0xff]
      %v3707 = vld [vmem:[%s315 + $0x86] sm:$0xff]
      %v3708 = vld [vmem:[%s315 + $0x8e] sm:$0xff]
      %v3709 = vld [vmem:[%s315 + $0x96] sm:$0xff]
      %v3710 = vld [vmem:[%s315 + $0x9e] sm:$0xff]
      %v3711 = vld [vmem:[%s315 + $0xa6] sm:$0xff]
      %v3712 = vld [vmem:[%s315 + $0xae] sm:$0xff]
      %v3713 = vld [vmem:[%s315 + $0xb6] sm:$0xff]
      %v3714 = vld [vmem:[%s315 + $0xbe] sm:$0xff]
      %v3715 = vld [vmem:[%s315 + $0xc6] sm:$0xff]
      %v3716 = vld [vmem:[%s315 + $0xce] sm:$0xff]
      %v3717 = vld [vmem:[%s315 + $0xd6] sm:$0xff]
      %v3718 = vld [vmem:[%s315 + $0xde] sm:$0xff]
      %v3719 = vld [vmem:[%s315 + $0xe6] sm:$0xff]
      %v3720 = vld [vmem:[%s315 + $0xee] sm:$0xff]
      %v3721 = vld [vmem:[%s315 + $0xf6] sm:$0xff]
      %v3722 = vld [vmem:[%s315 + $0xfe] sm:$0xff]
      %v3723 = vld [vmem:[%s315 + $0x106] sm:$0xff]
      %v3724 = vld [vmem:[%s315 + $0x10e] sm:$0xff]
      %v3725 = vld [vmem:[%s315 + $0x116] sm:$0xff]
      %v3726 = vld [vmem:[%s315 + $0x11e] sm:$0xff]
      %v3727 = vld [vmem:[%s315 + $0x126] sm:$0xff]
      %v3728 = vld [vmem:[%s315 + $0x12e] sm:$0xff]
      %v3729 = vld [vmem:[%s315 + $0x136] sm:$0xff]
      %v3730 = vld [vmem:[%s315 + $0x13e] sm:$0xff]
      %s3731 = scalar_lea.vmem %s3, 32
      %v3732 = vld [vmem:[%s3731] sm:$0xf]
      %v3734 = vsel %vm401, %v3695, 0
      %v3737 = vsel %vm401, %v3696, 0
      %v3740 = vsel %vm401, %v3697, 0
      %v3743 = vsel %vm401, %v3698, 0
      %v3746 = vsel %vm401, %v3699, 0
      %v3749 = vsel %vm401, %v3700, 0
      %v3752 = vsel %vm401, %v3701, 0
      %v3755 = vsel %vm401, %v3702, 0
      %v3758 = vsel %vm401, %v3703, 0
      %v3761 = vsel %vm401, %v3704, 0
      %v3764 = vsel %vm401, %v3705, 0
      %v3767 = vsel %vm401, %v3706, 0
      %v3770 = vsel %vm401, %v3707, 0
      %v3773 = vsel %vm401, %v3708, 0
      %v3776 = vsel %vm401, %v3709, 0
      %v3779 = vsel %vm401, %v3710, 0
      %v3782 = vsel %vm401, %v3711, 0
      %v3785 = vsel %vm401, %v3712, 0
      %v3788 = vsel %vm401, %v3713, 0
      %v3791 = vsel %vm401, %v3714, 0
      %v3794 = vsel %vm401, %v3715, 0
      %v3797 = vsel %vm401, %v3716, 0
      %v3800 = vsel %vm401, %v3717, 0
      %v3803 = vsel %vm401, %v3718, 0
      %v3806 = vsel %vm401, %v3719, 0
      %v3809 = vsel %vm401, %v3720, 0
      %v3812 = vsel %vm401, %v3721, 0
      %v3815 = vsel %vm401, %v3722, 0
      %v3818 = vsel %vm401, %v3723, 0
      %v3821 = vsel %vm401, %v3724, 0
      %v3824 = vsel %vm401, %v3725, 0
      %v3827 = vsel %vm401, %v3726, 0
      %v3830 = vsel %vm401, %v3727, 0
      %v3833 = vsel %vm401, %v3728, 0
      %v3836 = vsel %vm401, %v3729, 0
      %v3839 = vsel %vm401, %v3730, 0
      %v3842 = vsel %vm510, %v3732, 0
      %3844 = vmatprep.subr.mxu0 0.0
      %3845 = vmatpush1.msra.mxu0 0.0
      %3846 = vmatprep.subr.mxu0 0.0
      %3847 = vmatpush1.msra.mxu0 0.0
      %3848 = vmatprep.subr.mxu0 0.0
      %3849 = vmatpush1.msra.mxu0 0.0
      %3850 = vmatprep.subr.mxu0 0.0
      %3851 = vmatpush1.msra.mxu0 0.0
      %3852 = vmatprep.subr.mxu0 0.0
      %3853 = vmatpush1.msra.mxu0 0.0
      %3854 = vmatprep.subr.mxu0 0.0
      %3855 = vmatpush1.msra.mxu0 0.0
      %3856 = vmatprep.subr.mxu0 0.0
      %3857 = vmatpush1.msra.mxu0 0.0
      %3858 = vmatprep.subr.mxu0 0.0
      %3859 = vmatpush1.msra.mxu0 0.0
      %3860 = vmatprep.subr.mxu0 0.0
      %3861 = vmatpush1.msra.mxu0 0.0
      %3862 = vmatprep.subr.mxu0 0.0
      %3863 = vmatpush1.msra.mxu0 0.0
      %3864 = vmatprep.subr.mxu0 0.0
      %3865 = vmatpush1.msra.mxu0 0.0
      %3866 = vmatprep.subr.mxu0 0.0
      %3867 = vmatpush1.msra.mxu0 0.0
      %3868 = vmatprep.subr.mxu0 0.0
      %3869 = vmatpush1.msra.mxu0 0.0
      %3870 = vmatprep.subr.mxu0 0.0
      %3871 = vmatpush1.msra.mxu0 0.0
      %3872 = vmatprep.subr.mxu0 0.0
      %3873 = vmatpush1.msra.mxu0 0.0
      %3874 = vmatprep.subr.mxu0 0.0
      %3875 = vmatpush1.msra.mxu0 %v3842
      %3876 = vmatprep.subr.mxu0 0.0
      %3877 = vmatpush2.msra.mxu0 0.0
      %3878 = vmatprep.subr.mxu0 0.0
      %3879 = vmatpush2.msra.mxu0 0.0
      %3880 = vmatprep.subr.mxu0 0.0
      %3881 = vmatpush2.msra.mxu0 0.0
      %3882 = vmatprep.subr.mxu0 0.0
      %3883 = vmatpush2.msra.mxu0 0.0
      %3884 = vmatprep.subr.mxu0 0.0
      %3885 = vmatpush2.msra.mxu0 0.0
      %3886 = vmatprep.subr.mxu0 0.0
      %3887 = vmatpush2.msra.mxu0 0.0
      %3888 = vmatprep.subr.mxu0 0.0
      %3889 = vmatpush2.msra.mxu0 0.0
      %3890 = vmatprep.subr.mxu0 0.0
      %3891 = vmatpush2.msra.mxu0 0.0
      %3892 = vmatprep.subr.mxu0 0.0
      %3893 = vmatpush2.msra.mxu0 0.0
      %3894 = vmatprep.subr.mxu0 0.0
      %3895 = vmatpush2.msra.mxu0 0.0
      %3896 = vmatprep.subr.mxu0 0.0
      %3897 = vmatpush2.msra.mxu0 0.0
      %3898 = vmatprep.subr.mxu0 0.0
      %3899 = vmatpush2.msra.mxu0 0.0
      %3900 = vmatprep.subr.mxu0 0.0
      %3901 = vmatpush2.msra.mxu0 0.0
      %3902 = vmatprep.subr.mxu0 0.0
      %3903 = vmatpush2.msra.mxu0 0.0
      %3904 = vmatprep.subr.mxu0 0.0
      %3905 = vmatpush2.msra.mxu0 0.0
      %3906 = vmatprep.subr.mxu0 0.0
      %3907 = vmatpush2.msra.mxu0 0.0
      %3908 = vmatprep.mubr.f32.mxu0 0.0
      %3909 = vmatmul.mubr.f32.gmra.mxu0 %v3734
      %v3910 = vpop.f32.mrf.mxu0
      %v3911 = vadd.f32 0.0, %v3910
      %v3912 = vpop.f32.mrf.mxu0
      %3913 = vmatprep.mubr.f32.mxu0 0.0
      %3914 = vmatmul.mubr.f32.gmra.mxu0 %v3737
      %v3915 = vpop.f32.mrf.mxu0
      %v3916 = vadd.f32 0.0, %v3915
      %v3917 = vpop.f32.mrf.mxu0
      %3918 = vmatprep.mubr.f32.mxu0 0.0
      %3919 = vmatmul.mubr.f32.gmra.mxu0 %v3740
      %v3920 = vpop.f32.mrf.mxu0
      %v3921 = vadd.f32 0.0, %v3920
      %v3922 = vpop.f32.mrf.mxu0
      %3923 = vmatprep.mubr.f32.mxu0 0.0
      %3924 = vmatmul.mubr.f32.gmra.mxu0 %v3743
      %v3925 = vpop.f32.mrf.mxu0
      %v3926 = vadd.f32 0.0, %v3925
      %v3927 = vpop.f32.mrf.mxu0
      %3928 = vmatprep.mubr.f32.mxu0 0.0
      %3929 = vmatmul.mubr.f32.gmra.mxu0 %v3746
      %v3930 = vpop.f32.mrf.mxu0
      %v3931 = vadd.f32 0.0, %v3930
      %v3932 = vpop.f32.mrf.mxu0
      %3933 = vmatprep.mubr.f32.mxu0 0.0
      %3934 = vmatmul.mubr.f32.gmra.mxu0 %v3749
      %v3935 = vpop.f32.mrf.mxu0
      %v3936 = vadd.f32 0.0, %v3935
      %v3937 = vpop.f32.mrf.mxu0
      %3938 = vmatprep.mubr.f32.mxu0 0.0
      %3939 = vmatmul.mubr.f32.gmra.mxu0 %v3752
      %v3940 = vpop.f32.mrf.mxu0
      %v3941 = vadd.f32 0.0, %v3940
      %v3942 = vpop.f32.mrf.mxu0
      %3943 = vmatprep.mubr.f32.mxu0 0.0
      %3944 = vmatmul.mubr.f32.gmra.mxu0 %v3755
      %v3945 = vpop.f32.mrf.mxu0
      %v3946 = vadd.f32 0.0, %v3945
      %v3947 = vpop.f32.mrf.mxu0
      %3948 = vmatprep.mubr.f32.mxu0 0.0
      %3949 = vmatmul.mubr.f32.gmra.mxu0 %v3758
      %v3950 = vpop.f32.mrf.mxu0
      %v3951 = vadd.f32 0.0, %v3950
      %v3952 = vpop.f32.mrf.mxu0
      %3953 = vmatprep.mubr.f32.mxu0 0.0
      %3954 = vmatmul.mubr.f32.gmra.mxu0 %v3761
      %v3955 = vpop.f32.mrf.mxu0
      %v3956 = vadd.f32 0.0, %v3955
      %v3957 = vpop.f32.mrf.mxu0
      %3958 = vmatprep.mubr.f32.mxu0 0.0
      %3959 = vmatmul.mubr.f32.gmra.mxu0 %v3764
      %v3960 = vpop.f32.mrf.mxu0
      %v3961 = vadd.f32 0.0, %v3960
      %v3962 = vpop.f32.mrf.mxu0
      %3963 = vmatprep.mubr.f32.mxu0 0.0
      %3964 = vmatmul.mubr.f32.gmra.mxu0 %v3767
      %v3965 = vpop.f32.mrf.mxu0
      %v3966 = vadd.f32 0.0, %v3965
      %v3967 = vpop.f32.mrf.mxu0
      %3968 = vmatprep.mubr.f32.mxu0 0.0
      %3969 = vmatmul.mubr.f32.gmra.mxu0 %v3770
      %v3970 = vpop.f32.mrf.mxu0
      %v3971 = vadd.f32 0.0, %v3970
      %v3972 = vpop.f32.mrf.mxu0
      %3973 = vmatprep.mubr.f32.mxu0 0.0
      %3974 = vmatmul.mubr.f32.gmra.mxu0 %v3773
      %v3975 = vpop.f32.mrf.mxu0
      %v3976 = vadd.f32 0.0, %v3975
      %v3977 = vpop.f32.mrf.mxu0
      %3978 = vmatprep.mubr.f32.mxu0 0.0
      %3979 = vmatmul.mubr.f32.gmra.mxu0 %v3776
      %v3980 = vpop.f32.mrf.mxu0
      %v3981 = vadd.f32 0.0, %v3980
      %v3982 = vpop.f32.mrf.mxu0
      %3983 = vmatprep.mubr.f32.mxu0 0.0
      %3984 = vmatmul.mubr.f32.gmra.mxu0 %v3779
      %v3985 = vpop.f32.mrf.mxu0
      %v3986 = vadd.f32 0.0, %v3985
      %v3987 = vpop.f32.mrf.mxu0
      %3988 = vmatprep.mubr.f32.mxu0 0.0
      %3989 = vmatmul.mubr.f32.gmra.mxu0 %v3782
      %v3990 = vpop.f32.mrf.mxu0
      %v3991 = vadd.f32 0.0, %v3990
      %v3992 = vpop.f32.mrf.mxu0
      %3993 = vmatprep.mubr.f32.mxu0 0.0
      %3994 = vmatmul.mubr.f32.gmra.mxu0 %v3785
      %v3995 = vpop.f32.mrf.mxu0
      %v3996 = vadd.f32 0.0, %v3995
      %v3997 = vpop.f32.mrf.mxu0
      %3998 = vmatprep.mubr.f32.mxu0 0.0
      %3999 = vmatmul.mubr.f32.gmra.mxu0 %v3788
      %v4000 = vpop.f32.mrf.mxu0
      %v4001 = vadd.f32 0.0, %v4000
      %v4002 = vpop.f32.mrf.mxu0
      %4003 = vmatprep.mubr.f32.mxu0 0.0
      %4004 = vmatmul.mubr.f32.gmra.mxu0 %v3791
      %v4005 = vpop.f32.mrf.mxu0
      %v4006 = vadd.f32 0.0, %v4005
      %v4007 = vpop.f32.mrf.mxu0
      %4008 = vmatprep.mubr.f32.mxu0 0.0
      %4009 = vmatmul.mubr.f32.gmra.mxu0 %v3794
      %v4010 = vpop.f32.mrf.mxu0
      %v4011 = vadd.f32 0.0, %v4010
      %v4012 = vpop.f32.mrf.mxu0
      %4013 = vmatprep.mubr.f32.mxu0 0.0
      %4014 = vmatmul.mubr.f32.gmra.mxu0 %v3797
      %v4015 = vpop.f32.mrf.mxu0
      %v4016 = vadd.f32 0.0, %v4015
      %v4017 = vpop.f32.mrf.mxu0
      %4018 = vmatprep.mubr.f32.mxu0 0.0
      %4019 = vmatmul.mubr.f32.gmra.mxu0 %v3800
      %v4020 = vpop.f32.mrf.mxu0
      %v4021 = vadd.f32 0.0, %v4020
      %v4022 = vpop.f32.mrf.mxu0
      %4023 = vmatprep.mubr.f32.mxu0 0.0
      %4024 = vmatmul.mubr.f32.gmra.mxu0 %v3803
      %v4025 = vpop.f32.mrf.mxu0
      %v4026 = vadd.f32 0.0, %v4025
      %v4027 = vpop.f32.mrf.mxu0
      %4028 = vmatprep.mubr.f32.mxu0 0.0
      %4029 = vmatmul.mubr.f32.gmra.mxu0 %v3806
      %v4030 = vpop.f32.mrf.mxu0
      %v4031 = vadd.f32 0.0, %v4030
      %v4032 = vpop.f32.mrf.mxu0
      %4033 = vmatprep.mubr.f32.mxu0 0.0
      %4034 = vmatmul.mubr.f32.gmra.mxu0 %v3809
      %v4035 = vpop.f32.mrf.mxu0
      %v4036 = vadd.f32 0.0, %v4035
      %v4037 = vpop.f32.mrf.mxu0
      %4038 = vmatprep.mubr.f32.mxu0 0.0
      %4039 = vmatmul.mubr.f32.gmra.mxu0 %v3812
      %v4040 = vpop.f32.mrf.mxu0
      %v4041 = vadd.f32 0.0, %v4040
      %v4042 = vpop.f32.mrf.mxu0
      %4043 = vmatprep.mubr.f32.mxu0 0.0
      %4044 = vmatmul.mubr.f32.gmra.mxu0 %v3815
      %v4045 = vpop.f32.mrf.mxu0
      %v4046 = vadd.f32 0.0, %v4045
      %v4047 = vpop.f32.mrf.mxu0
      %4048 = vmatprep.mubr.f32.mxu0 0.0
      %4049 = vmatmul.mubr.f32.gmra.mxu0 %v3818
      %v4050 = vpop.f32.mrf.mxu0
      %v4051 = vadd.f32 0.0, %v4050
      %v4052 = vpop.f32.mrf.mxu0
      %4053 = vmatprep.mubr.f32.mxu0 0.0
      %4054 = vmatmul.mubr.f32.gmra.mxu0 %v3821
      %v4055 = vpop.f32.mrf.mxu0
      %v4056 = vadd.f32 0.0, %v4055
      %v4057 = vpop.f32.mrf.mxu0
      %4058 = vmatprep.mubr.f32.mxu0 0.0
      %4059 = vmatmul.mubr.f32.gmra.mxu0 %v3824
      %v4060 = vpop.f32.mrf.mxu0
      %v4061 = vadd.f32 0.0, %v4060
      %v4062 = vpop.f32.mrf.mxu0
      %4063 = vmatprep.mubr.f32.mxu0 0.0
      %4064 = vmatmul.mubr.f32.gmra.mxu0 %v3827
      %v4065 = vpop.f32.mrf.mxu0
      %v4066 = vadd.f32 0.0, %v4065
      %v4067 = vpop.f32.mrf.mxu0
      %4068 = vmatprep.mubr.f32.mxu0 0.0
      %4069 = vmatmul.mubr.f32.gmra.mxu0 %v3830
      %v4070 = vpop.f32.mrf.mxu0
      %v4071 = vadd.f32 0.0, %v4070
      %v4072 = vpop.f32.mrf.mxu0
      %4073 = vmatprep.mubr.f32.mxu0 0.0
      %4074 = vmatmul.mubr.f32.gmra.mxu0 %v3833
      %v4075 = vpop.f32.mrf.mxu0
      %v4076 = vadd.f32 0.0, %v4075
      %v4077 = vpop.f32.mrf.mxu0
      %4078 = vmatprep.mubr.f32.mxu0 0.0
      %4079 = vmatmul.mubr.f32.gmra.mxu0 %v3836
      %v4080 = vpop.f32.mrf.mxu0
      %v4081 = vadd.f32 0.0, %v4080
      %v4082 = vpop.f32.mrf.mxu0
      %4083 = vmatprep.mubr.f32.mxu0 0.0
      %4084 = vmatmul.mubr.f32.gmra.mxu0 %v3839
      %v4085 = vpop.f32.mrf.mxu0
      %v4086 = vadd.f32 0.0, %v4085
      %v4087 = vpop.f32.mrf.mxu0
      %4088 = vdwg.mxu0
      %v4089 = vadd.f32 %v3659, %v3911
      %v4090 = vadd.f32 %v3660, %v3916
      %v4091 = vadd.f32 %v3661, %v3921
      %v4092 = vadd.f32 %v3662, %v3926
      %v4093 = vadd.f32 %v3663, %v3931
      %v4094 = vadd.f32 %v3664, %v3936
      %v4095 = vadd.f32 %v3665, %v3941
      %v4096 = vadd.f32 %v3666, %v3946
      %v4097 = vadd.f32 %v3667, %v3951
      %v4098 = vadd.f32 %v3668, %v3956
      %v4099 = vadd.f32 %v3669, %v3961
      %v4100 = vadd.f32 %v3670, %v3966
      %v4101 = vadd.f32 %v3671, %v3971
      %v4102 = vadd.f32 %v3672, %v3976
      %v4103 = vadd.f32 %v3673, %v3981
      %v4104 = vadd.f32 %v3674, %v3986
      %v4105 = vadd.f32 %v3675, %v3991
      %v4106 = vadd.f32 %v3676, %v3996
      %v4107 = vadd.f32 %v3677, %v4001
      %v4108 = vadd.f32 %v3678, %v4006
      %v4109 = vadd.f32 %v3679, %v4011
      %v4110 = vadd.f32 %v3680, %v4016
      %v4111 = vadd.f32 %v3681, %v4021
      %v4112 = vadd.f32 %v3682, %v4026
      %v4113 = vadd.f32 %v3683, %v4031
      %v4114 = vadd.f32 %v3684, %v4036
      %v4115 = vadd.f32 %v3685, %v4041
      %v4116 = vadd.f32 %v3686, %v4046
      %v4117 = vadd.f32 %v3687, %v4051
      %v4118 = vadd.f32 %v3688, %v4056
      %v4119 = vadd.f32 %v3689, %v4061
      %v4120 = vadd.f32 %v3690, %v4066
      %v4121 = vadd.f32 %v3691, %v4071
      %v4122 = vadd.f32 %v3692, %v4076
      %v4123 = vadd.f32 %v3693, %v4081
      %v4124 = vadd.f32 %v3694, %v4086
      %v4125 = vld [vmem:[%s320] sm:$0xff]
      %v4126 = vld [vmem:[%s320 + $0x8] sm:$0xff]
      %v4127 = vld [vmem:[%s320 + $0x10] sm:$0xff]
      %v4128 = vld [vmem:[%s320 + $0x18] sm:$0xff]
      %v4129 = vld [vmem:[%s320 + $0x20] sm:$0xff]
      %v4130 = vld [vmem:[%s320 + $0x28] sm:$0xff]
      %v4131 = vld [vmem:[%s320 + $0x30] sm:$0xff]
      %v4132 = vld [vmem:[%s320 + $0x38] sm:$0xff]
      %v4133 = vld [vmem:[%s320 + $0x40] sm:$0xff]
      %v4134 = vld [vmem:[%s320 + $0x48] sm:$0xff]
      %v4135 = vld [vmem:[%s320 + $0x50] sm:$0xff]
      %v4136 = vld [vmem:[%s320 + $0x58] sm:$0xff]
      %v4137 = vld [vmem:[%s320 + $0x60] sm:$0xff]
      %v4138 = vld [vmem:[%s320 + $0x68] sm:$0xff]
      %v4139 = vld [vmem:[%s320 + $0x70] sm:$0xff]
      %v4140 = vld [vmem:[%s320 + $0x78] sm:$0xff]
      %v4141 = vld [vmem:[%s320 + $0x80] sm:$0xff]
      %v4142 = vld [vmem:[%s320 + $0x88] sm:$0xff]
      %v4143 = vld [vmem:[%s320 + $0x90] sm:$0xff]
      %v4144 = vld [vmem:[%s320 + $0x98] sm:$0xff]
      %v4145 = vld [vmem:[%s320 + $0xa0] sm:$0xff]
      %v4146 = vld [vmem:[%s320 + $0xa8] sm:$0xff]
      %v4147 = vld [vmem:[%s320 + $0xb0] sm:$0xff]
      %v4148 = vld [vmem:[%s320 + $0xb8] sm:$0xff]
      %v4149 = vld [vmem:[%s320 + $0xc0] sm:$0xff]
      %v4150 = vld [vmem:[%s320 + $0xc8] sm:$0xff]
      %v4151 = vld [vmem:[%s320 + $0xd0] sm:$0xff]
      %v4152 = vld [vmem:[%s320 + $0xd8] sm:$0xff]
      %v4153 = vld [vmem:[%s320 + $0xe0] sm:$0xff]
      %v4154 = vld [vmem:[%s320 + $0xe8] sm:$0xff]
      %v4155 = vld [vmem:[%s320 + $0xf0] sm:$0xff]
      %v4156 = vld [vmem:[%s320 + $0xf8] sm:$0xff]
      %v4157 = vld [vmem:[%s320 + $0x100] sm:$0xff]
      %v4158 = vld [vmem:[%s320 + $0x108] sm:$0xff]
      %v4159 = vld [vmem:[%s320 + $0x110] sm:$0xff]
      %v4160 = vld [vmem:[%s320 + $0x118] sm:$0xff]
      %v4161 = vld [vmem:[%s4] sm:$0xf]
      %v4163 = vsel %vm401, %v4125, 0
      %v4166 = vsel %vm401, %v4126, 0
      %v4169 = vsel %vm401, %v4127, 0
      %v4172 = vsel %vm401, %v4128, 0
      %v4175 = vsel %vm401, %v4129, 0
      %v4178 = vsel %vm401, %v4130, 0
      %v4181 = vsel %vm401, %v4131, 0
      %v4184 = vsel %vm401, %v4132, 0
      %v4187 = vsel %vm401, %v4133, 0
      %v4190 = vsel %vm401, %v4134, 0
      %v4193 = vsel %vm401, %v4135, 0
      %v4196 = vsel %vm401, %v4136, 0
      %v4199 = vsel %vm401, %v4137, 0
      %v4202 = vsel %vm401, %v4138, 0
      %v4205 = vsel %vm401, %v4139, 0
      %v4208 = vsel %vm401, %v4140, 0
      %v4211 = vsel %vm401, %v4141, 0
      %v4214 = vsel %vm401, %v4142, 0
      %v4217 = vsel %vm401, %v4143, 0
      %v4220 = vsel %vm401, %v4144, 0
      %v4223 = vsel %vm401, %v4145, 0
      %v4226 = vsel %vm401, %v4146, 0
      %v4229 = vsel %vm401, %v4147, 0
      %v4232 = vsel %vm401, %v4148, 0
      %v4235 = vsel %vm401, %v4149, 0
      %v4238 = vsel %vm401, %v4150, 0
      %v4241 = vsel %vm401, %v4151, 0
      %v4244 = vsel %vm401, %v4152, 0
      %v4247 = vsel %vm401, %v4153, 0
      %v4250 = vsel %vm401, %v4154, 0
      %v4253 = vsel %vm401, %v4155, 0
      %v4256 = vsel %vm401, %v4156, 0
      %v4259 = vsel %vm401, %v4157, 0
      %v4262 = vsel %vm401, %v4158, 0
      %v4265 = vsel %vm401, %v4159, 0
      %v4268 = vsel %vm401, %v4160, 0
      %v4271 = vsel %vm510, %v4161, 0
      %4273 = vmatprep.subr.mxu0 0.0
      %4274 = vmatpush1.msra.mxu0 0.0
      %4275 = vmatprep.subr.mxu0 0.0
      %4276 = vmatpush1.msra.mxu0 0.0
      %4277 = vmatprep.subr.mxu0 0.0
      %4278 = vmatpush1.msra.mxu0 0.0
      %4279 = vmatprep.subr.mxu0 0.0
      %4280 = vmatpush1.msra.mxu0 0.0
      %4281 = vmatprep.subr.mxu0 0.0
      %4282 = vmatpush1.msra.mxu0 0.0
      %4283 = vmatprep.subr.mxu0 0.0
      %4284 = vmatpush1.msra.mxu0 0.0
      %4285 = vmatprep.subr.mxu0 0.0
      %4286 = vmatpush1.msra.mxu0 0.0
      %4287 = vmatprep.subr.mxu0 0.0
      %4288 = vmatpush1.msra.mxu0 0.0
      %4289 = vmatprep.subr.mxu0 0.0
      %4290 = vmatpush1.msra.mxu0 0.0
      %4291 = vmatprep.subr.mxu0 0.0
      %4292 = vmatpush1.msra.mxu0 0.0
      %4293 = vmatprep.subr.mxu0 0.0
      %4294 = vmatpush1.msra.mxu0 0.0
      %4295 = vmatprep.subr.mxu0 0.0
      %4296 = vmatpush1.msra.mxu0 0.0
      %4297 = vmatprep.subr.mxu0 0.0
      %4298 = vmatpush1.msra.mxu0 0.0
      %4299 = vmatprep.subr.mxu0 0.0
      %4300 = vmatpush1.msra.mxu0 0.0
      %4301 = vmatprep.subr.mxu0 0.0
      %4302 = vmatpush1.msra.mxu0 0.0
      %4303 = vmatprep.subr.mxu0 0.0
      %4304 = vmatpush1.msra.mxu0 %v4271
      %4305 = vmatprep.subr.mxu0 0.0
      %4306 = vmatpush2.msra.mxu0 0.0
      %4307 = vmatprep.subr.mxu0 0.0
      %4308 = vmatpush2.msra.mxu0 0.0
      %4309 = vmatprep.subr.mxu0 0.0
      %4310 = vmatpush2.msra.mxu0 0.0
      %4311 = vmatprep.subr.mxu0 0.0
      %4312 = vmatpush2.msra.mxu0 0.0
      %4313 = vmatprep.subr.mxu0 0.0
      %4314 = vmatpush2.msra.mxu0 0.0
      %4315 = vmatprep.subr.mxu0 0.0
      %4316 = vmatpush2.msra.mxu0 0.0
      %4317 = vmatprep.subr.mxu0 0.0
      %4318 = vmatpush2.msra.mxu0 0.0
      %4319 = vmatprep.subr.mxu0 0.0
      %4320 = vmatpush2.msra.mxu0 0.0
      %4321 = vmatprep.subr.mxu0 0.0
      %4322 = vmatpush2.msra.mxu0 0.0
      %4323 = vmatprep.subr.mxu0 0.0
      %4324 = vmatpush2.msra.mxu0 0.0
      %4325 = vmatprep.subr.mxu0 0.0
      %4326 = vmatpush2.msra.mxu0 0.0
      %4327 = vmatprep.subr.mxu0 0.0
      %4328 = vmatpush2.msra.mxu0 0.0
      %4329 = vmatprep.subr.mxu0 0.0
      %4330 = vmatpush2.msra.mxu0 0.0
      %4331 = vmatprep.subr.mxu0 0.0
      %4332 = vmatpush2.msra.mxu0 0.0
      %4333 = vmatprep.subr.mxu0 0.0
      %4334 = vmatpush2.msra.mxu0 0.0
      %4335 = vmatprep.subr.mxu0 0.0
      %4336 = vmatpush2.msra.mxu0 0.0
      %4337 = vmatprep.mubr.f32.mxu0 0.0
      %4338 = vmatmul.mubr.f32.gmra.mxu0 %v4163
      %v4339 = vpop.f32.mrf.mxu0
      %v4340 = vadd.f32 0.0, %v4339
      %v4341 = vpop.f32.mrf.mxu0
      %4342 = vmatprep.mubr.f32.mxu0 0.0
      %4343 = vmatmul.mubr.f32.gmra.mxu0 %v4166
      %v4344 = vpop.f32.mrf.mxu0
      %v4345 = vadd.f32 0.0, %v4344
      %v4346 = vpop.f32.mrf.mxu0
      %4347 = vmatprep.mubr.f32.mxu0 0.0
      %4348 = vmatmul.mubr.f32.gmra.mxu0 %v4169
      %v4349 = vpop.f32.mrf.mxu0
      %v4350 = vadd.f32 0.0, %v4349
      %v4351 = vpop.f32.mrf.mxu0
      %4352 = vmatprep.mubr.f32.mxu0 0.0
      %4353 = vmatmul.mubr.f32.gmra.mxu0 %v4172
      %v4354 = vpop.f32.mrf.mxu0
      %v4355 = vadd.f32 0.0, %v4354
      %v4356 = vpop.f32.mrf.mxu0
      %4357 = vmatprep.mubr.f32.mxu0 0.0
      %4358 = vmatmul.mubr.f32.gmra.mxu0 %v4175
      %v4359 = vpop.f32.mrf.mxu0
      %v4360 = vadd.f32 0.0, %v4359
      %v4361 = vpop.f32.mrf.mxu0
      %4362 = vmatprep.mubr.f32.mxu0 0.0
      %4363 = vmatmul.mubr.f32.gmra.mxu0 %v4178
      %v4364 = vpop.f32.mrf.mxu0
      %v4365 = vadd.f32 0.0, %v4364
      %v4366 = vpop.f32.mrf.mxu0
      %4367 = vmatprep.mubr.f32.mxu0 0.0
      %4368 = vmatmul.mubr.f32.gmra.mxu0 %v4181
      %v4369 = vpop.f32.mrf.mxu0
      %v4370 = vadd.f32 0.0, %v4369
      %v4371 = vpop.f32.mrf.mxu0
      %4372 = vmatprep.mubr.f32.mxu0 0.0
      %4373 = vmatmul.mubr.f32.gmra.mxu0 %v4184
      %v4374 = vpop.f32.mrf.mxu0
      %v4375 = vadd.f32 0.0, %v4374
      %v4376 = vpop.f32.mrf.mxu0
      %4377 = vmatprep.mubr.f32.mxu0 0.0
      %4378 = vmatmul.mubr.f32.gmra.mxu0 %v4187
      %v4379 = vpop.f32.mrf.mxu0
      %v4380 = vadd.f32 0.0, %v4379
      %v4381 = vpop.f32.mrf.mxu0
      %4382 = vmatprep.mubr.f32.mxu0 0.0
      %4383 = vmatmul.mubr.f32.gmra.mxu0 %v4190
      %v4384 = vpop.f32.mrf.mxu0
      %v4385 = vadd.f32 0.0, %v4384
      %v4386 = vpop.f32.mrf.mxu0
      %4387 = vmatprep.mubr.f32.mxu0 0.0
      %4388 = vmatmul.mubr.f32.gmra.mxu0 %v4193
      %v4389 = vpop.f32.mrf.mxu0
      %v4390 = vadd.f32 0.0, %v4389
      %v4391 = vpop.f32.mrf.mxu0
      %4392 = vmatprep.mubr.f32.mxu0 0.0
      %4393 = vmatmul.mubr.f32.gmra.mxu0 %v4196
      %v4394 = vpop.f32.mrf.mxu0
      %v4395 = vadd.f32 0.0, %v4394
      %v4396 = vpop.f32.mrf.mxu0
      %4397 = vmatprep.mubr.f32.mxu0 0.0
      %4398 = vmatmul.mubr.f32.gmra.mxu0 %v4199
      %v4399 = vpop.f32.mrf.mxu0
      %v4400 = vadd.f32 0.0, %v4399
      %v4401 = vpop.f32.mrf.mxu0
      %4402 = vmatprep.mubr.f32.mxu0 0.0
      %4403 = vmatmul.mubr.f32.gmra.mxu0 %v4202
      %v4404 = vpop.f32.mrf.mxu0
      %v4405 = vadd.f32 0.0, %v4404
      %v4406 = vpop.f32.mrf.mxu0
      %4407 = vmatprep.mubr.f32.mxu0 0.0
      %4408 = vmatmul.mubr.f32.gmra.mxu0 %v4205
      %v4409 = vpop.f32.mrf.mxu0
      %v4410 = vadd.f32 0.0, %v4409
      %v4411 = vpop.f32.mrf.mxu0
      %4412 = vmatprep.mubr.f32.mxu0 0.0
      %4413 = vmatmul.mubr.f32.gmra.mxu0 %v4208
      %v4414 = vpop.f32.mrf.mxu0
      %v4415 = vadd.f32 0.0, %v4414
      %v4416 = vpop.f32.mrf.mxu0
      %4417 = vmatprep.mubr.f32.mxu0 0.0
      %4418 = vmatmul.mubr.f32.gmra.mxu0 %v4211
      %v4419 = vpop.f32.mrf.mxu0
      %v4420 = vadd.f32 0.0, %v4419
      %v4421 = vpop.f32.mrf.mxu0
      %4422 = vmatprep.mubr.f32.mxu0 0.0
      %4423 = vmatmul.mubr.f32.gmra.mxu0 %v4214
      %v4424 = vpop.f32.mrf.mxu0
      %v4425 = vadd.f32 0.0, %v4424
      %v4426 = vpop.f32.mrf.mxu0
      %4427 = vmatprep.mubr.f32.mxu0 0.0
      %4428 = vmatmul.mubr.f32.gmra.mxu0 %v4217
      %v4429 = vpop.f32.mrf.mxu0
      %v4430 = vadd.f32 0.0, %v4429
      %v4431 = vpop.f32.mrf.mxu0
      %4432 = vmatprep.mubr.f32.mxu0 0.0
      %4433 = vmatmul.mubr.f32.gmra.mxu0 %v4220
      %v4434 = vpop.f32.mrf.mxu0
      %v4435 = vadd.f32 0.0, %v4434
      %v4436 = vpop.f32.mrf.mxu0
      %4437 = vmatprep.mubr.f32.mxu0 0.0
      %4438 = vmatmul.mubr.f32.gmra.mxu0 %v4223
      %v4439 = vpop.f32.mrf.mxu0
      %v4440 = vadd.f32 0.0, %v4439
      %v4441 = vpop.f32.mrf.mxu0
      %4442 = vmatprep.mubr.f32.mxu0 0.0
      %4443 = vmatmul.mubr.f32.gmra.mxu0 %v4226
      %v4444 = vpop.f32.mrf.mxu0
      %v4445 = vadd.f32 0.0, %v4444
      %v4446 = vpop.f32.mrf.mxu0
      %4447 = vmatprep.mubr.f32.mxu0 0.0
      %4448 = vmatmul.mubr.f32.gmra.mxu0 %v4229
      %v4449 = vpop.f32.mrf.mxu0
      %v4450 = vadd.f32 0.0, %v4449
      %v4451 = vpop.f32.mrf.mxu0
      %4452 = vmatprep.mubr.f32.mxu0 0.0
      %4453 = vmatmul.mubr.f32.gmra.mxu0 %v4232
      %v4454 = vpop.f32.mrf.mxu0
      %v4455 = vadd.f32 0.0, %v4454
      %v4456 = vpop.f32.mrf.mxu0
      %4457 = vmatprep.mubr.f32.mxu0 0.0
      %4458 = vmatmul.mubr.f32.gmra.mxu0 %v4235
      %v4459 = vpop.f32.mrf.mxu0
      %v4460 = vadd.f32 0.0, %v4459
      %v4461 = vpop.f32.mrf.mxu0
      %4462 = vmatprep.mubr.f32.mxu0 0.0
      %4463 = vmatmul.mubr.f32.gmra.mxu0 %v4238
      %v4464 = vpop.f32.mrf.mxu0
      %v4465 = vadd.f32 0.0, %v4464
      %v4466 = vpop.f32.mrf.mxu0
      %4467 = vmatprep.mubr.f32.mxu0 0.0
      %4468 = vmatmul.mubr.f32.gmra.mxu0 %v4241
      %v4469 = vpop.f32.mrf.mxu0
      %v4470 = vadd.f32 0.0, %v4469
      %v4471 = vpop.f32.mrf.mxu0
      %4472 = vmatprep.mubr.f32.mxu0 0.0
      %4473 = vmatmul.mubr.f32.gmra.mxu0 %v4244
      %v4474 = vpop.f32.mrf.mxu0
      %v4475 = vadd.f32 0.0, %v4474
      %v4476 = vpop.f32.mrf.mxu0
      %4477 = vmatprep.mubr.f32.mxu0 0.0
      %4478 = vmatmul.mubr.f32.gmra.mxu0 %v4247
      %v4479 = vpop.f32.mrf.mxu0
      %v4480 = vadd.f32 0.0, %v4479
      %v4481 = vpop.f32.mrf.mxu0
      %4482 = vmatprep.mubr.f32.mxu0 0.0
      %4483 = vmatmul.mubr.f32.gmra.mxu0 %v4250
      %v4484 = vpop.f32.mrf.mxu0
      %v4485 = vadd.f32 0.0, %v4484
      %v4486 = vpop.f32.mrf.mxu0
      %4487 = vmatprep.mubr.f32.mxu0 0.0
      %4488 = vmatmul.mubr.f32.gmra.mxu0 %v4253
      %v4489 = vpop.f32.mrf.mxu0
      %v4490 = vadd.f32 0.0, %v4489
      %v4491 = vpop.f32.mrf.mxu0
      %4492 = vmatprep.mubr.f32.mxu0 0.0
      %4493 = vmatmul.mubr.f32.gmra.mxu0 %v4256
      %v4494 = vpop.f32.mrf.mxu0
      %v4495 = vadd.f32 0.0, %v4494
      %v4496 = vpop.f32.mrf.mxu0
      %4497 = vmatprep.mubr.f32.mxu0 0.0
      %4498 = vmatmul.mubr.f32.gmra.mxu0 %v4259
      %v4499 = vpop.f32.mrf.mxu0
      %v4500 = vadd.f32 0.0, %v4499
      %v4501 = vpop.f32.mrf.mxu0
      %4502 = vmatprep.mubr.f32.mxu0 0.0
      %4503 = vmatmul.mubr.f32.gmra.mxu0 %v4262
      %v4504 = vpop.f32.mrf.mxu0
      %v4505 = vadd.f32 0.0, %v4504
      %v4506 = vpop.f32.mrf.mxu0
      %4507 = vmatprep.mubr.f32.mxu0 0.0
      %4508 = vmatmul.mubr.f32.gmra.mxu0 %v4265
      %v4509 = vpop.f32.mrf.mxu0
      %v4510 = vadd.f32 0.0, %v4509
      %v4511 = vpop.f32.mrf.mxu0
      %4512 = vmatprep.mubr.f32.mxu0 0.0
      %4513 = vmatmul.mubr.f32.gmra.mxu0 %v4268
      %v4514 = vpop.f32.mrf.mxu0
      %v4515 = vadd.f32 0.0, %v4514
      %v4516 = vpop.f32.mrf.mxu0
      %4517 = vdwg.mxu0
      %v4518 = vadd.f32 %v4089, %v4340
      %v4519 = vadd.f32 %v4090, %v4345
      %v4520 = vadd.f32 %v4091, %v4350
      %v4521 = vadd.f32 %v4092, %v4355
      %v4522 = vadd.f32 %v4093, %v4360
      %v4523 = vadd.f32 %v4094, %v4365
      %v4524 = vadd.f32 %v4095, %v4370
      %v4525 = vadd.f32 %v4096, %v4375
      %v4526 = vadd.f32 %v4097, %v4380
      %v4527 = vadd.f32 %v4098, %v4385
      %v4528 = vadd.f32 %v4099, %v4390
      %v4529 = vadd.f32 %v4100, %v4395
      %v4530 = vadd.f32 %v4101, %v4400
      %v4531 = vadd.f32 %v4102, %v4405
      %v4532 = vadd.f32 %v4103, %v4410
      %v4533 = vadd.f32 %v4104, %v4415
      %v4534 = vadd.f32 %v4105, %v4420
      %v4535 = vadd.f32 %v4106, %v4425
      %v4536 = vadd.f32 %v4107, %v4430
      %v4537 = vadd.f32 %v4108, %v4435
      %v4538 = vadd.f32 %v4109, %v4440
      %v4539 = vadd.f32 %v4110, %v4445
      %v4540 = vadd.f32 %v4111, %v4450
      %v4541 = vadd.f32 %v4112, %v4455
      %v4542 = vadd.f32 %v4113, %v4460
      %v4543 = vadd.f32 %v4114, %v4465
      %v4544 = vadd.f32 %v4115, %v4470
      %v4545 = vadd.f32 %v4116, %v4475
      %v4546 = vadd.f32 %v4117, %v4480
      %v4547 = vadd.f32 %v4118, %v4485
      %v4548 = vadd.f32 %v4119, %v4490
      %v4549 = vadd.f32 %v4120, %v4495
      %v4550 = vadd.f32 %v4121, %v4500
      %v4551 = vadd.f32 %v4122, %v4505
      %v4552 = vadd.f32 %v4123, %v4510
      %v4553 = vadd.f32 %v4124, %v4515
      %v4554 = vld [vmem:[%s320 + $0x1] sm:$0xff]
      %v4555 = vld [vmem:[%s320 + $0x9] sm:$0xff]
      %v4556 = vld [vmem:[%s320 + $0x11] sm:$0xff]
      %v4557 = vld [vmem:[%s320 + $0x19] sm:$0xff]
      %v4558 = vld [vmem:[%s320 + $0x21] sm:$0xff]
      %v4559 = vld [vmem:[%s320 + $0x29] sm:$0xff]
      %v4560 = vld [vmem:[%s320 + $0x31] sm:$0xff]
      %v4561 = vld [vmem:[%s320 + $0x39] sm:$0xff]
      %v4562 = vld [vmem:[%s320 + $0x41] sm:$0xff]
      %v4563 = vld [vmem:[%s320 + $0x49] sm:$0xff]
      %v4564 = vld [vmem:[%s320 + $0x51] sm:$0xff]
      %v4565 = vld [vmem:[%s320 + $0x59] sm:$0xff]
      %v4566 = vld [vmem:[%s320 + $0x61] sm:$0xff]
      %v4567 = vld [vmem:[%s320 + $0x69] sm:$0xff]
      %v4568 = vld [vmem:[%s320 + $0x71] sm:$0xff]
      %v4569 = vld [vmem:[%s320 + $0x79] sm:$0xff]
      %v4570 = vld [vmem:[%s320 + $0x81] sm:$0xff]
      %v4571 = vld [vmem:[%s320 + $0x89] sm:$0xff]
      %v4572 = vld [vmem:[%s320 + $0x91] sm:$0xff]
      %v4573 = vld [vmem:[%s320 + $0x99] sm:$0xff]
      %v4574 = vld [vmem:[%s320 + $0xa1] sm:$0xff]
      %v4575 = vld [vmem:[%s320 + $0xa9] sm:$0xff]
      %v4576 = vld [vmem:[%s320 + $0xb1] sm:$0xff]
      %v4577 = vld [vmem:[%s320 + $0xb9] sm:$0xff]
      %v4578 = vld [vmem:[%s320 + $0xc1] sm:$0xff]
      %v4579 = vld [vmem:[%s320 + $0xc9] sm:$0xff]
      %v4580 = vld [vmem:[%s320 + $0xd1] sm:$0xff]
      %v4581 = vld [vmem:[%s320 + $0xd9] sm:$0xff]
      %v4582 = vld [vmem:[%s320 + $0xe1] sm:$0xff]
      %v4583 = vld [vmem:[%s320 + $0xe9] sm:$0xff]
      %v4584 = vld [vmem:[%s320 + $0xf1] sm:$0xff]
      %v4585 = vld [vmem:[%s320 + $0xf9] sm:$0xff]
      %v4586 = vld [vmem:[%s320 + $0x101] sm:$0xff]
      %v4587 = vld [vmem:[%s320 + $0x109] sm:$0xff]
      %v4588 = vld [vmem:[%s320 + $0x111] sm:$0xff]
      %v4589 = vld [vmem:[%s320 + $0x119] sm:$0xff]
      %s4590 = scalar_lea.vmem %s4, 4
      %v4591 = vld [vmem:[%s4590] sm:$0xf]
      %v4593 = vsel %vm401, %v4554, 0
      %v4596 = vsel %vm401, %v4555, 0
      %v4599 = vsel %vm401, %v4556, 0
      %v4602 = vsel %vm401, %v4557, 0
      %v4605 = vsel %vm401, %v4558, 0
      %v4608 = vsel %vm401, %v4559, 0
      %v4611 = vsel %vm401, %v4560, 0
      %v4614 = vsel %vm401, %v4561, 0
      %v4617 = vsel %vm401, %v4562, 0
      %v4620 = vsel %vm401, %v4563, 0
      %v4623 = vsel %vm401, %v4564, 0
      %v4626 = vsel %vm401, %v4565, 0
      %v4629 = vsel %vm401, %v4566, 0
      %v4632 = vsel %vm401, %v4567, 0
      %v4635 = vsel %vm401, %v4568, 0
      %v4638 = vsel %vm401, %v4569, 0
      %v4641 = vsel %vm401, %v4570, 0
      %v4644 = vsel %vm401, %v4571, 0
      %v4647 = vsel %vm401, %v4572, 0
      %v4650 = vsel %vm401, %v4573, 0
      %v4653 = vsel %vm401, %v4574, 0
      %v4656 = vsel %vm401, %v4575, 0
      %v4659 = vsel %vm401, %v4576, 0
      %v4662 = vsel %vm401, %v4577, 0
      %v4665 = vsel %vm401, %v4578, 0
      %v4668 = vsel %vm401, %v4579, 0
      %v4671 = vsel %vm401, %v4580, 0
      %v4674 = vsel %vm401, %v4581, 0
      %v4677 = vsel %vm401, %v4582, 0
      %v4680 = vsel %vm401, %v4583, 0
      %v4683 = vsel %vm401, %v4584, 0
      %v4686 = vsel %vm401, %v4585, 0
      %v4689 = vsel %vm401, %v4586, 0
      %v4692 = vsel %vm401, %v4587, 0
      %v4695 = vsel %vm401, %v4588, 0
      %v4698 = vsel %vm401, %v4589, 0
      %v4701 = vsel %vm510, %v4591, 0
      %4703 = vmatprep.subr.mxu0 0.0
      %4704 = vmatpush1.msra.mxu0 0.0
      %4705 = vmatprep.subr.mxu0 0.0
      %4706 = vmatpush1.msra.mxu0 0.0
      %4707 = vmatprep.subr.mxu0 0.0
      %4708 = vmatpush1.msra.mxu0 0.0
      %4709 = vmatprep.subr.mxu0 0.0
      %4710 = vmatpush1.msra.mxu0 0.0
      %4711 = vmatprep.subr.mxu0 0.0
      %4712 = vmatpush1.msra.mxu0 0.0
      %4713 = vmatprep.subr.mxu0 0.0
      %4714 = vmatpush1.msra.mxu0 0.0
      %4715 = vmatprep.subr.mxu0 0.0
      %4716 = vmatpush1.msra.mxu0 0.0
      %4717 = vmatprep.subr.mxu0 0.0
      %4718 = vmatpush1.msra.mxu0 0.0
      %4719 = vmatprep.subr.mxu0 0.0
      %4720 = vmatpush1.msra.mxu0 0.0
      %4721 = vmatprep.subr.mxu0 0.0
      %4722 = vmatpush1.msra.mxu0 0.0
      %4723 = vmatprep.subr.mxu0 0.0
      %4724 = vmatpush1.msra.mxu0 0.0
      %4725 = vmatprep.subr.mxu0 0.0
      %4726 = vmatpush1.msra.mxu0 0.0
      %4727 = vmatprep.subr.mxu0 0.0
      %4728 = vmatpush1.msra.mxu0 0.0
      %4729 = vmatprep.subr.mxu0 0.0
      %4730 = vmatpush1.msra.mxu0 0.0
      %4731 = vmatprep.subr.mxu0 0.0
      %4732 = vmatpush1.msra.mxu0 0.0
      %4733 = vmatprep.subr.mxu0 0.0
      %4734 = vmatpush1.msra.mxu0 %v4701
      %4735 = vmatprep.subr.mxu0 0.0
      %4736 = vmatpush2.msra.mxu0 0.0
      %4737 = vmatprep.subr.mxu0 0.0
      %4738 = vmatpush2.msra.mxu0 0.0
      %4739 = vmatprep.subr.mxu0 0.0
      %4740 = vmatpush2.msra.mxu0 0.0
      %4741 = vmatprep.subr.mxu0 0.0
      %4742 = vmatpush2.msra.mxu0 0.0
      %4743 = vmatprep.subr.mxu0 0.0
      %4744 = vmatpush2.msra.mxu0 0.0
      %4745 = vmatprep.subr.mxu0 0.0
      %4746 = vmatpush2.msra.mxu0 0.0
      %4747 = vmatprep.subr.mxu0 0.0
      %4748 = vmatpush2.msra.mxu0 0.0
      %4749 = vmatprep.subr.mxu0 0.0
      %4750 = vmatpush2.msra.mxu0 0.0
      %4751 = vmatprep.subr.mxu0 0.0
      %4752 = vmatpush2.msra.mxu0 0.0
      %4753 = vmatprep.subr.mxu0 0.0
      %4754 = vmatpush2.msra.mxu0 0.0
      %4755 = vmatprep.subr.mxu0 0.0
      %4756 = vmatpush2.msra.mxu0 0.0
      %4757 = vmatprep.subr.mxu0 0.0
      %4758 = vmatpush2.msra.mxu0 0.0
      %4759 = vmatprep.subr.mxu0 0.0
      %4760 = vmatpush2.msra.mxu0 0.0
      %4761 = vmatprep.subr.mxu0 0.0
      %4762 = vmatpush2.msra.mxu0 0.0
      %4763 = vmatprep.subr.mxu0 0.0
      %4764 = vmatpush2.msra.mxu0 0.0
      %4765 = vmatprep.subr.mxu0 0.0
      %4766 = vmatpush2.msra.mxu0 0.0
      %4767 = vmatprep.mubr.f32.mxu0 0.0
      %4768 = vmatmul.mubr.f32.gmra.mxu0 %v4593
      %v4769 = vpop.f32.mrf.mxu0
      %v4770 = vadd.f32 0.0, %v4769
      %v4771 = vpop.f32.mrf.mxu0
      %4772 = vmatprep.mubr.f32.mxu0 0.0
      %4773 = vmatmul.mubr.f32.gmra.mxu0 %v4596
      %v4774 = vpop.f32.mrf.mxu0
      %v4775 = vadd.f32 0.0, %v4774
      %v4776 = vpop.f32.mrf.mxu0
      %4777 = vmatprep.mubr.f32.mxu0 0.0
      %4778 = vmatmul.mubr.f32.gmra.mxu0 %v4599
      %v4779 = vpop.f32.mrf.mxu0
      %v4780 = vadd.f32 0.0, %v4779
      %v4781 = vpop.f32.mrf.mxu0
      %4782 = vmatprep.mubr.f32.mxu0 0.0
      %4783 = vmatmul.mubr.f32.gmra.mxu0 %v4602
      %v4784 = vpop.f32.mrf.mxu0
      %v4785 = vadd.f32 0.0, %v4784
      %v4786 = vpop.f32.mrf.mxu0
      %4787 = vmatprep.mubr.f32.mxu0 0.0
      %4788 = vmatmul.mubr.f32.gmra.mxu0 %v4605
      %v4789 = vpop.f32.mrf.mxu0
      %v4790 = vadd.f32 0.0, %v4789
      %v4791 = vpop.f32.mrf.mxu0
      %4792 = vmatprep.mubr.f32.mxu0 0.0
      %4793 = vmatmul.mubr.f32.gmra.mxu0 %v4608
      %v4794 = vpop.f32.mrf.mxu0
      %v4795 = vadd.f32 0.0, %v4794
      %v4796 = vpop.f32.mrf.mxu0
      %4797 = vmatprep.mubr.f32.mxu0 0.0
      %4798 = vmatmul.mubr.f32.gmra.mxu0 %v4611
      %v4799 = vpop.f32.mrf.mxu0
      %v4800 = vadd.f32 0.0, %v4799
      %v4801 = vpop.f32.mrf.mxu0
      %4802 = vmatprep.mubr.f32.mxu0 0.0
      %4803 = vmatmul.mubr.f32.gmra.mxu0 %v4614
      %v4804 = vpop.f32.mrf.mxu0
      %v4805 = vadd.f32 0.0, %v4804
      %v4806 = vpop.f32.mrf.mxu0
      %4807 = vmatprep.mubr.f32.mxu0 0.0
      %4808 = vmatmul.mubr.f32.gmra.mxu0 %v4617
      %v4809 = vpop.f32.mrf.mxu0
      %v4810 = vadd.f32 0.0, %v4809
      %v4811 = vpop.f32.mrf.mxu0
      %4812 = vmatprep.mubr.f32.mxu0 0.0
      %4813 = vmatmul.mubr.f32.gmra.mxu0 %v4620
      %v4814 = vpop.f32.mrf.mxu0
      %v4815 = vadd.f32 0.0, %v4814
      %v4816 = vpop.f32.mrf.mxu0
      %4817 = vmatprep.mubr.f32.mxu0 0.0
      %4818 = vmatmul.mubr.f32.gmra.mxu0 %v4623
      %v4819 = vpop.f32.mrf.mxu0
      %v4820 = vadd.f32 0.0, %v4819
      %v4821 = vpop.f32.mrf.mxu0
      %4822 = vmatprep.mubr.f32.mxu0 0.0
      %4823 = vmatmul.mubr.f32.gmra.mxu0 %v4626
      %v4824 = vpop.f32.mrf.mxu0
      %v4825 = vadd.f32 0.0, %v4824
      %v4826 = vpop.f32.mrf.mxu0
      %4827 = vmatprep.mubr.f32.mxu0 0.0
      %4828 = vmatmul.mubr.f32.gmra.mxu0 %v4629
      %v4829 = vpop.f32.mrf.mxu0
      %v4830 = vadd.f32 0.0, %v4829
      %v4831 = vpop.f32.mrf.mxu0
      %4832 = vmatprep.mubr.f32.mxu0 0.0
      %4833 = vmatmul.mubr.f32.gmra.mxu0 %v4632
      %v4834 = vpop.f32.mrf.mxu0
      %v4835 = vadd.f32 0.0, %v4834
      %v4836 = vpop.f32.mrf.mxu0
      %4837 = vmatprep.mubr.f32.mxu0 0.0
      %4838 = vmatmul.mubr.f32.gmra.mxu0 %v4635
      %v4839 = vpop.f32.mrf.mxu0
      %v4840 = vadd.f32 0.0, %v4839
      %v4841 = vpop.f32.mrf.mxu0
      %4842 = vmatprep.mubr.f32.mxu0 0.0
      %4843 = vmatmul.mubr.f32.gmra.mxu0 %v4638
      %v4844 = vpop.f32.mrf.mxu0
      %v4845 = vadd.f32 0.0, %v4844
      %v4846 = vpop.f32.mrf.mxu0
      %4847 = vmatprep.mubr.f32.mxu0 0.0
      %4848 = vmatmul.mubr.f32.gmra.mxu0 %v4641
      %v4849 = vpop.f32.mrf.mxu0
      %v4850 = vadd.f32 0.0, %v4849
      %v4851 = vpop.f32.mrf.mxu0
      %4852 = vmatprep.mubr.f32.mxu0 0.0
      %4853 = vmatmul.mubr.f32.gmra.mxu0 %v4644
      %v4854 = vpop.f32.mrf.mxu0
      %v4855 = vadd.f32 0.0, %v4854
      %v4856 = vpop.f32.mrf.mxu0
      %4857 = vmatprep.mubr.f32.mxu0 0.0
      %4858 = vmatmul.mubr.f32.gmra.mxu0 %v4647
      %v4859 = vpop.f32.mrf.mxu0
      %v4860 = vadd.f32 0.0, %v4859
      %v4861 = vpop.f32.mrf.mxu0
      %4862 = vmatprep.mubr.f32.mxu0 0.0
      %4863 = vmatmul.mubr.f32.gmra.mxu0 %v4650
      %v4864 = vpop.f32.mrf.mxu0
      %v4865 = vadd.f32 0.0, %v4864
      %v4866 = vpop.f32.mrf.mxu0
      %4867 = vmatprep.mubr.f32.mxu0 0.0
      %4868 = vmatmul.mubr.f32.gmra.mxu0 %v4653
      %v4869 = vpop.f32.mrf.mxu0
      %v4870 = vadd.f32 0.0, %v4869
      %v4871 = vpop.f32.mrf.mxu0
      %4872 = vmatprep.mubr.f32.mxu0 0.0
      %4873 = vmatmul.mubr.f32.gmra.mxu0 %v4656
      %v4874 = vpop.f32.mrf.mxu0
      %v4875 = vadd.f32 0.0, %v4874
      %v4876 = vpop.f32.mrf.mxu0
      %4877 = vmatprep.mubr.f32.mxu0 0.0
      %4878 = vmatmul.mubr.f32.gmra.mxu0 %v4659
      %v4879 = vpop.f32.mrf.mxu0
      %v4880 = vadd.f32 0.0, %v4879
      %v4881 = vpop.f32.mrf.mxu0
      %4882 = vmatprep.mubr.f32.mxu0 0.0
      %4883 = vmatmul.mubr.f32.gmra.mxu0 %v4662
      %v4884 = vpop.f32.mrf.mxu0
      %v4885 = vadd.f32 0.0, %v4884
      %v4886 = vpop.f32.mrf.mxu0
      %4887 = vmatprep.mubr.f32.mxu0 0.0
      %4888 = vmatmul.mubr.f32.gmra.mxu0 %v4665
      %v4889 = vpop.f32.mrf.mxu0
      %v4890 = vadd.f32 0.0, %v4889
      %v4891 = vpop.f32.mrf.mxu0
      %4892 = vmatprep.mubr.f32.mxu0 0.0
      %4893 = vmatmul.mubr.f32.gmra.mxu0 %v4668
      %v4894 = vpop.f32.mrf.mxu0
      %v4895 = vadd.f32 0.0, %v4894
      %v4896 = vpop.f32.mrf.mxu0
      %4897 = vmatprep.mubr.f32.mxu0 0.0
      %4898 = vmatmul.mubr.f32.gmra.mxu0 %v4671
      %v4899 = vpop.f32.mrf.mxu0
      %v4900 = vadd.f32 0.0, %v4899
      %v4901 = vpop.f32.mrf.mxu0
      %4902 = vmatprep.mubr.f32.mxu0 0.0
      %4903 = vmatmul.mubr.f32.gmra.mxu0 %v4674
      %v4904 = vpop.f32.mrf.mxu0
      %v4905 = vadd.f32 0.0, %v4904
      %v4906 = vpop.f32.mrf.mxu0
      %4907 = vmatprep.mubr.f32.mxu0 0.0
      %4908 = vmatmul.mubr.f32.gmra.mxu0 %v4677
      %v4909 = vpop.f32.mrf.mxu0
      %v4910 = vadd.f32 0.0, %v4909
      %v4911 = vpop.f32.mrf.mxu0
      %4912 = vmatprep.mubr.f32.mxu0 0.0
      %4913 = vmatmul.mubr.f32.gmra.mxu0 %v4680
      %v4914 = vpop.f32.mrf.mxu0
      %v4915 = vadd.f32 0.0, %v4914
      %v4916 = vpop.f32.mrf.mxu0
      %4917 = vmatprep.mubr.f32.mxu0 0.0
      %4918 = vmatmul.mubr.f32.gmra.mxu0 %v4683
      %v4919 = vpop.f32.mrf.mxu0
      %v4920 = vadd.f32 0.0, %v4919
      %v4921 = vpop.f32.mrf.mxu0
      %4922 = vmatprep.mubr.f32.mxu0 0.0
      %4923 = vmatmul.mubr.f32.gmra.mxu0 %v4686
      %v4924 = vpop.f32.mrf.mxu0
      %v4925 = vadd.f32 0.0, %v4924
      %v4926 = vpop.f32.mrf.mxu0
      %4927 = vmatprep.mubr.f32.mxu0 0.0
      %4928 = vmatmul.mubr.f32.gmra.mxu0 %v4689
      %v4929 = vpop.f32.mrf.mxu0
      %v4930 = vadd.f32 0.0, %v4929
      %v4931 = vpop.f32.mrf.mxu0
      %4932 = vmatprep.mubr.f32.mxu0 0.0
      %4933 = vmatmul.mubr.f32.gmra.mxu0 %v4692
      %v4934 = vpop.f32.mrf.mxu0
      %v4935 = vadd.f32 0.0, %v4934
      %v4936 = vpop.f32.mrf.mxu0
      %4937 = vmatprep.mubr.f32.mxu0 0.0
      %4938 = vmatmul.mubr.f32.gmra.mxu0 %v4695
      %v4939 = vpop.f32.mrf.mxu0
      %v4940 = vadd.f32 0.0, %v4939
      %v4941 = vpop.f32.mrf.mxu0
      %4942 = vmatprep.mubr.f32.mxu0 0.0
      %4943 = vmatmul.mubr.f32.gmra.mxu0 %v4698
      %v4944 = vpop.f32.mrf.mxu0
      %v4945 = vadd.f32 0.0, %v4944
      %v4946 = vpop.f32.mrf.mxu0
      %4947 = vdwg.mxu0
      %v4948 = vadd.f32 %v4518, %v4770
      %v4949 = vadd.f32 %v4519, %v4775
      %v4950 = vadd.f32 %v4520, %v4780
      %v4951 = vadd.f32 %v4521, %v4785
      %v4952 = vadd.f32 %v4522, %v4790
      %v4953 = vadd.f32 %v4523, %v4795
      %v4954 = vadd.f32 %v4524, %v4800
      %v4955 = vadd.f32 %v4525, %v4805
      %v4956 = vadd.f32 %v4526, %v4810
      %v4957 = vadd.f32 %v4527, %v4815
      %v4958 = vadd.f32 %v4528, %v4820
      %v4959 = vadd.f32 %v4529, %v4825
      %v4960 = vadd.f32 %v4530, %v4830
      %v4961 = vadd.f32 %v4531, %v4835
      %v4962 = vadd.f32 %v4532, %v4840
      %v4963 = vadd.f32 %v4533, %v4845
      %v4964 = vadd.f32 %v4534, %v4850
      %v4965 = vadd.f32 %v4535, %v4855
      %v4966 = vadd.f32 %v4536, %v4860
      %v4967 = vadd.f32 %v4537, %v4865
      %v4968 = vadd.f32 %v4538, %v4870
      %v4969 = vadd.f32 %v4539, %v4875
      %v4970 = vadd.f32 %v4540, %v4880
      %v4971 = vadd.f32 %v4541, %v4885
      %v4972 = vadd.f32 %v4542, %v4890
      %v4973 = vadd.f32 %v4543, %v4895
      %v4974 = vadd.f32 %v4544, %v4900
      %v4975 = vadd.f32 %v4545, %v4905
      %v4976 = vadd.f32 %v4546, %v4910
      %v4977 = vadd.f32 %v4547, %v4915
      %v4978 = vadd.f32 %v4548, %v4920
      %v4979 = vadd.f32 %v4549, %v4925
      %v4980 = vadd.f32 %v4550, %v4930
      %v4981 = vadd.f32 %v4551, %v4935
      %v4982 = vadd.f32 %v4552, %v4940
      %v4983 = vadd.f32 %v4553, %v4945
      %v4984 = vld [vmem:[%s320 + $0x2] sm:$0xff]
      %v4985 = vld [vmem:[%s320 + $0xa] sm:$0xff]
      %v4986 = vld [vmem:[%s320 + $0x12] sm:$0xff]
      %v4987 = vld [vmem:[%s320 + $0x1a] sm:$0xff]
      %v4988 = vld [vmem:[%s320 + $0x22] sm:$0xff]
      %v4989 = vld [vmem:[%s320 + $0x2a] sm:$0xff]
      %v4990 = vld [vmem:[%s320 + $0x32] sm:$0xff]
      %v4991 = vld [vmem:[%s320 + $0x3a] sm:$0xff]
      %v4992 = vld [vmem:[%s320 + $0x42] sm:$0xff]
      %v4993 = vld [vmem:[%s320 + $0x4a] sm:$0xff]
      %v4994 = vld [vmem:[%s320 + $0x52] sm:$0xff]
      %v4995 = vld [vmem:[%s320 + $0x5a] sm:$0xff]
      %v4996 = vld [vmem:[%s320 + $0x62] sm:$0xff]
      %v4997 = vld [vmem:[%s320 + $0x6a] sm:$0xff]
      %v4998 = vld [vmem:[%s320 + $0x72] sm:$0xff]
      %v4999 = vld [vmem:[%s320 + $0x7a] sm:$0xff]
      %v5000 = vld [vmem:[%s320 + $0x82] sm:$0xff]
      %v5001 = vld [vmem:[%s320 + $0x8a] sm:$0xff]
      %v5002 = vld [vmem:[%s320 + $0x92] sm:$0xff]
      %v5003 = vld [vmem:[%s320 + $0x9a] sm:$0xff]
      %v5004 = vld [vmem:[%s320 + $0xa2] sm:$0xff]
      %v5005 = vld [vmem:[%s320 + $0xaa] sm:$0xff]
      %v5006 = vld [vmem:[%s320 + $0xb2] sm:$0xff]
      %v5007 = vld [vmem:[%s320 + $0xba] sm:$0xff]
      %v5008 = vld [vmem:[%s320 + $0xc2] sm:$0xff]
      %v5009 = vld [vmem:[%s320 + $0xca] sm:$0xff]
      %v5010 = vld [vmem:[%s320 + $0xd2] sm:$0xff]
      %v5011 = vld [vmem:[%s320 + $0xda] sm:$0xff]
      %v5012 = vld [vmem:[%s320 + $0xe2] sm:$0xff]
      %v5013 = vld [vmem:[%s320 + $0xea] sm:$0xff]
      %v5014 = vld [vmem:[%s320 + $0xf2] sm:$0xff]
      %v5015 = vld [vmem:[%s320 + $0xfa] sm:$0xff]
      %v5016 = vld [vmem:[%s320 + $0x102] sm:$0xff]
      %v5017 = vld [vmem:[%s320 + $0x10a] sm:$0xff]
      %v5018 = vld [vmem:[%s320 + $0x112] sm:$0xff]
      %v5019 = vld [vmem:[%s320 + $0x11a] sm:$0xff]
      %s5020 = scalar_lea.vmem %s4, 8
      %v5021 = vld [vmem:[%s5020] sm:$0xf]
      %v5023 = vsel %vm401, %v4984, 0
      %v5026 = vsel %vm401, %v4985, 0
      %v5029 = vsel %vm401, %v4986, 0
      %v5032 = vsel %vm401, %v4987, 0
      %v5035 = vsel %vm401, %v4988, 0
      %v5038 = vsel %vm401, %v4989, 0
      %v5041 = vsel %vm401, %v4990, 0
      %v5044 = vsel %vm401, %v4991, 0
      %v5047 = vsel %vm401, %v4992, 0
      %v5050 = vsel %vm401, %v4993, 0
      %v5053 = vsel %vm401, %v4994, 0
      %v5056 = vsel %vm401, %v4995, 0
      %v5059 = vsel %vm401, %v4996, 0
      %v5062 = vsel %vm401, %v4997, 0
      %v5065 = vsel %vm401, %v4998, 0
      %v5068 = vsel %vm401, %v4999, 0
      %v5071 = vsel %vm401, %v5000, 0
      %v5074 = vsel %vm401, %v5001, 0
      %v5077 = vsel %vm401, %v5002, 0
      %v5080 = vsel %vm401, %v5003, 0
      %v5083 = vsel %vm401, %v5004, 0
      %v5086 = vsel %vm401, %v5005, 0
      %v5089 = vsel %vm401, %v5006, 0
      %v5092 = vsel %vm401, %v5007, 0
      %v5095 = vsel %vm401, %v5008, 0
      %v5098 = vsel %vm401, %v5009, 0
      %v5101 = vsel %vm401, %v5010, 0
      %v5104 = vsel %vm401, %v5011, 0
      %v5107 = vsel %vm401, %v5012, 0
      %v5110 = vsel %vm401, %v5013, 0
      %v5113 = vsel %vm401, %v5014, 0
      %v5116 = vsel %vm401, %v5015, 0
      %v5119 = vsel %vm401, %v5016, 0
      %v5122 = vsel %vm401, %v5017, 0
      %v5125 = vsel %vm401, %v5018, 0
      %v5128 = vsel %vm401, %v5019, 0
      %v5131 = vsel %vm510, %v5021, 0
      %5133 = vmatprep.subr.mxu0 0.0
      %5134 = vmatpush1.msra.mxu0 0.0
      %5135 = vmatprep.subr.mxu0 0.0
      %5136 = vmatpush1.msra.mxu0 0.0
      %5137 = vmatprep.subr.mxu0 0.0
      %5138 = vmatpush1.msra.mxu0 0.0
      %5139 = vmatprep.subr.mxu0 0.0
      %5140 = vmatpush1.msra.mxu0 0.0
      %5141 = vmatprep.subr.mxu0 0.0
      %5142 = vmatpush1.msra.mxu0 0.0
      %5143 = vmatprep.subr.mxu0 0.0
      %5144 = vmatpush1.msra.mxu0 0.0
      %5145 = vmatprep.subr.mxu0 0.0
      %5146 = vmatpush1.msra.mxu0 0.0
      %5147 = vmatprep.subr.mxu0 0.0
      %5148 = vmatpush1.msra.mxu0 0.0
      %5149 = vmatprep.subr.mxu0 0.0
      %5150 = vmatpush1.msra.mxu0 0.0
      %5151 = vmatprep.subr.mxu0 0.0
      %5152 = vmatpush1.msra.mxu0 0.0
      %5153 = vmatprep.subr.mxu0 0.0
      %5154 = vmatpush1.msra.mxu0 0.0
      %5155 = vmatprep.subr.mxu0 0.0
      %5156 = vmatpush1.msra.mxu0 0.0
      %5157 = vmatprep.subr.mxu0 0.0
      %5158 = vmatpush1.msra.mxu0 0.0
      %5159 = vmatprep.subr.mxu0 0.0
      %5160 = vmatpush1.msra.mxu0 0.0
      %5161 = vmatprep.subr.mxu0 0.0
      %5162 = vmatpush1.msra.mxu0 0.0
      %5163 = vmatprep.subr.mxu0 0.0
      %5164 = vmatpush1.msra.mxu0 %v5131
      %5165 = vmatprep.subr.mxu0 0.0
      %5166 = vmatpush2.msra.mxu0 0.0
      %5167 = vmatprep.subr.mxu0 0.0
      %5168 = vmatpush2.msra.mxu0 0.0
      %5169 = vmatprep.subr.mxu0 0.0
      %5170 = vmatpush2.msra.mxu0 0.0
      %5171 = vmatprep.subr.mxu0 0.0
      %5172 = vmatpush2.msra.mxu0 0.0
      %5173 = vmatprep.subr.mxu0 0.0
      %5174 = vmatpush2.msra.mxu0 0.0
      %5175 = vmatprep.subr.mxu0 0.0
      %5176 = vmatpush2.msra.mxu0 0.0
      %5177 = vmatprep.subr.mxu0 0.0
      %5178 = vmatpush2.msra.mxu0 0.0
      %5179 = vmatprep.subr.mxu0 0.0
      %5180 = vmatpush2.msra.mxu0 0.0
      %5181 = vmatprep.subr.mxu0 0.0
      %5182 = vmatpush2.msra.mxu0 0.0
      %5183 = vmatprep.subr.mxu0 0.0
      %5184 = vmatpush2.msra.mxu0 0.0
      %5185 = vmatprep.subr.mxu0 0.0
      %5186 = vmatpush2.msra.mxu0 0.0
      %5187 = vmatprep.subr.mxu0 0.0
      %5188 = vmatpush2.msra.mxu0 0.0
      %5189 = vmatprep.subr.mxu0 0.0
      %5190 = vmatpush2.msra.mxu0 0.0
      %5191 = vmatprep.subr.mxu0 0.0
      %5192 = vmatpush2.msra.mxu0 0.0
      %5193 = vmatprep.subr.mxu0 0.0
      %5194 = vmatpush2.msra.mxu0 0.0
      %5195 = vmatprep.subr.mxu0 0.0
      %5196 = vmatpush2.msra.mxu0 0.0
      %5197 = vmatprep.mubr.f32.mxu0 0.0
      %5198 = vmatmul.mubr.f32.gmra.mxu0 %v5023
      %v5199 = vpop.f32.mrf.mxu0
      %v5200 = vadd.f32 0.0, %v5199
      %v5201 = vpop.f32.mrf.mxu0
      %5202 = vmatprep.mubr.f32.mxu0 0.0
      %5203 = vmatmul.mubr.f32.gmra.mxu0 %v5026
      %v5204 = vpop.f32.mrf.mxu0
      %v5205 = vadd.f32 0.0, %v5204
      %v5206 = vpop.f32.mrf.mxu0
      %5207 = vmatprep.mubr.f32.mxu0 0.0
      %5208 = vmatmul.mubr.f32.gmra.mxu0 %v5029
      %v5209 = vpop.f32.mrf.mxu0
      %v5210 = vadd.f32 0.0, %v5209
      %v5211 = vpop.f32.mrf.mxu0
      %5212 = vmatprep.mubr.f32.mxu0 0.0
      %5213 = vmatmul.mubr.f32.gmra.mxu0 %v5032
      %v5214 = vpop.f32.mrf.mxu0
      %v5215 = vadd.f32 0.0, %v5214
      %v5216 = vpop.f32.mrf.mxu0
      %5217 = vmatprep.mubr.f32.mxu0 0.0
      %5218 = vmatmul.mubr.f32.gmra.mxu0 %v5035
      %v5219 = vpop.f32.mrf.mxu0
      %v5220 = vadd.f32 0.0, %v5219
      %v5221 = vpop.f32.mrf.mxu0
      %5222 = vmatprep.mubr.f32.mxu0 0.0
      %5223 = vmatmul.mubr.f32.gmra.mxu0 %v5038
      %v5224 = vpop.f32.mrf.mxu0
      %v5225 = vadd.f32 0.0, %v5224
      %v5226 = vpop.f32.mrf.mxu0
      %5227 = vmatprep.mubr.f32.mxu0 0.0
      %5228 = vmatmul.mubr.f32.gmra.mxu0 %v5041
      %v5229 = vpop.f32.mrf.mxu0
      %v5230 = vadd.f32 0.0, %v5229
      %v5231 = vpop.f32.mrf.mxu0
      %5232 = vmatprep.mubr.f32.mxu0 0.0
      %5233 = vmatmul.mubr.f32.gmra.mxu0 %v5044
      %v5234 = vpop.f32.mrf.mxu0
      %v5235 = vadd.f32 0.0, %v5234
      %v5236 = vpop.f32.mrf.mxu0
      %5237 = vmatprep.mubr.f32.mxu0 0.0
      %5238 = vmatmul.mubr.f32.gmra.mxu0 %v5047
      %v5239 = vpop.f32.mrf.mxu0
      %v5240 = vadd.f32 0.0, %v5239
      %v5241 = vpop.f32.mrf.mxu0
      %5242 = vmatprep.mubr.f32.mxu0 0.0
      %5243 = vmatmul.mubr.f32.gmra.mxu0 %v5050
      %v5244 = vpop.f32.mrf.mxu0
      %v5245 = vadd.f32 0.0, %v5244
      %v5246 = vpop.f32.mrf.mxu0
      %5247 = vmatprep.mubr.f32.mxu0 0.0
      %5248 = vmatmul.mubr.f32.gmra.mxu0 %v5053
      %v5249 = vpop.f32.mrf.mxu0
      %v5250 = vadd.f32 0.0, %v5249
      %v5251 = vpop.f32.mrf.mxu0
      %5252 = vmatprep.mubr.f32.mxu0 0.0
      %5253 = vmatmul.mubr.f32.gmra.mxu0 %v5056
      %v5254 = vpop.f32.mrf.mxu0
      %v5255 = vadd.f32 0.0, %v5254
      %v5256 = vpop.f32.mrf.mxu0
      %5257 = vmatprep.mubr.f32.mxu0 0.0
      %5258 = vmatmul.mubr.f32.gmra.mxu0 %v5059
      %v5259 = vpop.f32.mrf.mxu0
      %v5260 = vadd.f32 0.0, %v5259
      %v5261 = vpop.f32.mrf.mxu0
      %5262 = vmatprep.mubr.f32.mxu0 0.0
      %5263 = vmatmul.mubr.f32.gmra.mxu0 %v5062
      %v5264 = vpop.f32.mrf.mxu0
      %v5265 = vadd.f32 0.0, %v5264
      %v5266 = vpop.f32.mrf.mxu0
      %5267 = vmatprep.mubr.f32.mxu0 0.0
      %5268 = vmatmul.mubr.f32.gmra.mxu0 %v5065
      %v5269 = vpop.f32.mrf.mxu0
      %v5270 = vadd.f32 0.0, %v5269
      %v5271 = vpop.f32.mrf.mxu0
      %5272 = vmatprep.mubr.f32.mxu0 0.0
      %5273 = vmatmul.mubr.f32.gmra.mxu0 %v5068
      %v5274 = vpop.f32.mrf.mxu0
      %v5275 = vadd.f32 0.0, %v5274
      %v5276 = vpop.f32.mrf.mxu0
      %5277 = vmatprep.mubr.f32.mxu0 0.0
      %5278 = vmatmul.mubr.f32.gmra.mxu0 %v5071
      %v5279 = vpop.f32.mrf.mxu0
      %v5280 = vadd.f32 0.0, %v5279
      %v5281 = vpop.f32.mrf.mxu0
      %5282 = vmatprep.mubr.f32.mxu0 0.0
      %5283 = vmatmul.mubr.f32.gmra.mxu0 %v5074
      %v5284 = vpop.f32.mrf.mxu0
      %v5285 = vadd.f32 0.0, %v5284
      %v5286 = vpop.f32.mrf.mxu0
      %5287 = vmatprep.mubr.f32.mxu0 0.0
      %5288 = vmatmul.mubr.f32.gmra.mxu0 %v5077
      %v5289 = vpop.f32.mrf.mxu0
      %v5290 = vadd.f32 0.0, %v5289
      %v5291 = vpop.f32.mrf.mxu0
      %5292 = vmatprep.mubr.f32.mxu0 0.0
      %5293 = vmatmul.mubr.f32.gmra.mxu0 %v5080
      %v5294 = vpop.f32.mrf.mxu0
      %v5295 = vadd.f32 0.0, %v5294
      %v5296 = vpop.f32.mrf.mxu0
      %5297 = vmatprep.mubr.f32.mxu0 0.0
      %5298 = vmatmul.mubr.f32.gmra.mxu0 %v5083
      %v5299 = vpop.f32.mrf.mxu0
      %v5300 = vadd.f32 0.0, %v5299
      %v5301 = vpop.f32.mrf.mxu0
      %5302 = vmatprep.mubr.f32.mxu0 0.0
      %5303 = vmatmul.mubr.f32.gmra.mxu0 %v5086
      %v5304 = vpop.f32.mrf.mxu0
      %v5305 = vadd.f32 0.0, %v5304
      %v5306 = vpop.f32.mrf.mxu0
      %5307 = vmatprep.mubr.f32.mxu0 0.0
      %5308 = vmatmul.mubr.f32.gmra.mxu0 %v5089
      %v5309 = vpop.f32.mrf.mxu0
      %v5310 = vadd.f32 0.0, %v5309
      %v5311 = vpop.f32.mrf.mxu0
      %5312 = vmatprep.mubr.f32.mxu0 0.0
      %5313 = vmatmul.mubr.f32.gmra.mxu0 %v5092
      %v5314 = vpop.f32.mrf.mxu0
      %v5315 = vadd.f32 0.0, %v5314
      %v5316 = vpop.f32.mrf.mxu0
      %5317 = vmatprep.mubr.f32.mxu0 0.0
      %5318 = vmatmul.mubr.f32.gmra.mxu0 %v5095
      %v5319 = vpop.f32.mrf.mxu0
      %v5320 = vadd.f32 0.0, %v5319
      %v5321 = vpop.f32.mrf.mxu0
      %5322 = vmatprep.mubr.f32.mxu0 0.0
      %5323 = vmatmul.mubr.f32.gmra.mxu0 %v5098
      %v5324 = vpop.f32.mrf.mxu0
      %v5325 = vadd.f32 0.0, %v5324
      %v5326 = vpop.f32.mrf.mxu0
      %5327 = vmatprep.mubr.f32.mxu0 0.0
      %5328 = vmatmul.mubr.f32.gmra.mxu0 %v5101
      %v5329 = vpop.f32.mrf.mxu0
      %v5330 = vadd.f32 0.0, %v5329
      %v5331 = vpop.f32.mrf.mxu0
      %5332 = vmatprep.mubr.f32.mxu0 0.0
      %5333 = vmatmul.mubr.f32.gmra.mxu0 %v5104
      %v5334 = vpop.f32.mrf.mxu0
      %v5335 = vadd.f32 0.0, %v5334
      %v5336 = vpop.f32.mrf.mxu0
      %5337 = vmatprep.mubr.f32.mxu0 0.0
      %5338 = vmatmul.mubr.f32.gmra.mxu0 %v5107
      %v5339 = vpop.f32.mrf.mxu0
      %v5340 = vadd.f32 0.0, %v5339
      %v5341 = vpop.f32.mrf.mxu0
      %5342 = vmatprep.mubr.f32.mxu0 0.0
      %5343 = vmatmul.mubr.f32.gmra.mxu0 %v5110
      %v5344 = vpop.f32.mrf.mxu0
      %v5345 = vadd.f32 0.0, %v5344
      %v5346 = vpop.f32.mrf.mxu0
      %5347 = vmatprep.mubr.f32.mxu0 0.0
      %5348 = vmatmul.mubr.f32.gmra.mxu0 %v5113
      %v5349 = vpop.f32.mrf.mxu0
      %v5350 = vadd.f32 0.0, %v5349
      %v5351 = vpop.f32.mrf.mxu0
      %5352 = vmatprep.mubr.f32.mxu0 0.0
      %5353 = vmatmul.mubr.f32.gmra.mxu0 %v5116
      %v5354 = vpop.f32.mrf.mxu0
      %v5355 = vadd.f32 0.0, %v5354
      %v5356 = vpop.f32.mrf.mxu0
      %5357 = vmatprep.mubr.f32.mxu0 0.0
      %5358 = vmatmul.mubr.f32.gmra.mxu0 %v5119
      %v5359 = vpop.f32.mrf.mxu0
      %v5360 = vadd.f32 0.0, %v5359
      %v5361 = vpop.f32.mrf.mxu0
      %5362 = vmatprep.mubr.f32.mxu0 0.0
      %5363 = vmatmul.mubr.f32.gmra.mxu0 %v5122
      %v5364 = vpop.f32.mrf.mxu0
      %v5365 = vadd.f32 0.0, %v5364
      %v5366 = vpop.f32.mrf.mxu0
      %5367 = vmatprep.mubr.f32.mxu0 0.0
      %5368 = vmatmul.mubr.f32.gmra.mxu0 %v5125
      %v5369 = vpop.f32.mrf.mxu0
      %v5370 = vadd.f32 0.0, %v5369
      %v5371 = vpop.f32.mrf.mxu0
      %5372 = vmatprep.mubr.f32.mxu0 0.0
      %5373 = vmatmul.mubr.f32.gmra.mxu0 %v5128
      %v5374 = vpop.f32.mrf.mxu0
      %v5375 = vadd.f32 0.0, %v5374
      %v5376 = vpop.f32.mrf.mxu0
      %5377 = vdwg.mxu0
      %v5378 = vadd.f32 %v4948, %v5200
      %v5379 = vadd.f32 %v4949, %v5205
      %v5380 = vadd.f32 %v4950, %v5210
      %v5381 = vadd.f32 %v4951, %v5215
      %v5382 = vadd.f32 %v4952, %v5220
      %v5383 = vadd.f32 %v4953, %v5225
      %v5384 = vadd.f32 %v4954, %v5230
      %v5385 = vadd.f32 %v4955, %v5235
      %v5386 = vadd.f32 %v4956, %v5240
      %v5387 = vadd.f32 %v4957, %v5245
      %v5388 = vadd.f32 %v4958, %v5250
      %v5389 = vadd.f32 %v4959, %v5255
      %v5390 = vadd.f32 %v4960, %v5260
      %v5391 = vadd.f32 %v4961, %v5265
      %v5392 = vadd.f32 %v4962, %v5270
      %v5393 = vadd.f32 %v4963, %v5275
      %v5394 = vadd.f32 %v4964, %v5280
      %v5395 = vadd.f32 %v4965, %v5285
      %v5396 = vadd.f32 %v4966, %v5290
      %v5397 = vadd.f32 %v4967, %v5295
      %v5398 = vadd.f32 %v4968, %v5300
      %v5399 = vadd.f32 %v4969, %v5305
      %v5400 = vadd.f32 %v4970, %v5310
      %v5401 = vadd.f32 %v4971, %v5315
      %v5402 = vadd.f32 %v4972, %v5320
      %v5403 = vadd.f32 %v4973, %v5325
      %v5404 = vadd.f32 %v4974, %v5330
      %v5405 = vadd.f32 %v4975, %v5335
      %v5406 = vadd.f32 %v4976, %v5340
      %v5407 = vadd.f32 %v4977, %v5345
      %v5408 = vadd.f32 %v4978, %v5350
      %v5409 = vadd.f32 %v4979, %v5355
      %v5410 = vadd.f32 %v4980, %v5360
      %v5411 = vadd.f32 %v4981, %v5365
      %v5412 = vadd.f32 %v4982, %v5370
      %v5413 = vadd.f32 %v4983, %v5375
      %v5414 = vld [vmem:[%s320 + $0x12] sm:$0xff]
      %v5415 = vld [vmem:[%s320 + $0x1a] sm:$0xff]
      %v5416 = vld [vmem:[%s320 + $0x22] sm:$0xff]
      %v5417 = vld [vmem:[%s320 + $0x2a] sm:$0xff]
      %v5418 = vld [vmem:[%s320 + $0x32] sm:$0xff]
      %v5419 = vld [vmem:[%s320 + $0x3a] sm:$0xff]
      %v5420 = vld [vmem:[%s320 + $0x42] sm:$0xff]
      %v5421 = vld [vmem:[%s320 + $0x4a] sm:$0xff]
      %v5422 = vld [vmem:[%s320 + $0x52] sm:$0xff]
      %v5423 = vld [vmem:[%s320 + $0x5a] sm:$0xff]
      %v5424 = vld [vmem:[%s320 + $0x62] sm:$0xff]
      %v5425 = vld [vmem:[%s320 + $0x6a] sm:$0xff]
      %v5426 = vld [vmem:[%s320 + $0x72] sm:$0xff]
      %v5427 = vld [vmem:[%s320 + $0x7a] sm:$0xff]
      %v5428 = vld [vmem:[%s320 + $0x82] sm:$0xff]
      %v5429 = vld [vmem:[%s320 + $0x8a] sm:$0xff]
      %v5430 = vld [vmem:[%s320 + $0x92] sm:$0xff]
      %v5431 = vld [vmem:[%s320 + $0x9a] sm:$0xff]
      %v5432 = vld [vmem:[%s320 + $0xa2] sm:$0xff]
      %v5433 = vld [vmem:[%s320 + $0xaa] sm:$0xff]
      %v5434 = vld [vmem:[%s320 + $0xb2] sm:$0xff]
      %v5435 = vld [vmem:[%s320 + $0xba] sm:$0xff]
      %v5436 = vld [vmem:[%s320 + $0xc2] sm:$0xff]
      %v5437 = vld [vmem:[%s320 + $0xca] sm:$0xff]
      %v5438 = vld [vmem:[%s320 + $0xd2] sm:$0xff]
      %v5439 = vld [vmem:[%s320 + $0xda] sm:$0xff]
      %v5440 = vld [vmem:[%s320 + $0xe2] sm:$0xff]
      %v5441 = vld [vmem:[%s320 + $0xea] sm:$0xff]
      %v5442 = vld [vmem:[%s320 + $0xf2] sm:$0xff]
      %v5443 = vld [vmem:[%s320 + $0xfa] sm:$0xff]
      %v5444 = vld [vmem:[%s320 + $0x102] sm:$0xff]
      %v5445 = vld [vmem:[%s320 + $0x10a] sm:$0xff]
      %v5446 = vld [vmem:[%s320 + $0x112] sm:$0xff]
      %v5447 = vld [vmem:[%s320 + $0x11a] sm:$0xff]
      %v5448 = vld [vmem:[%s320 + $0x122] sm:$0xff]
      %v5449 = vld [vmem:[%s320 + $0x12a] sm:$0xff]
      %s5450 = scalar_lea.vmem %s4, 12
      %v5451 = vld [vmem:[%s5450] sm:$0xf]
      %v5453 = vsel %vm401, %v5414, 0
      %v5456 = vsel %vm401, %v5415, 0
      %v5459 = vsel %vm401, %v5416, 0
      %v5462 = vsel %vm401, %v5417, 0
      %v5465 = vsel %vm401, %v5418, 0
      %v5468 = vsel %vm401, %v5419, 0
      %v5471 = vsel %vm401, %v5420, 0
      %v5474 = vsel %vm401, %v5421, 0
      %v5477 = vsel %vm401, %v5422, 0
      %v5480 = vsel %vm401, %v5423, 0
      %v5483 = vsel %vm401, %v5424, 0
      %v5486 = vsel %vm401, %v5425, 0
      %v5489 = vsel %vm401, %v5426, 0
      %v5492 = vsel %vm401, %v5427, 0
      %v5495 = vsel %vm401, %v5428, 0
      %v5498 = vsel %vm401, %v5429, 0
      %v5501 = vsel %vm401, %v5430, 0
      %v5504 = vsel %vm401, %v5431, 0
      %v5507 = vsel %vm401, %v5432, 0
      %v5510 = vsel %vm401, %v5433, 0
      %v5513 = vsel %vm401, %v5434, 0
      %v5516 = vsel %vm401, %v5435, 0
      %v5519 = vsel %vm401, %v5436, 0
      %v5522 = vsel %vm401, %v5437, 0
      %v5525 = vsel %vm401, %v5438, 0
      %v5528 = vsel %vm401, %v5439, 0
      %v5531 = vsel %vm401, %v5440, 0
      %v5534 = vsel %vm401, %v5441, 0
      %v5537 = vsel %vm401, %v5442, 0
      %v5540 = vsel %vm401, %v5443, 0
      %v5543 = vsel %vm401, %v5444, 0
      %v5546 = vsel %vm401, %v5445, 0
      %v5549 = vsel %vm401, %v5446, 0
      %v5552 = vsel %vm401, %v5447, 0
      %v5555 = vsel %vm401, %v5448, 0
      %v5558 = vsel %vm401, %v5449, 0
      %v5561 = vsel %vm510, %v5451, 0
      %5563 = vmatprep.subr.mxu0 0.0
      %5564 = vmatpush1.msra.mxu0 0.0
      %5565 = vmatprep.subr.mxu0 0.0
      %5566 = vmatpush1.msra.mxu0 0.0
      %5567 = vmatprep.subr.mxu0 0.0
      %5568 = vmatpush1.msra.mxu0 0.0
      %5569 = vmatprep.subr.mxu0 0.0
      %5570 = vmatpush1.msra.mxu0 0.0
      %5571 = vmatprep.subr.mxu0 0.0
      %5572 = vmatpush1.msra.mxu0 0.0
      %5573 = vmatprep.subr.mxu0 0.0
      %5574 = vmatpush1.msra.mxu0 0.0
      %5575 = vmatprep.subr.mxu0 0.0
      %5576 = vmatpush1.msra.mxu0 0.0
      %5577 = vmatprep.subr.mxu0 0.0
      %5578 = vmatpush1.msra.mxu0 0.0
      %5579 = vmatprep.subr.mxu0 0.0
      %5580 = vmatpush1.msra.mxu0 0.0
      %5581 = vmatprep.subr.mxu0 0.0
      %5582 = vmatpush1.msra.mxu0 0.0
      %5583 = vmatprep.subr.mxu0 0.0
      %5584 = vmatpush1.msra.mxu0 0.0
      %5585 = vmatprep.subr.mxu0 0.0
      %5586 = vmatpush1.msra.mxu0 0.0
      %5587 = vmatprep.subr.mxu0 0.0
      %5588 = vmatpush1.msra.mxu0 0.0
      %5589 = vmatprep.subr.mxu0 0.0
      %5590 = vmatpush1.msra.mxu0 0.0
      %5591 = vmatprep.subr.mxu0 0.0
      %5592 = vmatpush1.msra.mxu0 0.0
      %5593 = vmatprep.subr.mxu0 0.0
      %5594 = vmatpush1.msra.mxu0 %v5561
      %5595 = vmatprep.subr.mxu0 0.0
      %5596 = vmatpush2.msra.mxu0 0.0
      %5597 = vmatprep.subr.mxu0 0.0
      %5598 = vmatpush2.msra.mxu0 0.0
      %5599 = vmatprep.subr.mxu0 0.0
      %5600 = vmatpush2.msra.mxu0 0.0
      %5601 = vmatprep.subr.mxu0 0.0
      %5602 = vmatpush2.msra.mxu0 0.0
      %5603 = vmatprep.subr.mxu0 0.0
      %5604 = vmatpush2.msra.mxu0 0.0
      %5605 = vmatprep.subr.mxu0 0.0
      %5606 = vmatpush2.msra.mxu0 0.0
      %5607 = vmatprep.subr.mxu0 0.0
      %5608 = vmatpush2.msra.mxu0 0.0
      %5609 = vmatprep.subr.mxu0 0.0
      %5610 = vmatpush2.msra.mxu0 0.0
      %5611 = vmatprep.subr.mxu0 0.0
      %5612 = vmatpush2.msra.mxu0 0.0
      %5613 = vmatprep.subr.mxu0 0.0
      %5614 = vmatpush2.msra.mxu0 0.0
      %5615 = vmatprep.subr.mxu0 0.0
      %5616 = vmatpush2.msra.mxu0 0.0
      %5617 = vmatprep.subr.mxu0 0.0
      %5618 = vmatpush2.msra.mxu0 0.0
      %5619 = vmatprep.subr.mxu0 0.0
      %5620 = vmatpush2.msra.mxu0 0.0
      %5621 = vmatprep.subr.mxu0 0.0
      %5622 = vmatpush2.msra.mxu0 0.0
      %5623 = vmatprep.subr.mxu0 0.0
      %5624 = vmatpush2.msra.mxu0 0.0
      %5625 = vmatprep.subr.mxu0 0.0
      %5626 = vmatpush2.msra.mxu0 0.0
      %5627 = vmatprep.mubr.f32.mxu0 0.0
      %5628 = vmatmul.mubr.f32.gmra.mxu0 %v5453
      %v5629 = vpop.f32.mrf.mxu0
      %v5630 = vadd.f32 0.0, %v5629
      %v5631 = vpop.f32.mrf.mxu0
      %5632 = vmatprep.mubr.f32.mxu0 0.0
      %5633 = vmatmul.mubr.f32.gmra.mxu0 %v5456
      %v5634 = vpop.f32.mrf.mxu0
      %v5635 = vadd.f32 0.0, %v5634
      %v5636 = vpop.f32.mrf.mxu0
      %5637 = vmatprep.mubr.f32.mxu0 0.0
      %5638 = vmatmul.mubr.f32.gmra.mxu0 %v5459
      %v5639 = vpop.f32.mrf.mxu0
      %v5640 = vadd.f32 0.0, %v5639
      %v5641 = vpop.f32.mrf.mxu0
      %5642 = vmatprep.mubr.f32.mxu0 0.0
      %5643 = vmatmul.mubr.f32.gmra.mxu0 %v5462
      %v5644 = vpop.f32.mrf.mxu0
      %v5645 = vadd.f32 0.0, %v5644
      %v5646 = vpop.f32.mrf.mxu0
      %5647 = vmatprep.mubr.f32.mxu0 0.0
      %5648 = vmatmul.mubr.f32.gmra.mxu0 %v5465
      %v5649 = vpop.f32.mrf.mxu0
      %v5650 = vadd.f32 0.0, %v5649
      %v5651 = vpop.f32.mrf.mxu0
      %5652 = vmatprep.mubr.f32.mxu0 0.0
      %5653 = vmatmul.mubr.f32.gmra.mxu0 %v5468
      %v5654 = vpop.f32.mrf.mxu0
      %v5655 = vadd.f32 0.0, %v5654
      %v5656 = vpop.f32.mrf.mxu0
      %5657 = vmatprep.mubr.f32.mxu0 0.0
      %5658 = vmatmul.mubr.f32.gmra.mxu0 %v5471
      %v5659 = vpop.f32.mrf.mxu0
      %v5660 = vadd.f32 0.0, %v5659
      %v5661 = vpop.f32.mrf.mxu0
      %5662 = vmatprep.mubr.f32.mxu0 0.0
      %5663 = vmatmul.mubr.f32.gmra.mxu0 %v5474
      %v5664 = vpop.f32.mrf.mxu0
      %v5665 = vadd.f32 0.0, %v5664
      %v5666 = vpop.f32.mrf.mxu0
      %5667 = vmatprep.mubr.f32.mxu0 0.0
      %5668 = vmatmul.mubr.f32.gmra.mxu0 %v5477
      %v5669 = vpop.f32.mrf.mxu0
      %v5670 = vadd.f32 0.0, %v5669
      %v5671 = vpop.f32.mrf.mxu0
      %5672 = vmatprep.mubr.f32.mxu0 0.0
      %5673 = vmatmul.mubr.f32.gmra.mxu0 %v5480
      %v5674 = vpop.f32.mrf.mxu0
      %v5675 = vadd.f32 0.0, %v5674
      %v5676 = vpop.f32.mrf.mxu0
      %5677 = vmatprep.mubr.f32.mxu0 0.0
      %5678 = vmatmul.mubr.f32.gmra.mxu0 %v5483
      %v5679 = vpop.f32.mrf.mxu0
      %v5680 = vadd.f32 0.0, %v5679
      %v5681 = vpop.f32.mrf.mxu0
      %5682 = vmatprep.mubr.f32.mxu0 0.0
      %5683 = vmatmul.mubr.f32.gmra.mxu0 %v5486
      %v5684 = vpop.f32.mrf.mxu0
      %v5685 = vadd.f32 0.0, %v5684
      %v5686 = vpop.f32.mrf.mxu0
      %5687 = vmatprep.mubr.f32.mxu0 0.0
      %5688 = vmatmul.mubr.f32.gmra.mxu0 %v5489
      %v5689 = vpop.f32.mrf.mxu0
      %v5690 = vadd.f32 0.0, %v5689
      %v5691 = vpop.f32.mrf.mxu0
      %5692 = vmatprep.mubr.f32.mxu0 0.0
      %5693 = vmatmul.mubr.f32.gmra.mxu0 %v5492
      %v5694 = vpop.f32.mrf.mxu0
      %v5695 = vadd.f32 0.0, %v5694
      %v5696 = vpop.f32.mrf.mxu0
      %5697 = vmatprep.mubr.f32.mxu0 0.0
      %5698 = vmatmul.mubr.f32.gmra.mxu0 %v5495
      %v5699 = vpop.f32.mrf.mxu0
      %v5700 = vadd.f32 0.0, %v5699
      %v5701 = vpop.f32.mrf.mxu0
      %5702 = vmatprep.mubr.f32.mxu0 0.0
      %5703 = vmatmul.mubr.f32.gmra.mxu0 %v5498
      %v5704 = vpop.f32.mrf.mxu0
      %v5705 = vadd.f32 0.0, %v5704
      %v5706 = vpop.f32.mrf.mxu0
      %5707 = vmatprep.mubr.f32.mxu0 0.0
      %5708 = vmatmul.mubr.f32.gmra.mxu0 %v5501
      %v5709 = vpop.f32.mrf.mxu0
      %v5710 = vadd.f32 0.0, %v5709
      %v5711 = vpop.f32.mrf.mxu0
      %5712 = vmatprep.mubr.f32.mxu0 0.0
      %5713 = vmatmul.mubr.f32.gmra.mxu0 %v5504
      %v5714 = vpop.f32.mrf.mxu0
      %v5715 = vadd.f32 0.0, %v5714
      %v5716 = vpop.f32.mrf.mxu0
      %5717 = vmatprep.mubr.f32.mxu0 0.0
      %5718 = vmatmul.mubr.f32.gmra.mxu0 %v5507
      %v5719 = vpop.f32.mrf.mxu0
      %v5720 = vadd.f32 0.0, %v5719
      %v5721 = vpop.f32.mrf.mxu0
      %5722 = vmatprep.mubr.f32.mxu0 0.0
      %5723 = vmatmul.mubr.f32.gmra.mxu0 %v5510
      %v5724 = vpop.f32.mrf.mxu0
      %v5725 = vadd.f32 0.0, %v5724
      %v5726 = vpop.f32.mrf.mxu0
      %5727 = vmatprep.mubr.f32.mxu0 0.0
      %5728 = vmatmul.mubr.f32.gmra.mxu0 %v5513
      %v5729 = vpop.f32.mrf.mxu0
      %v5730 = vadd.f32 0.0, %v5729
      %v5731 = vpop.f32.mrf.mxu0
      %5732 = vmatprep.mubr.f32.mxu0 0.0
      %5733 = vmatmul.mubr.f32.gmra.mxu0 %v5516
      %v5734 = vpop.f32.mrf.mxu0
      %v5735 = vadd.f32 0.0, %v5734
      %v5736 = vpop.f32.mrf.mxu0
      %5737 = vmatprep.mubr.f32.mxu0 0.0
      %5738 = vmatmul.mubr.f32.gmra.mxu0 %v5519
      %v5739 = vpop.f32.mrf.mxu0
      %v5740 = vadd.f32 0.0, %v5739
      %v5741 = vpop.f32.mrf.mxu0
      %5742 = vmatprep.mubr.f32.mxu0 0.0
      %5743 = vmatmul.mubr.f32.gmra.mxu0 %v5522
      %v5744 = vpop.f32.mrf.mxu0
      %v5745 = vadd.f32 0.0, %v5744
      %v5746 = vpop.f32.mrf.mxu0
      %5747 = vmatprep.mubr.f32.mxu0 0.0
      %5748 = vmatmul.mubr.f32.gmra.mxu0 %v5525
      %v5749 = vpop.f32.mrf.mxu0
      %v5750 = vadd.f32 0.0, %v5749
      %v5751 = vpop.f32.mrf.mxu0
      %5752 = vmatprep.mubr.f32.mxu0 0.0
      %5753 = vmatmul.mubr.f32.gmra.mxu0 %v5528
      %v5754 = vpop.f32.mrf.mxu0
      %v5755 = vadd.f32 0.0, %v5754
      %v5756 = vpop.f32.mrf.mxu0
      %5757 = vmatprep.mubr.f32.mxu0 0.0
      %5758 = vmatmul.mubr.f32.gmra.mxu0 %v5531
      %v5759 = vpop.f32.mrf.mxu0
      %v5760 = vadd.f32 0.0, %v5759
      %v5761 = vpop.f32.mrf.mxu0
      %5762 = vmatprep.mubr.f32.mxu0 0.0
      %5763 = vmatmul.mubr.f32.gmra.mxu0 %v5534
      %v5764 = vpop.f32.mrf.mxu0
      %v5765 = vadd.f32 0.0, %v5764
      %v5766 = vpop.f32.mrf.mxu0
      %5767 = vmatprep.mubr.f32.mxu0 0.0
      %5768 = vmatmul.mubr.f32.gmra.mxu0 %v5537
      %v5769 = vpop.f32.mrf.mxu0
      %v5770 = vadd.f32 0.0, %v5769
      %v5771 = vpop.f32.mrf.mxu0
      %5772 = vmatprep.mubr.f32.mxu0 0.0
      %5773 = vmatmul.mubr.f32.gmra.mxu0 %v5540
      %v5774 = vpop.f32.mrf.mxu0
      %v5775 = vadd.f32 0.0, %v5774
      %v5776 = vpop.f32.mrf.mxu0
      %5777 = vmatprep.mubr.f32.mxu0 0.0
      %5778 = vmatmul.mubr.f32.gmra.mxu0 %v5543
      %v5779 = vpop.f32.mrf.mxu0
      %v5780 = vadd.f32 0.0, %v5779
      %v5781 = vpop.f32.mrf.mxu0
      %5782 = vmatprep.mubr.f32.mxu0 0.0
      %5783 = vmatmul.mubr.f32.gmra.mxu0 %v5546
      %v5784 = vpop.f32.mrf.mxu0
      %v5785 = vadd.f32 0.0, %v5784
      %v5786 = vpop.f32.mrf.mxu0
      %5787 = vmatprep.mubr.f32.mxu0 0.0
      %5788 = vmatmul.mubr.f32.gmra.mxu0 %v5549
      %v5789 = vpop.f32.mrf.mxu0
      %v5790 = vadd.f32 0.0, %v5789
      %v5791 = vpop.f32.mrf.mxu0
      %5792 = vmatprep.mubr.f32.mxu0 0.0
      %5793 = vmatmul.mubr.f32.gmra.mxu0 %v5552
      %v5794 = vpop.f32.mrf.mxu0
      %v5795 = vadd.f32 0.0, %v5794
      %v5796 = vpop.f32.mrf.mxu0
      %5797 = vmatprep.mubr.f32.mxu0 0.0
      %5798 = vmatmul.mubr.f32.gmra.mxu0 %v5555
      %v5799 = vpop.f32.mrf.mxu0
      %v5800 = vadd.f32 0.0, %v5799
      %v5801 = vpop.f32.mrf.mxu0
      %5802 = vmatprep.mubr.f32.mxu0 0.0
      %5803 = vmatmul.mubr.f32.gmra.mxu0 %v5558
      %v5804 = vpop.f32.mrf.mxu0
      %v5805 = vadd.f32 0.0, %v5804
      %v5806 = vpop.f32.mrf.mxu0
      %5807 = vdwg.mxu0
      %v5808 = vadd.f32 %v5378, %v5630
      %v5809 = vadd.f32 %v5379, %v5635
      %v5810 = vadd.f32 %v5380, %v5640
      %v5811 = vadd.f32 %v5381, %v5645
      %v5812 = vadd.f32 %v5382, %v5650
      %v5813 = vadd.f32 %v5383, %v5655
      %v5814 = vadd.f32 %v5384, %v5660
      %v5815 = vadd.f32 %v5385, %v5665
      %v5816 = vadd.f32 %v5386, %v5670
      %v5817 = vadd.f32 %v5387, %v5675
      %v5818 = vadd.f32 %v5388, %v5680
      %v5819 = vadd.f32 %v5389, %v5685
      %v5820 = vadd.f32 %v5390, %v5690
      %v5821 = vadd.f32 %v5391, %v5695
      %v5822 = vadd.f32 %v5392, %v5700
      %v5823 = vadd.f32 %v5393, %v5705
      %v5824 = vadd.f32 %v5394, %v5710
      %v5825 = vadd.f32 %v5395, %v5715
      %v5826 = vadd.f32 %v5396, %v5720
      %v5827 = vadd.f32 %v5397, %v5725
      %v5828 = vadd.f32 %v5398, %v5730
      %v5829 = vadd.f32 %v5399, %v5735
      %v5830 = vadd.f32 %v5400, %v5740
      %v5831 = vadd.f32 %v5401, %v5745
      %v5832 = vadd.f32 %v5402, %v5750
      %v5833 = vadd.f32 %v5403, %v5755
      %v5834 = vadd.f32 %v5404, %v5760
      %v5835 = vadd.f32 %v5405, %v5765
      %v5836 = vadd.f32 %v5406, %v5770
      %v5837 = vadd.f32 %v5407, %v5775
      %v5838 = vadd.f32 %v5408, %v5780
      %v5839 = vadd.f32 %v5409, %v5785
      %v5840 = vadd.f32 %v5410, %v5790
      %v5841 = vadd.f32 %v5411, %v5795
      %v5842 = vadd.f32 %v5412, %v5800
      %v5843 = vadd.f32 %v5413, %v5805
      %v5844 = vld [vmem:[%s320 + $0x13] sm:$0xff]
      %v5845 = vld [vmem:[%s320 + $0x1b] sm:$0xff]
      %v5846 = vld [vmem:[%s320 + $0x23] sm:$0xff]
      %v5847 = vld [vmem:[%s320 + $0x2b] sm:$0xff]
      %v5848 = vld [vmem:[%s320 + $0x33] sm:$0xff]
      %v5849 = vld [vmem:[%s320 + $0x3b] sm:$0xff]
      %v5850 = vld [vmem:[%s320 + $0x43] sm:$0xff]
      %v5851 = vld [vmem:[%s320 + $0x4b] sm:$0xff]
      %v5852 = vld [vmem:[%s320 + $0x53] sm:$0xff]
      %v5853 = vld [vmem:[%s320 + $0x5b] sm:$0xff]
      %v5854 = vld [vmem:[%s320 + $0x63] sm:$0xff]
      %v5855 = vld [vmem:[%s320 + $0x6b] sm:$0xff]
      %v5856 = vld [vmem:[%s320 + $0x73] sm:$0xff]
      %v5857 = vld [vmem:[%s320 + $0x7b] sm:$0xff]
      %v5858 = vld [vmem:[%s320 + $0x83] sm:$0xff]
      %v5859 = vld [vmem:[%s320 + $0x8b] sm:$0xff]
      %v5860 = vld [vmem:[%s320 + $0x93] sm:$0xff]
      %v5861 = vld [vmem:[%s320 + $0x9b] sm:$0xff]
      %v5862 = vld [vmem:[%s320 + $0xa3] sm:$0xff]
      %v5863 = vld [vmem:[%s320 + $0xab] sm:$0xff]
      %v5864 = vld [vmem:[%s320 + $0xb3] sm:$0xff]
      %v5865 = vld [vmem:[%s320 + $0xbb] sm:$0xff]
      %v5866 = vld [vmem:[%s320 + $0xc3] sm:$0xff]
      %v5867 = vld [vmem:[%s320 + $0xcb] sm:$0xff]
      %v5868 = vld [vmem:[%s320 + $0xd3] sm:$0xff]
      %v5869 = vld [vmem:[%s320 + $0xdb] sm:$0xff]
      %v5870 = vld [vmem:[%s320 + $0xe3] sm:$0xff]
      %v5871 = vld [vmem:[%s320 + $0xeb] sm:$0xff]
      %v5872 = vld [vmem:[%s320 + $0xf3] sm:$0xff]
      %v5873 = vld [vmem:[%s320 + $0xfb] sm:$0xff]
      %v5874 = vld [vmem:[%s320 + $0x103] sm:$0xff]
      %v5875 = vld [vmem:[%s320 + $0x10b] sm:$0xff]
      %v5876 = vld [vmem:[%s320 + $0x113] sm:$0xff]
      %v5877 = vld [vmem:[%s320 + $0x11b] sm:$0xff]
      %v5878 = vld [vmem:[%s320 + $0x123] sm:$0xff]
      %v5879 = vld [vmem:[%s320 + $0x12b] sm:$0xff]
      %s5880 = scalar_lea.vmem %s4, 16
      %v5881 = vld [vmem:[%s5880] sm:$0xf]
      %v5883 = vsel %vm401, %v5844, 0
      %v5886 = vsel %vm401, %v5845, 0
      %v5889 = vsel %vm401, %v5846, 0
      %v5892 = vsel %vm401, %v5847, 0
      %v5895 = vsel %vm401, %v5848, 0
      %v5898 = vsel %vm401, %v5849, 0
      %v5901 = vsel %vm401, %v5850, 0
      %v5904 = vsel %vm401, %v5851, 0
      %v5907 = vsel %vm401, %v5852, 0
      %v5910 = vsel %vm401, %v5853, 0
      %v5913 = vsel %vm401, %v5854, 0
      %v5916 = vsel %vm401, %v5855, 0
      %v5919 = vsel %vm401, %v5856, 0
      %v5922 = vsel %vm401, %v5857, 0
      %v5925 = vsel %vm401, %v5858, 0
      %v5928 = vsel %vm401, %v5859, 0
      %v5931 = vsel %vm401, %v5860, 0
      %v5934 = vsel %vm401, %v5861, 0
      %v5937 = vsel %vm401, %v5862, 0
      %v5940 = vsel %vm401, %v5863, 0
      %v5943 = vsel %vm401, %v5864, 0
      %v5946 = vsel %vm401, %v5865, 0
      %v5949 = vsel %vm401, %v5866, 0
      %v5952 = vsel %vm401, %v5867, 0
      %v5955 = vsel %vm401, %v5868, 0
      %v5958 = vsel %vm401, %v5869, 0
      %v5961 = vsel %vm401, %v5870, 0
      %v5964 = vsel %vm401, %v5871, 0
      %v5967 = vsel %vm401, %v5872, 0
      %v5970 = vsel %vm401, %v5873, 0
      %v5973 = vsel %vm401, %v5874, 0
      %v5976 = vsel %vm401, %v5875, 0
      %v5979 = vsel %vm401, %v5876, 0
      %v5982 = vsel %vm401, %v5877, 0
      %v5985 = vsel %vm401, %v5878, 0
      %v5988 = vsel %vm401, %v5879, 0
      %v5991 = vsel %vm510, %v5881, 0
      %5993 = vmatprep.subr.mxu0 0.0
      %5994 = vmatpush1.msra.mxu0 0.0
      %5995 = vmatprep.subr.mxu0 0.0
      %5996 = vmatpush1.msra.mxu0 0.0
      %5997 = vmatprep.subr.mxu0 0.0
      %5998 = vmatpush1.msra.mxu0 0.0
      %5999 = vmatprep.subr.mxu0 0.0
      %6000 = vmatpush1.msra.mxu0 0.0
      %6001 = vmatprep.subr.mxu0 0.0
      %6002 = vmatpush1.msra.mxu0 0.0
      %6003 = vmatprep.subr.mxu0 0.0
      %6004 = vmatpush1.msra.mxu0 0.0
      %6005 = vmatprep.subr.mxu0 0.0
      %6006 = vmatpush1.msra.mxu0 0.0
      %6007 = vmatprep.subr.mxu0 0.0
      %6008 = vmatpush1.msra.mxu0 0.0
      %6009 = vmatprep.subr.mxu0 0.0
      %6010 = vmatpush1.msra.mxu0 0.0
      %6011 = vmatprep.subr.mxu0 0.0
      %6012 = vmatpush1.msra.mxu0 0.0
      %6013 = vmatprep.subr.mxu0 0.0
      %6014 = vmatpush1.msra.mxu0 0.0
      %6015 = vmatprep.subr.mxu0 0.0
      %6016 = vmatpush1.msra.mxu0 0.0
      %6017 = vmatprep.subr.mxu0 0.0
      %6018 = vmatpush1.msra.mxu0 0.0
      %6019 = vmatprep.subr.mxu0 0.0
      %6020 = vmatpush1.msra.mxu0 0.0
      %6021 = vmatprep.subr.mxu0 0.0
      %6022 = vmatpush1.msra.mxu0 0.0
      %6023 = vmatprep.subr.mxu0 0.0
      %6024 = vmatpush1.msra.mxu0 %v5991
      %6025 = vmatprep.subr.mxu0 0.0
      %6026 = vmatpush2.msra.mxu0 0.0
      %6027 = vmatprep.subr.mxu0 0.0
      %6028 = vmatpush2.msra.mxu0 0.0
      %6029 = vmatprep.subr.mxu0 0.0
      %6030 = vmatpush2.msra.mxu0 0.0
      %6031 = vmatprep.subr.mxu0 0.0
      %6032 = vmatpush2.msra.mxu0 0.0
      %6033 = vmatprep.subr.mxu0 0.0
      %6034 = vmatpush2.msra.mxu0 0.0
      %6035 = vmatprep.subr.mxu0 0.0
      %6036 = vmatpush2.msra.mxu0 0.0
      %6037 = vmatprep.subr.mxu0 0.0
      %6038 = vmatpush2.msra.mxu0 0.0
      %6039 = vmatprep.subr.mxu0 0.0
      %6040 = vmatpush2.msra.mxu0 0.0
      %6041 = vmatprep.subr.mxu0 0.0
      %6042 = vmatpush2.msra.mxu0 0.0
      %6043 = vmatprep.subr.mxu0 0.0
      %6044 = vmatpush2.msra.mxu0 0.0
      %6045 = vmatprep.subr.mxu0 0.0
      %6046 = vmatpush2.msra.mxu0 0.0
      %6047 = vmatprep.subr.mxu0 0.0
      %6048 = vmatpush2.msra.mxu0 0.0
      %6049 = vmatprep.subr.mxu0 0.0
      %6050 = vmatpush2.msra.mxu0 0.0
      %6051 = vmatprep.subr.mxu0 0.0
      %6052 = vmatpush2.msra.mxu0 0.0
      %6053 = vmatprep.subr.mxu0 0.0
      %6054 = vmatpush2.msra.mxu0 0.0
      %6055 = vmatprep.subr.mxu0 0.0
      %6056 = vmatpush2.msra.mxu0 0.0
      %6057 = vmatprep.mubr.f32.mxu0 0.0
      %6058 = vmatmul.mubr.f32.gmra.mxu0 %v5883
      %v6059 = vpop.f32.mrf.mxu0
      %v6060 = vadd.f32 0.0, %v6059
      %v6061 = vpop.f32.mrf.mxu0
      %6062 = vmatprep.mubr.f32.mxu0 0.0
      %6063 = vmatmul.mubr.f32.gmra.mxu0 %v5886
      %v6064 = vpop.f32.mrf.mxu0
      %v6065 = vadd.f32 0.0, %v6064
      %v6066 = vpop.f32.mrf.mxu0
      %6067 = vmatprep.mubr.f32.mxu0 0.0
      %6068 = vmatmul.mubr.f32.gmra.mxu0 %v5889
      %v6069 = vpop.f32.mrf.mxu0
      %v6070 = vadd.f32 0.0, %v6069
      %v6071 = vpop.f32.mrf.mxu0
      %6072 = vmatprep.mubr.f32.mxu0 0.0
      %6073 = vmatmul.mubr.f32.gmra.mxu0 %v5892
      %v6074 = vpop.f32.mrf.mxu0
      %v6075 = vadd.f32 0.0, %v6074
      %v6076 = vpop.f32.mrf.mxu0
      %6077 = vmatprep.mubr.f32.mxu0 0.0
      %6078 = vmatmul.mubr.f32.gmra.mxu0 %v5895
      %v6079 = vpop.f32.mrf.mxu0
      %v6080 = vadd.f32 0.0, %v6079
      %v6081 = vpop.f32.mrf.mxu0
      %6082 = vmatprep.mubr.f32.mxu0 0.0
      %6083 = vmatmul.mubr.f32.gmra.mxu0 %v5898
      %v6084 = vpop.f32.mrf.mxu0
      %v6085 = vadd.f32 0.0, %v6084
      %v6086 = vpop.f32.mrf.mxu0
      %6087 = vmatprep.mubr.f32.mxu0 0.0
      %6088 = vmatmul.mubr.f32.gmra.mxu0 %v5901
      %v6089 = vpop.f32.mrf.mxu0
      %v6090 = vadd.f32 0.0, %v6089
      %v6091 = vpop.f32.mrf.mxu0
      %6092 = vmatprep.mubr.f32.mxu0 0.0
      %6093 = vmatmul.mubr.f32.gmra.mxu0 %v5904
      %v6094 = vpop.f32.mrf.mxu0
      %v6095 = vadd.f32 0.0, %v6094
      %v6096 = vpop.f32.mrf.mxu0
      %6097 = vmatprep.mubr.f32.mxu0 0.0
      %6098 = vmatmul.mubr.f32.gmra.mxu0 %v5907
      %v6099 = vpop.f32.mrf.mxu0
      %v6100 = vadd.f32 0.0, %v6099
      %v6101 = vpop.f32.mrf.mxu0
      %6102 = vmatprep.mubr.f32.mxu0 0.0
      %6103 = vmatmul.mubr.f32.gmra.mxu0 %v5910
      %v6104 = vpop.f32.mrf.mxu0
      %v6105 = vadd.f32 0.0, %v6104
      %v6106 = vpop.f32.mrf.mxu0
      %6107 = vmatprep.mubr.f32.mxu0 0.0
      %6108 = vmatmul.mubr.f32.gmra.mxu0 %v5913
      %v6109 = vpop.f32.mrf.mxu0
      %v6110 = vadd.f32 0.0, %v6109
      %v6111 = vpop.f32.mrf.mxu0
      %6112 = vmatprep.mubr.f32.mxu0 0.0
      %6113 = vmatmul.mubr.f32.gmra.mxu0 %v5916
      %v6114 = vpop.f32.mrf.mxu0
      %v6115 = vadd.f32 0.0, %v6114
      %v6116 = vpop.f32.mrf.mxu0
      %6117 = vmatprep.mubr.f32.mxu0 0.0
      %6118 = vmatmul.mubr.f32.gmra.mxu0 %v5919
      %v6119 = vpop.f32.mrf.mxu0
      %v6120 = vadd.f32 0.0, %v6119
      %v6121 = vpop.f32.mrf.mxu0
      %6122 = vmatprep.mubr.f32.mxu0 0.0
      %6123 = vmatmul.mubr.f32.gmra.mxu0 %v5922
      %v6124 = vpop.f32.mrf.mxu0
      %v6125 = vadd.f32 0.0, %v6124
      %v6126 = vpop.f32.mrf.mxu0
      %6127 = vmatprep.mubr.f32.mxu0 0.0
      %6128 = vmatmul.mubr.f32.gmra.mxu0 %v5925
      %v6129 = vpop.f32.mrf.mxu0
      %v6130 = vadd.f32 0.0, %v6129
      %v6131 = vpop.f32.mrf.mxu0
      %6132 = vmatprep.mubr.f32.mxu0 0.0
      %6133 = vmatmul.mubr.f32.gmra.mxu0 %v5928
      %v6134 = vpop.f32.mrf.mxu0
      %v6135 = vadd.f32 0.0, %v6134
      %v6136 = vpop.f32.mrf.mxu0
      %6137 = vmatprep.mubr.f32.mxu0 0.0
      %6138 = vmatmul.mubr.f32.gmra.mxu0 %v5931
      %v6139 = vpop.f32.mrf.mxu0
      %v6140 = vadd.f32 0.0, %v6139
      %v6141 = vpop.f32.mrf.mxu0
      %6142 = vmatprep.mubr.f32.mxu0 0.0
      %6143 = vmatmul.mubr.f32.gmra.mxu0 %v5934
      %v6144 = vpop.f32.mrf.mxu0
      %v6145 = vadd.f32 0.0, %v6144
      %v6146 = vpop.f32.mrf.mxu0
      %6147 = vmatprep.mubr.f32.mxu0 0.0
      %6148 = vmatmul.mubr.f32.gmra.mxu0 %v5937
      %v6149 = vpop.f32.mrf.mxu0
      %v6150 = vadd.f32 0.0, %v6149
      %v6151 = vpop.f32.mrf.mxu0
      %6152 = vmatprep.mubr.f32.mxu0 0.0
      %6153 = vmatmul.mubr.f32.gmra.mxu0 %v5940
      %v6154 = vpop.f32.mrf.mxu0
      %v6155 = vadd.f32 0.0, %v6154
      %v6156 = vpop.f32.mrf.mxu0
      %6157 = vmatprep.mubr.f32.mxu0 0.0
      %6158 = vmatmul.mubr.f32.gmra.mxu0 %v5943
      %v6159 = vpop.f32.mrf.mxu0
      %v6160 = vadd.f32 0.0, %v6159
      %v6161 = vpop.f32.mrf.mxu0
      %6162 = vmatprep.mubr.f32.mxu0 0.0
      %6163 = vmatmul.mubr.f32.gmra.mxu0 %v5946
      %v6164 = vpop.f32.mrf.mxu0
      %v6165 = vadd.f32 0.0, %v6164
      %v6166 = vpop.f32.mrf.mxu0
      %6167 = vmatprep.mubr.f32.mxu0 0.0
      %6168 = vmatmul.mubr.f32.gmra.mxu0 %v5949
      %v6169 = vpop.f32.mrf.mxu0
      %v6170 = vadd.f32 0.0, %v6169
      %v6171 = vpop.f32.mrf.mxu0
      %6172 = vmatprep.mubr.f32.mxu0 0.0
      %6173 = vmatmul.mubr.f32.gmra.mxu0 %v5952
      %v6174 = vpop.f32.mrf.mxu0
      %v6175 = vadd.f32 0.0, %v6174
      %v6176 = vpop.f32.mrf.mxu0
      %6177 = vmatprep.mubr.f32.mxu0 0.0
      %6178 = vmatmul.mubr.f32.gmra.mxu0 %v5955
      %v6179 = vpop.f32.mrf.mxu0
      %v6180 = vadd.f32 0.0, %v6179
      %v6181 = vpop.f32.mrf.mxu0
      %6182 = vmatprep.mubr.f32.mxu0 0.0
      %6183 = vmatmul.mubr.f32.gmra.mxu0 %v5958
      %v6184 = vpop.f32.mrf.mxu0
      %v6185 = vadd.f32 0.0, %v6184
      %v6186 = vpop.f32.mrf.mxu0
      %6187 = vmatprep.mubr.f32.mxu0 0.0
      %6188 = vmatmul.mubr.f32.gmra.mxu0 %v5961
      %v6189 = vpop.f32.mrf.mxu0
      %v6190 = vadd.f32 0.0, %v6189
      %v6191 = vpop.f32.mrf.mxu0
      %6192 = vmatprep.mubr.f32.mxu0 0.0
      %6193 = vmatmul.mubr.f32.gmra.mxu0 %v5964
      %v6194 = vpop.f32.mrf.mxu0
      %v6195 = vadd.f32 0.0, %v6194
      %v6196 = vpop.f32.mrf.mxu0
      %6197 = vmatprep.mubr.f32.mxu0 0.0
      %6198 = vmatmul.mubr.f32.gmra.mxu0 %v5967
      %v6199 = vpop.f32.mrf.mxu0
      %v6200 = vadd.f32 0.0, %v6199
      %v6201 = vpop.f32.mrf.mxu0
      %6202 = vmatprep.mubr.f32.mxu0 0.0
      %6203 = vmatmul.mubr.f32.gmra.mxu0 %v5970
      %v6204 = vpop.f32.mrf.mxu0
      %v6205 = vadd.f32 0.0, %v6204
      %v6206 = vpop.f32.mrf.mxu0
      %6207 = vmatprep.mubr.f32.mxu0 0.0
      %6208 = vmatmul.mubr.f32.gmra.mxu0 %v5973
      %v6209 = vpop.f32.mrf.mxu0
      %v6210 = vadd.f32 0.0, %v6209
      %v6211 = vpop.f32.mrf.mxu0
      %6212 = vmatprep.mubr.f32.mxu0 0.0
      %6213 = vmatmul.mubr.f32.gmra.mxu0 %v5976
      %v6214 = vpop.f32.mrf.mxu0
      %v6215 = vadd.f32 0.0, %v6214
      %v6216 = vpop.f32.mrf.mxu0
      %6217 = vmatprep.mubr.f32.mxu0 0.0
      %6218 = vmatmul.mubr.f32.gmra.mxu0 %v5979
      %v6219 = vpop.f32.mrf.mxu0
      %v6220 = vadd.f32 0.0, %v6219
      %v6221 = vpop.f32.mrf.mxu0
      %6222 = vmatprep.mubr.f32.mxu0 0.0
      %6223 = vmatmul.mubr.f32.gmra.mxu0 %v5982
      %v6224 = vpop.f32.mrf.mxu0
      %v6225 = vadd.f32 0.0, %v6224
      %v6226 = vpop.f32.mrf.mxu0
      %6227 = vmatprep.mubr.f32.mxu0 0.0
      %6228 = vmatmul.mubr.f32.gmra.mxu0 %v5985
      %v6229 = vpop.f32.mrf.mxu0
      %v6230 = vadd.f32 0.0, %v6229
      %v6231 = vpop.f32.mrf.mxu0
      %6232 = vmatprep.mubr.f32.mxu0 0.0
      %6233 = vmatmul.mubr.f32.gmra.mxu0 %v5988
      %v6234 = vpop.f32.mrf.mxu0
      %v6235 = vadd.f32 0.0, %v6234
      %v6236 = vpop.f32.mrf.mxu0
      %6237 = vdwg.mxu0
      %v6238 = vadd.f32 %v5808, %v6060
      %v6239 = vadd.f32 %v5809, %v6065
      %v6240 = vadd.f32 %v5810, %v6070
      %v6241 = vadd.f32 %v5811, %v6075
      %v6242 = vadd.f32 %v5812, %v6080
      %v6243 = vadd.f32 %v5813, %v6085
      %v6244 = vadd.f32 %v5814, %v6090
      %v6245 = vadd.f32 %v5815, %v6095
      %v6246 = vadd.f32 %v5816, %v6100
      %v6247 = vadd.f32 %v5817, %v6105
      %v6248 = vadd.f32 %v5818, %v6110
      %v6249 = vadd.f32 %v5819, %v6115
      %v6250 = vadd.f32 %v5820, %v6120
      %v6251 = vadd.f32 %v5821, %v6125
      %v6252 = vadd.f32 %v5822, %v6130
      %v6253 = vadd.f32 %v5823, %v6135
      %v6254 = vadd.f32 %v5824, %v6140
      %v6255 = vadd.f32 %v5825, %v6145
      %v6256 = vadd.f32 %v5826, %v6150
      %v6257 = vadd.f32 %v5827, %v6155
      %v6258 = vadd.f32 %v5828, %v6160
      %v6259 = vadd.f32 %v5829, %v6165
      %v6260 = vadd.f32 %v5830, %v6170
      %v6261 = vadd.f32 %v5831, %v6175
      %v6262 = vadd.f32 %v5832, %v6180
      %v6263 = vadd.f32 %v5833, %v6185
      %v6264 = vadd.f32 %v5834, %v6190
      %v6265 = vadd.f32 %v5835, %v6195
      %v6266 = vadd.f32 %v5836, %v6200
      %v6267 = vadd.f32 %v5837, %v6205
      %v6268 = vadd.f32 %v5838, %v6210
      %v6269 = vadd.f32 %v5839, %v6215
      %v6270 = vadd.f32 %v5840, %v6220
      %v6271 = vadd.f32 %v5841, %v6225
      %v6272 = vadd.f32 %v5842, %v6230
      %v6273 = vadd.f32 %v5843, %v6235
      %v6274 = vld [vmem:[%s320 + $0x14] sm:$0xff]
      %v6275 = vld [vmem:[%s320 + $0x1c] sm:$0xff]
      %v6276 = vld [vmem:[%s320 + $0x24] sm:$0xff]
      %v6277 = vld [vmem:[%s320 + $0x2c] sm:$0xff]
      %v6278 = vld [vmem:[%s320 + $0x34] sm:$0xff]
      %v6279 = vld [vmem:[%s320 + $0x3c] sm:$0xff]
      %v6280 = vld [vmem:[%s320 + $0x44] sm:$0xff]
      %v6281 = vld [vmem:[%s320 + $0x4c] sm:$0xff]
      %v6282 = vld [vmem:[%s320 + $0x54] sm:$0xff]
      %v6283 = vld [vmem:[%s320 + $0x5c] sm:$0xff]
      %v6284 = vld [vmem:[%s320 + $0x64] sm:$0xff]
      %v6285 = vld [vmem:[%s320 + $0x6c] sm:$0xff]
      %v6286 = vld [vmem:[%s320 + $0x74] sm:$0xff]
      %v6287 = vld [vmem:[%s320 + $0x7c] sm:$0xff]
      %v6288 = vld [vmem:[%s320 + $0x84] sm:$0xff]
      %v6289 = vld [vmem:[%s320 + $0x8c] sm:$0xff]
      %v6290 = vld [vmem:[%s320 + $0x94] sm:$0xff]
      %v6291 = vld [vmem:[%s320 + $0x9c] sm:$0xff]
      %v6292 = vld [vmem:[%s320 + $0xa4] sm:$0xff]
      %v6293 = vld [vmem:[%s320 + $0xac] sm:$0xff]
      %v6294 = vld [vmem:[%s320 + $0xb4] sm:$0xff]
      %v6295 = vld [vmem:[%s320 + $0xbc] sm:$0xff]
      %v6296 = vld [vmem:[%s320 + $0xc4] sm:$0xff]
      %v6297 = vld [vmem:[%s320 + $0xcc] sm:$0xff]
      %v6298 = vld [vmem:[%s320 + $0xd4] sm:$0xff]
      %v6299 = vld [vmem:[%s320 + $0xdc] sm:$0xff]
      %v6300 = vld [vmem:[%s320 + $0xe4] sm:$0xff]
      %v6301 = vld [vmem:[%s320 + $0xec] sm:$0xff]
      %v6302 = vld [vmem:[%s320 + $0xf4] sm:$0xff]
      %v6303 = vld [vmem:[%s320 + $0xfc] sm:$0xff]
      %v6304 = vld [vmem:[%s320 + $0x104] sm:$0xff]
      %v6305 = vld [vmem:[%s320 + $0x10c] sm:$0xff]
      %v6306 = vld [vmem:[%s320 + $0x114] sm:$0xff]
      %v6307 = vld [vmem:[%s320 + $0x11c] sm:$0xff]
      %v6308 = vld [vmem:[%s320 + $0x124] sm:$0xff]
      %v6309 = vld [vmem:[%s320 + $0x12c] sm:$0xff]
      %s6310 = scalar_lea.vmem %s4, 20
      %v6311 = vld [vmem:[%s6310] sm:$0xf]
      %v6313 = vsel %vm401, %v6274, 0
      %v6316 = vsel %vm401, %v6275, 0
      %v6319 = vsel %vm401, %v6276, 0
      %v6322 = vsel %vm401, %v6277, 0
      %v6325 = vsel %vm401, %v6278, 0
      %v6328 = vsel %vm401, %v6279, 0
      %v6331 = vsel %vm401, %v6280, 0
      %v6334 = vsel %vm401, %v6281, 0
      %v6337 = vsel %vm401, %v6282, 0
      %v6340 = vsel %vm401, %v6283, 0
      %v6343 = vsel %vm401, %v6284, 0
      %v6346 = vsel %vm401, %v6285, 0
      %v6349 = vsel %vm401, %v6286, 0
      %v6352 = vsel %vm401, %v6287, 0
      %v6355 = vsel %vm401, %v6288, 0
      %v6358 = vsel %vm401, %v6289, 0
      %v6361 = vsel %vm401, %v6290, 0
      %v6364 = vsel %vm401, %v6291, 0
      %v6367 = vsel %vm401, %v6292, 0
      %v6370 = vsel %vm401, %v6293, 0
      %v6373 = vsel %vm401, %v6294, 0
      %v6376 = vsel %vm401, %v6295, 0
      %v6379 = vsel %vm401, %v6296, 0
      %v6382 = vsel %vm401, %v6297, 0
      %v6385 = vsel %vm401, %v6298, 0
      %v6388 = vsel %vm401, %v6299, 0
      %v6391 = vsel %vm401, %v6300, 0
      %v6394 = vsel %vm401, %v6301, 0
      %v6397 = vsel %vm401, %v6302, 0
      %v6400 = vsel %vm401, %v6303, 0
      %v6403 = vsel %vm401, %v6304, 0
      %v6406 = vsel %vm401, %v6305, 0
      %v6409 = vsel %vm401, %v6306, 0
      %v6412 = vsel %vm401, %v6307, 0
      %v6415 = vsel %vm401, %v6308, 0
      %v6418 = vsel %vm401, %v6309, 0
      %v6421 = vsel %vm510, %v6311, 0
      %6423 = vmatprep.subr.mxu0 0.0
      %6424 = vmatpush1.msra.mxu0 0.0
      %6425 = vmatprep.subr.mxu0 0.0
      %6426 = vmatpush1.msra.mxu0 0.0
      %6427 = vmatprep.subr.mxu0 0.0
      %6428 = vmatpush1.msra.mxu0 0.0
      %6429 = vmatprep.subr.mxu0 0.0
      %6430 = vmatpush1.msra.mxu0 0.0
      %6431 = vmatprep.subr.mxu0 0.0
      %6432 = vmatpush1.msra.mxu0 0.0
      %6433 = vmatprep.subr.mxu0 0.0
      %6434 = vmatpush1.msra.mxu0 0.0
      %6435 = vmatprep.subr.mxu0 0.0
      %6436 = vmatpush1.msra.mxu0 0.0
      %6437 = vmatprep.subr.mxu0 0.0
      %6438 = vmatpush1.msra.mxu0 0.0
      %6439 = vmatprep.subr.mxu0 0.0
      %6440 = vmatpush1.msra.mxu0 0.0
      %6441 = vmatprep.subr.mxu0 0.0
      %6442 = vmatpush1.msra.mxu0 0.0
      %6443 = vmatprep.subr.mxu0 0.0
      %6444 = vmatpush1.msra.mxu0 0.0
      %6445 = vmatprep.subr.mxu0 0.0
      %6446 = vmatpush1.msra.mxu0 0.0
      %6447 = vmatprep.subr.mxu0 0.0
      %6448 = vmatpush1.msra.mxu0 0.0
      %6449 = vmatprep.subr.mxu0 0.0
      %6450 = vmatpush1.msra.mxu0 0.0
      %6451 = vmatprep.subr.mxu0 0.0
      %6452 = vmatpush1.msra.mxu0 0.0
      %6453 = vmatprep.subr.mxu0 0.0
      %6454 = vmatpush1.msra.mxu0 %v6421
      %6455 = vmatprep.subr.mxu0 0.0
      %6456 = vmatpush2.msra.mxu0 0.0
      %6457 = vmatprep.subr.mxu0 0.0
      %6458 = vmatpush2.msra.mxu0 0.0
      %6459 = vmatprep.subr.mxu0 0.0
      %6460 = vmatpush2.msra.mxu0 0.0
      %6461 = vmatprep.subr.mxu0 0.0
      %6462 = vmatpush2.msra.mxu0 0.0
      %6463 = vmatprep.subr.mxu0 0.0
      %6464 = vmatpush2.msra.mxu0 0.0
      %6465 = vmatprep.subr.mxu0 0.0
      %6466 = vmatpush2.msra.mxu0 0.0
      %6467 = vmatprep.subr.mxu0 0.0
      %6468 = vmatpush2.msra.mxu0 0.0
      %6469 = vmatprep.subr.mxu0 0.0
      %6470 = vmatpush2.msra.mxu0 0.0
      %6471 = vmatprep.subr.mxu0 0.0
      %6472 = vmatpush2.msra.mxu0 0.0
      %6473 = vmatprep.subr.mxu0 0.0
      %6474 = vmatpush2.msra.mxu0 0.0
      %6475 = vmatprep.subr.mxu0 0.0
      %6476 = vmatpush2.msra.mxu0 0.0
      %6477 = vmatprep.subr.mxu0 0.0
      %6478 = vmatpush2.msra.mxu0 0.0
      %6479 = vmatprep.subr.mxu0 0.0
      %6480 = vmatpush2.msra.mxu0 0.0
      %6481 = vmatprep.subr.mxu0 0.0
      %6482 = vmatpush2.msra.mxu0 0.0
      %6483 = vmatprep.subr.mxu0 0.0
      %6484 = vmatpush2.msra.mxu0 0.0
      %6485 = vmatprep.subr.mxu0 0.0
      %6486 = vmatpush2.msra.mxu0 0.0
      %6487 = vmatprep.mubr.f32.mxu0 0.0
      %6488 = vmatmul.mubr.f32.gmra.mxu0 %v6313
      %v6489 = vpop.f32.mrf.mxu0
      %v6490 = vadd.f32 0.0, %v6489
      %v6491 = vpop.f32.mrf.mxu0
      %6492 = vmatprep.mubr.f32.mxu0 0.0
      %6493 = vmatmul.mubr.f32.gmra.mxu0 %v6316
      %v6494 = vpop.f32.mrf.mxu0
      %v6495 = vadd.f32 0.0, %v6494
      %v6496 = vpop.f32.mrf.mxu0
      %6497 = vmatprep.mubr.f32.mxu0 0.0
      %6498 = vmatmul.mubr.f32.gmra.mxu0 %v6319
      %v6499 = vpop.f32.mrf.mxu0
      %v6500 = vadd.f32 0.0, %v6499
      %v6501 = vpop.f32.mrf.mxu0
      %6502 = vmatprep.mubr.f32.mxu0 0.0
      %6503 = vmatmul.mubr.f32.gmra.mxu0 %v6322
      %v6504 = vpop.f32.mrf.mxu0
      %v6505 = vadd.f32 0.0, %v6504
      %v6506 = vpop.f32.mrf.mxu0
      %6507 = vmatprep.mubr.f32.mxu0 0.0
      %6508 = vmatmul.mubr.f32.gmra.mxu0 %v6325
      %v6509 = vpop.f32.mrf.mxu0
      %v6510 = vadd.f32 0.0, %v6509
      %v6511 = vpop.f32.mrf.mxu0
      %6512 = vmatprep.mubr.f32.mxu0 0.0
      %6513 = vmatmul.mubr.f32.gmra.mxu0 %v6328
      %v6514 = vpop.f32.mrf.mxu0
      %v6515 = vadd.f32 0.0, %v6514
      %v6516 = vpop.f32.mrf.mxu0
      %6517 = vmatprep.mubr.f32.mxu0 0.0
      %6518 = vmatmul.mubr.f32.gmra.mxu0 %v6331
      %v6519 = vpop.f32.mrf.mxu0
      %v6520 = vadd.f32 0.0, %v6519
      %v6521 = vpop.f32.mrf.mxu0
      %6522 = vmatprep.mubr.f32.mxu0 0.0
      %6523 = vmatmul.mubr.f32.gmra.mxu0 %v6334
      %v6524 = vpop.f32.mrf.mxu0
      %v6525 = vadd.f32 0.0, %v6524
      %v6526 = vpop.f32.mrf.mxu0
      %6527 = vmatprep.mubr.f32.mxu0 0.0
      %6528 = vmatmul.mubr.f32.gmra.mxu0 %v6337
      %v6529 = vpop.f32.mrf.mxu0
      %v6530 = vadd.f32 0.0, %v6529
      %v6531 = vpop.f32.mrf.mxu0
      %6532 = vmatprep.mubr.f32.mxu0 0.0
      %6533 = vmatmul.mubr.f32.gmra.mxu0 %v6340
      %v6534 = vpop.f32.mrf.mxu0
      %v6535 = vadd.f32 0.0, %v6534
      %v6536 = vpop.f32.mrf.mxu0
      %6537 = vmatprep.mubr.f32.mxu0 0.0
      %6538 = vmatmul.mubr.f32.gmra.mxu0 %v6343
      %v6539 = vpop.f32.mrf.mxu0
      %v6540 = vadd.f32 0.0, %v6539
      %v6541 = vpop.f32.mrf.mxu0
      %6542 = vmatprep.mubr.f32.mxu0 0.0
      %6543 = vmatmul.mubr.f32.gmra.mxu0 %v6346
      %v6544 = vpop.f32.mrf.mxu0
      %v6545 = vadd.f32 0.0, %v6544
      %v6546 = vpop.f32.mrf.mxu0
      %6547 = vmatprep.mubr.f32.mxu0 0.0
      %6548 = vmatmul.mubr.f32.gmra.mxu0 %v6349
      %v6549 = vpop.f32.mrf.mxu0
      %v6550 = vadd.f32 0.0, %v6549
      %v6551 = vpop.f32.mrf.mxu0
      %6552 = vmatprep.mubr.f32.mxu0 0.0
      %6553 = vmatmul.mubr.f32.gmra.mxu0 %v6352
      %v6554 = vpop.f32.mrf.mxu0
      %v6555 = vadd.f32 0.0, %v6554
      %v6556 = vpop.f32.mrf.mxu0
      %6557 = vmatprep.mubr.f32.mxu0 0.0
      %6558 = vmatmul.mubr.f32.gmra.mxu0 %v6355
      %v6559 = vpop.f32.mrf.mxu0
      %v6560 = vadd.f32 0.0, %v6559
      %v6561 = vpop.f32.mrf.mxu0
      %6562 = vmatprep.mubr.f32.mxu0 0.0
      %6563 = vmatmul.mubr.f32.gmra.mxu0 %v6358
      %v6564 = vpop.f32.mrf.mxu0
      %v6565 = vadd.f32 0.0, %v6564
      %v6566 = vpop.f32.mrf.mxu0
      %6567 = vmatprep.mubr.f32.mxu0 0.0
      %6568 = vmatmul.mubr.f32.gmra.mxu0 %v6361
      %v6569 = vpop.f32.mrf.mxu0
      %v6570 = vadd.f32 0.0, %v6569
      %v6571 = vpop.f32.mrf.mxu0
      %6572 = vmatprep.mubr.f32.mxu0 0.0
      %6573 = vmatmul.mubr.f32.gmra.mxu0 %v6364
      %v6574 = vpop.f32.mrf.mxu0
      %v6575 = vadd.f32 0.0, %v6574
      %v6576 = vpop.f32.mrf.mxu0
      %6577 = vmatprep.mubr.f32.mxu0 0.0
      %6578 = vmatmul.mubr.f32.gmra.mxu0 %v6367
      %v6579 = vpop.f32.mrf.mxu0
      %v6580 = vadd.f32 0.0, %v6579
      %v6581 = vpop.f32.mrf.mxu0
      %6582 = vmatprep.mubr.f32.mxu0 0.0
      %6583 = vmatmul.mubr.f32.gmra.mxu0 %v6370
      %v6584 = vpop.f32.mrf.mxu0
      %v6585 = vadd.f32 0.0, %v6584
      %v6586 = vpop.f32.mrf.mxu0
      %6587 = vmatprep.mubr.f32.mxu0 0.0
      %6588 = vmatmul.mubr.f32.gmra.mxu0 %v6373
      %v6589 = vpop.f32.mrf.mxu0
      %v6590 = vadd.f32 0.0, %v6589
      %v6591 = vpop.f32.mrf.mxu0
      %6592 = vmatprep.mubr.f32.mxu0 0.0
      %6593 = vmatmul.mubr.f32.gmra.mxu0 %v6376
      %v6594 = vpop.f32.mrf.mxu0
      %v6595 = vadd.f32 0.0, %v6594
      %v6596 = vpop.f32.mrf.mxu0
      %6597 = vmatprep.mubr.f32.mxu0 0.0
      %6598 = vmatmul.mubr.f32.gmra.mxu0 %v6379
      %v6599 = vpop.f32.mrf.mxu0
      %v6600 = vadd.f32 0.0, %v6599
      %v6601 = vpop.f32.mrf.mxu0
      %6602 = vmatprep.mubr.f32.mxu0 0.0
      %6603 = vmatmul.mubr.f32.gmra.mxu0 %v6382
      %v6604 = vpop.f32.mrf.mxu0
      %v6605 = vadd.f32 0.0, %v6604
      %v6606 = vpop.f32.mrf.mxu0
      %6607 = vmatprep.mubr.f32.mxu0 0.0
      %6608 = vmatmul.mubr.f32.gmra.mxu0 %v6385
      %v6609 = vpop.f32.mrf.mxu0
      %v6610 = vadd.f32 0.0, %v6609
      %v6611 = vpop.f32.mrf.mxu0
      %6612 = vmatprep.mubr.f32.mxu0 0.0
      %6613 = vmatmul.mubr.f32.gmra.mxu0 %v6388
      %v6614 = vpop.f32.mrf.mxu0
      %v6615 = vadd.f32 0.0, %v6614
      %v6616 = vpop.f32.mrf.mxu0
      %6617 = vmatprep.mubr.f32.mxu0 0.0
      %6618 = vmatmul.mubr.f32.gmra.mxu0 %v6391
      %v6619 = vpop.f32.mrf.mxu0
      %v6620 = vadd.f32 0.0, %v6619
      %v6621 = vpop.f32.mrf.mxu0
      %6622 = vmatprep.mubr.f32.mxu0 0.0
      %6623 = vmatmul.mubr.f32.gmra.mxu0 %v6394
      %v6624 = vpop.f32.mrf.mxu0
      %v6625 = vadd.f32 0.0, %v6624
      %v6626 = vpop.f32.mrf.mxu0
      %6627 = vmatprep.mubr.f32.mxu0 0.0
      %6628 = vmatmul.mubr.f32.gmra.mxu0 %v6397
      %v6629 = vpop.f32.mrf.mxu0
      %v6630 = vadd.f32 0.0, %v6629
      %v6631 = vpop.f32.mrf.mxu0
      %6632 = vmatprep.mubr.f32.mxu0 0.0
      %6633 = vmatmul.mubr.f32.gmra.mxu0 %v6400
      %v6634 = vpop.f32.mrf.mxu0
      %v6635 = vadd.f32 0.0, %v6634
      %v6636 = vpop.f32.mrf.mxu0
      %6637 = vmatprep.mubr.f32.mxu0 0.0
      %6638 = vmatmul.mubr.f32.gmra.mxu0 %v6403
      %v6639 = vpop.f32.mrf.mxu0
      %v6640 = vadd.f32 0.0, %v6639
      %v6641 = vpop.f32.mrf.mxu0
      %6642 = vmatprep.mubr.f32.mxu0 0.0
      %6643 = vmatmul.mubr.f32.gmra.mxu0 %v6406
      %v6644 = vpop.f32.mrf.mxu0
      %v6645 = vadd.f32 0.0, %v6644
      %v6646 = vpop.f32.mrf.mxu0
      %6647 = vmatprep.mubr.f32.mxu0 0.0
      %6648 = vmatmul.mubr.f32.gmra.mxu0 %v6409
      %v6649 = vpop.f32.mrf.mxu0
      %v6650 = vadd.f32 0.0, %v6649
      %v6651 = vpop.f32.mrf.mxu0
      %6652 = vmatprep.mubr.f32.mxu0 0.0
      %6653 = vmatmul.mubr.f32.gmra.mxu0 %v6412
      %v6654 = vpop.f32.mrf.mxu0
      %v6655 = vadd.f32 0.0, %v6654
      %v6656 = vpop.f32.mrf.mxu0
      %6657 = vmatprep.mubr.f32.mxu0 0.0
      %6658 = vmatmul.mubr.f32.gmra.mxu0 %v6415
      %v6659 = vpop.f32.mrf.mxu0
      %v6660 = vadd.f32 0.0, %v6659
      %v6661 = vpop.f32.mrf.mxu0
      %6662 = vmatprep.mubr.f32.mxu0 0.0
      %6663 = vmatmul.mubr.f32.gmra.mxu0 %v6418
      %v6664 = vpop.f32.mrf.mxu0
      %v6665 = vadd.f32 0.0, %v6664
      %v6666 = vpop.f32.mrf.mxu0
      %6667 = vdwg.mxu0
      %v6668 = vadd.f32 %v6238, %v6490
      %v6669 = vadd.f32 %v6239, %v6495
      %v6670 = vadd.f32 %v6240, %v6500
      %v6671 = vadd.f32 %v6241, %v6505
      %v6672 = vadd.f32 %v6242, %v6510
      %v6673 = vadd.f32 %v6243, %v6515
      %v6674 = vadd.f32 %v6244, %v6520
      %v6675 = vadd.f32 %v6245, %v6525
      %v6676 = vadd.f32 %v6246, %v6530
      %v6677 = vadd.f32 %v6247, %v6535
      %v6678 = vadd.f32 %v6248, %v6540
      %v6679 = vadd.f32 %v6249, %v6545
      %v6680 = vadd.f32 %v6250, %v6550
      %v6681 = vadd.f32 %v6251, %v6555
      %v6682 = vadd.f32 %v6252, %v6560
      %v6683 = vadd.f32 %v6253, %v6565
      %v6684 = vadd.f32 %v6254, %v6570
      %v6685 = vadd.f32 %v6255, %v6575
      %v6686 = vadd.f32 %v6256, %v6580
      %v6687 = vadd.f32 %v6257, %v6585
      %v6688 = vadd.f32 %v6258, %v6590
      %v6689 = vadd.f32 %v6259, %v6595
      %v6690 = vadd.f32 %v6260, %v6600
      %v6691 = vadd.f32 %v6261, %v6605
      %v6692 = vadd.f32 %v6262, %v6610
      %v6693 = vadd.f32 %v6263, %v6615
      %v6694 = vadd.f32 %v6264, %v6620
      %v6695 = vadd.f32 %v6265, %v6625
      %v6696 = vadd.f32 %v6266, %v6630
      %v6697 = vadd.f32 %v6267, %v6635
      %v6698 = vadd.f32 %v6268, %v6640
      %v6699 = vadd.f32 %v6269, %v6645
      %v6700 = vadd.f32 %v6270, %v6650
      %v6701 = vadd.f32 %v6271, %v6655
      %v6702 = vadd.f32 %v6272, %v6660
      %v6703 = vadd.f32 %v6273, %v6665
      %v6704 = vld [vmem:[%s320 + $0x24] sm:$0xff]
      %v6705 = vld [vmem:[%s320 + $0x2c] sm:$0xff]
      %v6706 = vld [vmem:[%s320 + $0x34] sm:$0xff]
      %v6707 = vld [vmem:[%s320 + $0x3c] sm:$0xff]
      %v6708 = vld [vmem:[%s320 + $0x44] sm:$0xff]
      %v6709 = vld [vmem:[%s320 + $0x4c] sm:$0xff]
      %v6710 = vld [vmem:[%s320 + $0x54] sm:$0xff]
      %v6711 = vld [vmem:[%s320 + $0x5c] sm:$0xff]
      %v6712 = vld [vmem:[%s320 + $0x64] sm:$0xff]
      %v6713 = vld [vmem:[%s320 + $0x6c] sm:$0xff]
      %v6714 = vld [vmem:[%s320 + $0x74] sm:$0xff]
      %v6715 = vld [vmem:[%s320 + $0x7c] sm:$0xff]
      %v6716 = vld [vmem:[%s320 + $0x84] sm:$0xff]
      %v6717 = vld [vmem:[%s320 + $0x8c] sm:$0xff]
      %v6718 = vld [vmem:[%s320 + $0x94] sm:$0xff]
      %v6719 = vld [vmem:[%s320 + $0x9c] sm:$0xff]
      %v6720 = vld [vmem:[%s320 + $0xa4] sm:$0xff]
      %v6721 = vld [vmem:[%s320 + $0xac] sm:$0xff]
      %v6722 = vld [vmem:[%s320 + $0xb4] sm:$0xff]
      %v6723 = vld [vmem:[%s320 + $0xbc] sm:$0xff]
      %v6724 = vld [vmem:[%s320 + $0xc4] sm:$0xff]
      %v6725 = vld [vmem:[%s320 + $0xcc] sm:$0xff]
      %v6726 = vld [vmem:[%s320 + $0xd4] sm:$0xff]
      %v6727 = vld [vmem:[%s320 + $0xdc] sm:$0xff]
      %v6728 = vld [vmem:[%s320 + $0xe4] sm:$0xff]
      %v6729 = vld [vmem:[%s320 + $0xec] sm:$0xff]
      %v6730 = vld [vmem:[%s320 + $0xf4] sm:$0xff]
      %v6731 = vld [vmem:[%s320 + $0xfc] sm:$0xff]
      %v6732 = vld [vmem:[%s320 + $0x104] sm:$0xff]
      %v6733 = vld [vmem:[%s320 + $0x10c] sm:$0xff]
      %v6734 = vld [vmem:[%s320 + $0x114] sm:$0xff]
      %v6735 = vld [vmem:[%s320 + $0x11c] sm:$0xff]
      %v6736 = vld [vmem:[%s320 + $0x124] sm:$0xff]
      %v6737 = vld [vmem:[%s320 + $0x12c] sm:$0xff]
      %v6738 = vld [vmem:[%s320 + $0x134] sm:$0xff]
      %v6739 = vld [vmem:[%s320 + $0x13c] sm:$0xff]
      %s6740 = scalar_lea.vmem %s4, 24
      %v6741 = vld [vmem:[%s6740] sm:$0xf]
      %v6743 = vsel %vm401, %v6704, 0
      %v6746 = vsel %vm401, %v6705, 0
      %v6749 = vsel %vm401, %v6706, 0
      %v6752 = vsel %vm401, %v6707, 0
      %v6755 = vsel %vm401, %v6708, 0
      %v6758 = vsel %vm401, %v6709, 0
      %v6761 = vsel %vm401, %v6710, 0
      %v6764 = vsel %vm401, %v6711, 0
      %v6767 = vsel %vm401, %v6712, 0
      %v6770 = vsel %vm401, %v6713, 0
      %v6773 = vsel %vm401, %v6714, 0
      %v6776 = vsel %vm401, %v6715, 0
      %v6779 = vsel %vm401, %v6716, 0
      %v6782 = vsel %vm401, %v6717, 0
      %v6785 = vsel %vm401, %v6718, 0
      %v6788 = vsel %vm401, %v6719, 0
      %v6791 = vsel %vm401, %v6720, 0
      %v6794 = vsel %vm401, %v6721, 0
      %v6797 = vsel %vm401, %v6722, 0
      %v6800 = vsel %vm401, %v6723, 0
      %v6803 = vsel %vm401, %v6724, 0
      %v6806 = vsel %vm401, %v6725, 0
      %v6809 = vsel %vm401, %v6726, 0
      %v6812 = vsel %vm401, %v6727, 0
      %v6815 = vsel %vm401, %v6728, 0
      %v6818 = vsel %vm401, %v6729, 0
      %v6821 = vsel %vm401, %v6730, 0
      %v6824 = vsel %vm401, %v6731, 0
      %v6827 = vsel %vm401, %v6732, 0
      %v6830 = vsel %vm401, %v6733, 0
      %v6833 = vsel %vm401, %v6734, 0
      %v6836 = vsel %vm401, %v6735, 0
      %v6839 = vsel %vm401, %v6736, 0
      %v6842 = vsel %vm401, %v6737, 0
      %v6845 = vsel %vm401, %v6738, 0
      %v6848 = vsel %vm401, %v6739, 0
      %v6851 = vsel %vm510, %v6741, 0
      %6853 = vmatprep.subr.mxu0 0.0
      %6854 = vmatpush1.msra.mxu0 0.0
      %6855 = vmatprep.subr.mxu0 0.0
      %6856 = vmatpush1.msra.mxu0 0.0
      %6857 = vmatprep.subr.mxu0 0.0
      %6858 = vmatpush1.msra.mxu0 0.0
      %6859 = vmatprep.subr.mxu0 0.0
      %6860 = vmatpush1.msra.mxu0 0.0
      %6861 = vmatprep.subr.mxu0 0.0
      %6862 = vmatpush1.msra.mxu0 0.0
      %6863 = vmatprep.subr.mxu0 0.0
      %6864 = vmatpush1.msra.mxu0 0.0
      %6865 = vmatprep.subr.mxu0 0.0
      %6866 = vmatpush1.msra.mxu0 0.0
      %6867 = vmatprep.subr.mxu0 0.0
      %6868 = vmatpush1.msra.mxu0 0.0
      %6869 = vmatprep.subr.mxu0 0.0
      %6870 = vmatpush1.msra.mxu0 0.0
      %6871 = vmatprep.subr.mxu0 0.0
      %6872 = vmatpush1.msra.mxu0 0.0
      %6873 = vmatprep.subr.mxu0 0.0
      %6874 = vmatpush1.msra.mxu0 0.0
      %6875 = vmatprep.subr.mxu0 0.0
      %6876 = vmatpush1.msra.mxu0 0.0
      %6877 = vmatprep.subr.mxu0 0.0
      %6878 = vmatpush1.msra.mxu0 0.0
      %6879 = vmatprep.subr.mxu0 0.0
      %6880 = vmatpush1.msra.mxu0 0.0
      %6881 = vmatprep.subr.mxu0 0.0
      %6882 = vmatpush1.msra.mxu0 0.0
      %6883 = vmatprep.subr.mxu0 0.0
      %6884 = vmatpush1.msra.mxu0 %v6851
      %6885 = vmatprep.subr.mxu0 0.0
      %6886 = vmatpush2.msra.mxu0 0.0
      %6887 = vmatprep.subr.mxu0 0.0
      %6888 = vmatpush2.msra.mxu0 0.0
      %6889 = vmatprep.subr.mxu0 0.0
      %6890 = vmatpush2.msra.mxu0 0.0
      %6891 = vmatprep.subr.mxu0 0.0
      %6892 = vmatpush2.msra.mxu0 0.0
      %6893 = vmatprep.subr.mxu0 0.0
      %6894 = vmatpush2.msra.mxu0 0.0
      %6895 = vmatprep.subr.mxu0 0.0
      %6896 = vmatpush2.msra.mxu0 0.0
      %6897 = vmatprep.subr.mxu0 0.0
      %6898 = vmatpush2.msra.mxu0 0.0
      %6899 = vmatprep.subr.mxu0 0.0
      %6900 = vmatpush2.msra.mxu0 0.0
      %6901 = vmatprep.subr.mxu0 0.0
      %6902 = vmatpush2.msra.mxu0 0.0
      %6903 = vmatprep.subr.mxu0 0.0
      %6904 = vmatpush2.msra.mxu0 0.0
      %6905 = vmatprep.subr.mxu0 0.0
      %6906 = vmatpush2.msra.mxu0 0.0
      %6907 = vmatprep.subr.mxu0 0.0
      %6908 = vmatpush2.msra.mxu0 0.0
      %6909 = vmatprep.subr.mxu0 0.0
      %6910 = vmatpush2.msra.mxu0 0.0
      %6911 = vmatprep.subr.mxu0 0.0
      %6912 = vmatpush2.msra.mxu0 0.0
      %6913 = vmatprep.subr.mxu0 0.0
      %6914 = vmatpush2.msra.mxu0 0.0
      %6915 = vmatprep.subr.mxu0 0.0
      %6916 = vmatpush2.msra.mxu0 0.0
      %6917 = vmatprep.mubr.f32.mxu0 0.0
      %6918 = vmatmul.mubr.f32.gmra.mxu0 %v6743
      %v6919 = vpop.f32.mrf.mxu0
      %v6920 = vadd.f32 0.0, %v6919
      %v6921 = vpop.f32.mrf.mxu0
      %6922 = vmatprep.mubr.f32.mxu0 0.0
      %6923 = vmatmul.mubr.f32.gmra.mxu0 %v6746
      %v6924 = vpop.f32.mrf.mxu0
      %v6925 = vadd.f32 0.0, %v6924
      %v6926 = vpop.f32.mrf.mxu0
      %6927 = vmatprep.mubr.f32.mxu0 0.0
      %6928 = vmatmul.mubr.f32.gmra.mxu0 %v6749
      %v6929 = vpop.f32.mrf.mxu0
      %v6930 = vadd.f32 0.0, %v6929
      %v6931 = vpop.f32.mrf.mxu0
      %6932 = vmatprep.mubr.f32.mxu0 0.0
      %6933 = vmatmul.mubr.f32.gmra.mxu0 %v6752
      %v6934 = vpop.f32.mrf.mxu0
      %v6935 = vadd.f32 0.0, %v6934
      %v6936 = vpop.f32.mrf.mxu0
      %6937 = vmatprep.mubr.f32.mxu0 0.0
      %6938 = vmatmul.mubr.f32.gmra.mxu0 %v6755
      %v6939 = vpop.f32.mrf.mxu0
      %v6940 = vadd.f32 0.0, %v6939
      %v6941 = vpop.f32.mrf.mxu0
      %6942 = vmatprep.mubr.f32.mxu0 0.0
      %6943 = vmatmul.mubr.f32.gmra.mxu0 %v6758
      %v6944 = vpop.f32.mrf.mxu0
      %v6945 = vadd.f32 0.0, %v6944
      %v6946 = vpop.f32.mrf.mxu0
      %6947 = vmatprep.mubr.f32.mxu0 0.0
      %6948 = vmatmul.mubr.f32.gmra.mxu0 %v6761
      %v6949 = vpop.f32.mrf.mxu0
      %v6950 = vadd.f32 0.0, %v6949
      %v6951 = vpop.f32.mrf.mxu0
      %6952 = vmatprep.mubr.f32.mxu0 0.0
      %6953 = vmatmul.mubr.f32.gmra.mxu0 %v6764
      %v6954 = vpop.f32.mrf.mxu0
      %v6955 = vadd.f32 0.0, %v6954
      %v6956 = vpop.f32.mrf.mxu0
      %6957 = vmatprep.mubr.f32.mxu0 0.0
      %6958 = vmatmul.mubr.f32.gmra.mxu0 %v6767
      %v6959 = vpop.f32.mrf.mxu0
      %v6960 = vadd.f32 0.0, %v6959
      %v6961 = vpop.f32.mrf.mxu0
      %6962 = vmatprep.mubr.f32.mxu0 0.0
      %6963 = vmatmul.mubr.f32.gmra.mxu0 %v6770
      %v6964 = vpop.f32.mrf.mxu0
      %v6965 = vadd.f32 0.0, %v6964
      %v6966 = vpop.f32.mrf.mxu0
      %6967 = vmatprep.mubr.f32.mxu0 0.0
      %6968 = vmatmul.mubr.f32.gmra.mxu0 %v6773
      %v6969 = vpop.f32.mrf.mxu0
      %v6970 = vadd.f32 0.0, %v6969
      %v6971 = vpop.f32.mrf.mxu0
      %6972 = vmatprep.mubr.f32.mxu0 0.0
      %6973 = vmatmul.mubr.f32.gmra.mxu0 %v6776
      %v6974 = vpop.f32.mrf.mxu0
      %v6975 = vadd.f32 0.0, %v6974
      %v6976 = vpop.f32.mrf.mxu0
      %6977 = vmatprep.mubr.f32.mxu0 0.0
      %6978 = vmatmul.mubr.f32.gmra.mxu0 %v6779
      %v6979 = vpop.f32.mrf.mxu0
      %v6980 = vadd.f32 0.0, %v6979
      %v6981 = vpop.f32.mrf.mxu0
      %6982 = vmatprep.mubr.f32.mxu0 0.0
      %6983 = vmatmul.mubr.f32.gmra.mxu0 %v6782
      %v6984 = vpop.f32.mrf.mxu0
      %v6985 = vadd.f32 0.0, %v6984
      %v6986 = vpop.f32.mrf.mxu0
      %6987 = vmatprep.mubr.f32.mxu0 0.0
      %6988 = vmatmul.mubr.f32.gmra.mxu0 %v6785
      %v6989 = vpop.f32.mrf.mxu0
      %v6990 = vadd.f32 0.0, %v6989
      %v6991 = vpop.f32.mrf.mxu0
      %6992 = vmatprep.mubr.f32.mxu0 0.0
      %6993 = vmatmul.mubr.f32.gmra.mxu0 %v6788
      %v6994 = vpop.f32.mrf.mxu0
      %v6995 = vadd.f32 0.0, %v6994
      %v6996 = vpop.f32.mrf.mxu0
      %6997 = vmatprep.mubr.f32.mxu0 0.0
      %6998 = vmatmul.mubr.f32.gmra.mxu0 %v6791
      %v6999 = vpop.f32.mrf.mxu0
      %v7000 = vadd.f32 0.0, %v6999
      %v7001 = vpop.f32.mrf.mxu0
      %7002 = vmatprep.mubr.f32.mxu0 0.0
      %7003 = vmatmul.mubr.f32.gmra.mxu0 %v6794
      %v7004 = vpop.f32.mrf.mxu0
      %v7005 = vadd.f32 0.0, %v7004
      %v7006 = vpop.f32.mrf.mxu0
      %7007 = vmatprep.mubr.f32.mxu0 0.0
      %7008 = vmatmul.mubr.f32.gmra.mxu0 %v6797
      %v7009 = vpop.f32.mrf.mxu0
      %v7010 = vadd.f32 0.0, %v7009
      %v7011 = vpop.f32.mrf.mxu0
      %7012 = vmatprep.mubr.f32.mxu0 0.0
      %7013 = vmatmul.mubr.f32.gmra.mxu0 %v6800
      %v7014 = vpop.f32.mrf.mxu0
      %v7015 = vadd.f32 0.0, %v7014
      %v7016 = vpop.f32.mrf.mxu0
      %7017 = vmatprep.mubr.f32.mxu0 0.0
      %7018 = vmatmul.mubr.f32.gmra.mxu0 %v6803
      %v7019 = vpop.f32.mrf.mxu0
      %v7020 = vadd.f32 0.0, %v7019
      %v7021 = vpop.f32.mrf.mxu0
      %7022 = vmatprep.mubr.f32.mxu0 0.0
      %7023 = vmatmul.mubr.f32.gmra.mxu0 %v6806
      %v7024 = vpop.f32.mrf.mxu0
      %v7025 = vadd.f32 0.0, %v7024
      %v7026 = vpop.f32.mrf.mxu0
      %7027 = vmatprep.mubr.f32.mxu0 0.0
      %7028 = vmatmul.mubr.f32.gmra.mxu0 %v6809
      %v7029 = vpop.f32.mrf.mxu0
      %v7030 = vadd.f32 0.0, %v7029
      %v7031 = vpop.f32.mrf.mxu0
      %7032 = vmatprep.mubr.f32.mxu0 0.0
      %7033 = vmatmul.mubr.f32.gmra.mxu0 %v6812
      %v7034 = vpop.f32.mrf.mxu0
      %v7035 = vadd.f32 0.0, %v7034
      %v7036 = vpop.f32.mrf.mxu0
      %7037 = vmatprep.mubr.f32.mxu0 0.0
      %7038 = vmatmul.mubr.f32.gmra.mxu0 %v6815
      %v7039 = vpop.f32.mrf.mxu0
      %v7040 = vadd.f32 0.0, %v7039
      %v7041 = vpop.f32.mrf.mxu0
      %7042 = vmatprep.mubr.f32.mxu0 0.0
      %7043 = vmatmul.mubr.f32.gmra.mxu0 %v6818
      %v7044 = vpop.f32.mrf.mxu0
      %v7045 = vadd.f32 0.0, %v7044
      %v7046 = vpop.f32.mrf.mxu0
      %7047 = vmatprep.mubr.f32.mxu0 0.0
      %7048 = vmatmul.mubr.f32.gmra.mxu0 %v6821
      %v7049 = vpop.f32.mrf.mxu0
      %v7050 = vadd.f32 0.0, %v7049
      %v7051 = vpop.f32.mrf.mxu0
      %7052 = vmatprep.mubr.f32.mxu0 0.0
      %7053 = vmatmul.mubr.f32.gmra.mxu0 %v6824
      %v7054 = vpop.f32.mrf.mxu0
      %v7055 = vadd.f32 0.0, %v7054
      %v7056 = vpop.f32.mrf.mxu0
      %7057 = vmatprep.mubr.f32.mxu0 0.0
      %7058 = vmatmul.mubr.f32.gmra.mxu0 %v6827
      %v7059 = vpop.f32.mrf.mxu0
      %v7060 = vadd.f32 0.0, %v7059
      %v7061 = vpop.f32.mrf.mxu0
      %7062 = vmatprep.mubr.f32.mxu0 0.0
      %7063 = vmatmul.mubr.f32.gmra.mxu0 %v6830
      %v7064 = vpop.f32.mrf.mxu0
      %v7065 = vadd.f32 0.0, %v7064
      %v7066 = vpop.f32.mrf.mxu0
      %7067 = vmatprep.mubr.f32.mxu0 0.0
      %7068 = vmatmul.mubr.f32.gmra.mxu0 %v6833
      %v7069 = vpop.f32.mrf.mxu0
      %v7070 = vadd.f32 0.0, %v7069
      %v7071 = vpop.f32.mrf.mxu0
      %7072 = vmatprep.mubr.f32.mxu0 0.0
      %7073 = vmatmul.mubr.f32.gmra.mxu0 %v6836
      %v7074 = vpop.f32.mrf.mxu0
      %v7075 = vadd.f32 0.0, %v7074
      %v7076 = vpop.f32.mrf.mxu0
      %7077 = vmatprep.mubr.f32.mxu0 0.0
      %7078 = vmatmul.mubr.f32.gmra.mxu0 %v6839
      %v7079 = vpop.f32.mrf.mxu0
      %v7080 = vadd.f32 0.0, %v7079
      %v7081 = vpop.f32.mrf.mxu0
      %7082 = vmatprep.mubr.f32.mxu0 0.0
      %7083 = vmatmul.mubr.f32.gmra.mxu0 %v6842
      %v7084 = vpop.f32.mrf.mxu0
      %v7085 = vadd.f32 0.0, %v7084
      %v7086 = vpop.f32.mrf.mxu0
      %7087 = vmatprep.mubr.f32.mxu0 0.0
      %7088 = vmatmul.mubr.f32.gmra.mxu0 %v6845
      %v7089 = vpop.f32.mrf.mxu0
      %v7090 = vadd.f32 0.0, %v7089
      %v7091 = vpop.f32.mrf.mxu0
      %7092 = vmatprep.mubr.f32.mxu0 0.0
      %7093 = vmatmul.mubr.f32.gmra.mxu0 %v6848
      %v7094 = vpop.f32.mrf.mxu0
      %v7095 = vadd.f32 0.0, %v7094
      %v7096 = vpop.f32.mrf.mxu0
      %7097 = vdwg.mxu0
      %v7098 = vadd.f32 %v6668, %v6920
      %v7099 = vadd.f32 %v6669, %v6925
      %v7100 = vadd.f32 %v6670, %v6930
      %v7101 = vadd.f32 %v6671, %v6935
      %v7102 = vadd.f32 %v6672, %v6940
      %v7103 = vadd.f32 %v6673, %v6945
      %v7104 = vadd.f32 %v6674, %v6950
      %v7105 = vadd.f32 %v6675, %v6955
      %v7106 = vadd.f32 %v6676, %v6960
      %v7107 = vadd.f32 %v6677, %v6965
      %v7108 = vadd.f32 %v6678, %v6970
      %v7109 = vadd.f32 %v6679, %v6975
      %v7110 = vadd.f32 %v6680, %v6980
      %v7111 = vadd.f32 %v6681, %v6985
      %v7112 = vadd.f32 %v6682, %v6990
      %v7113 = vadd.f32 %v6683, %v6995
      %v7114 = vadd.f32 %v6684, %v7000
      %v7115 = vadd.f32 %v6685, %v7005
      %v7116 = vadd.f32 %v6686, %v7010
      %v7117 = vadd.f32 %v6687, %v7015
      %v7118 = vadd.f32 %v6688, %v7020
      %v7119 = vadd.f32 %v6689, %v7025
      %v7120 = vadd.f32 %v6690, %v7030
      %v7121 = vadd.f32 %v6691, %v7035
      %v7122 = vadd.f32 %v6692, %v7040
      %v7123 = vadd.f32 %v6693, %v7045
      %v7124 = vadd.f32 %v6694, %v7050
      %v7125 = vadd.f32 %v6695, %v7055
      %v7126 = vadd.f32 %v6696, %v7060
      %v7127 = vadd.f32 %v6697, %v7065
      %v7128 = vadd.f32 %v6698, %v7070
      %v7129 = vadd.f32 %v6699, %v7075
      %v7130 = vadd.f32 %v6700, %v7080
      %v7131 = vadd.f32 %v6701, %v7085
      %v7132 = vadd.f32 %v6702, %v7090
      %v7133 = vadd.f32 %v6703, %v7095
      %v7134 = vld [vmem:[%s320 + $0x25] sm:$0xff]
      %v7135 = vld [vmem:[%s320 + $0x2d] sm:$0xff]
      %v7136 = vld [vmem:[%s320 + $0x35] sm:$0xff]
      %v7137 = vld [vmem:[%s320 + $0x3d] sm:$0xff]
      %v7138 = vld [vmem:[%s320 + $0x45] sm:$0xff]
      %v7139 = vld [vmem:[%s320 + $0x4d] sm:$0xff]
      %v7140 = vld [vmem:[%s320 + $0x55] sm:$0xff]
      %v7141 = vld [vmem:[%s320 + $0x5d] sm:$0xff]
      %v7142 = vld [vmem:[%s320 + $0x65] sm:$0xff]
      %v7143 = vld [vmem:[%s320 + $0x6d] sm:$0xff]
      %v7144 = vld [vmem:[%s320 + $0x75] sm:$0xff]
      %v7145 = vld [vmem:[%s320 + $0x7d] sm:$0xff]
      %v7146 = vld [vmem:[%s320 + $0x85] sm:$0xff]
      %v7147 = vld [vmem:[%s320 + $0x8d] sm:$0xff]
      %v7148 = vld [vmem:[%s320 + $0x95] sm:$0xff]
      %v7149 = vld [vmem:[%s320 + $0x9d] sm:$0xff]
      %v7150 = vld [vmem:[%s320 + $0xa5] sm:$0xff]
      %v7151 = vld [vmem:[%s320 + $0xad] sm:$0xff]
      %v7152 = vld [vmem:[%s320 + $0xb5] sm:$0xff]
      %v7153 = vld [vmem:[%s320 + $0xbd] sm:$0xff]
      %v7154 = vld [vmem:[%s320 + $0xc5] sm:$0xff]
      %v7155 = vld [vmem:[%s320 + $0xcd] sm:$0xff]
      %v7156 = vld [vmem:[%s320 + $0xd5] sm:$0xff]
      %v7157 = vld [vmem:[%s320 + $0xdd] sm:$0xff]
      %v7158 = vld [vmem:[%s320 + $0xe5] sm:$0xff]
      %v7159 = vld [vmem:[%s320 + $0xed] sm:$0xff]
      %v7160 = vld [vmem:[%s320 + $0xf5] sm:$0xff]
      %v7161 = vld [vmem:[%s320 + $0xfd] sm:$0xff]
      %v7162 = vld [vmem:[%s320 + $0x105] sm:$0xff]
      %v7163 = vld [vmem:[%s320 + $0x10d] sm:$0xff]
      %v7164 = vld [vmem:[%s320 + $0x115] sm:$0xff]
      %v7165 = vld [vmem:[%s320 + $0x11d] sm:$0xff]
      %v7166 = vld [vmem:[%s320 + $0x125] sm:$0xff]
      %v7167 = vld [vmem:[%s320 + $0x12d] sm:$0xff]
      %v7168 = vld [vmem:[%s320 + $0x135] sm:$0xff]
      %v7169 = vld [vmem:[%s320 + $0x13d] sm:$0xff]
      %s7170 = scalar_lea.vmem %s4, 28
      %v7171 = vld [vmem:[%s7170] sm:$0xf]
      %v7173 = vsel %vm401, %v7134, 0
      %v7176 = vsel %vm401, %v7135, 0
      %v7179 = vsel %vm401, %v7136, 0
      %v7182 = vsel %vm401, %v7137, 0
      %v7185 = vsel %vm401, %v7138, 0
      %v7188 = vsel %vm401, %v7139, 0
      %v7191 = vsel %vm401, %v7140, 0
      %v7194 = vsel %vm401, %v7141, 0
      %v7197 = vsel %vm401, %v7142, 0
      %v7200 = vsel %vm401, %v7143, 0
      %v7203 = vsel %vm401, %v7144, 0
      %v7206 = vsel %vm401, %v7145, 0
      %v7209 = vsel %vm401, %v7146, 0
      %v7212 = vsel %vm401, %v7147, 0
      %v7215 = vsel %vm401, %v7148, 0
      %v7218 = vsel %vm401, %v7149, 0
      %v7221 = vsel %vm401, %v7150, 0
      %v7224 = vsel %vm401, %v7151, 0
      %v7227 = vsel %vm401, %v7152, 0
      %v7230 = vsel %vm401, %v7153, 0
      %v7233 = vsel %vm401, %v7154, 0
      %v7236 = vsel %vm401, %v7155, 0
      %v7239 = vsel %vm401, %v7156, 0
      %v7242 = vsel %vm401, %v7157, 0
      %v7245 = vsel %vm401, %v7158, 0
      %v7248 = vsel %vm401, %v7159, 0
      %v7251 = vsel %vm401, %v7160, 0
      %v7254 = vsel %vm401, %v7161, 0
      %v7257 = vsel %vm401, %v7162, 0
      %v7260 = vsel %vm401, %v7163, 0
      %v7263 = vsel %vm401, %v7164, 0
      %v7266 = vsel %vm401, %v7165, 0
      %v7269 = vsel %vm401, %v7166, 0
      %v7272 = vsel %vm401, %v7167, 0
      %v7275 = vsel %vm401, %v7168, 0
      %v7278 = vsel %vm401, %v7169, 0
      %v7281 = vsel %vm510, %v7171, 0
      %7283 = vmatprep.subr.mxu0 0.0
      %7284 = vmatpush1.msra.mxu0 0.0
      %7285 = vmatprep.subr.mxu0 0.0
      %7286 = vmatpush1.msra.mxu0 0.0
      %7287 = vmatprep.subr.mxu0 0.0
      %7288 = vmatpush1.msra.mxu0 0.0
      %7289 = vmatprep.subr.mxu0 0.0
      %7290 = vmatpush1.msra.mxu0 0.0
      %7291 = vmatprep.subr.mxu0 0.0
      %7292 = vmatpush1.msra.mxu0 0.0
      %7293 = vmatprep.subr.mxu0 0.0
      %7294 = vmatpush1.msra.mxu0 0.0
      %7295 = vmatprep.subr.mxu0 0.0
      %7296 = vmatpush1.msra.mxu0 0.0
      %7297 = vmatprep.subr.mxu0 0.0
      %7298 = vmatpush1.msra.mxu0 0.0
      %7299 = vmatprep.subr.mxu0 0.0
      %7300 = vmatpush1.msra.mxu0 0.0
      %7301 = vmatprep.subr.mxu0 0.0
      %7302 = vmatpush1.msra.mxu0 0.0
      %7303 = vmatprep.subr.mxu0 0.0
      %7304 = vmatpush1.msra.mxu0 0.0
      %7305 = vmatprep.subr.mxu0 0.0
      %7306 = vmatpush1.msra.mxu0 0.0
      %7307 = vmatprep.subr.mxu0 0.0
      %7308 = vmatpush1.msra.mxu0 0.0
      %7309 = vmatprep.subr.mxu0 0.0
      %7310 = vmatpush1.msra.mxu0 0.0
      %7311 = vmatprep.subr.mxu0 0.0
      %7312 = vmatpush1.msra.mxu0 0.0
      %7313 = vmatprep.subr.mxu0 0.0
      %7314 = vmatpush1.msra.mxu0 %v7281
      %7315 = vmatprep.subr.mxu0 0.0
      %7316 = vmatpush2.msra.mxu0 0.0
      %7317 = vmatprep.subr.mxu0 0.0
      %7318 = vmatpush2.msra.mxu0 0.0
      %7319 = vmatprep.subr.mxu0 0.0
      %7320 = vmatpush2.msra.mxu0 0.0
      %7321 = vmatprep.subr.mxu0 0.0
      %7322 = vmatpush2.msra.mxu0 0.0
      %7323 = vmatprep.subr.mxu0 0.0
      %7324 = vmatpush2.msra.mxu0 0.0
      %7325 = vmatprep.subr.mxu0 0.0
      %7326 = vmatpush2.msra.mxu0 0.0
      %7327 = vmatprep.subr.mxu0 0.0
      %7328 = vmatpush2.msra.mxu0 0.0
      %7329 = vmatprep.subr.mxu0 0.0
      %7330 = vmatpush2.msra.mxu0 0.0
      %7331 = vmatprep.subr.mxu0 0.0
      %7332 = vmatpush2.msra.mxu0 0.0
      %7333 = vmatprep.subr.mxu0 0.0
      %7334 = vmatpush2.msra.mxu0 0.0
      %7335 = vmatprep.subr.mxu0 0.0
      %7336 = vmatpush2.msra.mxu0 0.0
      %7337 = vmatprep.subr.mxu0 0.0
      %7338 = vmatpush2.msra.mxu0 0.0
      %7339 = vmatprep.subr.mxu0 0.0
      %7340 = vmatpush2.msra.mxu0 0.0
      %7341 = vmatprep.subr.mxu0 0.0
      %7342 = vmatpush2.msra.mxu0 0.0
      %7343 = vmatprep.subr.mxu0 0.0
      %7344 = vmatpush2.msra.mxu0 0.0
      %7345 = vmatprep.subr.mxu0 0.0
      %7346 = vmatpush2.msra.mxu0 0.0
      %7347 = vmatprep.mubr.f32.mxu0 0.0
      %7348 = vmatmul.mubr.f32.gmra.mxu0 %v7173
      %v7349 = vpop.f32.mrf.mxu0
      %v7350 = vadd.f32 0.0, %v7349
      %v7351 = vpop.f32.mrf.mxu0
      %7352 = vmatprep.mubr.f32.mxu0 0.0
      %7353 = vmatmul.mubr.f32.gmra.mxu0 %v7176
      %v7354 = vpop.f32.mrf.mxu0
      %v7355 = vadd.f32 0.0, %v7354
      %v7356 = vpop.f32.mrf.mxu0
      %7357 = vmatprep.mubr.f32.mxu0 0.0
      %7358 = vmatmul.mubr.f32.gmra.mxu0 %v7179
      %v7359 = vpop.f32.mrf.mxu0
      %v7360 = vadd.f32 0.0, %v7359
      %v7361 = vpop.f32.mrf.mxu0
      %7362 = vmatprep.mubr.f32.mxu0 0.0
      %7363 = vmatmul.mubr.f32.gmra.mxu0 %v7182
      %v7364 = vpop.f32.mrf.mxu0
      %v7365 = vadd.f32 0.0, %v7364
      %v7366 = vpop.f32.mrf.mxu0
      %7367 = vmatprep.mubr.f32.mxu0 0.0
      %7368 = vmatmul.mubr.f32.gmra.mxu0 %v7185
      %v7369 = vpop.f32.mrf.mxu0
      %v7370 = vadd.f32 0.0, %v7369
      %v7371 = vpop.f32.mrf.mxu0
      %7372 = vmatprep.mubr.f32.mxu0 0.0
      %7373 = vmatmul.mubr.f32.gmra.mxu0 %v7188
      %v7374 = vpop.f32.mrf.mxu0
      %v7375 = vadd.f32 0.0, %v7374
      %v7376 = vpop.f32.mrf.mxu0
      %7377 = vmatprep.mubr.f32.mxu0 0.0
      %7378 = vmatmul.mubr.f32.gmra.mxu0 %v7191
      %v7379 = vpop.f32.mrf.mxu0
      %v7380 = vadd.f32 0.0, %v7379
      %v7381 = vpop.f32.mrf.mxu0
      %7382 = vmatprep.mubr.f32.mxu0 0.0
      %7383 = vmatmul.mubr.f32.gmra.mxu0 %v7194
      %v7384 = vpop.f32.mrf.mxu0
      %v7385 = vadd.f32 0.0, %v7384
      %v7386 = vpop.f32.mrf.mxu0
      %7387 = vmatprep.mubr.f32.mxu0 0.0
      %7388 = vmatmul.mubr.f32.gmra.mxu0 %v7197
      %v7389 = vpop.f32.mrf.mxu0
      %v7390 = vadd.f32 0.0, %v7389
      %v7391 = vpop.f32.mrf.mxu0
      %7392 = vmatprep.mubr.f32.mxu0 0.0
      %7393 = vmatmul.mubr.f32.gmra.mxu0 %v7200
      %v7394 = vpop.f32.mrf.mxu0
      %v7395 = vadd.f32 0.0, %v7394
      %v7396 = vpop.f32.mrf.mxu0
      %7397 = vmatprep.mubr.f32.mxu0 0.0
      %7398 = vmatmul.mubr.f32.gmra.mxu0 %v7203
      %v7399 = vpop.f32.mrf.mxu0
      %v7400 = vadd.f32 0.0, %v7399
      %v7401 = vpop.f32.mrf.mxu0
      %7402 = vmatprep.mubr.f32.mxu0 0.0
      %7403 = vmatmul.mubr.f32.gmra.mxu0 %v7206
      %v7404 = vpop.f32.mrf.mxu0
      %v7405 = vadd.f32 0.0, %v7404
      %v7406 = vpop.f32.mrf.mxu0
      %7407 = vmatprep.mubr.f32.mxu0 0.0
      %7408 = vmatmul.mubr.f32.gmra.mxu0 %v7209
      %v7409 = vpop.f32.mrf.mxu0
      %v7410 = vadd.f32 0.0, %v7409
      %v7411 = vpop.f32.mrf.mxu0
      %7412 = vmatprep.mubr.f32.mxu0 0.0
      %7413 = vmatmul.mubr.f32.gmra.mxu0 %v7212
      %v7414 = vpop.f32.mrf.mxu0
      %v7415 = vadd.f32 0.0, %v7414
      %v7416 = vpop.f32.mrf.mxu0
      %7417 = vmatprep.mubr.f32.mxu0 0.0
      %7418 = vmatmul.mubr.f32.gmra.mxu0 %v7215
      %v7419 = vpop.f32.mrf.mxu0
      %v7420 = vadd.f32 0.0, %v7419
      %v7421 = vpop.f32.mrf.mxu0
      %7422 = vmatprep.mubr.f32.mxu0 0.0
      %7423 = vmatmul.mubr.f32.gmra.mxu0 %v7218
      %v7424 = vpop.f32.mrf.mxu0
      %v7425 = vadd.f32 0.0, %v7424
      %v7426 = vpop.f32.mrf.mxu0
      %7427 = vmatprep.mubr.f32.mxu0 0.0
      %7428 = vmatmul.mubr.f32.gmra.mxu0 %v7221
      %v7429 = vpop.f32.mrf.mxu0
      %v7430 = vadd.f32 0.0, %v7429
      %v7431 = vpop.f32.mrf.mxu0
      %7432 = vmatprep.mubr.f32.mxu0 0.0
      %7433 = vmatmul.mubr.f32.gmra.mxu0 %v7224
      %v7434 = vpop.f32.mrf.mxu0
      %v7435 = vadd.f32 0.0, %v7434
      %v7436 = vpop.f32.mrf.mxu0
      %7437 = vmatprep.mubr.f32.mxu0 0.0
      %7438 = vmatmul.mubr.f32.gmra.mxu0 %v7227
      %v7439 = vpop.f32.mrf.mxu0
      %v7440 = vadd.f32 0.0, %v7439
      %v7441 = vpop.f32.mrf.mxu0
      %7442 = vmatprep.mubr.f32.mxu0 0.0
      %7443 = vmatmul.mubr.f32.gmra.mxu0 %v7230
      %v7444 = vpop.f32.mrf.mxu0
      %v7445 = vadd.f32 0.0, %v7444
      %v7446 = vpop.f32.mrf.mxu0
      %7447 = vmatprep.mubr.f32.mxu0 0.0
      %7448 = vmatmul.mubr.f32.gmra.mxu0 %v7233
      %v7449 = vpop.f32.mrf.mxu0
      %v7450 = vadd.f32 0.0, %v7449
      %v7451 = vpop.f32.mrf.mxu0
      %7452 = vmatprep.mubr.f32.mxu0 0.0
      %7453 = vmatmul.mubr.f32.gmra.mxu0 %v7236
      %v7454 = vpop.f32.mrf.mxu0
      %v7455 = vadd.f32 0.0, %v7454
      %v7456 = vpop.f32.mrf.mxu0
      %7457 = vmatprep.mubr.f32.mxu0 0.0
      %7458 = vmatmul.mubr.f32.gmra.mxu0 %v7239
      %v7459 = vpop.f32.mrf.mxu0
      %v7460 = vadd.f32 0.0, %v7459
      %v7461 = vpop.f32.mrf.mxu0
      %7462 = vmatprep.mubr.f32.mxu0 0.0
      %7463 = vmatmul.mubr.f32.gmra.mxu0 %v7242
      %v7464 = vpop.f32.mrf.mxu0
      %v7465 = vadd.f32 0.0, %v7464
      %v7466 = vpop.f32.mrf.mxu0
      %7467 = vmatprep.mubr.f32.mxu0 0.0
      %7468 = vmatmul.mubr.f32.gmra.mxu0 %v7245
      %v7469 = vpop.f32.mrf.mxu0
      %v7470 = vadd.f32 0.0, %v7469
      %v7471 = vpop.f32.mrf.mxu0
      %7472 = vmatprep.mubr.f32.mxu0 0.0
      %7473 = vmatmul.mubr.f32.gmra.mxu0 %v7248
      %v7474 = vpop.f32.mrf.mxu0
      %v7475 = vadd.f32 0.0, %v7474
      %v7476 = vpop.f32.mrf.mxu0
      %7477 = vmatprep.mubr.f32.mxu0 0.0
      %7478 = vmatmul.mubr.f32.gmra.mxu0 %v7251
      %v7479 = vpop.f32.mrf.mxu0
      %v7480 = vadd.f32 0.0, %v7479
      %v7481 = vpop.f32.mrf.mxu0
      %7482 = vmatprep.mubr.f32.mxu0 0.0
      %7483 = vmatmul.mubr.f32.gmra.mxu0 %v7254
      %v7484 = vpop.f32.mrf.mxu0
      %v7485 = vadd.f32 0.0, %v7484
      %v7486 = vpop.f32.mrf.mxu0
      %7487 = vmatprep.mubr.f32.mxu0 0.0
      %7488 = vmatmul.mubr.f32.gmra.mxu0 %v7257
      %v7489 = vpop.f32.mrf.mxu0
      %v7490 = vadd.f32 0.0, %v7489
      %v7491 = vpop.f32.mrf.mxu0
      %7492 = vmatprep.mubr.f32.mxu0 0.0
      %7493 = vmatmul.mubr.f32.gmra.mxu0 %v7260
      %v7494 = vpop.f32.mrf.mxu0
      %v7495 = vadd.f32 0.0, %v7494
      %v7496 = vpop.f32.mrf.mxu0
      %7497 = vmatprep.mubr.f32.mxu0 0.0
      %7498 = vmatmul.mubr.f32.gmra.mxu0 %v7263
      %v7499 = vpop.f32.mrf.mxu0
      %v7500 = vadd.f32 0.0, %v7499
      %v7501 = vpop.f32.mrf.mxu0
      %7502 = vmatprep.mubr.f32.mxu0 0.0
      %7503 = vmatmul.mubr.f32.gmra.mxu0 %v7266
      %v7504 = vpop.f32.mrf.mxu0
      %v7505 = vadd.f32 0.0, %v7504
      %v7506 = vpop.f32.mrf.mxu0
      %7507 = vmatprep.mubr.f32.mxu0 0.0
      %7508 = vmatmul.mubr.f32.gmra.mxu0 %v7269
      %v7509 = vpop.f32.mrf.mxu0
      %v7510 = vadd.f32 0.0, %v7509
      %v7511 = vpop.f32.mrf.mxu0
      %7512 = vmatprep.mubr.f32.mxu0 0.0
      %7513 = vmatmul.mubr.f32.gmra.mxu0 %v7272
      %v7514 = vpop.f32.mrf.mxu0
      %v7515 = vadd.f32 0.0, %v7514
      %v7516 = vpop.f32.mrf.mxu0
      %7517 = vmatprep.mubr.f32.mxu0 0.0
      %7518 = vmatmul.mubr.f32.gmra.mxu0 %v7275
      %v7519 = vpop.f32.mrf.mxu0
      %v7520 = vadd.f32 0.0, %v7519
      %v7521 = vpop.f32.mrf.mxu0
      %7522 = vmatprep.mubr.f32.mxu0 0.0
      %7523 = vmatmul.mubr.f32.gmra.mxu0 %v7278
      %v7524 = vpop.f32.mrf.mxu0
      %v7525 = vadd.f32 0.0, %v7524
      %v7526 = vpop.f32.mrf.mxu0
      %7527 = vdwg.mxu0
      %v7528 = vadd.f32 %v7098, %v7350
      %v7529 = vadd.f32 %v7099, %v7355
      %v7530 = vadd.f32 %v7100, %v7360
      %v7531 = vadd.f32 %v7101, %v7365
      %v7532 = vadd.f32 %v7102, %v7370
      %v7533 = vadd.f32 %v7103, %v7375
      %v7534 = vadd.f32 %v7104, %v7380
      %v7535 = vadd.f32 %v7105, %v7385
      %v7536 = vadd.f32 %v7106, %v7390
      %v7537 = vadd.f32 %v7107, %v7395
      %v7538 = vadd.f32 %v7108, %v7400
      %v7539 = vadd.f32 %v7109, %v7405
      %v7540 = vadd.f32 %v7110, %v7410
      %v7541 = vadd.f32 %v7111, %v7415
      %v7542 = vadd.f32 %v7112, %v7420
      %v7543 = vadd.f32 %v7113, %v7425
      %v7544 = vadd.f32 %v7114, %v7430
      %v7545 = vadd.f32 %v7115, %v7435
      %v7546 = vadd.f32 %v7116, %v7440
      %v7547 = vadd.f32 %v7117, %v7445
      %v7548 = vadd.f32 %v7118, %v7450
      %v7549 = vadd.f32 %v7119, %v7455
      %v7550 = vadd.f32 %v7120, %v7460
      %v7551 = vadd.f32 %v7121, %v7465
      %v7552 = vadd.f32 %v7122, %v7470
      %v7553 = vadd.f32 %v7123, %v7475
      %v7554 = vadd.f32 %v7124, %v7480
      %v7555 = vadd.f32 %v7125, %v7485
      %v7556 = vadd.f32 %v7126, %v7490
      %v7557 = vadd.f32 %v7127, %v7495
      %v7558 = vadd.f32 %v7128, %v7500
      %v7559 = vadd.f32 %v7129, %v7505
      %v7560 = vadd.f32 %v7130, %v7510
      %v7561 = vadd.f32 %v7131, %v7515
      %v7562 = vadd.f32 %v7132, %v7520
      %v7563 = vadd.f32 %v7133, %v7525
      %v7564 = vld [vmem:[%s320 + $0x26] sm:$0xff]
      %v7565 = vld [vmem:[%s320 + $0x2e] sm:$0xff]
      %v7566 = vld [vmem:[%s320 + $0x36] sm:$0xff]
      %v7567 = vld [vmem:[%s320 + $0x3e] sm:$0xff]
      %v7568 = vld [vmem:[%s320 + $0x46] sm:$0xff]
      %v7569 = vld [vmem:[%s320 + $0x4e] sm:$0xff]
      %v7570 = vld [vmem:[%s320 + $0x56] sm:$0xff]
      %v7571 = vld [vmem:[%s320 + $0x5e] sm:$0xff]
      %v7572 = vld [vmem:[%s320 + $0x66] sm:$0xff]
      %v7573 = vld [vmem:[%s320 + $0x6e] sm:$0xff]
      %v7574 = vld [vmem:[%s320 + $0x76] sm:$0xff]
      %v7575 = vld [vmem:[%s320 + $0x7e] sm:$0xff]
      %v7576 = vld [vmem:[%s320 + $0x86] sm:$0xff]
      %v7577 = vld [vmem:[%s320 + $0x8e] sm:$0xff]
      %v7578 = vld [vmem:[%s320 + $0x96] sm:$0xff]
      %v7579 = vld [vmem:[%s320 + $0x9e] sm:$0xff]
      %v7580 = vld [vmem:[%s320 + $0xa6] sm:$0xff]
      %v7581 = vld [vmem:[%s320 + $0xae] sm:$0xff]
      %v7582 = vld [vmem:[%s320 + $0xb6] sm:$0xff]
      %v7583 = vld [vmem:[%s320 + $0xbe] sm:$0xff]
      %v7584 = vld [vmem:[%s320 + $0xc6] sm:$0xff]
      %v7585 = vld [vmem:[%s320 + $0xce] sm:$0xff]
      %v7586 = vld [vmem:[%s320 + $0xd6] sm:$0xff]
      %v7587 = vld [vmem:[%s320 + $0xde] sm:$0xff]
      %v7588 = vld [vmem:[%s320 + $0xe6] sm:$0xff]
      %v7589 = vld [vmem:[%s320 + $0xee] sm:$0xff]
      %v7590 = vld [vmem:[%s320 + $0xf6] sm:$0xff]
      %v7591 = vld [vmem:[%s320 + $0xfe] sm:$0xff]
      %v7592 = vld [vmem:[%s320 + $0x106] sm:$0xff]
      %v7593 = vld [vmem:[%s320 + $0x10e] sm:$0xff]
      %v7594 = vld [vmem:[%s320 + $0x116] sm:$0xff]
      %v7595 = vld [vmem:[%s320 + $0x11e] sm:$0xff]
      %v7596 = vld [vmem:[%s320 + $0x126] sm:$0xff]
      %v7597 = vld [vmem:[%s320 + $0x12e] sm:$0xff]
      %v7598 = vld [vmem:[%s320 + $0x136] sm:$0xff]
      %v7599 = vld [vmem:[%s320 + $0x13e] sm:$0xff]
      %s7600 = scalar_lea.vmem %s4, 32
      %v7601 = vld [vmem:[%s7600] sm:$0xf]
      %v7603 = vsel %vm401, %v7564, 0
      %v7606 = vsel %vm401, %v7565, 0
      %v7609 = vsel %vm401, %v7566, 0
      %v7612 = vsel %vm401, %v7567, 0
      %v7615 = vsel %vm401, %v7568, 0
      %v7618 = vsel %vm401, %v7569, 0
      %v7621 = vsel %vm401, %v7570, 0
      %v7624 = vsel %vm401, %v7571, 0
      %v7627 = vsel %vm401, %v7572, 0
      %v7630 = vsel %vm401, %v7573, 0
      %v7633 = vsel %vm401, %v7574, 0
      %v7636 = vsel %vm401, %v7575, 0
      %v7639 = vsel %vm401, %v7576, 0
      %v7642 = vsel %vm401, %v7577, 0
      %v7645 = vsel %vm401, %v7578, 0
      %v7648 = vsel %vm401, %v7579, 0
      %v7651 = vsel %vm401, %v7580, 0
      %v7654 = vsel %vm401, %v7581, 0
      %v7657 = vsel %vm401, %v7582, 0
      %v7660 = vsel %vm401, %v7583, 0
      %v7663 = vsel %vm401, %v7584, 0
      %v7666 = vsel %vm401, %v7585, 0
      %v7669 = vsel %vm401, %v7586, 0
      %v7672 = vsel %vm401, %v7587, 0
      %v7675 = vsel %vm401, %v7588, 0
      %v7678 = vsel %vm401, %v7589, 0
      %v7681 = vsel %vm401, %v7590, 0
      %v7684 = vsel %vm401, %v7591, 0
      %v7687 = vsel %vm401, %v7592, 0
      %v7690 = vsel %vm401, %v7593, 0
      %v7693 = vsel %vm401, %v7594, 0
      %v7696 = vsel %vm401, %v7595, 0
      %v7699 = vsel %vm401, %v7596, 0
      %v7702 = vsel %vm401, %v7597, 0
      %v7705 = vsel %vm401, %v7598, 0
      %v7708 = vsel %vm401, %v7599, 0
      %v7711 = vsel %vm510, %v7601, 0
      %7713 = vmatprep.subr.mxu0 0.0
      %7714 = vmatpush1.msra.mxu0 0.0
      %7715 = vmatprep.subr.mxu0 0.0
      %7716 = vmatpush1.msra.mxu0 0.0
      %7717 = vmatprep.subr.mxu0 0.0
      %7718 = vmatpush1.msra.mxu0 0.0
      %7719 = vmatprep.subr.mxu0 0.0
      %7720 = vmatpush1.msra.mxu0 0.0
      %7721 = vmatprep.subr.mxu0 0.0
      %7722 = vmatpush1.msra.mxu0 0.0
      %7723 = vmatprep.subr.mxu0 0.0
      %7724 = vmatpush1.msra.mxu0 0.0
      %7725 = vmatprep.subr.mxu0 0.0
      %7726 = vmatpush1.msra.mxu0 0.0
      %7727 = vmatprep.subr.mxu0 0.0
      %7728 = vmatpush1.msra.mxu0 0.0
      %7729 = vmatprep.subr.mxu0 0.0
      %7730 = vmatpush1.msra.mxu0 0.0
      %7731 = vmatprep.subr.mxu0 0.0
      %7732 = vmatpush1.msra.mxu0 0.0
      %7733 = vmatprep.subr.mxu0 0.0
      %7734 = vmatpush1.msra.mxu0 0.0
      %7735 = vmatprep.subr.mxu0 0.0
      %7736 = vmatpush1.msra.mxu0 0.0
      %7737 = vmatprep.subr.mxu0 0.0
      %7738 = vmatpush1.msra.mxu0 0.0
      %7739 = vmatprep.subr.mxu0 0.0
      %7740 = vmatpush1.msra.mxu0 0.0
      %7741 = vmatprep.subr.mxu0 0.0
      %7742 = vmatpush1.msra.mxu0 0.0
      %7743 = vmatprep.subr.mxu0 0.0
      %7744 = vmatpush1.msra.mxu0 %v7711
      %7745 = vmatprep.subr.mxu0 0.0
      %7746 = vmatpush2.msra.mxu0 0.0
      %7747 = vmatprep.subr.mxu0 0.0
      %7748 = vmatpush2.msra.mxu0 0.0
      %7749 = vmatprep.subr.mxu0 0.0
      %7750 = vmatpush2.msra.mxu0 0.0
      %7751 = vmatprep.subr.mxu0 0.0
      %7752 = vmatpush2.msra.mxu0 0.0
      %7753 = vmatprep.subr.mxu0 0.0
      %7754 = vmatpush2.msra.mxu0 0.0
      %7755 = vmatprep.subr.mxu0 0.0
      %7756 = vmatpush2.msra.mxu0 0.0
      %7757 = vmatprep.subr.mxu0 0.0
      %7758 = vmatpush2.msra.mxu0 0.0
      %7759 = vmatprep.subr.mxu0 0.0
      %7760 = vmatpush2.msra.mxu0 0.0
      %7761 = vmatprep.subr.mxu0 0.0
      %7762 = vmatpush2.msra.mxu0 0.0
      %7763 = vmatprep.subr.mxu0 0.0
      %7764 = vmatpush2.msra.mxu0 0.0
      %7765 = vmatprep.subr.mxu0 0.0
      %7766 = vmatpush2.msra.mxu0 0.0
      %7767 = vmatprep.subr.mxu0 0.0
      %7768 = vmatpush2.msra.mxu0 0.0
      %7769 = vmatprep.subr.mxu0 0.0
      %7770 = vmatpush2.msra.mxu0 0.0
      %7771 = vmatprep.subr.mxu0 0.0
      %7772 = vmatpush2.msra.mxu0 0.0
      %7773 = vmatprep.subr.mxu0 0.0
      %7774 = vmatpush2.msra.mxu0 0.0
      %7775 = vmatprep.subr.mxu0 0.0
      %7776 = vmatpush2.msra.mxu0 0.0
      %7777 = vmatprep.mubr.f32.mxu0 0.0
      %7778 = vmatmul.mubr.f32.gmra.mxu0 %v7603
      %v7779 = vpop.f32.mrf.mxu0
      %v7780 = vadd.f32 0.0, %v7779
      %v7781 = vpop.f32.mrf.mxu0
      %7782 = vmatprep.mubr.f32.mxu0 0.0
      %7783 = vmatmul.mubr.f32.gmra.mxu0 %v7606
      %v7784 = vpop.f32.mrf.mxu0
      %v7785 = vadd.f32 0.0, %v7784
      %v7786 = vpop.f32.mrf.mxu0
      %7787 = vmatprep.mubr.f32.mxu0 0.0
      %7788 = vmatmul.mubr.f32.gmra.mxu0 %v7609
      %v7789 = vpop.f32.mrf.mxu0
      %v7790 = vadd.f32 0.0, %v7789
      %v7791 = vpop.f32.mrf.mxu0
      %7792 = vmatprep.mubr.f32.mxu0 0.0
      %7793 = vmatmul.mubr.f32.gmra.mxu0 %v7612
      %v7794 = vpop.f32.mrf.mxu0
      %v7795 = vadd.f32 0.0, %v7794
      %v7796 = vpop.f32.mrf.mxu0
      %7797 = vmatprep.mubr.f32.mxu0 0.0
      %7798 = vmatmul.mubr.f32.gmra.mxu0 %v7615
      %v7799 = vpop.f32.mrf.mxu0
      %v7800 = vadd.f32 0.0, %v7799
      %v7801 = vpop.f32.mrf.mxu0
      %7802 = vmatprep.mubr.f32.mxu0 0.0
      %7803 = vmatmul.mubr.f32.gmra.mxu0 %v7618
      %v7804 = vpop.f32.mrf.mxu0
      %v7805 = vadd.f32 0.0, %v7804
      %v7806 = vpop.f32.mrf.mxu0
      %7807 = vmatprep.mubr.f32.mxu0 0.0
      %7808 = vmatmul.mubr.f32.gmra.mxu0 %v7621
      %v7809 = vpop.f32.mrf.mxu0
      %v7810 = vadd.f32 0.0, %v7809
      %v7811 = vpop.f32.mrf.mxu0
      %7812 = vmatprep.mubr.f32.mxu0 0.0
      %7813 = vmatmul.mubr.f32.gmra.mxu0 %v7624
      %v7814 = vpop.f32.mrf.mxu0
      %v7815 = vadd.f32 0.0, %v7814
      %v7816 = vpop.f32.mrf.mxu0
      %7817 = vmatprep.mubr.f32.mxu0 0.0
      %7818 = vmatmul.mubr.f32.gmra.mxu0 %v7627
      %v7819 = vpop.f32.mrf.mxu0
      %v7820 = vadd.f32 0.0, %v7819
      %v7821 = vpop.f32.mrf.mxu0
      %7822 = vmatprep.mubr.f32.mxu0 0.0
      %7823 = vmatmul.mubr.f32.gmra.mxu0 %v7630
      %v7824 = vpop.f32.mrf.mxu0
      %v7825 = vadd.f32 0.0, %v7824
      %v7826 = vpop.f32.mrf.mxu0
      %7827 = vmatprep.mubr.f32.mxu0 0.0
      %7828 = vmatmul.mubr.f32.gmra.mxu0 %v7633
      %v7829 = vpop.f32.mrf.mxu0
      %v7830 = vadd.f32 0.0, %v7829
      %v7831 = vpop.f32.mrf.mxu0
      %7832 = vmatprep.mubr.f32.mxu0 0.0
      %7833 = vmatmul.mubr.f32.gmra.mxu0 %v7636
      %v7834 = vpop.f32.mrf.mxu0
      %v7835 = vadd.f32 0.0, %v7834
      %v7836 = vpop.f32.mrf.mxu0
      %7837 = vmatprep.mubr.f32.mxu0 0.0
      %7838 = vmatmul.mubr.f32.gmra.mxu0 %v7639
      %v7839 = vpop.f32.mrf.mxu0
      %v7840 = vadd.f32 0.0, %v7839
      %v7841 = vpop.f32.mrf.mxu0
      %7842 = vmatprep.mubr.f32.mxu0 0.0
      %7843 = vmatmul.mubr.f32.gmra.mxu0 %v7642
      %v7844 = vpop.f32.mrf.mxu0
      %v7845 = vadd.f32 0.0, %v7844
      %v7846 = vpop.f32.mrf.mxu0
      %7847 = vmatprep.mubr.f32.mxu0 0.0
      %7848 = vmatmul.mubr.f32.gmra.mxu0 %v7645
      %v7849 = vpop.f32.mrf.mxu0
      %v7850 = vadd.f32 0.0, %v7849
      %v7851 = vpop.f32.mrf.mxu0
      %7852 = vmatprep.mubr.f32.mxu0 0.0
      %7853 = vmatmul.mubr.f32.gmra.mxu0 %v7648
      %v7854 = vpop.f32.mrf.mxu0
      %v7855 = vadd.f32 0.0, %v7854
      %v7856 = vpop.f32.mrf.mxu0
      %7857 = vmatprep.mubr.f32.mxu0 0.0
      %7858 = vmatmul.mubr.f32.gmra.mxu0 %v7651
      %v7859 = vpop.f32.mrf.mxu0
      %v7860 = vadd.f32 0.0, %v7859
      %v7861 = vpop.f32.mrf.mxu0
      %7862 = vmatprep.mubr.f32.mxu0 0.0
      %7863 = vmatmul.mubr.f32.gmra.mxu0 %v7654
      %v7864 = vpop.f32.mrf.mxu0
      %v7865 = vadd.f32 0.0, %v7864
      %v7866 = vpop.f32.mrf.mxu0
      %7867 = vmatprep.mubr.f32.mxu0 0.0
      %7868 = vmatmul.mubr.f32.gmra.mxu0 %v7657
      %v7869 = vpop.f32.mrf.mxu0
      %v7870 = vadd.f32 0.0, %v7869
      %v7871 = vpop.f32.mrf.mxu0
      %7872 = vmatprep.mubr.f32.mxu0 0.0
      %7873 = vmatmul.mubr.f32.gmra.mxu0 %v7660
      %v7874 = vpop.f32.mrf.mxu0
      %v7875 = vadd.f32 0.0, %v7874
      %v7876 = vpop.f32.mrf.mxu0
      %7877 = vmatprep.mubr.f32.mxu0 0.0
      %7878 = vmatmul.mubr.f32.gmra.mxu0 %v7663
      %v7879 = vpop.f32.mrf.mxu0
      %v7880 = vadd.f32 0.0, %v7879
      %v7881 = vpop.f32.mrf.mxu0
      %7882 = vmatprep.mubr.f32.mxu0 0.0
      %7883 = vmatmul.mubr.f32.gmra.mxu0 %v7666
      %v7884 = vpop.f32.mrf.mxu0
      %v7885 = vadd.f32 0.0, %v7884
      %v7886 = vpop.f32.mrf.mxu0
      %7887 = vmatprep.mubr.f32.mxu0 0.0
      %7888 = vmatmul.mubr.f32.gmra.mxu0 %v7669
      %v7889 = vpop.f32.mrf.mxu0
      %v7890 = vadd.f32 0.0, %v7889
      %v7891 = vpop.f32.mrf.mxu0
      %7892 = vmatprep.mubr.f32.mxu0 0.0
      %7893 = vmatmul.mubr.f32.gmra.mxu0 %v7672
      %v7894 = vpop.f32.mrf.mxu0
      %v7895 = vadd.f32 0.0, %v7894
      %v7896 = vpop.f32.mrf.mxu0
      %7897 = vmatprep.mubr.f32.mxu0 0.0
      %7898 = vmatmul.mubr.f32.gmra.mxu0 %v7675
      %v7899 = vpop.f32.mrf.mxu0
      %v7900 = vadd.f32 0.0, %v7899
      %v7901 = vpop.f32.mrf.mxu0
      %7902 = vmatprep.mubr.f32.mxu0 0.0
      %7903 = vmatmul.mubr.f32.gmra.mxu0 %v7678
      %v7904 = vpop.f32.mrf.mxu0
      %v7905 = vadd.f32 0.0, %v7904
      %v7906 = vpop.f32.mrf.mxu0
      %7907 = vmatprep.mubr.f32.mxu0 0.0
      %7908 = vmatmul.mubr.f32.gmra.mxu0 %v7681
      %v7909 = vpop.f32.mrf.mxu0
      %v7910 = vadd.f32 0.0, %v7909
      %v7911 = vpop.f32.mrf.mxu0
      %7912 = vmatprep.mubr.f32.mxu0 0.0
      %7913 = vmatmul.mubr.f32.gmra.mxu0 %v7684
      %v7914 = vpop.f32.mrf.mxu0
      %v7915 = vadd.f32 0.0, %v7914
      %v7916 = vpop.f32.mrf.mxu0
      %7917 = vmatprep.mubr.f32.mxu0 0.0
      %7918 = vmatmul.mubr.f32.gmra.mxu0 %v7687
      %v7919 = vpop.f32.mrf.mxu0
      %v7920 = vadd.f32 0.0, %v7919
      %v7921 = vpop.f32.mrf.mxu0
      %7922 = vmatprep.mubr.f32.mxu0 0.0
      %7923 = vmatmul.mubr.f32.gmra.mxu0 %v7690
      %v7924 = vpop.f32.mrf.mxu0
      %v7925 = vadd.f32 0.0, %v7924
      %v7926 = vpop.f32.mrf.mxu0
      %7927 = vmatprep.mubr.f32.mxu0 0.0
      %7928 = vmatmul.mubr.f32.gmra.mxu0 %v7693
      %v7929 = vpop.f32.mrf.mxu0
      %v7930 = vadd.f32 0.0, %v7929
      %v7931 = vpop.f32.mrf.mxu0
      %7932 = vmatprep.mubr.f32.mxu0 0.0
      %7933 = vmatmul.mubr.f32.gmra.mxu0 %v7696
      %v7934 = vpop.f32.mrf.mxu0
      %v7935 = vadd.f32 0.0, %v7934
      %v7936 = vpop.f32.mrf.mxu0
      %7937 = vmatprep.mubr.f32.mxu0 0.0
      %7938 = vmatmul.mubr.f32.gmra.mxu0 %v7699
      %v7939 = vpop.f32.mrf.mxu0
      %v7940 = vadd.f32 0.0, %v7939
      %v7941 = vpop.f32.mrf.mxu0
      %7942 = vmatprep.mubr.f32.mxu0 0.0
      %7943 = vmatmul.mubr.f32.gmra.mxu0 %v7702
      %v7944 = vpop.f32.mrf.mxu0
      %v7945 = vadd.f32 0.0, %v7944
      %v7946 = vpop.f32.mrf.mxu0
      %7947 = vmatprep.mubr.f32.mxu0 0.0
      %7948 = vmatmul.mubr.f32.gmra.mxu0 %v7705
      %v7949 = vpop.f32.mrf.mxu0
      %v7950 = vadd.f32 0.0, %v7949
      %v7951 = vpop.f32.mrf.mxu0
      %7952 = vmatprep.mubr.f32.mxu0 0.0
      %7953 = vmatmul.mubr.f32.gmra.mxu0 %v7708
      %v7954 = vpop.f32.mrf.mxu0
      %v7955 = vadd.f32 0.0, %v7954
      %v7956 = vpop.f32.mrf.mxu0
      %7957 = vdwg.mxu0
      %v7958 = vadd.f32 %v7528, %v7780
      %v7959 = vadd.f32 %v7529, %v7785
      %v7960 = vadd.f32 %v7530, %v7790
      %v7961 = vadd.f32 %v7531, %v7795
      %v7962 = vadd.f32 %v7532, %v7800
      %v7963 = vadd.f32 %v7533, %v7805
      %v7964 = vadd.f32 %v7534, %v7810
      %v7965 = vadd.f32 %v7535, %v7815
      %v7966 = vadd.f32 %v7536, %v7820
      %v7967 = vadd.f32 %v7537, %v7825
      %v7968 = vadd.f32 %v7538, %v7830
      %v7969 = vadd.f32 %v7539, %v7835
      %v7970 = vadd.f32 %v7540, %v7840
      %v7971 = vadd.f32 %v7541, %v7845
      %v7972 = vadd.f32 %v7542, %v7850
      %v7973 = vadd.f32 %v7543, %v7855
      %v7974 = vadd.f32 %v7544, %v7860
      %v7975 = vadd.f32 %v7545, %v7865
      %v7976 = vadd.f32 %v7546, %v7870
      %v7977 = vadd.f32 %v7547, %v7875
      %v7978 = vadd.f32 %v7548, %v7880
      %v7979 = vadd.f32 %v7549, %v7885
      %v7980 = vadd.f32 %v7550, %v7890
      %v7981 = vadd.f32 %v7551, %v7895
      %v7982 = vadd.f32 %v7552, %v7900
      %v7983 = vadd.f32 %v7553, %v7905
      %v7984 = vadd.f32 %v7554, %v7910
      %v7985 = vadd.f32 %v7555, %v7915
      %v7986 = vadd.f32 %v7556, %v7920
      %v7987 = vadd.f32 %v7557, %v7925
      %v7988 = vadd.f32 %v7558, %v7930
      %v7989 = vadd.f32 %v7559, %v7935
      %v7990 = vadd.f32 %v7560, %v7940
      %v7991 = vadd.f32 %v7561, %v7945
      %v7992 = vadd.f32 %v7562, %v7950
      %v7993 = vadd.f32 %v7563, %v7955
      %v7994 = vld [vmem:[%s5] sm:$0x1]
      %v7996 = vlaneseq
      %v7997 = vshrl.u32 %v7996, 7
      %v7998 = vsub.s32 0, %v7997
      %v7999 = vrot.slane %v7994, %v7998
      %v8001 = vadd.f32 %v7958, %v7999
      %v8002 = vadd.f32 %v7959, %v7999
      %v8003 = vadd.f32 %v7960, %v7999
      %v8004 = vadd.f32 %v7961, %v7999
      %v8005 = vadd.f32 %v7962, %v7999
      %v8006 = vadd.f32 %v7963, %v7999
      %v8007 = vadd.f32 %v7964, %v7999
      %v8008 = vadd.f32 %v7965, %v7999
      %v8009 = vadd.f32 %v7966, %v7999
      %v8010 = vadd.f32 %v7967, %v7999
      %v8011 = vadd.f32 %v7968, %v7999
      %v8012 = vadd.f32 %v7969, %v7999
      %v8013 = vadd.f32 %v7970, %v7999
      %v8014 = vadd.f32 %v7971, %v7999
      %v8015 = vadd.f32 %v7972, %v7999
      %v8016 = vadd.f32 %v7973, %v7999
      %v8017 = vadd.f32 %v7974, %v7999
      %v8018 = vadd.f32 %v7975, %v7999
      %v8019 = vadd.f32 %v7976, %v7999
      %v8020 = vadd.f32 %v7977, %v7999
      %v8021 = vadd.f32 %v7978, %v7999
      %v8022 = vadd.f32 %v7979, %v7999
      %v8023 = vadd.f32 %v7980, %v7999
      %v8024 = vadd.f32 %v7981, %v7999
      %v8025 = vadd.f32 %v7982, %v7999
      %v8026 = vadd.f32 %v7983, %v7999
      %v8027 = vadd.f32 %v7984, %v7999
      %v8028 = vadd.f32 %v7985, %v7999
      %v8029 = vadd.f32 %v7986, %v7999
      %v8030 = vadd.f32 %v7987, %v7999
      %v8031 = vadd.f32 %v7988, %v7999
      %v8032 = vadd.f32 %v7989, %v7999
      %v8033 = vadd.f32 %v7990, %v7999
      %v8034 = vadd.f32 %v7991, %v7999
      %v8035 = vadd.f32 %v7992, %v7999
      %v8036 = vadd.f32 %v7993, %v7999
      %v8037 = vmul.f32 %v8001, 0.01
      %v8038 = vmul.f32 %v8002, 0.01
      %v8039 = vmul.f32 %v8003, 0.01
      %v8040 = vmul.f32 %v8004, 0.01
      %v8041 = vmul.f32 %v8005, 0.01
      %v8042 = vmul.f32 %v8006, 0.01
      %v8043 = vmul.f32 %v8007, 0.01
      %v8044 = vmul.f32 %v8008, 0.01
      %v8045 = vmul.f32 %v8009, 0.01
      %v8046 = vmul.f32 %v8010, 0.01
      %v8047 = vmul.f32 %v8011, 0.01
      %v8048 = vmul.f32 %v8012, 0.01
      %v8049 = vmul.f32 %v8013, 0.01
      %v8050 = vmul.f32 %v8014, 0.01
      %v8051 = vmul.f32 %v8015, 0.01
      %v8052 = vmul.f32 %v8016, 0.01
      %v8053 = vmul.f32 %v8017, 0.01
      %v8054 = vmul.f32 %v8018, 0.01
      %v8055 = vmul.f32 %v8019, 0.01
      %v8056 = vmul.f32 %v8020, 0.01
      %v8057 = vmul.f32 %v8021, 0.01
      %v8058 = vmul.f32 %v8022, 0.01
      %v8059 = vmul.f32 %v8023, 0.01
      %v8060 = vmul.f32 %v8024, 0.01
      %v8061 = vmul.f32 %v8025, 0.01
      %v8062 = vmul.f32 %v8026, 0.01
      %v8063 = vmul.f32 %v8027, 0.01
      %v8064 = vmul.f32 %v8028, 0.01
      %v8065 = vmul.f32 %v8029, 0.01
      %v8066 = vmul.f32 %v8030, 0.01
      %v8067 = vmul.f32 %v8031, 0.01
      %v8068 = vmul.f32 %v8032, 0.01
      %v8069 = vmul.f32 %v8033, 0.01
      %v8070 = vmul.f32 %v8034, 0.01
      %v8071 = vmul.f32 %v8035, 0.01
      %v8072 = vmul.f32 %v8036, 0.01
      %v8073 = vmax.f32 %v8001, %v8037
      %v8074 = vmax.f32 %v8002, %v8038
      %v8075 = vmax.f32 %v8003, %v8039
      %v8076 = vmax.f32 %v8004, %v8040
      %v8077 = vmax.f32 %v8005, %v8041
      %v8078 = vmax.f32 %v8006, %v8042
      %v8079 = vmax.f32 %v8007, %v8043
      %v8080 = vmax.f32 %v8008, %v8044
      %v8081 = vmax.f32 %v8009, %v8045
      %v8082 = vmax.f32 %v8010, %v8046
      %v8083 = vmax.f32 %v8011, %v8047
      %v8084 = vmax.f32 %v8012, %v8048
      %v8085 = vmax.f32 %v8013, %v8049
      %v8086 = vmax.f32 %v8014, %v8050
      %v8087 = vmax.f32 %v8015, %v8051
      %v8088 = vmax.f32 %v8016, %v8052
      %v8089 = vmax.f32 %v8017, %v8053
      %v8090 = vmax.f32 %v8018, %v8054
      %v8091 = vmax.f32 %v8019, %v8055
      %v8092 = vmax.f32 %v8020, %v8056
      %v8093 = vmax.f32 %v8021, %v8057
      %v8094 = vmax.f32 %v8022, %v8058
      %v8095 = vmax.f32 %v8023, %v8059
      %v8096 = vmax.f32 %v8024, %v8060
      %v8097 = vmax.f32 %v8025, %v8061
      %v8098 = vmax.f32 %v8026, %v8062
      %v8099 = vmax.f32 %v8027, %v8063
      %v8100 = vmax.f32 %v8028, %v8064
      %v8101 = vmax.f32 %v8029, %v8065
      %v8102 = vmax.f32 %v8030, %v8066
      %v8103 = vmax.f32 %v8031, %v8067
      %v8104 = vmax.f32 %v8032, %v8068
      %v8105 = vmax.f32 %v8033, %v8069
      %v8106 = vmax.f32 %v8034, %v8070
      %v8107 = vmax.f32 %v8035, %v8071
      %v8108 = vmax.f32 %v8036, %v8072
      %v8109 = vld [vmem:[%s2] sm:$0xff]
      %v8110 = vld [vmem:[%s2 + $0x8] sm:$0xff]
      %v8111 = vld [vmem:[%s2 + $0x10] sm:$0xff]
      %v8112 = vld [vmem:[%s2 + $0x18] sm:$0xff]
      %v8113 = vld [vmem:[%s2 + $0x20] sm:$0xff]
      %v8114 = vld [vmem:[%s2 + $0x28] sm:$0xff]
      %v8115 = vld [vmem:[%s2 + $0x30] sm:$0xff]
      %v8116 = vld [vmem:[%s2 + $0x38] sm:$0xff]
      %v8117 = vld [vmem:[%s2 + $0x40] sm:$0xff]
      %v8118 = vld [vmem:[%s2 + $0x48] sm:$0xff]
      %v8119 = vld [vmem:[%s2 + $0x50] sm:$0xff]
      %v8120 = vld [vmem:[%s2 + $0x58] sm:$0xff]
      %v8121 = vld [vmem:[%s2 + $0x60] sm:$0xff]
      %v8122 = vld [vmem:[%s2 + $0x68] sm:$0xff]
      %v8123 = vld [vmem:[%s2 + $0x70] sm:$0xff]
      %v8124 = vld [vmem:[%s2 + $0x78] sm:$0xff]
      %v8125 = vld [vmem:[%s2 + $0x80] sm:$0xff]
      %v8126 = vld [vmem:[%s2 + $0x88] sm:$0xff]
      %v8127 = vld [vmem:[%s2 + $0x90] sm:$0xff]
      %v8128 = vld [vmem:[%s2 + $0x98] sm:$0xff]
      %v8129 = vld [vmem:[%s2 + $0xa0] sm:$0xff]
      %v8130 = vld [vmem:[%s2 + $0xa8] sm:$0xff]
      %v8131 = vld [vmem:[%s2 + $0xb0] sm:$0xff]
      %v8132 = vld [vmem:[%s2 + $0xb8] sm:$0xff]
      %v8133 = vld [vmem:[%s2 + $0xc0] sm:$0xff]
      %v8134 = vld [vmem:[%s2 + $0xc8] sm:$0xff]
      %v8135 = vld [vmem:[%s2 + $0xd0] sm:$0xff]
      %v8136 = vld [vmem:[%s2 + $0xd8] sm:$0xff]
      %v8137 = vld [vmem:[%s2 + $0xe0] sm:$0xff]
      %v8138 = vld [vmem:[%s2 + $0xe8] sm:$0xff]
      %v8139 = vld [vmem:[%s2 + $0xf0] sm:$0xff]
      %v8140 = vld [vmem:[%s2 + $0xf8] sm:$0xff]
      %v8141 = vld [vmem:[%s2 + $0x100] sm:$0xff]
      %v8142 = vld [vmem:[%s2 + $0x108] sm:$0xff]
      %v8143 = vld [vmem:[%s2 + $0x110] sm:$0xff]
      %v8144 = vld [vmem:[%s2 + $0x118] sm:$0xff]
      %8146 = vset.pattern.permute.xlu0 0
      %8147 = vperm.xlu0 %8146, %v8109
      %v8148 = vpop.permute.xlu0 %8147
      %8151 = vset.pattern.permute.xlu0 0
      %8152 = vperm.xlu0 %8151, %v8110
      %v8153 = vpop.permute.xlu0 %8152
      %8156 = vset.pattern.permute.xlu0 0
      %8157 = vperm.xlu0 %8156, %v8111
      %v8158 = vpop.permute.xlu0 %8157
      %8161 = vset.pattern.permute.xlu0 0
      %8162 = vperm.xlu0 %8161, %v8112
      %v8163 = vpop.permute.xlu0 %8162
      %8166 = vset.pattern.permute.xlu0 0
      %8167 = vperm.xlu0 %8166, %v8113
      %v8168 = vpop.permute.xlu0 %8167
      %8171 = vset.pattern.permute.xlu0 0
      %8172 = vperm.xlu0 %8171, %v8114
      %v8173 = vpop.permute.xlu0 %8172
      %8176 = vset.pattern.permute.xlu0 0
      %8177 = vperm.xlu0 %8176, %v8115
      %v8178 = vpop.permute.xlu0 %8177
      %8181 = vset.pattern.permute.xlu0 0
      %8182 = vperm.xlu0 %8181, %v8116
      %v8183 = vpop.permute.xlu0 %8182
      %8186 = vset.pattern.permute.xlu0 0
      %8187 = vperm.xlu0 %8186, %v8117
      %v8188 = vpop.permute.xlu0 %8187
      %8191 = vset.pattern.permute.xlu0 0
      %8192 = vperm.xlu0 %8191, %v8118
      %v8193 = vpop.permute.xlu0 %8192
      %8196 = vset.pattern.permute.xlu0 0
      %8197 = vperm.xlu0 %8196, %v8119
      %v8198 = vpop.permute.xlu0 %8197
      %8201 = vset.pattern.permute.xlu0 0
      %8202 = vperm.xlu0 %8201, %v8120
      %v8203 = vpop.permute.xlu0 %8202
      %8206 = vset.pattern.permute.xlu0 0
      %8207 = vperm.xlu0 %8206, %v8121
      %v8208 = vpop.permute.xlu0 %8207
      %8211 = vset.pattern.permute.xlu0 0
      %8212 = vperm.xlu0 %8211, %v8122
      %v8213 = vpop.permute.xlu0 %8212
      %8216 = vset.pattern.permute.xlu0 0
      %8217 = vperm.xlu0 %8216, %v8123
      %v8218 = vpop.permute.xlu0 %8217
      %8221 = vset.pattern.permute.xlu0 0
      %8222 = vperm.xlu0 %8221, %v8124
      %v8223 = vpop.permute.xlu0 %8222
      %8226 = vset.pattern.permute.xlu0 0
      %8227 = vperm.xlu0 %8226, %v8125
      %v8228 = vpop.permute.xlu0 %8227
      %8231 = vset.pattern.permute.xlu0 0
      %8232 = vperm.xlu0 %8231, %v8126
      %v8233 = vpop.permute.xlu0 %8232
      %8236 = vset.pattern.permute.xlu0 0
      %8237 = vperm.xlu0 %8236, %v8127
      %v8238 = vpop.permute.xlu0 %8237
      %8241 = vset.pattern.permute.xlu0 0
      %8242 = vperm.xlu0 %8241, %v8128
      %v8243 = vpop.permute.xlu0 %8242
      %8246 = vset.pattern.permute.xlu0 0
      %8247 = vperm.xlu0 %8246, %v8129
      %v8248 = vpop.permute.xlu0 %8247
      %8251 = vset.pattern.permute.xlu0 0
      %8252 = vperm.xlu0 %8251, %v8130
      %v8253 = vpop.permute.xlu0 %8252
      %8256 = vset.pattern.permute.xlu0 0
      %8257 = vperm.xlu0 %8256, %v8131
      %v8258 = vpop.permute.xlu0 %8257
      %8261 = vset.pattern.permute.xlu0 0
      %8262 = vperm.xlu0 %8261, %v8132
      %v8263 = vpop.permute.xlu0 %8262
      %8266 = vset.pattern.permute.xlu0 0
      %8267 = vperm.xlu0 %8266, %v8133
      %v8268 = vpop.permute.xlu0 %8267
      %8271 = vset.pattern.permute.xlu0 0
      %8272 = vperm.xlu0 %8271, %v8134
      %v8273 = vpop.permute.xlu0 %8272
      %8276 = vset.pattern.permute.xlu0 0
      %8277 = vperm.xlu0 %8276, %v8135
      %v8278 = vpop.permute.xlu0 %8277
      %8281 = vset.pattern.permute.xlu0 0
      %8282 = vperm.xlu0 %8281, %v8136
      %v8283 = vpop.permute.xlu0 %8282
      %8286 = vset.pattern.permute.xlu0 0
      %8287 = vperm.xlu0 %8286, %v8137
      %v8288 = vpop.permute.xlu0 %8287
      %8291 = vset.pattern.permute.xlu0 0
      %8292 = vperm.xlu0 %8291, %v8138
      %v8293 = vpop.permute.xlu0 %8292
      %8296 = vset.pattern.permute.xlu0 0
      %8297 = vperm.xlu0 %8296, %v8139
      %v8298 = vpop.permute.xlu0 %8297
      %8301 = vset.pattern.permute.xlu0 0
      %8302 = vperm.xlu0 %8301, %v8140
      %v8303 = vpop.permute.xlu0 %8302
      %8306 = vset.pattern.permute.xlu0 0
      %8307 = vperm.xlu0 %8306, %v8141
      %v8308 = vpop.permute.xlu0 %8307
      %8311 = vset.pattern.permute.xlu0 0
      %8312 = vperm.xlu0 %8311, %v8142
      %v8313 = vpop.permute.xlu0 %8312
      %8316 = vset.pattern.permute.xlu0 0
      %8317 = vperm.xlu0 %8316, %v8143
      %v8318 = vpop.permute.xlu0 %8317
      %8321 = vset.pattern.permute.xlu0 0
      %8322 = vperm.xlu0 %8321, %v8144
      %v8323 = vpop.permute.xlu0 %8322
      %v8325 = vmul.f32 %v8073, %v8148
      %v8326 = vmul.f32 %v8074, %v8153
      %v8327 = vmul.f32 %v8075, %v8158
      %v8328 = vmul.f32 %v8076, %v8163
      %v8329 = vmul.f32 %v8077, %v8168
      %v8330 = vmul.f32 %v8078, %v8173
      %v8331 = vmul.f32 %v8079, %v8178
      %v8332 = vmul.f32 %v8080, %v8183
      %v8333 = vmul.f32 %v8081, %v8188
      %v8334 = vmul.f32 %v8082, %v8193
      %v8335 = vmul.f32 %v8083, %v8198
      %v8336 = vmul.f32 %v8084, %v8203
      %v8337 = vmul.f32 %v8085, %v8208
      %v8338 = vmul.f32 %v8086, %v8213
      %v8339 = vmul.f32 %v8087, %v8218
      %v8340 = vmul.f32 %v8088, %v8223
      %v8341 = vmul.f32 %v8089, %v8228
      %v8342 = vmul.f32 %v8090, %v8233
      %v8343 = vmul.f32 %v8091, %v8238
      %v8344 = vmul.f32 %v8092, %v8243
      %v8345 = vmul.f32 %v8093, %v8248
      %v8346 = vmul.f32 %v8094, %v8253
      %v8347 = vmul.f32 %v8095, %v8258
      %v8348 = vmul.f32 %v8096, %v8263
      %v8349 = vmul.f32 %v8097, %v8268
      %v8350 = vmul.f32 %v8098, %v8273
      %v8351 = vmul.f32 %v8099, %v8278
      %v8352 = vmul.f32 %v8100, %v8283
      %v8353 = vmul.f32 %v8101, %v8288
      %v8354 = vmul.f32 %v8102, %v8293
      %v8355 = vmul.f32 %v8103, %v8298
      %v8356 = vmul.f32 %v8104, %v8303
      %v8357 = vmul.f32 %v8105, %v8308
      %v8358 = vmul.f32 %v8106, %v8313
      %v8359 = vmul.f32 %v8107, %v8318
      %v8360 = vmul.f32 %v8108, %v8323
      %8361 = vst.msk [vmem:[#allocation2] sm:$0xff] %vm401, 0.0
      %8362 = vst.msk [vmem:[#allocation2 + $0x8] sm:$0xff] %vm401, 0.0
      %8363 = vst.msk [vmem:[#allocation2 + $0x10] sm:$0xff] %vm401, 0.0
      %8364 = vst.msk [vmem:[#allocation2 + $0x18] sm:$0xff] %vm401, 0.0
      %8365 = vst.msk [vmem:[#allocation2 + $0x20] sm:$0xff] %vm401, 0.0
      %8366 = vst.msk [vmem:[#allocation2 + $0x28] sm:$0xff] %vm401, 0.0
      %8367 = vst.msk [vmem:[#allocation2 + $0x30] sm:$0xff] %vm401, 0.0
      %8368 = vst.msk [vmem:[#allocation2 + $0x38] sm:$0xff] %vm401, 0.0
      %8369 = vst.msk [vmem:[#allocation2 + $0x40] sm:$0xff] %vm401, 0.0
      %8370 = vst.msk [vmem:[#allocation2 + $0x48] sm:$0xff] %vm401, 0.0
      %8371 = vst.msk [vmem:[#allocation2 + $0x50] sm:$0xff] %vm401, 0.0
      %8372 = vst.msk [vmem:[#allocation2 + $0x58] sm:$0xff] %vm401, 0.0
      %8373 = vst.msk [vmem:[#allocation2 + $0x60] sm:$0xff] %vm401, 0.0
      %8374 = vst.msk [vmem:[#allocation2 + $0x68] sm:$0xff] %vm401, 0.0
      %8375 = vst.msk [vmem:[#allocation2 + $0x70] sm:$0xff] %vm401, 0.0
      %8376 = vst.msk [vmem:[#allocation2 + $0x78] sm:$0xff] %vm401, 0.0
      %8377 = vst.msk [vmem:[#allocation2 + $0x80] sm:$0xff] %vm401, 0.0
      %8378 = vst.msk [vmem:[#allocation2 + $0x88] sm:$0xff] %vm401, 0.0
      %8379 = vst.msk [vmem:[#allocation2 + $0x90] sm:$0xff] %vm401, 0.0
      %8380 = vst.msk [vmem:[#allocation2 + $0x98] sm:$0xff] %vm401, 0.0
      %8381 = vst.msk [vmem:[#allocation2 + $0xa0] sm:$0xff] %vm401, 0.0
      %8382 = vst.msk [vmem:[#allocation2 + $0xa8] sm:$0xff] %vm401, 0.0
      %8383 = vst.msk [vmem:[#allocation2 + $0xb0] sm:$0xff] %vm401, 0.0
      %8384 = vst.msk [vmem:[#allocation2 + $0xb8] sm:$0xff] %vm401, 0.0
      %8385 = vst.msk [vmem:[#allocation2 + $0xc0] sm:$0xff] %vm401, 0.0
      %8386 = vst.msk [vmem:[#allocation2 + $0xc8] sm:$0xff] %vm401, 0.0
      %8387 = vst.msk [vmem:[#allocation2 + $0xd0] sm:$0xff] %vm401, 0.0
      %8388 = vst.msk [vmem:[#allocation2 + $0xd8] sm:$0xff] %vm401, 0.0
      %8389 = vst.msk [vmem:[#allocation2 + $0xe0] sm:$0xff] %vm401, 0.0
      %8390 = vst.msk [vmem:[#allocation2 + $0xe8] sm:$0xff] %vm401, 0.0
      %8391 = vst.msk [vmem:[#allocation2 + $0xf0] sm:$0xff] %vm401, 0.0
      %8392 = vst.msk [vmem:[#allocation2 + $0xf8] sm:$0xff] %vm401, 0.0
      %8393 = vst.msk [vmem:[#allocation2 + $0x100] sm:$0xff] %vm401, 0.0
      %8394 = vst.msk [vmem:[#allocation2 + $0x108] sm:$0xff] %vm401, 0.0
      %8395 = vst.msk [vmem:[#allocation2 + $0x110] sm:$0xff] %vm401, 0.0
      %8396 = vst.msk [vmem:[#allocation2 + $0x118] sm:$0xff] %vm401, 0.0
      %8397 = vst.msk [vmem:[#allocation2 + $0x120] sm:$0xff] %vm401, 0.0
      %8398 = vst.msk [vmem:[#allocation2 + $0x128] sm:$0xff] %vm401, 0.0
      %8399 = vst.msk [vmem:[#allocation2 + $0x130] sm:$0xff] %vm401, 0.0
      %8400 = vst.msk [vmem:[#allocation2 + $0x138] sm:$0xff] %vm401, 0.0
      %8401 = vst.msk [vmem:[#allocation2 + $0x140] sm:$0xff] %vm401, 0.0
      %8402 = vst.msk [vmem:[#allocation2 + $0x148] sm:$0xff] %vm401, 0.0
      %8403 = vst.msk [vmem:[#allocation2 + $0x150] sm:$0xff] %vm401, 0.0
      %vm8404 = vcmask 27648
      %8405 = vst.msk [vmem:[#allocation2 + $0x158] sm:$0xf] %vm8404, 0.0
      %8406 = vst.msk [vmem:[#allocation2 + $0x18] sm:$0xff] %vm401, %v8325
      %8407 = vst.msk [vmem:[#allocation2 + $0x20] sm:$0xff] %vm401, %v8326
      %8408 = vst.msk [vmem:[#allocation2 + $0x28] sm:$0xff] %vm401, %v8327
      %8409 = vst.msk [vmem:[#allocation2 + $0x30] sm:$0xff] %vm401, %v8328
      %8410 = vst.msk [vmem:[#allocation2 + $0x38] sm:$0xff] %vm401, %v8329
      %8411 = vst.msk [vmem:[#allocation2 + $0x40] sm:$0xff] %vm401, %v8330
      %8412 = vst.msk [vmem:[#allocation2 + $0x48] sm:$0xff] %vm401, %v8331
      %8413 = vst.msk [vmem:[#allocation2 + $0x50] sm:$0xff] %vm401, %v8332
      %8414 = vst.msk [vmem:[#allocation2 + $0x58] sm:$0xff] %vm401, %v8333
      %8415 = vst.msk [vmem:[#allocation2 + $0x60] sm:$0xff] %vm401, %v8334
      %8416 = vst.msk [vmem:[#allocation2 + $0x68] sm:$0xff] %vm401, %v8335
      %8417 = vst.msk [vmem:[#allocation2 + $0x70] sm:$0xff] %vm401, %v8336
      %8418 = vst.msk [vmem:[#allocation2 + $0x78] sm:$0xff] %vm401, %v8337
      %8419 = vst.msk [vmem:[#allocation2 + $0x80] sm:$0xff] %vm401, %v8338
      %8420 = vst.msk [vmem:[#allocation2 + $0x88] sm:$0xff] %vm401, %v8339
      %8421 = vst.msk [vmem:[#allocation2 + $0x90] sm:$0xff] %vm401, %v8340
      %8422 = vst.msk [vmem:[#allocation2 + $0x98] sm:$0xff] %vm401, %v8341
      %8423 = vst.msk [vmem:[#allocation2 + $0xa0] sm:$0xff] %vm401, %v8342
      %8424 = vst.msk [vmem:[#allocation2 + $0xa8] sm:$0xff] %vm401, %v8343
      %8425 = vst.msk [vmem:[#allocation2 + $0xb0] sm:$0xff] %vm401, %v8344
      %8426 = vst.msk [vmem:[#allocation2 + $0xb8] sm:$0xff] %vm401, %v8345
      %8427 = vst.msk [vmem:[#allocation2 + $0xc0] sm:$0xff] %vm401, %v8346
      %8428 = vst.msk [vmem:[#allocation2 + $0xc8] sm:$0xff] %vm401, %v8347
      %8429 = vst.msk [vmem:[#allocation2 + $0xd0] sm:$0xff] %vm401, %v8348
      %8430 = vst.msk [vmem:[#allocation2 + $0xd8] sm:$0xff] %vm401, %v8349
      %8431 = vst.msk [vmem:[#allocation2 + $0xe0] sm:$0xff] %vm401, %v8350
      %8432 = vst.msk [vmem:[#allocation2 + $0xe8] sm:$0xff] %vm401, %v8351
      %8433 = vst.msk [vmem:[#allocation2 + $0xf0] sm:$0xff] %vm401, %v8352
      %8434 = vst.msk [vmem:[#allocation2 + $0xf8] sm:$0xff] %vm401, %v8353
      %8435 = vst.msk [vmem:[#allocation2 + $0x100] sm:$0xff] %vm401, %v8354
      %8436 = vst.msk [vmem:[#allocation2 + $0x108] sm:$0xff] %vm401, %v8355
      %8437 = vst.msk [vmem:[#allocation2 + $0x110] sm:$0xff] %vm401, %v8356
      %8438 = vst.msk [vmem:[#allocation2 + $0x118] sm:$0xff] %vm401, %v8357
      %8439 = vst.msk [vmem:[#allocation2 + $0x120] sm:$0xff] %vm401, %v8358
      %8440 = vst.msk [vmem:[#allocation2 + $0x128] sm:$0xff] %vm401, %v8359
      %8441 = vst.msk [vmem:[#allocation2 + $0x130] sm:$0xff] %vm401, %v8360
      %v8442 = vld [vmem:[#allocation2 + $0x5] sm:$0xff]
      %v8443 = vld [vmem:[#allocation2 + $0xd] sm:$0xff]
      %v8444 = vld [vmem:[#allocation2 + $0x15] sm:$0xff]
      %v8445 = vld [vmem:[#allocation2 + $0x1d] sm:$0xff]
      %v8446 = vld [vmem:[#allocation2 + $0x25] sm:$0xff]
      %v8447 = vld [vmem:[#allocation2 + $0x2d] sm:$0xff]
      %v8448 = vld [vmem:[#allocation2 + $0x35] sm:$0xff]
      %v8449 = vld [vmem:[#allocation2 + $0x3d] sm:$0xff]
      %v8450 = vld [vmem:[#allocation2 + $0x45] sm:$0xff]
      %v8451 = vld [vmem:[#allocation2 + $0x4d] sm:$0xff]
      %v8452 = vld [vmem:[#allocation2 + $0x55] sm:$0xff]
      %v8453 = vld [vmem:[#allocation2 + $0x5d] sm:$0xff]
      %v8454 = vld [vmem:[#allocation2 + $0x65] sm:$0xff]
      %v8455 = vld [vmem:[#allocation2 + $0x6d] sm:$0xff]
      %v8456 = vld [vmem:[#allocation2 + $0x75] sm:$0xff]
      %v8457 = vld [vmem:[#allocation2 + $0x7d] sm:$0xff]
      %v8458 = vld [vmem:[#allocation2 + $0x85] sm:$0xff]
      %v8459 = vld [vmem:[#allocation2 + $0x8d] sm:$0xff]
      %v8460 = vld [vmem:[#allocation2 + $0x95] sm:$0xff]
      %v8461 = vld [vmem:[#allocation2 + $0x9d] sm:$0xff]
      %v8462 = vld [vmem:[#allocation2 + $0xa5] sm:$0xff]
      %v8463 = vld [vmem:[#allocation2 + $0xad] sm:$0xff]
      %v8464 = vld [vmem:[#allocation2 + $0xb5] sm:$0xff]
      %v8465 = vld [vmem:[#allocation2 + $0xbd] sm:$0xff]
      %v8466 = vld [vmem:[#allocation2 + $0xc5] sm:$0xff]
      %v8467 = vld [vmem:[#allocation2 + $0xcd] sm:$0xff]
      %v8468 = vld [vmem:[#allocation2 + $0xd5] sm:$0xff]
      %v8469 = vld [vmem:[#allocation2 + $0xdd] sm:$0xff]
      %v8470 = vld [vmem:[#allocation2 + $0xe5] sm:$0xff]
      %v8471 = vld [vmem:[#allocation2 + $0xed] sm:$0xff]
      %v8472 = vld [vmem:[#allocation2 + $0xf5] sm:$0xff]
      %v8473 = vld [vmem:[#allocation2 + $0xfd] sm:$0xff]
      %v8474 = vld [vmem:[#allocation2 + $0x105] sm:$0xff]
      %v8475 = vld [vmem:[#allocation2 + $0x10d] sm:$0xff]
      %v8476 = vld [vmem:[#allocation2 + $0x115] sm:$0xff]
      %v8477 = vld [vmem:[#allocation2 + $0x11d] sm:$0xff]
      %v8478 = vld [vmem:[%s6] sm:$0xf]
      %v8479 = vld [vmem:[#allocation2 + $0x6] sm:$0xff]
      %v8480 = vld [vmem:[#allocation2 + $0xe] sm:$0xff]
      %v8481 = vld [vmem:[#allocation2 + $0x16] sm:$0xff]
      %v8482 = vld [vmem:[#allocation2 + $0x1e] sm:$0xff]
      %v8483 = vld [vmem:[#allocation2 + $0x26] sm:$0xff]
      %v8484 = vld [vmem:[#allocation2 + $0x2e] sm:$0xff]
      %v8485 = vld [vmem:[#allocation2 + $0x36] sm:$0xff]
      %v8486 = vld [vmem:[#allocation2 + $0x3e] sm:$0xff]
      %v8487 = vld [vmem:[#allocation2 + $0x46] sm:$0xff]
      %v8488 = vld [vmem:[#allocation2 + $0x4e] sm:$0xff]
      %v8489 = vld [vmem:[#allocation2 + $0x56] sm:$0xff]
      %v8490 = vld [vmem:[#allocation2 + $0x5e] sm:$0xff]
      %v8491 = vld [vmem:[#allocation2 + $0x66] sm:$0xff]
      %v8492 = vld [vmem:[#allocation2 + $0x6e] sm:$0xff]
      %v8493 = vld [vmem:[#allocation2 + $0x76] sm:$0xff]
      %v8494 = vld [vmem:[#allocation2 + $0x7e] sm:$0xff]
      %v8495 = vld [vmem:[#allocation2 + $0x86] sm:$0xff]
      %v8496 = vld [vmem:[#allocation2 + $0x8e] sm:$0xff]
      %v8497 = vld [vmem:[#allocation2 + $0x96] sm:$0xff]
      %v8498 = vld [vmem:[#allocation2 + $0x9e] sm:$0xff]
      %v8499 = vld [vmem:[#allocation2 + $0xa6] sm:$0xff]
      %v8500 = vld [vmem:[#allocation2 + $0xae] sm:$0xff]
      %v8501 = vld [vmem:[#allocation2 + $0xb6] sm:$0xff]
      %v8502 = vld [vmem:[#allocation2 + $0xbe] sm:$0xff]
      %v8503 = vld [vmem:[#allocation2 + $0xc6] sm:$0xff]
      %v8504 = vld [vmem:[#allocation2 + $0xce] sm:$0xff]
      %v8505 = vld [vmem:[#allocation2 + $0xd6] sm:$0xff]
      %v8506 = vld [vmem:[#allocation2 + $0xde] sm:$0xff]
      %v8507 = vld [vmem:[#allocation2 + $0xe6] sm:$0xff]
      %v8508 = vld [vmem:[#allocation2 + $0xee] sm:$0xff]
      %v8509 = vld [vmem:[#allocation2 + $0xf6] sm:$0xff]
      %v8510 = vld [vmem:[#allocation2 + $0xfe] sm:$0xff]
      %v8511 = vld [vmem:[#allocation2 + $0x106] sm:$0xff]
      %v8512 = vld [vmem:[#allocation2 + $0x10e] sm:$0xff]
      %v8513 = vld [vmem:[#allocation2 + $0x116] sm:$0xff]
      %v8514 = vld [vmem:[#allocation2 + $0x11e] sm:$0xff]
      %s8515 = scalar_lea.vmem %s6, 4
      %v8516 = vld [vmem:[%s8515] sm:$0xf]
      %v8518 = vsel %vm401, %v8479, 0
      %v8521 = vsel %vm401, %v8480, 0
      %v8524 = vsel %vm401, %v8481, 0
      %v8527 = vsel %vm401, %v8482, 0
      %v8530 = vsel %vm401, %v8483, 0
      %v8533 = vsel %vm401, %v8484, 0
      %v8536 = vsel %vm401, %v8485, 0
      %v8539 = vsel %vm401, %v8486, 0
      %v8542 = vsel %vm401, %v8487, 0
      %v8545 = vsel %vm401, %v8488, 0
      %v8548 = vsel %vm401, %v8489, 0
      %v8551 = vsel %vm401, %v8490, 0
      %v8554 = vsel %vm401, %v8491, 0
      %v8557 = vsel %vm401, %v8492, 0
      %v8560 = vsel %vm401, %v8493, 0
      %v8563 = vsel %vm401, %v8494, 0
      %v8566 = vsel %vm401, %v8495, 0
      %v8569 = vsel %vm401, %v8496, 0
      %v8572 = vsel %vm401, %v8497, 0
      %v8575 = vsel %vm401, %v8498, 0
      %v8578 = vsel %vm401, %v8499, 0
      %v8581 = vsel %vm401, %v8500, 0
      %v8584 = vsel %vm401, %v8501, 0
      %v8587 = vsel %vm401, %v8502, 0
      %v8590 = vsel %vm401, %v8503, 0
      %v8593 = vsel %vm401, %v8504, 0
      %v8596 = vsel %vm401, %v8505, 0
      %v8599 = vsel %vm401, %v8506, 0
      %v8602 = vsel %vm401, %v8507, 0
      %v8605 = vsel %vm401, %v8508, 0
      %v8608 = vsel %vm401, %v8509, 0
      %v8611 = vsel %vm401, %v8510, 0
      %v8614 = vsel %vm401, %v8511, 0
      %v8617 = vsel %vm401, %v8512, 0
      %v8620 = vsel %vm401, %v8513, 0
      %v8623 = vsel %vm401, %v8514, 0
      %v8626 = vsel %vm510, %v8516, 0
      %8628 = vmatprep.subr.mxu0 0.0
      %8629 = vmatpush1.msra.mxu0 0.0
      %8630 = vmatprep.subr.mxu0 0.0
      %8631 = vmatpush1.msra.mxu0 0.0
      %8632 = vmatprep.subr.mxu0 0.0
      %8633 = vmatpush1.msra.mxu0 0.0
      %8634 = vmatprep.subr.mxu0 0.0
      %8635 = vmatpush1.msra.mxu0 0.0
      %8636 = vmatprep.subr.mxu0 0.0
      %8637 = vmatpush1.msra.mxu0 0.0
      %8638 = vmatprep.subr.mxu0 0.0
      %8639 = vmatpush1.msra.mxu0 0.0
      %8640 = vmatprep.subr.mxu0 0.0
      %8641 = vmatpush1.msra.mxu0 0.0
      %8642 = vmatprep.subr.mxu0 0.0
      %8643 = vmatpush1.msra.mxu0 0.0
      %8644 = vmatprep.subr.mxu0 0.0
      %8645 = vmatpush1.msra.mxu0 0.0
      %8646 = vmatprep.subr.mxu0 0.0
      %8647 = vmatpush1.msra.mxu0 0.0
      %8648 = vmatprep.subr.mxu0 0.0
      %8649 = vmatpush1.msra.mxu0 0.0
      %8650 = vmatprep.subr.mxu0 0.0
      %8651 = vmatpush1.msra.mxu0 0.0
      %8652 = vmatprep.subr.mxu0 0.0
      %8653 = vmatpush1.msra.mxu0 0.0
      %8654 = vmatprep.subr.mxu0 0.0
      %8655 = vmatpush1.msra.mxu0 0.0
      %8656 = vmatprep.subr.mxu0 0.0
      %8657 = vmatpush1.msra.mxu0 0.0
      %8658 = vmatprep.subr.mxu0 0.0
      %8659 = vmatpush1.msra.mxu0 %v8626
      %8660 = vmatprep.subr.mxu0 0.0
      %8661 = vmatpush2.msra.mxu0 0.0
      %8662 = vmatprep.subr.mxu0 0.0
      %8663 = vmatpush2.msra.mxu0 0.0
      %8664 = vmatprep.subr.mxu0 0.0
      %8665 = vmatpush2.msra.mxu0 0.0
      %8666 = vmatprep.subr.mxu0 0.0
      %8667 = vmatpush2.msra.mxu0 0.0
      %8668 = vmatprep.subr.mxu0 0.0
      %8669 = vmatpush2.msra.mxu0 0.0
      %8670 = vmatprep.subr.mxu0 0.0
      %8671 = vmatpush2.msra.mxu0 0.0
      %8672 = vmatprep.subr.mxu0 0.0
      %8673 = vmatpush2.msra.mxu0 0.0
      %8674 = vmatprep.subr.mxu0 0.0
      %8675 = vmatpush2.msra.mxu0 0.0
      %8676 = vmatprep.subr.mxu0 0.0
      %8677 = vmatpush2.msra.mxu0 0.0
      %8678 = vmatprep.subr.mxu0 0.0
      %8679 = vmatpush2.msra.mxu0 0.0
      %8680 = vmatprep.subr.mxu0 0.0
      %8681 = vmatpush2.msra.mxu0 0.0
      %8682 = vmatprep.subr.mxu0 0.0
      %8683 = vmatpush2.msra.mxu0 0.0
      %8684 = vmatprep.subr.mxu0 0.0
      %8685 = vmatpush2.msra.mxu0 0.0
      %8686 = vmatprep.subr.mxu0 0.0
      %8687 = vmatpush2.msra.mxu0 0.0
      %8688 = vmatprep.subr.mxu0 0.0
      %8689 = vmatpush2.msra.mxu0 0.0
      %8690 = vmatprep.subr.mxu0 0.0
      %8691 = vmatpush2.msra.mxu0 0.0
      %8692 = vmatprep.mubr.f32.mxu0 0.0
      %8693 = vmatmul.mubr.f32.gmra.mxu0 %v8518
      %v8694 = vpop.f32.mrf.mxu0
      %v8695 = vadd.f32 0.0, %v8694
      %v8696 = vpop.f32.mrf.mxu0
      %8697 = vmatprep.mubr.f32.mxu0 0.0
      %8698 = vmatmul.mubr.f32.gmra.mxu0 %v8521
      %v8699 = vpop.f32.mrf.mxu0
      %v8700 = vadd.f32 0.0, %v8699
      %v8701 = vpop.f32.mrf.mxu0
      %8702 = vmatprep.mubr.f32.mxu0 0.0
      %8703 = vmatmul.mubr.f32.gmra.mxu0 %v8524
      %v8704 = vpop.f32.mrf.mxu0
      %v8705 = vadd.f32 0.0, %v8704
      %v8706 = vpop.f32.mrf.mxu0
      %8707 = vmatprep.mubr.f32.mxu0 0.0
      %8708 = vmatmul.mubr.f32.gmra.mxu0 %v8527
      %v8709 = vpop.f32.mrf.mxu0
      %v8710 = vadd.f32 0.0, %v8709
      %v8711 = vpop.f32.mrf.mxu0
      %8712 = vmatprep.mubr.f32.mxu0 0.0
      %8713 = vmatmul.mubr.f32.gmra.mxu0 %v8530
      %v8714 = vpop.f32.mrf.mxu0
      %v8715 = vadd.f32 0.0, %v8714
      %v8716 = vpop.f32.mrf.mxu0
      %8717 = vmatprep.mubr.f32.mxu0 0.0
      %8718 = vmatmul.mubr.f32.gmra.mxu0 %v8533
      %v8719 = vpop.f32.mrf.mxu0
      %v8720 = vadd.f32 0.0, %v8719
      %v8721 = vpop.f32.mrf.mxu0
      %8722 = vmatprep.mubr.f32.mxu0 0.0
      %8723 = vmatmul.mubr.f32.gmra.mxu0 %v8536
      %v8724 = vpop.f32.mrf.mxu0
      %v8725 = vadd.f32 0.0, %v8724
      %v8726 = vpop.f32.mrf.mxu0
      %8727 = vmatprep.mubr.f32.mxu0 0.0
      %8728 = vmatmul.mubr.f32.gmra.mxu0 %v8539
      %v8729 = vpop.f32.mrf.mxu0
      %v8730 = vadd.f32 0.0, %v8729
      %v8731 = vpop.f32.mrf.mxu0
      %8732 = vmatprep.mubr.f32.mxu0 0.0
      %8733 = vmatmul.mubr.f32.gmra.mxu0 %v8542
      %v8734 = vpop.f32.mrf.mxu0
      %v8735 = vadd.f32 0.0, %v8734
      %v8736 = vpop.f32.mrf.mxu0
      %8737 = vmatprep.mubr.f32.mxu0 0.0
      %8738 = vmatmul.mubr.f32.gmra.mxu0 %v8545
      %v8739 = vpop.f32.mrf.mxu0
      %v8740 = vadd.f32 0.0, %v8739
      %v8741 = vpop.f32.mrf.mxu0
      %8742 = vmatprep.mubr.f32.mxu0 0.0
      %8743 = vmatmul.mubr.f32.gmra.mxu0 %v8548
      %v8744 = vpop.f32.mrf.mxu0
      %v8745 = vadd.f32 0.0, %v8744
      %v8746 = vpop.f32.mrf.mxu0
      %8747 = vmatprep.mubr.f32.mxu0 0.0
      %8748 = vmatmul.mubr.f32.gmra.mxu0 %v8551
      %v8749 = vpop.f32.mrf.mxu0
      %v8750 = vadd.f32 0.0, %v8749
      %v8751 = vpop.f32.mrf.mxu0
      %8752 = vmatprep.mubr.f32.mxu0 0.0
      %8753 = vmatmul.mubr.f32.gmra.mxu0 %v8554
      %v8754 = vpop.f32.mrf.mxu0
      %v8755 = vadd.f32 0.0, %v8754
      %v8756 = vpop.f32.mrf.mxu0
      %8757 = vmatprep.mubr.f32.mxu0 0.0
      %8758 = vmatmul.mubr.f32.gmra.mxu0 %v8557
      %v8759 = vpop.f32.mrf.mxu0
      %v8760 = vadd.f32 0.0, %v8759
      %v8761 = vpop.f32.mrf.mxu0
      %8762 = vmatprep.mubr.f32.mxu0 0.0
      %8763 = vmatmul.mubr.f32.gmra.mxu0 %v8560
      %v8764 = vpop.f32.mrf.mxu0
      %v8765 = vadd.f32 0.0, %v8764
      %v8766 = vpop.f32.mrf.mxu0
      %8767 = vmatprep.mubr.f32.mxu0 0.0
      %8768 = vmatmul.mubr.f32.gmra.mxu0 %v8563
      %v8769 = vpop.f32.mrf.mxu0
      %v8770 = vadd.f32 0.0, %v8769
      %v8771 = vpop.f32.mrf.mxu0
      %8772 = vmatprep.mubr.f32.mxu0 0.0
      %8773 = vmatmul.mubr.f32.gmra.mxu0 %v8566
      %v8774 = vpop.f32.mrf.mxu0
      %v8775 = vadd.f32 0.0, %v8774
      %v8776 = vpop.f32.mrf.mxu0
      %8777 = vmatprep.mubr.f32.mxu0 0.0
      %8778 = vmatmul.mubr.f32.gmra.mxu0 %v8569
      %v8779 = vpop.f32.mrf.mxu0
      %v8780 = vadd.f32 0.0, %v8779
      %v8781 = vpop.f32.mrf.mxu0
      %8782 = vmatprep.mubr.f32.mxu0 0.0
      %8783 = vmatmul.mubr.f32.gmra.mxu0 %v8572
      %v8784 = vpop.f32.mrf.mxu0
      %v8785 = vadd.f32 0.0, %v8784
      %v8786 = vpop.f32.mrf.mxu0
      %8787 = vmatprep.mubr.f32.mxu0 0.0
      %8788 = vmatmul.mubr.f32.gmra.mxu0 %v8575
      %v8789 = vpop.f32.mrf.mxu0
      %v8790 = vadd.f32 0.0, %v8789
      %v8791 = vpop.f32.mrf.mxu0
      %8792 = vmatprep.mubr.f32.mxu0 0.0
      %8793 = vmatmul.mubr.f32.gmra.mxu0 %v8578
      %v8794 = vpop.f32.mrf.mxu0
      %v8795 = vadd.f32 0.0, %v8794
      %v8796 = vpop.f32.mrf.mxu0
      %8797 = vmatprep.mubr.f32.mxu0 0.0
      %8798 = vmatmul.mubr.f32.gmra.mxu0 %v8581
      %v8799 = vpop.f32.mrf.mxu0
      %v8800 = vadd.f32 0.0, %v8799
      %v8801 = vpop.f32.mrf.mxu0
      %8802 = vmatprep.mubr.f32.mxu0 0.0
      %8803 = vmatmul.mubr.f32.gmra.mxu0 %v8584
      %v8804 = vpop.f32.mrf.mxu0
      %v8805 = vadd.f32 0.0, %v8804
      %v8806 = vpop.f32.mrf.mxu0
      %8807 = vmatprep.mubr.f32.mxu0 0.0
      %8808 = vmatmul.mubr.f32.gmra.mxu0 %v8587
      %v8809 = vpop.f32.mrf.mxu0
      %v8810 = vadd.f32 0.0, %v8809
      %v8811 = vpop.f32.mrf.mxu0
      %8812 = vmatprep.mubr.f32.mxu0 0.0
      %8813 = vmatmul.mubr.f32.gmra.mxu0 %v8590
      %v8814 = vpop.f32.mrf.mxu0
      %v8815 = vadd.f32 0.0, %v8814
      %v8816 = vpop.f32.mrf.mxu0
      %8817 = vmatprep.mubr.f32.mxu0 0.0
      %8818 = vmatmul.mubr.f32.gmra.mxu0 %v8593
      %v8819 = vpop.f32.mrf.mxu0
      %v8820 = vadd.f32 0.0, %v8819
      %v8821 = vpop.f32.mrf.mxu0
      %8822 = vmatprep.mubr.f32.mxu0 0.0
      %8823 = vmatmul.mubr.f32.gmra.mxu0 %v8596
      %v8824 = vpop.f32.mrf.mxu0
      %v8825 = vadd.f32 0.0, %v8824
      %v8826 = vpop.f32.mrf.mxu0
      %8827 = vmatprep.mubr.f32.mxu0 0.0
      %8828 = vmatmul.mubr.f32.gmra.mxu0 %v8599
      %v8829 = vpop.f32.mrf.mxu0
      %v8830 = vadd.f32 0.0, %v8829
      %v8831 = vpop.f32.mrf.mxu0
      %8832 = vmatprep.mubr.f32.mxu0 0.0
      %8833 = vmatmul.mubr.f32.gmra.mxu0 %v8602
      %v8834 = vpop.f32.mrf.mxu0
      %v8835 = vadd.f32 0.0, %v8834
      %v8836 = vpop.f32.mrf.mxu0
      %8837 = vmatprep.mubr.f32.mxu0 0.0
      %8838 = vmatmul.mubr.f32.gmra.mxu0 %v8605
      %v8839 = vpop.f32.mrf.mxu0
      %v8840 = vadd.f32 0.0, %v8839
      %v8841 = vpop.f32.mrf.mxu0
      %8842 = vmatprep.mubr.f32.mxu0 0.0
      %8843 = vmatmul.mubr.f32.gmra.mxu0 %v8608
      %v8844 = vpop.f32.mrf.mxu0
      %v8845 = vadd.f32 0.0, %v8844
      %v8846 = vpop.f32.mrf.mxu0
      %8847 = vmatprep.mubr.f32.mxu0 0.0
      %8848 = vmatmul.mubr.f32.gmra.mxu0 %v8611
      %v8849 = vpop.f32.mrf.mxu0
      %v8850 = vadd.f32 0.0, %v8849
      %v8851 = vpop.f32.mrf.mxu0
      %8852 = vmatprep.mubr.f32.mxu0 0.0
      %8853 = vmatmul.mubr.f32.gmra.mxu0 %v8614
      %v8854 = vpop.f32.mrf.mxu0
      %v8855 = vadd.f32 0.0, %v8854
      %v8856 = vpop.f32.mrf.mxu0
      %8857 = vmatprep.mubr.f32.mxu0 0.0
      %8858 = vmatmul.mubr.f32.gmra.mxu0 %v8617
      %v8859 = vpop.f32.mrf.mxu0
      %v8860 = vadd.f32 0.0, %v8859
      %v8861 = vpop.f32.mrf.mxu0
      %8862 = vmatprep.mubr.f32.mxu0 0.0
      %8863 = vmatmul.mubr.f32.gmra.mxu0 %v8620
      %v8864 = vpop.f32.mrf.mxu0
      %v8865 = vadd.f32 0.0, %v8864
      %v8866 = vpop.f32.mrf.mxu0
      %8867 = vmatprep.mubr.f32.mxu0 0.0
      %8868 = vmatmul.mubr.f32.gmra.mxu0 %v8623
      %v8869 = vpop.f32.mrf.mxu0
      %v8870 = vadd.f32 0.0, %v8869
      %v8871 = vpop.f32.mrf.mxu0
      %8872 = vdwg.mxu0
      %v8874 = vsel %vm401, %v8442, 0
      %v8877 = vsel %vm401, %v8443, 0
      %v8880 = vsel %vm401, %v8444, 0
      %v8883 = vsel %vm401, %v8445, 0
      %v8886 = vsel %vm401, %v8446, 0
      %v8889 = vsel %vm401, %v8447, 0
      %v8892 = vsel %vm401, %v8448, 0
      %v8895 = vsel %vm401, %v8449, 0
      %v8898 = vsel %vm401, %v8450, 0
      %v8901 = vsel %vm401, %v8451, 0
      %v8904 = vsel %vm401, %v8452, 0
      %v8907 = vsel %vm401, %v8453, 0
      %v8910 = vsel %vm401, %v8454, 0
      %v8913 = vsel %vm401, %v8455, 0
      %v8916 = vsel %vm401, %v8456, 0
      %v8919 = vsel %vm401, %v8457, 0
      %v8922 = vsel %vm401, %v8458, 0
      %v8925 = vsel %vm401, %v8459, 0
      %v8928 = vsel %vm401, %v8460, 0
      %v8931 = vsel %vm401, %v8461, 0
      %v8934 = vsel %vm401, %v8462, 0
      %v8937 = vsel %vm401, %v8463, 0
      %v8940 = vsel %vm401, %v8464, 0
      %v8943 = vsel %vm401, %v8465, 0
      %v8946 = vsel %vm401, %v8466, 0
      %v8949 = vsel %vm401, %v8467, 0
      %v8952 = vsel %vm401, %v8468, 0
      %v8955 = vsel %vm401, %v8469, 0
      %v8958 = vsel %vm401, %v8470, 0
      %v8961 = vsel %vm401, %v8471, 0
      %v8964 = vsel %vm401, %v8472, 0
      %v8967 = vsel %vm401, %v8473, 0
      %v8970 = vsel %vm401, %v8474, 0
      %v8973 = vsel %vm401, %v8475, 0
      %v8976 = vsel %vm401, %v8476, 0
      %v8979 = vsel %vm401, %v8477, 0
      %v8982 = vsel %vm510, %v8478, 0
      %8984 = vmatprep.subr.mxu0 0.0
      %8985 = vmatpush1.msra.mxu0 0.0
      %8986 = vmatprep.subr.mxu0 0.0
      %8987 = vmatpush1.msra.mxu0 0.0
      %8988 = vmatprep.subr.mxu0 0.0
      %8989 = vmatpush1.msra.mxu0 0.0
      %8990 = vmatprep.subr.mxu0 0.0
      %8991 = vmatpush1.msra.mxu0 0.0
      %8992 = vmatprep.subr.mxu0 0.0
      %8993 = vmatpush1.msra.mxu0 0.0
      %8994 = vmatprep.subr.mxu0 0.0
      %8995 = vmatpush1.msra.mxu0 0.0
      %8996 = vmatprep.subr.mxu0 0.0
      %8997 = vmatpush1.msra.mxu0 0.0
      %8998 = vmatprep.subr.mxu0 0.0
      %8999 = vmatpush1.msra.mxu0 0.0
      %9000 = vmatprep.subr.mxu0 0.0
      %9001 = vmatpush1.msra.mxu0 0.0
      %9002 = vmatprep.subr.mxu0 0.0
      %9003 = vmatpush1.msra.mxu0 0.0
      %9004 = vmatprep.subr.mxu0 0.0
      %9005 = vmatpush1.msra.mxu0 0.0
      %9006 = vmatprep.subr.mxu0 0.0
      %9007 = vmatpush1.msra.mxu0 0.0
      %9008 = vmatprep.subr.mxu0 0.0
      %9009 = vmatpush1.msra.mxu0 0.0
      %9010 = vmatprep.subr.mxu0 0.0
      %9011 = vmatpush1.msra.mxu0 0.0
      %9012 = vmatprep.subr.mxu0 0.0
      %9013 = vmatpush1.msra.mxu0 0.0
      %9014 = vmatprep.subr.mxu0 0.0
      %9015 = vmatpush1.msra.mxu0 %v8982
      %9016 = vmatprep.subr.mxu0 0.0
      %9017 = vmatpush2.msra.mxu0 0.0
      %9018 = vmatprep.subr.mxu0 0.0
      %9019 = vmatpush2.msra.mxu0 0.0
      %9020 = vmatprep.subr.mxu0 0.0
      %9021 = vmatpush2.msra.mxu0 0.0
      %9022 = vmatprep.subr.mxu0 0.0
      %9023 = vmatpush2.msra.mxu0 0.0
      %9024 = vmatprep.subr.mxu0 0.0
      %9025 = vmatpush2.msra.mxu0 0.0
      %9026 = vmatprep.subr.mxu0 0.0
      %9027 = vmatpush2.msra.mxu0 0.0
      %9028 = vmatprep.subr.mxu0 0.0
      %9029 = vmatpush2.msra.mxu0 0.0
      %9030 = vmatprep.subr.mxu0 0.0
      %9031 = vmatpush2.msra.mxu0 0.0
      %9032 = vmatprep.subr.mxu0 0.0
      %9033 = vmatpush2.msra.mxu0 0.0
      %9034 = vmatprep.subr.mxu0 0.0
      %9035 = vmatpush2.msra.mxu0 0.0
      %9036 = vmatprep.subr.mxu0 0.0
      %9037 = vmatpush2.msra.mxu0 0.0
      %9038 = vmatprep.subr.mxu0 0.0
      %9039 = vmatpush2.msra.mxu0 0.0
      %9040 = vmatprep.subr.mxu0 0.0
      %9041 = vmatpush2.msra.mxu0 0.0
      %9042 = vmatprep.subr.mxu0 0.0
      %9043 = vmatpush2.msra.mxu0 0.0
      %9044 = vmatprep.subr.mxu0 0.0
      %9045 = vmatpush2.msra.mxu0 0.0
      %9046 = vmatprep.subr.mxu0 0.0
      %9047 = vmatpush2.msra.mxu0 0.0
      %9048 = vmatprep.mubr.f32.mxu0 0.0
      %9049 = vmatmul.mubr.f32.gmra.mxu0 %v8874
      %v9050 = vpop.f32.mrf.mxu0
      %v9051 = vadd.f32 %v8695, %v9050
      %v9052 = vpop.f32.mrf.mxu0
      %9053 = vmatprep.mubr.f32.mxu0 0.0
      %9054 = vmatmul.mubr.f32.gmra.mxu0 %v8877
      %v9055 = vpop.f32.mrf.mxu0
      %v9056 = vadd.f32 %v8700, %v9055
      %v9057 = vpop.f32.mrf.mxu0
      %9058 = vmatprep.mubr.f32.mxu0 0.0
      %9059 = vmatmul.mubr.f32.gmra.mxu0 %v8880
      %v9060 = vpop.f32.mrf.mxu0
      %v9061 = vadd.f32 %v8705, %v9060
      %v9062 = vpop.f32.mrf.mxu0
      %9063 = vmatprep.mubr.f32.mxu0 0.0
      %9064 = vmatmul.mubr.f32.gmra.mxu0 %v8883
      %v9065 = vpop.f32.mrf.mxu0
      %v9066 = vadd.f32 %v8710, %v9065
      %v9067 = vpop.f32.mrf.mxu0
      %9068 = vmatprep.mubr.f32.mxu0 0.0
      %9069 = vmatmul.mubr.f32.gmra.mxu0 %v8886
      %v9070 = vpop.f32.mrf.mxu0
      %v9071 = vadd.f32 %v8715, %v9070
      %v9072 = vpop.f32.mrf.mxu0
      %9073 = vmatprep.mubr.f32.mxu0 0.0
      %9074 = vmatmul.mubr.f32.gmra.mxu0 %v8889
      %v9075 = vpop.f32.mrf.mxu0
      %v9076 = vadd.f32 %v8720, %v9075
      %v9077 = vpop.f32.mrf.mxu0
      %9078 = vmatprep.mubr.f32.mxu0 0.0
      %9079 = vmatmul.mubr.f32.gmra.mxu0 %v8892
      %v9080 = vpop.f32.mrf.mxu0
      %v9081 = vadd.f32 %v8725, %v9080
      %v9082 = vpop.f32.mrf.mxu0
      %9083 = vmatprep.mubr.f32.mxu0 0.0
      %9084 = vmatmul.mubr.f32.gmra.mxu0 %v8895
      %v9085 = vpop.f32.mrf.mxu0
      %v9086 = vadd.f32 %v8730, %v9085
      %v9087 = vpop.f32.mrf.mxu0
      %9088 = vmatprep.mubr.f32.mxu0 0.0
      %9089 = vmatmul.mubr.f32.gmra.mxu0 %v8898
      %v9090 = vpop.f32.mrf.mxu0
      %v9091 = vadd.f32 %v8735, %v9090
      %v9092 = vpop.f32.mrf.mxu0
      %9093 = vmatprep.mubr.f32.mxu0 0.0
      %9094 = vmatmul.mubr.f32.gmra.mxu0 %v8901
      %v9095 = vpop.f32.mrf.mxu0
      %v9096 = vadd.f32 %v8740, %v9095
      %v9097 = vpop.f32.mrf.mxu0
      %9098 = vmatprep.mubr.f32.mxu0 0.0
      %9099 = vmatmul.mubr.f32.gmra.mxu0 %v8904
      %v9100 = vpop.f32.mrf.mxu0
      %v9101 = vadd.f32 %v8745, %v9100
      %v9102 = vpop.f32.mrf.mxu0
      %9103 = vmatprep.mubr.f32.mxu0 0.0
      %9104 = vmatmul.mubr.f32.gmra.mxu0 %v8907
      %v9105 = vpop.f32.mrf.mxu0
      %v9106 = vadd.f32 %v8750, %v9105
      %v9107 = vpop.f32.mrf.mxu0
      %9108 = vmatprep.mubr.f32.mxu0 0.0
      %9109 = vmatmul.mubr.f32.gmra.mxu0 %v8910
      %v9110 = vpop.f32.mrf.mxu0
      %v9111 = vadd.f32 %v8755, %v9110
      %v9112 = vpop.f32.mrf.mxu0
      %9113 = vmatprep.mubr.f32.mxu0 0.0
      %9114 = vmatmul.mubr.f32.gmra.mxu0 %v8913
      %v9115 = vpop.f32.mrf.mxu0
      %v9116 = vadd.f32 %v8760, %v9115
      %v9117 = vpop.f32.mrf.mxu0
      %9118 = vmatprep.mubr.f32.mxu0 0.0
      %9119 = vmatmul.mubr.f32.gmra.mxu0 %v8916
      %v9120 = vpop.f32.mrf.mxu0
      %v9121 = vadd.f32 %v8765, %v9120
      %v9122 = vpop.f32.mrf.mxu0
      %9123 = vmatprep.mubr.f32.mxu0 0.0
      %9124 = vmatmul.mubr.f32.gmra.mxu0 %v8919
      %v9125 = vpop.f32.mrf.mxu0
      %v9126 = vadd.f32 %v8770, %v9125
      %v9127 = vpop.f32.mrf.mxu0
      %9128 = vmatprep.mubr.f32.mxu0 0.0
      %9129 = vmatmul.mubr.f32.gmra.mxu0 %v8922
      %v9130 = vpop.f32.mrf.mxu0
      %v9131 = vadd.f32 %v8775, %v9130
      %v9132 = vpop.f32.mrf.mxu0
      %9133 = vmatprep.mubr.f32.mxu0 0.0
      %9134 = vmatmul.mubr.f32.gmra.mxu0 %v8925
      %v9135 = vpop.f32.mrf.mxu0
      %v9136 = vadd.f32 %v8780, %v9135
      %v9137 = vpop.f32.mrf.mxu0
      %9138 = vmatprep.mubr.f32.mxu0 0.0
      %9139 = vmatmul.mubr.f32.gmra.mxu0 %v8928
      %v9140 = vpop.f32.mrf.mxu0
      %v9141 = vadd.f32 %v8785, %v9140
      %v9142 = vpop.f32.mrf.mxu0
      %9143 = vmatprep.mubr.f32.mxu0 0.0
      %9144 = vmatmul.mubr.f32.gmra.mxu0 %v8931
      %v9145 = vpop.f32.mrf.mxu0
      %v9146 = vadd.f32 %v8790, %v9145
      %v9147 = vpop.f32.mrf.mxu0
      %9148 = vmatprep.mubr.f32.mxu0 0.0
      %9149 = vmatmul.mubr.f32.gmra.mxu0 %v8934
      %v9150 = vpop.f32.mrf.mxu0
      %v9151 = vadd.f32 %v8795, %v9150
      %v9152 = vpop.f32.mrf.mxu0
      %9153 = vmatprep.mubr.f32.mxu0 0.0
      %9154 = vmatmul.mubr.f32.gmra.mxu0 %v8937
      %v9155 = vpop.f32.mrf.mxu0
      %v9156 = vadd.f32 %v8800, %v9155
      %v9157 = vpop.f32.mrf.mxu0
      %9158 = vmatprep.mubr.f32.mxu0 0.0
      %9159 = vmatmul.mubr.f32.gmra.mxu0 %v8940
      %v9160 = vpop.f32.mrf.mxu0
      %v9161 = vadd.f32 %v8805, %v9160
      %v9162 = vpop.f32.mrf.mxu0
      %9163 = vmatprep.mubr.f32.mxu0 0.0
      %9164 = vmatmul.mubr.f32.gmra.mxu0 %v8943
      %v9165 = vpop.f32.mrf.mxu0
      %v9166 = vadd.f32 %v8810, %v9165
      %v9167 = vpop.f32.mrf.mxu0
      %9168 = vmatprep.mubr.f32.mxu0 0.0
      %9169 = vmatmul.mubr.f32.gmra.mxu0 %v8946
      %v9170 = vpop.f32.mrf.mxu0
      %v9171 = vadd.f32 %v8815, %v9170
      %v9172 = vpop.f32.mrf.mxu0
      %9173 = vmatprep.mubr.f32.mxu0 0.0
      %9174 = vmatmul.mubr.f32.gmra.mxu0 %v8949
      %v9175 = vpop.f32.mrf.mxu0
      %v9176 = vadd.f32 %v8820, %v9175
      %v9177 = vpop.f32.mrf.mxu0
      %9178 = vmatprep.mubr.f32.mxu0 0.0
      %9179 = vmatmul.mubr.f32.gmra.mxu0 %v8952
      %v9180 = vpop.f32.mrf.mxu0
      %v9181 = vadd.f32 %v8825, %v9180
      %v9182 = vpop.f32.mrf.mxu0
      %9183 = vmatprep.mubr.f32.mxu0 0.0
      %9184 = vmatmul.mubr.f32.gmra.mxu0 %v8955
      %v9185 = vpop.f32.mrf.mxu0
      %v9186 = vadd.f32 %v8830, %v9185
      %v9187 = vpop.f32.mrf.mxu0
      %9188 = vmatprep.mubr.f32.mxu0 0.0
      %9189 = vmatmul.mubr.f32.gmra.mxu0 %v8958
      %v9190 = vpop.f32.mrf.mxu0
      %v9191 = vadd.f32 %v8835, %v9190
      %v9192 = vpop.f32.mrf.mxu0
      %9193 = vmatprep.mubr.f32.mxu0 0.0
      %9194 = vmatmul.mubr.f32.gmra.mxu0 %v8961
      %v9195 = vpop.f32.mrf.mxu0
      %v9196 = vadd.f32 %v8840, %v9195
      %v9197 = vpop.f32.mrf.mxu0
      %9198 = vmatprep.mubr.f32.mxu0 0.0
      %9199 = vmatmul.mubr.f32.gmra.mxu0 %v8964
      %v9200 = vpop.f32.mrf.mxu0
      %v9201 = vadd.f32 %v8845, %v9200
      %v9202 = vpop.f32.mrf.mxu0
      %9203 = vmatprep.mubr.f32.mxu0 0.0
      %9204 = vmatmul.mubr.f32.gmra.mxu0 %v8967
      %v9205 = vpop.f32.mrf.mxu0
      %v9206 = vadd.f32 %v8850, %v9205
      %v9207 = vpop.f32.mrf.mxu0
      %9208 = vmatprep.mubr.f32.mxu0 0.0
      %9209 = vmatmul.mubr.f32.gmra.mxu0 %v8970
      %v9210 = vpop.f32.mrf.mxu0
      %v9211 = vadd.f32 %v8855, %v9210
      %v9212 = vpop.f32.mrf.mxu0
      %9213 = vmatprep.mubr.f32.mxu0 0.0
      %9214 = vmatmul.mubr.f32.gmra.mxu0 %v8973
      %v9215 = vpop.f32.mrf.mxu0
      %v9216 = vadd.f32 %v8860, %v9215
      %v9217 = vpop.f32.mrf.mxu0
      %9218 = vmatprep.mubr.f32.mxu0 0.0
      %9219 = vmatmul.mubr.f32.gmra.mxu0 %v8976
      %v9220 = vpop.f32.mrf.mxu0
      %v9221 = vadd.f32 %v8865, %v9220
      %v9222 = vpop.f32.mrf.mxu0
      %9223 = vmatprep.mubr.f32.mxu0 0.0
      %9224 = vmatmul.mubr.f32.gmra.mxu0 %v8979
      %v9225 = vpop.f32.mrf.mxu0
      %v9226 = vadd.f32 %v8870, %v9225
      %v9227 = vpop.f32.mrf.mxu0
      %9228 = vdwg.mxu0
      %v9229 = vld [vmem:[#allocation2 + $0x7] sm:$0xff]
      %v9230 = vld [vmem:[#allocation2 + $0xf] sm:$0xff]
      %v9231 = vld [vmem:[#allocation2 + $0x17] sm:$0xff]
      %v9232 = vld [vmem:[#allocation2 + $0x1f] sm:$0xff]
      %v9233 = vld [vmem:[#allocation2 + $0x27] sm:$0xff]
      %v9234 = vld [vmem:[#allocation2 + $0x2f] sm:$0xff]
      %v9235 = vld [vmem:[#allocation2 + $0x37] sm:$0xff]
      %v9236 = vld [vmem:[#allocation2 + $0x3f] sm:$0xff]
      %v9237 = vld [vmem:[#allocation2 + $0x47] sm:$0xff]
      %v9238 = vld [vmem:[#allocation2 + $0x4f] sm:$0xff]
      %v9239 = vld [vmem:[#allocation2 + $0x57] sm:$0xff]
      %v9240 = vld [vmem:[#allocation2 + $0x5f] sm:$0xff]
      %v9241 = vld [vmem:[#allocation2 + $0x67] sm:$0xff]
      %v9242 = vld [vmem:[#allocation2 + $0x6f] sm:$0xff]
      %v9243 = vld [vmem:[#allocation2 + $0x77] sm:$0xff]
      %v9244 = vld [vmem:[#allocation2 + $0x7f] sm:$0xff]
      %v9245 = vld [vmem:[#allocation2 + $0x87] sm:$0xff]
      %v9246 = vld [vmem:[#allocation2 + $0x8f] sm:$0xff]
      %v9247 = vld [vmem:[#allocation2 + $0x97] sm:$0xff]
      %v9248 = vld [vmem:[#allocation2 + $0x9f] sm:$0xff]
      %v9249 = vld [vmem:[#allocation2 + $0xa7] sm:$0xff]
      %v9250 = vld [vmem:[#allocation2 + $0xaf] sm:$0xff]
      %v9251 = vld [vmem:[#allocation2 + $0xb7] sm:$0xff]
      %v9252 = vld [vmem:[#allocation2 + $0xbf] sm:$0xff]
      %v9253 = vld [vmem:[#allocation2 + $0xc7] sm:$0xff]
      %v9254 = vld [vmem:[#allocation2 + $0xcf] sm:$0xff]
      %v9255 = vld [vmem:[#allocation2 + $0xd7] sm:$0xff]
      %v9256 = vld [vmem:[#allocation2 + $0xdf] sm:$0xff]
      %v9257 = vld [vmem:[#allocation2 + $0xe7] sm:$0xff]
      %v9258 = vld [vmem:[#allocation2 + $0xef] sm:$0xff]
      %v9259 = vld [vmem:[#allocation2 + $0xf7] sm:$0xff]
      %v9260 = vld [vmem:[#allocation2 + $0xff] sm:$0xff]
      %v9261 = vld [vmem:[#allocation2 + $0x107] sm:$0xff]
      %v9262 = vld [vmem:[#allocation2 + $0x10f] sm:$0xff]
      %v9263 = vld [vmem:[#allocation2 + $0x117] sm:$0xff]
      %v9264 = vld [vmem:[#allocation2 + $0x11f] sm:$0xff]
      %s9265 = scalar_lea.vmem %s6, 8
      %v9266 = vld [vmem:[%s9265] sm:$0xf]
      %v9268 = vsel %vm401, %v9229, 0
      %v9271 = vsel %vm401, %v9230, 0
      %v9274 = vsel %vm401, %v9231, 0
      %v9277 = vsel %vm401, %v9232, 0
      %v9280 = vsel %vm401, %v9233, 0
      %v9283 = vsel %vm401, %v9234, 0
      %v9286 = vsel %vm401, %v9235, 0
      %v9289 = vsel %vm401, %v9236, 0
      %v9292 = vsel %vm401, %v9237, 0
      %v9295 = vsel %vm401, %v9238, 0
      %v9298 = vsel %vm401, %v9239, 0
      %v9301 = vsel %vm401, %v9240, 0
      %v9304 = vsel %vm401, %v9241, 0
      %v9307 = vsel %vm401, %v9242, 0
      %v9310 = vsel %vm401, %v9243, 0
      %v9313 = vsel %vm401, %v9244, 0
      %v9316 = vsel %vm401, %v9245, 0
      %v9319 = vsel %vm401, %v9246, 0
      %v9322 = vsel %vm401, %v9247, 0
      %v9325 = vsel %vm401, %v9248, 0
      %v9328 = vsel %vm401, %v9249, 0
      %v9331 = vsel %vm401, %v9250, 0
      %v9334 = vsel %vm401, %v9251, 0
      %v9337 = vsel %vm401, %v9252, 0
      %v9340 = vsel %vm401, %v9253, 0
      %v9343 = vsel %vm401, %v9254, 0
      %v9346 = vsel %vm401, %v9255, 0
      %v9349 = vsel %vm401, %v9256, 0
      %v9352 = vsel %vm401, %v9257, 0
      %v9355 = vsel %vm401, %v9258, 0
      %v9358 = vsel %vm401, %v9259, 0
      %v9361 = vsel %vm401, %v9260, 0
      %v9364 = vsel %vm401, %v9261, 0
      %v9367 = vsel %vm401, %v9262, 0
      %v9370 = vsel %vm401, %v9263, 0
      %v9373 = vsel %vm401, %v9264, 0
      %v9376 = vsel %vm510, %v9266, 0
      %9378 = vmatprep.subr.mxu0 0.0
      %9379 = vmatpush1.msra.mxu0 0.0
      %9380 = vmatprep.subr.mxu0 0.0
      %9381 = vmatpush1.msra.mxu0 0.0
      %9382 = vmatprep.subr.mxu0 0.0
      %9383 = vmatpush1.msra.mxu0 0.0
      %9384 = vmatprep.subr.mxu0 0.0
      %9385 = vmatpush1.msra.mxu0 0.0
      %9386 = vmatprep.subr.mxu0 0.0
      %9387 = vmatpush1.msra.mxu0 0.0
      %9388 = vmatprep.subr.mxu0 0.0
      %9389 = vmatpush1.msra.mxu0 0.0
      %9390 = vmatprep.subr.mxu0 0.0
      %9391 = vmatpush1.msra.mxu0 0.0
      %9392 = vmatprep.subr.mxu0 0.0
      %9393 = vmatpush1.msra.mxu0 0.0
      %9394 = vmatprep.subr.mxu0 0.0
      %9395 = vmatpush1.msra.mxu0 0.0
      %9396 = vmatprep.subr.mxu0 0.0
      %9397 = vmatpush1.msra.mxu0 0.0
      %9398 = vmatprep.subr.mxu0 0.0
      %9399 = vmatpush1.msra.mxu0 0.0
      %9400 = vmatprep.subr.mxu0 0.0
      %9401 = vmatpush1.msra.mxu0 0.0
      %9402 = vmatprep.subr.mxu0 0.0
      %9403 = vmatpush1.msra.mxu0 0.0
      %9404 = vmatprep.subr.mxu0 0.0
      %9405 = vmatpush1.msra.mxu0 0.0
      %9406 = vmatprep.subr.mxu0 0.0
      %9407 = vmatpush1.msra.mxu0 0.0
      %9408 = vmatprep.subr.mxu0 0.0
      %9409 = vmatpush1.msra.mxu0 %v9376
      %9410 = vmatprep.subr.mxu0 0.0
      %9411 = vmatpush2.msra.mxu0 0.0
      %9412 = vmatprep.subr.mxu0 0.0
      %9413 = vmatpush2.msra.mxu0 0.0
      %9414 = vmatprep.subr.mxu0 0.0
      %9415 = vmatpush2.msra.mxu0 0.0
      %9416 = vmatprep.subr.mxu0 0.0
      %9417 = vmatpush2.msra.mxu0 0.0
      %9418 = vmatprep.subr.mxu0 0.0
      %9419 = vmatpush2.msra.mxu0 0.0
      %9420 = vmatprep.subr.mxu0 0.0
      %9421 = vmatpush2.msra.mxu0 0.0
      %9422 = vmatprep.subr.mxu0 0.0
      %9423 = vmatpush2.msra.mxu0 0.0
      %9424 = vmatprep.subr.mxu0 0.0
      %9425 = vmatpush2.msra.mxu0 0.0
      %9426 = vmatprep.subr.mxu0 0.0
      %9427 = vmatpush2.msra.mxu0 0.0
      %9428 = vmatprep.subr.mxu0 0.0
      %9429 = vmatpush2.msra.mxu0 0.0
      %9430 = vmatprep.subr.mxu0 0.0
      %9431 = vmatpush2.msra.mxu0 0.0
      %9432 = vmatprep.subr.mxu0 0.0
      %9433 = vmatpush2.msra.mxu0 0.0
      %9434 = vmatprep.subr.mxu0 0.0
      %9435 = vmatpush2.msra.mxu0 0.0
      %9436 = vmatprep.subr.mxu0 0.0
      %9437 = vmatpush2.msra.mxu0 0.0
      %9438 = vmatprep.subr.mxu0 0.0
      %9439 = vmatpush2.msra.mxu0 0.0
      %9440 = vmatprep.subr.mxu0 0.0
      %9441 = vmatpush2.msra.mxu0 0.0
      %9442 = vmatprep.mubr.f32.mxu0 0.0
      %9443 = vmatmul.mubr.f32.gmra.mxu0 %v9268
      %v9444 = vpop.f32.mrf.mxu0
      %v9445 = vadd.f32 0.0, %v9444
      %v9446 = vpop.f32.mrf.mxu0
      %9447 = vmatprep.mubr.f32.mxu0 0.0
      %9448 = vmatmul.mubr.f32.gmra.mxu0 %v9271
      %v9449 = vpop.f32.mrf.mxu0
      %v9450 = vadd.f32 0.0, %v9449
      %v9451 = vpop.f32.mrf.mxu0
      %9452 = vmatprep.mubr.f32.mxu0 0.0
      %9453 = vmatmul.mubr.f32.gmra.mxu0 %v9274
      %v9454 = vpop.f32.mrf.mxu0
      %v9455 = vadd.f32 0.0, %v9454
      %v9456 = vpop.f32.mrf.mxu0
      %9457 = vmatprep.mubr.f32.mxu0 0.0
      %9458 = vmatmul.mubr.f32.gmra.mxu0 %v9277
      %v9459 = vpop.f32.mrf.mxu0
      %v9460 = vadd.f32 0.0, %v9459
      %v9461 = vpop.f32.mrf.mxu0
      %9462 = vmatprep.mubr.f32.mxu0 0.0
      %9463 = vmatmul.mubr.f32.gmra.mxu0 %v9280
      %v9464 = vpop.f32.mrf.mxu0
      %v9465 = vadd.f32 0.0, %v9464
      %v9466 = vpop.f32.mrf.mxu0
      %9467 = vmatprep.mubr.f32.mxu0 0.0
      %9468 = vmatmul.mubr.f32.gmra.mxu0 %v9283
      %v9469 = vpop.f32.mrf.mxu0
      %v9470 = vadd.f32 0.0, %v9469
      %v9471 = vpop.f32.mrf.mxu0
      %9472 = vmatprep.mubr.f32.mxu0 0.0
      %9473 = vmatmul.mubr.f32.gmra.mxu0 %v9286
      %v9474 = vpop.f32.mrf.mxu0
      %v9475 = vadd.f32 0.0, %v9474
      %v9476 = vpop.f32.mrf.mxu0
      %9477 = vmatprep.mubr.f32.mxu0 0.0
      %9478 = vmatmul.mubr.f32.gmra.mxu0 %v9289
      %v9479 = vpop.f32.mrf.mxu0
      %v9480 = vadd.f32 0.0, %v9479
      %v9481 = vpop.f32.mrf.mxu0
      %9482 = vmatprep.mubr.f32.mxu0 0.0
      %9483 = vmatmul.mubr.f32.gmra.mxu0 %v9292
      %v9484 = vpop.f32.mrf.mxu0
      %v9485 = vadd.f32 0.0, %v9484
      %v9486 = vpop.f32.mrf.mxu0
      %9487 = vmatprep.mubr.f32.mxu0 0.0
      %9488 = vmatmul.mubr.f32.gmra.mxu0 %v9295
      %v9489 = vpop.f32.mrf.mxu0
      %v9490 = vadd.f32 0.0, %v9489
      %v9491 = vpop.f32.mrf.mxu0
      %9492 = vmatprep.mubr.f32.mxu0 0.0
      %9493 = vmatmul.mubr.f32.gmra.mxu0 %v9298
      %v9494 = vpop.f32.mrf.mxu0
      %v9495 = vadd.f32 0.0, %v9494
      %v9496 = vpop.f32.mrf.mxu0
      %9497 = vmatprep.mubr.f32.mxu0 0.0
      %9498 = vmatmul.mubr.f32.gmra.mxu0 %v9301
      %v9499 = vpop.f32.mrf.mxu0
      %v9500 = vadd.f32 0.0, %v9499
      %v9501 = vpop.f32.mrf.mxu0
      %9502 = vmatprep.mubr.f32.mxu0 0.0
      %9503 = vmatmul.mubr.f32.gmra.mxu0 %v9304
      %v9504 = vpop.f32.mrf.mxu0
      %v9505 = vadd.f32 0.0, %v9504
      %v9506 = vpop.f32.mrf.mxu0
      %9507 = vmatprep.mubr.f32.mxu0 0.0
      %9508 = vmatmul.mubr.f32.gmra.mxu0 %v9307
      %v9509 = vpop.f32.mrf.mxu0
      %v9510 = vadd.f32 0.0, %v9509
      %v9511 = vpop.f32.mrf.mxu0
      %9512 = vmatprep.mubr.f32.mxu0 0.0
      %9513 = vmatmul.mubr.f32.gmra.mxu0 %v9310
      %v9514 = vpop.f32.mrf.mxu0
      %v9515 = vadd.f32 0.0, %v9514
      %v9516 = vpop.f32.mrf.mxu0
      %9517 = vmatprep.mubr.f32.mxu0 0.0
      %9518 = vmatmul.mubr.f32.gmra.mxu0 %v9313
      %v9519 = vpop.f32.mrf.mxu0
      %v9520 = vadd.f32 0.0, %v9519
      %v9521 = vpop.f32.mrf.mxu0
      %9522 = vmatprep.mubr.f32.mxu0 0.0
      %9523 = vmatmul.mubr.f32.gmra.mxu0 %v9316
      %v9524 = vpop.f32.mrf.mxu0
      %v9525 = vadd.f32 0.0, %v9524
      %v9526 = vpop.f32.mrf.mxu0
      %9527 = vmatprep.mubr.f32.mxu0 0.0
      %9528 = vmatmul.mubr.f32.gmra.mxu0 %v9319
      %v9529 = vpop.f32.mrf.mxu0
      %v9530 = vadd.f32 0.0, %v9529
      %v9531 = vpop.f32.mrf.mxu0
      %9532 = vmatprep.mubr.f32.mxu0 0.0
      %9533 = vmatmul.mubr.f32.gmra.mxu0 %v9322
      %v9534 = vpop.f32.mrf.mxu0
      %v9535 = vadd.f32 0.0, %v9534
      %v9536 = vpop.f32.mrf.mxu0
      %9537 = vmatprep.mubr.f32.mxu0 0.0
      %9538 = vmatmul.mubr.f32.gmra.mxu0 %v9325
      %v9539 = vpop.f32.mrf.mxu0
      %v9540 = vadd.f32 0.0, %v9539
      %v9541 = vpop.f32.mrf.mxu0
      %9542 = vmatprep.mubr.f32.mxu0 0.0
      %9543 = vmatmul.mubr.f32.gmra.mxu0 %v9328
      %v9544 = vpop.f32.mrf.mxu0
      %v9545 = vadd.f32 0.0, %v9544
      %v9546 = vpop.f32.mrf.mxu0
      %9547 = vmatprep.mubr.f32.mxu0 0.0
      %9548 = vmatmul.mubr.f32.gmra.mxu0 %v9331
      %v9549 = vpop.f32.mrf.mxu0
      %v9550 = vadd.f32 0.0, %v9549
      %v9551 = vpop.f32.mrf.mxu0
      %9552 = vmatprep.mubr.f32.mxu0 0.0
      %9553 = vmatmul.mubr.f32.gmra.mxu0 %v9334
      %v9554 = vpop.f32.mrf.mxu0
      %v9555 = vadd.f32 0.0, %v9554
      %v9556 = vpop.f32.mrf.mxu0
      %9557 = vmatprep.mubr.f32.mxu0 0.0
      %9558 = vmatmul.mubr.f32.gmra.mxu0 %v9337
      %v9559 = vpop.f32.mrf.mxu0
      %v9560 = vadd.f32 0.0, %v9559
      %v9561 = vpop.f32.mrf.mxu0
      %9562 = vmatprep.mubr.f32.mxu0 0.0
      %9563 = vmatmul.mubr.f32.gmra.mxu0 %v9340
      %v9564 = vpop.f32.mrf.mxu0
      %v9565 = vadd.f32 0.0, %v9564
      %v9566 = vpop.f32.mrf.mxu0
      %9567 = vmatprep.mubr.f32.mxu0 0.0
      %9568 = vmatmul.mubr.f32.gmra.mxu0 %v9343
      %v9569 = vpop.f32.mrf.mxu0
      %v9570 = vadd.f32 0.0, %v9569
      %v9571 = vpop.f32.mrf.mxu0
      %9572 = vmatprep.mubr.f32.mxu0 0.0
      %9573 = vmatmul.mubr.f32.gmra.mxu0 %v9346
      %v9574 = vpop.f32.mrf.mxu0
      %v9575 = vadd.f32 0.0, %v9574
      %v9576 = vpop.f32.mrf.mxu0
      %9577 = vmatprep.mubr.f32.mxu0 0.0
      %9578 = vmatmul.mubr.f32.gmra.mxu0 %v9349
      %v9579 = vpop.f32.mrf.mxu0
      %v9580 = vadd.f32 0.0, %v9579
      %v9581 = vpop.f32.mrf.mxu0
      %9582 = vmatprep.mubr.f32.mxu0 0.0
      %9583 = vmatmul.mubr.f32.gmra.mxu0 %v9352
      %v9584 = vpop.f32.mrf.mxu0
      %v9585 = vadd.f32 0.0, %v9584
      %v9586 = vpop.f32.mrf.mxu0
      %9587 = vmatprep.mubr.f32.mxu0 0.0
      %9588 = vmatmul.mubr.f32.gmra.mxu0 %v9355
      %v9589 = vpop.f32.mrf.mxu0
      %v9590 = vadd.f32 0.0, %v9589
      %v9591 = vpop.f32.mrf.mxu0
      %9592 = vmatprep.mubr.f32.mxu0 0.0
      %9593 = vmatmul.mubr.f32.gmra.mxu0 %v9358
      %v9594 = vpop.f32.mrf.mxu0
      %v9595 = vadd.f32 0.0, %v9594
      %v9596 = vpop.f32.mrf.mxu0
      %9597 = vmatprep.mubr.f32.mxu0 0.0
      %9598 = vmatmul.mubr.f32.gmra.mxu0 %v9361
      %v9599 = vpop.f32.mrf.mxu0
      %v9600 = vadd.f32 0.0, %v9599
      %v9601 = vpop.f32.mrf.mxu0
      %9602 = vmatprep.mubr.f32.mxu0 0.0
      %9603 = vmatmul.mubr.f32.gmra.mxu0 %v9364
      %v9604 = vpop.f32.mrf.mxu0
      %v9605 = vadd.f32 0.0, %v9604
      %v9606 = vpop.f32.mrf.mxu0
      %9607 = vmatprep.mubr.f32.mxu0 0.0
      %9608 = vmatmul.mubr.f32.gmra.mxu0 %v9367
      %v9609 = vpop.f32.mrf.mxu0
      %v9610 = vadd.f32 0.0, %v9609
      %v9611 = vpop.f32.mrf.mxu0
      %9612 = vmatprep.mubr.f32.mxu0 0.0
      %9613 = vmatmul.mubr.f32.gmra.mxu0 %v9370
      %v9614 = vpop.f32.mrf.mxu0
      %v9615 = vadd.f32 0.0, %v9614
      %v9616 = vpop.f32.mrf.mxu0
      %9617 = vmatprep.mubr.f32.mxu0 0.0
      %9618 = vmatmul.mubr.f32.gmra.mxu0 %v9373
      %v9619 = vpop.f32.mrf.mxu0
      %v9620 = vadd.f32 0.0, %v9619
      %v9621 = vpop.f32.mrf.mxu0
      %9622 = vdwg.mxu0
      %v9623 = vadd.f32 %v9051, %v9445
      %v9624 = vadd.f32 %v9056, %v9450
      %v9625 = vadd.f32 %v9061, %v9455
      %v9626 = vadd.f32 %v9066, %v9460
      %v9627 = vadd.f32 %v9071, %v9465
      %v9628 = vadd.f32 %v9076, %v9470
      %v9629 = vadd.f32 %v9081, %v9475
      %v9630 = vadd.f32 %v9086, %v9480
      %v9631 = vadd.f32 %v9091, %v9485
      %v9632 = vadd.f32 %v9096, %v9490
      %v9633 = vadd.f32 %v9101, %v9495
      %v9634 = vadd.f32 %v9106, %v9500
      %v9635 = vadd.f32 %v9111, %v9505
      %v9636 = vadd.f32 %v9116, %v9510
      %v9637 = vadd.f32 %v9121, %v9515
      %v9638 = vadd.f32 %v9126, %v9520
      %v9639 = vadd.f32 %v9131, %v9525
      %v9640 = vadd.f32 %v9136, %v9530
      %v9641 = vadd.f32 %v9141, %v9535
      %v9642 = vadd.f32 %v9146, %v9540
      %v9643 = vadd.f32 %v9151, %v9545
      %v9644 = vadd.f32 %v9156, %v9550
      %v9645 = vadd.f32 %v9161, %v9555
      %v9646 = vadd.f32 %v9166, %v9560
      %v9647 = vadd.f32 %v9171, %v9565
      %v9648 = vadd.f32 %v9176, %v9570
      %v9649 = vadd.f32 %v9181, %v9575
      %v9650 = vadd.f32 %v9186, %v9580
      %v9651 = vadd.f32 %v9191, %v9585
      %v9652 = vadd.f32 %v9196, %v9590
      %v9653 = vadd.f32 %v9201, %v9595
      %v9654 = vadd.f32 %v9206, %v9600
      %v9655 = vadd.f32 %v9211, %v9605
      %v9656 = vadd.f32 %v9216, %v9610
      %v9657 = vadd.f32 %v9221, %v9615
      %v9658 = vadd.f32 %v9226, %v9620
      %v9659 = vld [vmem:[#allocation2 + $0x17] sm:$0xff]
      %v9660 = vld [vmem:[#allocation2 + $0x1f] sm:$0xff]
      %v9661 = vld [vmem:[#allocation2 + $0x27] sm:$0xff]
      %v9662 = vld [vmem:[#allocation2 + $0x2f] sm:$0xff]
      %v9663 = vld [vmem:[#allocation2 + $0x37] sm:$0xff]
      %v9664 = vld [vmem:[#allocation2 + $0x3f] sm:$0xff]
      %v9665 = vld [vmem:[#allocation2 + $0x47] sm:$0xff]
      %v9666 = vld [vmem:[#allocation2 + $0x4f] sm:$0xff]
      %v9667 = vld [vmem:[#allocation2 + $0x57] sm:$0xff]
      %v9668 = vld [vmem:[#allocation2 + $0x5f] sm:$0xff]
      %v9669 = vld [vmem:[#allocation2 + $0x67] sm:$0xff]
      %v9670 = vld [vmem:[#allocation2 + $0x6f] sm:$0xff]
      %v9671 = vld [vmem:[#allocation2 + $0x77] sm:$0xff]
      %v9672 = vld [vmem:[#allocation2 + $0x7f] sm:$0xff]
      %v9673 = vld [vmem:[#allocation2 + $0x87] sm:$0xff]
      %v9674 = vld [vmem:[#allocation2 + $0x8f] sm:$0xff]
      %v9675 = vld [vmem:[#allocation2 + $0x97] sm:$0xff]
      %v9676 = vld [vmem:[#allocation2 + $0x9f] sm:$0xff]
      %v9677 = vld [vmem:[#allocation2 + $0xa7] sm:$0xff]
      %v9678 = vld [vmem:[#allocation2 + $0xaf] sm:$0xff]
      %v9679 = vld [vmem:[#allocation2 + $0xb7] sm:$0xff]
      %v9680 = vld [vmem:[#allocation2 + $0xbf] sm:$0xff]
      %v9681 = vld [vmem:[#allocation2 + $0xc7] sm:$0xff]
      %v9682 = vld [vmem:[#allocation2 + $0xcf] sm:$0xff]
      %v9683 = vld [vmem:[#allocation2 + $0xd7] sm:$0xff]
      %v9684 = vld [vmem:[#allocation2 + $0xdf] sm:$0xff]
      %v9685 = vld [vmem:[#allocation2 + $0xe7] sm:$0xff]
      %v9686 = vld [vmem:[#allocation2 + $0xef] sm:$0xff]
      %v9687 = vld [vmem:[#allocation2 + $0xf7] sm:$0xff]
      %v9688 = vld [vmem:[#allocation2 + $0xff] sm:$0xff]
      %v9689 = vld [vmem:[#allocation2 + $0x107] sm:$0xff]
      %v9690 = vld [vmem:[#allocation2 + $0x10f] sm:$0xff]
      %v9691 = vld [vmem:[#allocation2 + $0x117] sm:$0xff]
      %v9692 = vld [vmem:[#allocation2 + $0x11f] sm:$0xff]
      %v9693 = vld [vmem:[#allocation2 + $0x127] sm:$0xff]
      %v9694 = vld [vmem:[#allocation2 + $0x12f] sm:$0xff]
      %s9695 = scalar_lea.vmem %s6, 12
      %v9696 = vld [vmem:[%s9695] sm:$0xf]
      %v9698 = vsel %vm401, %v9659, 0
      %v9701 = vsel %vm401, %v9660, 0
      %v9704 = vsel %vm401, %v9661, 0
      %v9707 = vsel %vm401, %v9662, 0
      %v9710 = vsel %vm401, %v9663, 0
      %v9713 = vsel %vm401, %v9664, 0
      %v9716 = vsel %vm401, %v9665, 0
      %v9719 = vsel %vm401, %v9666, 0
      %v9722 = vsel %vm401, %v9667, 0
      %v9725 = vsel %vm401, %v9668, 0
      %v9728 = vsel %vm401, %v9669, 0
      %v9731 = vsel %vm401, %v9670, 0
      %v9734 = vsel %vm401, %v9671, 0
      %v9737 = vsel %vm401, %v9672, 0
      %v9740 = vsel %vm401, %v9673, 0
      %v9743 = vsel %vm401, %v9674, 0
      %v9746 = vsel %vm401, %v9675, 0
      %v9749 = vsel %vm401, %v9676, 0
      %v9752 = vsel %vm401, %v9677, 0
      %v9755 = vsel %vm401, %v9678, 0
      %v9758 = vsel %vm401, %v9679, 0
      %v9761 = vsel %vm401, %v9680, 0
      %v9764 = vsel %vm401, %v9681, 0
      %v9767 = vsel %vm401, %v9682, 0
      %v9770 = vsel %vm401, %v9683, 0
      %v9773 = vsel %vm401, %v9684, 0
      %v9776 = vsel %vm401, %v9685, 0
      %v9779 = vsel %vm401, %v9686, 0
      %v9782 = vsel %vm401, %v9687, 0
      %v9785 = vsel %vm401, %v9688, 0
      %v9788 = vsel %vm401, %v9689, 0
      %v9791 = vsel %vm401, %v9690, 0
      %v9794 = vsel %vm401, %v9691, 0
      %v9797 = vsel %vm401, %v9692, 0
      %v9800 = vsel %vm401, %v9693, 0
      %v9803 = vsel %vm401, %v9694, 0
      %v9806 = vsel %vm510, %v9696, 0
      %9808 = vmatprep.subr.mxu0 0.0
      %9809 = vmatpush1.msra.mxu0 0.0
      %9810 = vmatprep.subr.mxu0 0.0
      %9811 = vmatpush1.msra.mxu0 0.0
      %9812 = vmatprep.subr.mxu0 0.0
      %9813 = vmatpush1.msra.mxu0 0.0
      %9814 = vmatprep.subr.mxu0 0.0
      %9815 = vmatpush1.msra.mxu0 0.0
      %9816 = vmatprep.subr.mxu0 0.0
      %9817 = vmatpush1.msra.mxu0 0.0
      %9818 = vmatprep.subr.mxu0 0.0
      %9819 = vmatpush1.msra.mxu0 0.0
      %9820 = vmatprep.subr.mxu0 0.0
      %9821 = vmatpush1.msra.mxu0 0.0
      %9822 = vmatprep.subr.mxu0 0.0
      %9823 = vmatpush1.msra.mxu0 0.0
      %9824 = vmatprep.subr.mxu0 0.0
      %9825 = vmatpush1.msra.mxu0 0.0
      %9826 = vmatprep.subr.mxu0 0.0
      %9827 = vmatpush1.msra.mxu0 0.0
      %9828 = vmatprep.subr.mxu0 0.0
      %9829 = vmatpush1.msra.mxu0 0.0
      %9830 = vmatprep.subr.mxu0 0.0
      %9831 = vmatpush1.msra.mxu0 0.0
      %9832 = vmatprep.subr.mxu0 0.0
      %9833 = vmatpush1.msra.mxu0 0.0
      %9834 = vmatprep.subr.mxu0 0.0
      %9835 = vmatpush1.msra.mxu0 0.0
      %9836 = vmatprep.subr.mxu0 0.0
      %9837 = vmatpush1.msra.mxu0 0.0
      %9838 = vmatprep.subr.mxu0 0.0
      %9839 = vmatpush1.msra.mxu0 %v9806
      %9840 = vmatprep.subr.mxu0 0.0
      %9841 = vmatpush2.msra.mxu0 0.0
      %9842 = vmatprep.subr.mxu0 0.0
      %9843 = vmatpush2.msra.mxu0 0.0
      %9844 = vmatprep.subr.mxu0 0.0
      %9845 = vmatpush2.msra.mxu0 0.0
      %9846 = vmatprep.subr.mxu0 0.0
      %9847 = vmatpush2.msra.mxu0 0.0
      %9848 = vmatprep.subr.mxu0 0.0
      %9849 = vmatpush2.msra.mxu0 0.0
      %9850 = vmatprep.subr.mxu0 0.0
      %9851 = vmatpush2.msra.mxu0 0.0
      %9852 = vmatprep.subr.mxu0 0.0
      %9853 = vmatpush2.msra.mxu0 0.0
      %9854 = vmatprep.subr.mxu0 0.0
      %9855 = vmatpush2.msra.mxu0 0.0
      %9856 = vmatprep.subr.mxu0 0.0
      %9857 = vmatpush2.msra.mxu0 0.0
      %9858 = vmatprep.subr.mxu0 0.0
      %9859 = vmatpush2.msra.mxu0 0.0
      %9860 = vmatprep.subr.mxu0 0.0
      %9861 = vmatpush2.msra.mxu0 0.0
      %9862 = vmatprep.subr.mxu0 0.0
      %9863 = vmatpush2.msra.mxu0 0.0
      %9864 = vmatprep.subr.mxu0 0.0
      %9865 = vmatpush2.msra.mxu0 0.0
      %9866 = vmatprep.subr.mxu0 0.0
      %9867 = vmatpush2.msra.mxu0 0.0
      %9868 = vmatprep.subr.mxu0 0.0
      %9869 = vmatpush2.msra.mxu0 0.0
      %9870 = vmatprep.subr.mxu0 0.0
      %9871 = vmatpush2.msra.mxu0 0.0
      %9872 = vmatprep.mubr.f32.mxu0 0.0
      %9873 = vmatmul.mubr.f32.gmra.mxu0 %v9698
      %v9874 = vpop.f32.mrf.mxu0
      %v9875 = vadd.f32 0.0, %v9874
      %v9876 = vpop.f32.mrf.mxu0
      %9877 = vmatprep.mubr.f32.mxu0 0.0
      %9878 = vmatmul.mubr.f32.gmra.mxu0 %v9701
      %v9879 = vpop.f32.mrf.mxu0
      %v9880 = vadd.f32 0.0, %v9879
      %v9881 = vpop.f32.mrf.mxu0
      %9882 = vmatprep.mubr.f32.mxu0 0.0
      %9883 = vmatmul.mubr.f32.gmra.mxu0 %v9704
      %v9884 = vpop.f32.mrf.mxu0
      %v9885 = vadd.f32 0.0, %v9884
      %v9886 = vpop.f32.mrf.mxu0
      %9887 = vmatprep.mubr.f32.mxu0 0.0
      %9888 = vmatmul.mubr.f32.gmra.mxu0 %v9707
      %v9889 = vpop.f32.mrf.mxu0
      %v9890 = vadd.f32 0.0, %v9889
      %v9891 = vpop.f32.mrf.mxu0
      %9892 = vmatprep.mubr.f32.mxu0 0.0
      %9893 = vmatmul.mubr.f32.gmra.mxu0 %v9710
      %v9894 = vpop.f32.mrf.mxu0
      %v9895 = vadd.f32 0.0, %v9894
      %v9896 = vpop.f32.mrf.mxu0
      %9897 = vmatprep.mubr.f32.mxu0 0.0
      %9898 = vmatmul.mubr.f32.gmra.mxu0 %v9713
      %v9899 = vpop.f32.mrf.mxu0
      %v9900 = vadd.f32 0.0, %v9899
      %v9901 = vpop.f32.mrf.mxu0
      %9902 = vmatprep.mubr.f32.mxu0 0.0
      %9903 = vmatmul.mubr.f32.gmra.mxu0 %v9716
      %v9904 = vpop.f32.mrf.mxu0
      %v9905 = vadd.f32 0.0, %v9904
      %v9906 = vpop.f32.mrf.mxu0
      %9907 = vmatprep.mubr.f32.mxu0 0.0
      %9908 = vmatmul.mubr.f32.gmra.mxu0 %v9719
      %v9909 = vpop.f32.mrf.mxu0
      %v9910 = vadd.f32 0.0, %v9909
      %v9911 = vpop.f32.mrf.mxu0
      %9912 = vmatprep.mubr.f32.mxu0 0.0
      %9913 = vmatmul.mubr.f32.gmra.mxu0 %v9722
      %v9914 = vpop.f32.mrf.mxu0
      %v9915 = vadd.f32 0.0, %v9914
      %v9916 = vpop.f32.mrf.mxu0
      %9917 = vmatprep.mubr.f32.mxu0 0.0
      %9918 = vmatmul.mubr.f32.gmra.mxu0 %v9725
      %v9919 = vpop.f32.mrf.mxu0
      %v9920 = vadd.f32 0.0, %v9919
      %v9921 = vpop.f32.mrf.mxu0
      %9922 = vmatprep.mubr.f32.mxu0 0.0
      %9923 = vmatmul.mubr.f32.gmra.mxu0 %v9728
      %v9924 = vpop.f32.mrf.mxu0
      %v9925 = vadd.f32 0.0, %v9924
      %v9926 = vpop.f32.mrf.mxu0
      %9927 = vmatprep.mubr.f32.mxu0 0.0
      %9928 = vmatmul.mubr.f32.gmra.mxu0 %v9731
      %v9929 = vpop.f32.mrf.mxu0
      %v9930 = vadd.f32 0.0, %v9929
      %v9931 = vpop.f32.mrf.mxu0
      %9932 = vmatprep.mubr.f32.mxu0 0.0
      %9933 = vmatmul.mubr.f32.gmra.mxu0 %v9734
      %v9934 = vpop.f32.mrf.mxu0
      %v9935 = vadd.f32 0.0, %v9934
      %v9936 = vpop.f32.mrf.mxu0
      %9937 = vmatprep.mubr.f32.mxu0 0.0
      %9938 = vmatmul.mubr.f32.gmra.mxu0 %v9737
      %v9939 = vpop.f32.mrf.mxu0
      %v9940 = vadd.f32 0.0, %v9939
      %v9941 = vpop.f32.mrf.mxu0
      %9942 = vmatprep.mubr.f32.mxu0 0.0
      %9943 = vmatmul.mubr.f32.gmra.mxu0 %v9740
      %v9944 = vpop.f32.mrf.mxu0
      %v9945 = vadd.f32 0.0, %v9944
      %v9946 = vpop.f32.mrf.mxu0
      %9947 = vmatprep.mubr.f32.mxu0 0.0
      %9948 = vmatmul.mubr.f32.gmra.mxu0 %v9743
      %v9949 = vpop.f32.mrf.mxu0
      %v9950 = vadd.f32 0.0, %v9949
      %v9951 = vpop.f32.mrf.mxu0
      %9952 = vmatprep.mubr.f32.mxu0 0.0
      %9953 = vmatmul.mubr.f32.gmra.mxu0 %v9746
      %v9954 = vpop.f32.mrf.mxu0
      %v9955 = vadd.f32 0.0, %v9954
      %v9956 = vpop.f32.mrf.mxu0
      %9957 = vmatprep.mubr.f32.mxu0 0.0
      %9958 = vmatmul.mubr.f32.gmra.mxu0 %v9749
      %v9959 = vpop.f32.mrf.mxu0
      %v9960 = vadd.f32 0.0, %v9959
      %v9961 = vpop.f32.mrf.mxu0
      %9962 = vmatprep.mubr.f32.mxu0 0.0
      %9963 = vmatmul.mubr.f32.gmra.mxu0 %v9752
      %v9964 = vpop.f32.mrf.mxu0
      %v9965 = vadd.f32 0.0, %v9964
      %v9966 = vpop.f32.mrf.mxu0
      %9967 = vmatprep.mubr.f32.mxu0 0.0
      %9968 = vmatmul.mubr.f32.gmra.mxu0 %v9755
      %v9969 = vpop.f32.mrf.mxu0
      %v9970 = vadd.f32 0.0, %v9969
      %v9971 = vpop.f32.mrf.mxu0
      %9972 = vmatprep.mubr.f32.mxu0 0.0
      %9973 = vmatmul.mubr.f32.gmra.mxu0 %v9758
      %v9974 = vpop.f32.mrf.mxu0
      %v9975 = vadd.f32 0.0, %v9974
      %v9976 = vpop.f32.mrf.mxu0
      %9977 = vmatprep.mubr.f32.mxu0 0.0
      %9978 = vmatmul.mubr.f32.gmra.mxu0 %v9761
      %v9979 = vpop.f32.mrf.mxu0
      %v9980 = vadd.f32 0.0, %v9979
      %v9981 = vpop.f32.mrf.mxu0
      %9982 = vmatprep.mubr.f32.mxu0 0.0
      %9983 = vmatmul.mubr.f32.gmra.mxu0 %v9764
      %v9984 = vpop.f32.mrf.mxu0
      %v9985 = vadd.f32 0.0, %v9984
      %v9986 = vpop.f32.mrf.mxu0
      %9987 = vmatprep.mubr.f32.mxu0 0.0
      %9988 = vmatmul.mubr.f32.gmra.mxu0 %v9767
      %v9989 = vpop.f32.mrf.mxu0
      %v9990 = vadd.f32 0.0, %v9989
      %v9991 = vpop.f32.mrf.mxu0
      %9992 = vmatprep.mubr.f32.mxu0 0.0
      %9993 = vmatmul.mubr.f32.gmra.mxu0 %v9770
      %v9994 = vpop.f32.mrf.mxu0
      %v9995 = vadd.f32 0.0, %v9994
      %v9996 = vpop.f32.mrf.mxu0
      %9997 = vmatprep.mubr.f32.mxu0 0.0
      %9998 = vmatmul.mubr.f32.gmra.mxu0 %v9773
      %v9999 = vpop.f32.mrf.mxu0
      %v10000 = vadd.f32 0.0, %v9999
      %v10001 = vpop.f32.mrf.mxu0
      %10002 = vmatprep.mubr.f32.mxu0 0.0
      %10003 = vmatmul.mubr.f32.gmra.mxu0 %v9776
      %v10004 = vpop.f32.mrf.mxu0
      %v10005 = vadd.f32 0.0, %v10004
      %v10006 = vpop.f32.mrf.mxu0
      %10007 = vmatprep.mubr.f32.mxu0 0.0
      %10008 = vmatmul.mubr.f32.gmra.mxu0 %v9779
      %v10009 = vpop.f32.mrf.mxu0
      %v10010 = vadd.f32 0.0, %v10009
      %v10011 = vpop.f32.mrf.mxu0
      %10012 = vmatprep.mubr.f32.mxu0 0.0
      %10013 = vmatmul.mubr.f32.gmra.mxu0 %v9782
      %v10014 = vpop.f32.mrf.mxu0
      %v10015 = vadd.f32 0.0, %v10014
      %v10016 = vpop.f32.mrf.mxu0
      %10017 = vmatprep.mubr.f32.mxu0 0.0
      %10018 = vmatmul.mubr.f32.gmra.mxu0 %v9785
      %v10019 = vpop.f32.mrf.mxu0
      %v10020 = vadd.f32 0.0, %v10019
      %v10021 = vpop.f32.mrf.mxu0
      %10022 = vmatprep.mubr.f32.mxu0 0.0
      %10023 = vmatmul.mubr.f32.gmra.mxu0 %v9788
      %v10024 = vpop.f32.mrf.mxu0
      %v10025 = vadd.f32 0.0, %v10024
      %v10026 = vpop.f32.mrf.mxu0
      %10027 = vmatprep.mubr.f32.mxu0 0.0
      %10028 = vmatmul.mubr.f32.gmra.mxu0 %v9791
      %v10029 = vpop.f32.mrf.mxu0
      %v10030 = vadd.f32 0.0, %v10029
      %v10031 = vpop.f32.mrf.mxu0
      %10032 = vmatprep.mubr.f32.mxu0 0.0
      %10033 = vmatmul.mubr.f32.gmra.mxu0 %v9794
      %v10034 = vpop.f32.mrf.mxu0
      %v10035 = vadd.f32 0.0, %v10034
      %v10036 = vpop.f32.mrf.mxu0
      %10037 = vmatprep.mubr.f32.mxu0 0.0
      %10038 = vmatmul.mubr.f32.gmra.mxu0 %v9797
      %v10039 = vpop.f32.mrf.mxu0
      %v10040 = vadd.f32 0.0, %v10039
      %v10041 = vpop.f32.mrf.mxu0
      %10042 = vmatprep.mubr.f32.mxu0 0.0
      %10043 = vmatmul.mubr.f32.gmra.mxu0 %v9800
      %v10044 = vpop.f32.mrf.mxu0
      %v10045 = vadd.f32 0.0, %v10044
      %v10046 = vpop.f32.mrf.mxu0
      %10047 = vmatprep.mubr.f32.mxu0 0.0
      %10048 = vmatmul.mubr.f32.gmra.mxu0 %v9803
      %v10049 = vpop.f32.mrf.mxu0
      %v10050 = vadd.f32 0.0, %v10049
      %v10051 = vpop.f32.mrf.mxu0
      %10052 = vdwg.mxu0
      %v10053 = vadd.f32 %v9623, %v9875
      %v10054 = vadd.f32 %v9624, %v9880
      %v10055 = vadd.f32 %v9625, %v9885
      %v10056 = vadd.f32 %v9626, %v9890
      %v10057 = vadd.f32 %v9627, %v9895
      %v10058 = vadd.f32 %v9628, %v9900
      %v10059 = vadd.f32 %v9629, %v9905
      %v10060 = vadd.f32 %v9630, %v9910
      %v10061 = vadd.f32 %v9631, %v9915
      %v10062 = vadd.f32 %v9632, %v9920
      %v10063 = vadd.f32 %v9633, %v9925
      %v10064 = vadd.f32 %v9634, %v9930
      %v10065 = vadd.f32 %v9635, %v9935
      %v10066 = vadd.f32 %v9636, %v9940
      %v10067 = vadd.f32 %v9637, %v9945
      %v10068 = vadd.f32 %v9638, %v9950
      %v10069 = vadd.f32 %v9639, %v9955
      %v10070 = vadd.f32 %v9640, %v9960
      %v10071 = vadd.f32 %v9641, %v9965
      %v10072 = vadd.f32 %v9642, %v9970
      %v10073 = vadd.f32 %v9643, %v9975
      %v10074 = vadd.f32 %v9644, %v9980
      %v10075 = vadd.f32 %v9645, %v9985
      %v10076 = vadd.f32 %v9646, %v9990
      %v10077 = vadd.f32 %v9647, %v9995
      %v10078 = vadd.f32 %v9648, %v10000
      %v10079 = vadd.f32 %v9649, %v10005
      %v10080 = vadd.f32 %v9650, %v10010
      %v10081 = vadd.f32 %v9651, %v10015
      %v10082 = vadd.f32 %v9652, %v10020
      %v10083 = vadd.f32 %v9653, %v10025
      %v10084 = vadd.f32 %v9654, %v10030
      %v10085 = vadd.f32 %v9655, %v10035
      %v10086 = vadd.f32 %v9656, %v10040
      %v10087 = vadd.f32 %v9657, %v10045
      %v10088 = vadd.f32 %v9658, %v10050
      %v10089 = vld [vmem:[#allocation2 + $0x18] sm:$0xff]
      %v10090 = vld [vmem:[#allocation2 + $0x20] sm:$0xff]
      %v10091 = vld [vmem:[#allocation2 + $0x28] sm:$0xff]
      %v10092 = vld [vmem:[#allocation2 + $0x30] sm:$0xff]
      %v10093 = vld [vmem:[#allocation2 + $0x38] sm:$0xff]
      %v10094 = vld [vmem:[#allocation2 + $0x40] sm:$0xff]
      %v10095 = vld [vmem:[#allocation2 + $0x48] sm:$0xff]
      %v10096 = vld [vmem:[#allocation2 + $0x50] sm:$0xff]
      %v10097 = vld [vmem:[#allocation2 + $0x58] sm:$0xff]
      %v10098 = vld [vmem:[#allocation2 + $0x60] sm:$0xff]
      %v10099 = vld [vmem:[#allocation2 + $0x68] sm:$0xff]
      %v10100 = vld [vmem:[#allocation2 + $0x70] sm:$0xff]
      %v10101 = vld [vmem:[#allocation2 + $0x78] sm:$0xff]
      %v10102 = vld [vmem:[#allocation2 + $0x80] sm:$0xff]
      %v10103 = vld [vmem:[#allocation2 + $0x88] sm:$0xff]
      %v10104 = vld [vmem:[#allocation2 + $0x90] sm:$0xff]
      %v10105 = vld [vmem:[#allocation2 + $0x98] sm:$0xff]
      %v10106 = vld [vmem:[#allocation2 + $0xa0] sm:$0xff]
      %v10107 = vld [vmem:[#allocation2 + $0xa8] sm:$0xff]
      %v10108 = vld [vmem:[#allocation2 + $0xb0] sm:$0xff]
      %v10109 = vld [vmem:[#allocation2 + $0xb8] sm:$0xff]
      %v10110 = vld [vmem:[#allocation2 + $0xc0] sm:$0xff]
      %v10111 = vld [vmem:[#allocation2 + $0xc8] sm:$0xff]
      %v10112 = vld [vmem:[#allocation2 + $0xd0] sm:$0xff]
      %v10113 = vld [vmem:[#allocation2 + $0xd8] sm:$0xff]
      %v10114 = vld [vmem:[#allocation2 + $0xe0] sm:$0xff]
      %v10115 = vld [vmem:[#allocation2 + $0xe8] sm:$0xff]
      %v10116 = vld [vmem:[#allocation2 + $0xf0] sm:$0xff]
      %v10117 = vld [vmem:[#allocation2 + $0xf8] sm:$0xff]
      %v10118 = vld [vmem:[#allocation2 + $0x100] sm:$0xff]
      %v10119 = vld [vmem:[#allocation2 + $0x108] sm:$0xff]
      %v10120 = vld [vmem:[#allocation2 + $0x110] sm:$0xff]
      %v10121 = vld [vmem:[#allocation2 + $0x118] sm:$0xff]
      %v10122 = vld [vmem:[#allocation2 + $0x120] sm:$0xff]
      %v10123 = vld [vmem:[#allocation2 + $0x128] sm:$0xff]
      %v10124 = vld [vmem:[#allocation2 + $0x130] sm:$0xff]
      %s10125 = scalar_lea.vmem %s6, 16
      %v10126 = vld [vmem:[%s10125] sm:$0xf]
      %v10128 = vsel %vm401, %v10089, 0
      %v10131 = vsel %vm401, %v10090, 0
      %v10134 = vsel %vm401, %v10091, 0
      %v10137 = vsel %vm401, %v10092, 0
      %v10140 = vsel %vm401, %v10093, 0
      %v10143 = vsel %vm401, %v10094, 0
      %v10146 = vsel %vm401, %v10095, 0
      %v10149 = vsel %vm401, %v10096, 0
      %v10152 = vsel %vm401, %v10097, 0
      %v10155 = vsel %vm401, %v10098, 0
      %v10158 = vsel %vm401, %v10099, 0
      %v10161 = vsel %vm401, %v10100, 0
      %v10164 = vsel %vm401, %v10101, 0
      %v10167 = vsel %vm401, %v10102, 0
      %v10170 = vsel %vm401, %v10103, 0
      %v10173 = vsel %vm401, %v10104, 0
      %v10176 = vsel %vm401, %v10105, 0
      %v10179 = vsel %vm401, %v10106, 0
      %v10182 = vsel %vm401, %v10107, 0
      %v10185 = vsel %vm401, %v10108, 0
      %v10188 = vsel %vm401, %v10109, 0
      %v10191 = vsel %vm401, %v10110, 0
      %v10194 = vsel %vm401, %v10111, 0
      %v10197 = vsel %vm401, %v10112, 0
      %v10200 = vsel %vm401, %v10113, 0
      %v10203 = vsel %vm401, %v10114, 0
      %v10206 = vsel %vm401, %v10115, 0
      %v10209 = vsel %vm401, %v10116, 0
      %v10212 = vsel %vm401, %v10117, 0
      %v10215 = vsel %vm401, %v10118, 0
      %v10218 = vsel %vm401, %v10119, 0
      %v10221 = vsel %vm401, %v10120, 0
      %v10224 = vsel %vm401, %v10121, 0
      %v10227 = vsel %vm401, %v10122, 0
      %v10230 = vsel %vm401, %v10123, 0
      %v10233 = vsel %vm401, %v10124, 0
      %v10236 = vsel %vm510, %v10126, 0
      %10238 = vmatprep.subr.mxu0 0.0
      %10239 = vmatpush1.msra.mxu0 0.0
      %10240 = vmatprep.subr.mxu0 0.0
      %10241 = vmatpush1.msra.mxu0 0.0
      %10242 = vmatprep.subr.mxu0 0.0
      %10243 = vmatpush1.msra.mxu0 0.0
      %10244 = vmatprep.subr.mxu0 0.0
      %10245 = vmatpush1.msra.mxu0 0.0
      %10246 = vmatprep.subr.mxu0 0.0
      %10247 = vmatpush1.msra.mxu0 0.0
      %10248 = vmatprep.subr.mxu0 0.0
      %10249 = vmatpush1.msra.mxu0 0.0
      %10250 = vmatprep.subr.mxu0 0.0
      %10251 = vmatpush1.msra.mxu0 0.0
      %10252 = vmatprep.subr.mxu0 0.0
      %10253 = vmatpush1.msra.mxu0 0.0
      %10254 = vmatprep.subr.mxu0 0.0
      %10255 = vmatpush1.msra.mxu0 0.0
      %10256 = vmatprep.subr.mxu0 0.0
      %10257 = vmatpush1.msra.mxu0 0.0
      %10258 = vmatprep.subr.mxu0 0.0
      %10259 = vmatpush1.msra.mxu0 0.0
      %10260 = vmatprep.subr.mxu0 0.0
      %10261 = vmatpush1.msra.mxu0 0.0
      %10262 = vmatprep.subr.mxu0 0.0
      %10263 = vmatpush1.msra.mxu0 0.0
      %10264 = vmatprep.subr.mxu0 0.0
      %10265 = vmatpush1.msra.mxu0 0.0
      %10266 = vmatprep.subr.mxu0 0.0
      %10267 = vmatpush1.msra.mxu0 0.0
      %10268 = vmatprep.subr.mxu0 0.0
      %10269 = vmatpush1.msra.mxu0 %v10236
      %10270 = vmatprep.subr.mxu0 0.0
      %10271 = vmatpush2.msra.mxu0 0.0
      %10272 = vmatprep.subr.mxu0 0.0
      %10273 = vmatpush2.msra.mxu0 0.0
      %10274 = vmatprep.subr.mxu0 0.0
      %10275 = vmatpush2.msra.mxu0 0.0
      %10276 = vmatprep.subr.mxu0 0.0
      %10277 = vmatpush2.msra.mxu0 0.0
      %10278 = vmatprep.subr.mxu0 0.0
      %10279 = vmatpush2.msra.mxu0 0.0
      %10280 = vmatprep.subr.mxu0 0.0
      %10281 = vmatpush2.msra.mxu0 0.0
      %10282 = vmatprep.subr.mxu0 0.0
      %10283 = vmatpush2.msra.mxu0 0.0
      %10284 = vmatprep.subr.mxu0 0.0
      %10285 = vmatpush2.msra.mxu0 0.0
      %10286 = vmatprep.subr.mxu0 0.0
      %10287 = vmatpush2.msra.mxu0 0.0
      %10288 = vmatprep.subr.mxu0 0.0
      %10289 = vmatpush2.msra.mxu0 0.0
      %10290 = vmatprep.subr.mxu0 0.0
      %10291 = vmatpush2.msra.mxu0 0.0
      %10292 = vmatprep.subr.mxu0 0.0
      %10293 = vmatpush2.msra.mxu0 0.0
      %10294 = vmatprep.subr.mxu0 0.0
      %10295 = vmatpush2.msra.mxu0 0.0
      %10296 = vmatprep.subr.mxu0 0.0
      %10297 = vmatpush2.msra.mxu0 0.0
      %10298 = vmatprep.subr.mxu0 0.0
      %10299 = vmatpush2.msra.mxu0 0.0
      %10300 = vmatprep.subr.mxu0 0.0
      %10301 = vmatpush2.msra.mxu0 0.0
      %10302 = vmatprep.mubr.f32.mxu0 0.0
      %10303 = vmatmul.mubr.f32.gmra.mxu0 %v10128
      %v10304 = vpop.f32.mrf.mxu0
      %v10305 = vadd.f32 0.0, %v10304
      %v10306 = vpop.f32.mrf.mxu0
      %10307 = vmatprep.mubr.f32.mxu0 0.0
      %10308 = vmatmul.mubr.f32.gmra.mxu0 %v10131
      %v10309 = vpop.f32.mrf.mxu0
      %v10310 = vadd.f32 0.0, %v10309
      %v10311 = vpop.f32.mrf.mxu0
      %10312 = vmatprep.mubr.f32.mxu0 0.0
      %10313 = vmatmul.mubr.f32.gmra.mxu0 %v10134
      %v10314 = vpop.f32.mrf.mxu0
      %v10315 = vadd.f32 0.0, %v10314
      %v10316 = vpop.f32.mrf.mxu0
      %10317 = vmatprep.mubr.f32.mxu0 0.0
      %10318 = vmatmul.mubr.f32.gmra.mxu0 %v10137
      %v10319 = vpop.f32.mrf.mxu0
      %v10320 = vadd.f32 0.0, %v10319
      %v10321 = vpop.f32.mrf.mxu0
      %10322 = vmatprep.mubr.f32.mxu0 0.0
      %10323 = vmatmul.mubr.f32.gmra.mxu0 %v10140
      %v10324 = vpop.f32.mrf.mxu0
      %v10325 = vadd.f32 0.0, %v10324
      %v10326 = vpop.f32.mrf.mxu0
      %10327 = vmatprep.mubr.f32.mxu0 0.0
      %10328 = vmatmul.mubr.f32.gmra.mxu0 %v10143
      %v10329 = vpop.f32.mrf.mxu0
      %v10330 = vadd.f32 0.0, %v10329
      %v10331 = vpop.f32.mrf.mxu0
      %10332 = vmatprep.mubr.f32.mxu0 0.0
      %10333 = vmatmul.mubr.f32.gmra.mxu0 %v10146
      %v10334 = vpop.f32.mrf.mxu0
      %v10335 = vadd.f32 0.0, %v10334
      %v10336 = vpop.f32.mrf.mxu0
      %10337 = vmatprep.mubr.f32.mxu0 0.0
      %10338 = vmatmul.mubr.f32.gmra.mxu0 %v10149
      %v10339 = vpop.f32.mrf.mxu0
      %v10340 = vadd.f32 0.0, %v10339
      %v10341 = vpop.f32.mrf.mxu0
      %10342 = vmatprep.mubr.f32.mxu0 0.0
      %10343 = vmatmul.mubr.f32.gmra.mxu0 %v10152
      %v10344 = vpop.f32.mrf.mxu0
      %v10345 = vadd.f32 0.0, %v10344
      %v10346 = vpop.f32.mrf.mxu0
      %10347 = vmatprep.mubr.f32.mxu0 0.0
      %10348 = vmatmul.mubr.f32.gmra.mxu0 %v10155
      %v10349 = vpop.f32.mrf.mxu0
      %v10350 = vadd.f32 0.0, %v10349
      %v10351 = vpop.f32.mrf.mxu0
      %10352 = vmatprep.mubr.f32.mxu0 0.0
      %10353 = vmatmul.mubr.f32.gmra.mxu0 %v10158
      %v10354 = vpop.f32.mrf.mxu0
      %v10355 = vadd.f32 0.0, %v10354
      %v10356 = vpop.f32.mrf.mxu0
      %10357 = vmatprep.mubr.f32.mxu0 0.0
      %10358 = vmatmul.mubr.f32.gmra.mxu0 %v10161
      %v10359 = vpop.f32.mrf.mxu0
      %v10360 = vadd.f32 0.0, %v10359
      %v10361 = vpop.f32.mrf.mxu0
      %10362 = vmatprep.mubr.f32.mxu0 0.0
      %10363 = vmatmul.mubr.f32.gmra.mxu0 %v10164
      %v10364 = vpop.f32.mrf.mxu0
      %v10365 = vadd.f32 0.0, %v10364
      %v10366 = vpop.f32.mrf.mxu0
      %10367 = vmatprep.mubr.f32.mxu0 0.0
      %10368 = vmatmul.mubr.f32.gmra.mxu0 %v10167
      %v10369 = vpop.f32.mrf.mxu0
      %v10370 = vadd.f32 0.0, %v10369
      %v10371 = vpop.f32.mrf.mxu0
      %10372 = vmatprep.mubr.f32.mxu0 0.0
      %10373 = vmatmul.mubr.f32.gmra.mxu0 %v10170
      %v10374 = vpop.f32.mrf.mxu0
      %v10375 = vadd.f32 0.0, %v10374
      %v10376 = vpop.f32.mrf.mxu0
      %10377 = vmatprep.mubr.f32.mxu0 0.0
      %10378 = vmatmul.mubr.f32.gmra.mxu0 %v10173
      %v10379 = vpop.f32.mrf.mxu0
      %v10380 = vadd.f32 0.0, %v10379
      %v10381 = vpop.f32.mrf.mxu0
      %10382 = vmatprep.mubr.f32.mxu0 0.0
      %10383 = vmatmul.mubr.f32.gmra.mxu0 %v10176
      %v10384 = vpop.f32.mrf.mxu0
      %v10385 = vadd.f32 0.0, %v10384
      %v10386 = vpop.f32.mrf.mxu0
      %10387 = vmatprep.mubr.f32.mxu0 0.0
      %10388 = vmatmul.mubr.f32.gmra.mxu0 %v10179
      %v10389 = vpop.f32.mrf.mxu0
      %v10390 = vadd.f32 0.0, %v10389
      %v10391 = vpop.f32.mrf.mxu0
      %10392 = vmatprep.mubr.f32.mxu0 0.0
      %10393 = vmatmul.mubr.f32.gmra.mxu0 %v10182
      %v10394 = vpop.f32.mrf.mxu0
      %v10395 = vadd.f32 0.0, %v10394
      %v10396 = vpop.f32.mrf.mxu0
      %10397 = vmatprep.mubr.f32.mxu0 0.0
      %10398 = vmatmul.mubr.f32.gmra.mxu0 %v10185
      %v10399 = vpop.f32.mrf.mxu0
      %v10400 = vadd.f32 0.0, %v10399
      %v10401 = vpop.f32.mrf.mxu0
      %10402 = vmatprep.mubr.f32.mxu0 0.0
      %10403 = vmatmul.mubr.f32.gmra.mxu0 %v10188
      %v10404 = vpop.f32.mrf.mxu0
      %v10405 = vadd.f32 0.0, %v10404
      %v10406 = vpop.f32.mrf.mxu0
      %10407 = vmatprep.mubr.f32.mxu0 0.0
      %10408 = vmatmul.mubr.f32.gmra.mxu0 %v10191
      %v10409 = vpop.f32.mrf.mxu0
      %v10410 = vadd.f32 0.0, %v10409
      %v10411 = vpop.f32.mrf.mxu0
      %10412 = vmatprep.mubr.f32.mxu0 0.0
      %10413 = vmatmul.mubr.f32.gmra.mxu0 %v10194
      %v10414 = vpop.f32.mrf.mxu0
      %v10415 = vadd.f32 0.0, %v10414
      %v10416 = vpop.f32.mrf.mxu0
      %10417 = vmatprep.mubr.f32.mxu0 0.0
      %10418 = vmatmul.mubr.f32.gmra.mxu0 %v10197
      %v10419 = vpop.f32.mrf.mxu0
      %v10420 = vadd.f32 0.0, %v10419
      %v10421 = vpop.f32.mrf.mxu0
      %10422 = vmatprep.mubr.f32.mxu0 0.0
      %10423 = vmatmul.mubr.f32.gmra.mxu0 %v10200
      %v10424 = vpop.f32.mrf.mxu0
      %v10425 = vadd.f32 0.0, %v10424
      %v10426 = vpop.f32.mrf.mxu0
      %10427 = vmatprep.mubr.f32.mxu0 0.0
      %10428 = vmatmul.mubr.f32.gmra.mxu0 %v10203
      %v10429 = vpop.f32.mrf.mxu0
      %v10430 = vadd.f32 0.0, %v10429
      %v10431 = vpop.f32.mrf.mxu0
      %10432 = vmatprep.mubr.f32.mxu0 0.0
      %10433 = vmatmul.mubr.f32.gmra.mxu0 %v10206
      %v10434 = vpop.f32.mrf.mxu0
      %v10435 = vadd.f32 0.0, %v10434
      %v10436 = vpop.f32.mrf.mxu0
      %10437 = vmatprep.mubr.f32.mxu0 0.0
      %10438 = vmatmul.mubr.f32.gmra.mxu0 %v10209
      %v10439 = vpop.f32.mrf.mxu0
      %v10440 = vadd.f32 0.0, %v10439
      %v10441 = vpop.f32.mrf.mxu0
      %10442 = vmatprep.mubr.f32.mxu0 0.0
      %10443 = vmatmul.mubr.f32.gmra.mxu0 %v10212
      %v10444 = vpop.f32.mrf.mxu0
      %v10445 = vadd.f32 0.0, %v10444
      %v10446 = vpop.f32.mrf.mxu0
      %10447 = vmatprep.mubr.f32.mxu0 0.0
      %10448 = vmatmul.mubr.f32.gmra.mxu0 %v10215
      %v10449 = vpop.f32.mrf.mxu0
      %v10450 = vadd.f32 0.0, %v10449
      %v10451 = vpop.f32.mrf.mxu0
      %10452 = vmatprep.mubr.f32.mxu0 0.0
      %10453 = vmatmul.mubr.f32.gmra.mxu0 %v10218
      %v10454 = vpop.f32.mrf.mxu0
      %v10455 = vadd.f32 0.0, %v10454
      %v10456 = vpop.f32.mrf.mxu0
      %10457 = vmatprep.mubr.f32.mxu0 0.0
      %10458 = vmatmul.mubr.f32.gmra.mxu0 %v10221
      %v10459 = vpop.f32.mrf.mxu0
      %v10460 = vadd.f32 0.0, %v10459
      %v10461 = vpop.f32.mrf.mxu0
      %10462 = vmatprep.mubr.f32.mxu0 0.0
      %10463 = vmatmul.mubr.f32.gmra.mxu0 %v10224
      %v10464 = vpop.f32.mrf.mxu0
      %v10465 = vadd.f32 0.0, %v10464
      %v10466 = vpop.f32.mrf.mxu0
      %10467 = vmatprep.mubr.f32.mxu0 0.0
      %10468 = vmatmul.mubr.f32.gmra.mxu0 %v10227
      %v10469 = vpop.f32.mrf.mxu0
      %v10470 = vadd.f32 0.0, %v10469
      %v10471 = vpop.f32.mrf.mxu0
      %10472 = vmatprep.mubr.f32.mxu0 0.0
      %10473 = vmatmul.mubr.f32.gmra.mxu0 %v10230
      %v10474 = vpop.f32.mrf.mxu0
      %v10475 = vadd.f32 0.0, %v10474
      %v10476 = vpop.f32.mrf.mxu0
      %10477 = vmatprep.mubr.f32.mxu0 0.0
      %10478 = vmatmul.mubr.f32.gmra.mxu0 %v10233
      %v10479 = vpop.f32.mrf.mxu0
      %v10480 = vadd.f32 0.0, %v10479
      %v10481 = vpop.f32.mrf.mxu0
      %10482 = vdwg.mxu0
      %v10483 = vadd.f32 %v10053, %v10305
      %v10484 = vadd.f32 %v10054, %v10310
      %v10485 = vadd.f32 %v10055, %v10315
      %v10486 = vadd.f32 %v10056, %v10320
      %v10487 = vadd.f32 %v10057, %v10325
      %v10488 = vadd.f32 %v10058, %v10330
      %v10489 = vadd.f32 %v10059, %v10335
      %v10490 = vadd.f32 %v10060, %v10340
      %v10491 = vadd.f32 %v10061, %v10345
      %v10492 = vadd.f32 %v10062, %v10350
      %v10493 = vadd.f32 %v10063, %v10355
      %v10494 = vadd.f32 %v10064, %v10360
      %v10495 = vadd.f32 %v10065, %v10365
      %v10496 = vadd.f32 %v10066, %v10370
      %v10497 = vadd.f32 %v10067, %v10375
      %v10498 = vadd.f32 %v10068, %v10380
      %v10499 = vadd.f32 %v10069, %v10385
      %v10500 = vadd.f32 %v10070, %v10390
      %v10501 = vadd.f32 %v10071, %v10395
      %v10502 = vadd.f32 %v10072, %v10400
      %v10503 = vadd.f32 %v10073, %v10405
      %v10504 = vadd.f32 %v10074, %v10410
      %v10505 = vadd.f32 %v10075, %v10415
      %v10506 = vadd.f32 %v10076, %v10420
      %v10507 = vadd.f32 %v10077, %v10425
      %v10508 = vadd.f32 %v10078, %v10430
      %v10509 = vadd.f32 %v10079, %v10435
      %v10510 = vadd.f32 %v10080, %v10440
      %v10511 = vadd.f32 %v10081, %v10445
      %v10512 = vadd.f32 %v10082, %v10450
      %v10513 = vadd.f32 %v10083, %v10455
      %v10514 = vadd.f32 %v10084, %v10460
      %v10515 = vadd.f32 %v10085, %v10465
      %v10516 = vadd.f32 %v10086, %v10470
      %v10517 = vadd.f32 %v10087, %v10475
      %v10518 = vadd.f32 %v10088, %v10480
      %v10519 = vld [vmem:[#allocation2 + $0x19] sm:$0xff]
      %v10520 = vld [vmem:[#allocation2 + $0x21] sm:$0xff]
      %v10521 = vld [vmem:[#allocation2 + $0x29] sm:$0xff]
      %v10522 = vld [vmem:[#allocation2 + $0x31] sm:$0xff]
      %v10523 = vld [vmem:[#allocation2 + $0x39] sm:$0xff]
      %v10524 = vld [vmem:[#allocation2 + $0x41] sm:$0xff]
      %v10525 = vld [vmem:[#allocation2 + $0x49] sm:$0xff]
      %v10526 = vld [vmem:[#allocation2 + $0x51] sm:$0xff]
      %v10527 = vld [vmem:[#allocation2 + $0x59] sm:$0xff]
      %v10528 = vld [vmem:[#allocation2 + $0x61] sm:$0xff]
      %v10529 = vld [vmem:[#allocation2 + $0x69] sm:$0xff]
      %v10530 = vld [vmem:[#allocation2 + $0x71] sm:$0xff]
      %v10531 = vld [vmem:[#allocation2 + $0x79] sm:$0xff]
      %v10532 = vld [vmem:[#allocation2 + $0x81] sm:$0xff]
      %v10533 = vld [vmem:[#allocation2 + $0x89] sm:$0xff]
      %v10534 = vld [vmem:[#allocation2 + $0x91] sm:$0xff]
      %v10535 = vld [vmem:[#allocation2 + $0x99] sm:$0xff]
      %v10536 = vld [vmem:[#allocation2 + $0xa1] sm:$0xff]
      %v10537 = vld [vmem:[#allocation2 + $0xa9] sm:$0xff]
      %v10538 = vld [vmem:[#allocation2 + $0xb1] sm:$0xff]
      %v10539 = vld [vmem:[#allocation2 + $0xb9] sm:$0xff]
      %v10540 = vld [vmem:[#allocation2 + $0xc1] sm:$0xff]
      %v10541 = vld [vmem:[#allocation2 + $0xc9] sm:$0xff]
      %v10542 = vld [vmem:[#allocation2 + $0xd1] sm:$0xff]
      %v10543 = vld [vmem:[#allocation2 + $0xd9] sm:$0xff]
      %v10544 = vld [vmem:[#allocation2 + $0xe1] sm:$0xff]
      %v10545 = vld [vmem:[#allocation2 + $0xe9] sm:$0xff]
      %v10546 = vld [vmem:[#allocation2 + $0xf1] sm:$0xff]
      %v10547 = vld [vmem:[#allocation2 + $0xf9] sm:$0xff]
      %v10548 = vld [vmem:[#allocation2 + $0x101] sm:$0xff]
      %v10549 = vld [vmem:[#allocation2 + $0x109] sm:$0xff]
      %v10550 = vld [vmem:[#allocation2 + $0x111] sm:$0xff]
      %v10551 = vld [vmem:[#allocation2 + $0x119] sm:$0xff]
      %v10552 = vld [vmem:[#allocation2 + $0x121] sm:$0xff]
      %v10553 = vld [vmem:[#allocation2 + $0x129] sm:$0xff]
      %v10554 = vld [vmem:[#allocation2 + $0x131] sm:$0xff]
      %s10555 = scalar_lea.vmem %s6, 20
      %v10556 = vld [vmem:[%s10555] sm:$0xf]
      %v10558 = vsel %vm401, %v10519, 0
      %v10561 = vsel %vm401, %v10520, 0
      %v10564 = vsel %vm401, %v10521, 0
      %v10567 = vsel %vm401, %v10522, 0
      %v10570 = vsel %vm401, %v10523, 0
      %v10573 = vsel %vm401, %v10524, 0
      %v10576 = vsel %vm401, %v10525, 0
      %v10579 = vsel %vm401, %v10526, 0
      %v10582 = vsel %vm401, %v10527, 0
      %v10585 = vsel %vm401, %v10528, 0
      %v10588 = vsel %vm401, %v10529, 0
      %v10591 = vsel %vm401, %v10530, 0
      %v10594 = vsel %vm401, %v10531, 0
      %v10597 = vsel %vm401, %v10532, 0
      %v10600 = vsel %vm401, %v10533, 0
      %v10603 = vsel %vm401, %v10534, 0
      %v10606 = vsel %vm401, %v10535, 0
      %v10609 = vsel %vm401, %v10536, 0
      %v10612 = vsel %vm401, %v10537, 0
      %v10615 = vsel %vm401, %v10538, 0
      %v10618 = vsel %vm401, %v10539, 0
      %v10621 = vsel %vm401, %v10540, 0
      %v10624 = vsel %vm401, %v10541, 0
      %v10627 = vsel %vm401, %v10542, 0
      %v10630 = vsel %vm401, %v10543, 0
      %v10633 = vsel %vm401, %v10544, 0
      %v10636 = vsel %vm401, %v10545, 0
      %v10639 = vsel %vm401, %v10546, 0
      %v10642 = vsel %vm401, %v10547, 0
      %v10645 = vsel %vm401, %v10548, 0
      %v10648 = vsel %vm401, %v10549, 0
      %v10651 = vsel %vm401, %v10550, 0
      %v10654 = vsel %vm401, %v10551, 0
      %v10657 = vsel %vm401, %v10552, 0
      %v10660 = vsel %vm401, %v10553, 0
      %v10663 = vsel %vm401, %v10554, 0
      %v10666 = vsel %vm510, %v10556, 0
      %10668 = vmatprep.subr.mxu0 0.0
      %10669 = vmatpush1.msra.mxu0 0.0
      %10670 = vmatprep.subr.mxu0 0.0
      %10671 = vmatpush1.msra.mxu0 0.0
      %10672 = vmatprep.subr.mxu0 0.0
      %10673 = vmatpush1.msra.mxu0 0.0
      %10674 = vmatprep.subr.mxu0 0.0
      %10675 = vmatpush1.msra.mxu0 0.0
      %10676 = vmatprep.subr.mxu0 0.0
      %10677 = vmatpush1.msra.mxu0 0.0
      %10678 = vmatprep.subr.mxu0 0.0
      %10679 = vmatpush1.msra.mxu0 0.0
      %10680 = vmatprep.subr.mxu0 0.0
      %10681 = vmatpush1.msra.mxu0 0.0
      %10682 = vmatprep.subr.mxu0 0.0
      %10683 = vmatpush1.msra.mxu0 0.0
      %10684 = vmatprep.subr.mxu0 0.0
      %10685 = vmatpush1.msra.mxu0 0.0
      %10686 = vmatprep.subr.mxu0 0.0
      %10687 = vmatpush1.msra.mxu0 0.0
      %10688 = vmatprep.subr.mxu0 0.0
      %10689 = vmatpush1.msra.mxu0 0.0
      %10690 = vmatprep.subr.mxu0 0.0
      %10691 = vmatpush1.msra.mxu0 0.0
      %10692 = vmatprep.subr.mxu0 0.0
      %10693 = vmatpush1.msra.mxu0 0.0
      %10694 = vmatprep.subr.mxu0 0.0
      %10695 = vmatpush1.msra.mxu0 0.0
      %10696 = vmatprep.subr.mxu0 0.0
      %10697 = vmatpush1.msra.mxu0 0.0
      %10698 = vmatprep.subr.mxu0 0.0
      %10699 = vmatpush1.msra.mxu0 %v10666
      %10700 = vmatprep.subr.mxu0 0.0
      %10701 = vmatpush2.msra.mxu0 0.0
      %10702 = vmatprep.subr.mxu0 0.0
      %10703 = vmatpush2.msra.mxu0 0.0
      %10704 = vmatprep.subr.mxu0 0.0
      %10705 = vmatpush2.msra.mxu0 0.0
      %10706 = vmatprep.subr.mxu0 0.0
      %10707 = vmatpush2.msra.mxu0 0.0
      %10708 = vmatprep.subr.mxu0 0.0
      %10709 = vmatpush2.msra.mxu0 0.0
      %10710 = vmatprep.subr.mxu0 0.0
      %10711 = vmatpush2.msra.mxu0 0.0
      %10712 = vmatprep.subr.mxu0 0.0
      %10713 = vmatpush2.msra.mxu0 0.0
      %10714 = vmatprep.subr.mxu0 0.0
      %10715 = vmatpush2.msra.mxu0 0.0
      %10716 = vmatprep.subr.mxu0 0.0
      %10717 = vmatpush2.msra.mxu0 0.0
      %10718 = vmatprep.subr.mxu0 0.0
      %10719 = vmatpush2.msra.mxu0 0.0
      %10720 = vmatprep.subr.mxu0 0.0
      %10721 = vmatpush2.msra.mxu0 0.0
      %10722 = vmatprep.subr.mxu0 0.0
      %10723 = vmatpush2.msra.mxu0 0.0
      %10724 = vmatprep.subr.mxu0 0.0
      %10725 = vmatpush2.msra.mxu0 0.0
      %10726 = vmatprep.subr.mxu0 0.0
      %10727 = vmatpush2.msra.mxu0 0.0
      %10728 = vmatprep.subr.mxu0 0.0
      %10729 = vmatpush2.msra.mxu0 0.0
      %10730 = vmatprep.subr.mxu0 0.0
      %10731 = vmatpush2.msra.mxu0 0.0
      %10732 = vmatprep.mubr.f32.mxu0 0.0
      %10733 = vmatmul.mubr.f32.gmra.mxu0 %v10558
      %v10734 = vpop.f32.mrf.mxu0
      %v10735 = vadd.f32 0.0, %v10734
      %v10736 = vpop.f32.mrf.mxu0
      %10737 = vmatprep.mubr.f32.mxu0 0.0
      %10738 = vmatmul.mubr.f32.gmra.mxu0 %v10561
      %v10739 = vpop.f32.mrf.mxu0
      %v10740 = vadd.f32 0.0, %v10739
      %v10741 = vpop.f32.mrf.mxu0
      %10742 = vmatprep.mubr.f32.mxu0 0.0
      %10743 = vmatmul.mubr.f32.gmra.mxu0 %v10564
      %v10744 = vpop.f32.mrf.mxu0
      %v10745 = vadd.f32 0.0, %v10744
      %v10746 = vpop.f32.mrf.mxu0
      %10747 = vmatprep.mubr.f32.mxu0 0.0
      %10748 = vmatmul.mubr.f32.gmra.mxu0 %v10567
      %v10749 = vpop.f32.mrf.mxu0
      %v10750 = vadd.f32 0.0, %v10749
      %v10751 = vpop.f32.mrf.mxu0
      %10752 = vmatprep.mubr.f32.mxu0 0.0
      %10753 = vmatmul.mubr.f32.gmra.mxu0 %v10570
      %v10754 = vpop.f32.mrf.mxu0
      %v10755 = vadd.f32 0.0, %v10754
      %v10756 = vpop.f32.mrf.mxu0
      %10757 = vmatprep.mubr.f32.mxu0 0.0
      %10758 = vmatmul.mubr.f32.gmra.mxu0 %v10573
      %v10759 = vpop.f32.mrf.mxu0
      %v10760 = vadd.f32 0.0, %v10759
      %v10761 = vpop.f32.mrf.mxu0
      %10762 = vmatprep.mubr.f32.mxu0 0.0
      %10763 = vmatmul.mubr.f32.gmra.mxu0 %v10576
      %v10764 = vpop.f32.mrf.mxu0
      %v10765 = vadd.f32 0.0, %v10764
      %v10766 = vpop.f32.mrf.mxu0
      %10767 = vmatprep.mubr.f32.mxu0 0.0
      %10768 = vmatmul.mubr.f32.gmra.mxu0 %v10579
      %v10769 = vpop.f32.mrf.mxu0
      %v10770 = vadd.f32 0.0, %v10769
      %v10771 = vpop.f32.mrf.mxu0
      %10772 = vmatprep.mubr.f32.mxu0 0.0
      %10773 = vmatmul.mubr.f32.gmra.mxu0 %v10582
      %v10774 = vpop.f32.mrf.mxu0
      %v10775 = vadd.f32 0.0, %v10774
      %v10776 = vpop.f32.mrf.mxu0
      %10777 = vmatprep.mubr.f32.mxu0 0.0
      %10778 = vmatmul.mubr.f32.gmra.mxu0 %v10585
      %v10779 = vpop.f32.mrf.mxu0
      %v10780 = vadd.f32 0.0, %v10779
      %v10781 = vpop.f32.mrf.mxu0
      %10782 = vmatprep.mubr.f32.mxu0 0.0
      %10783 = vmatmul.mubr.f32.gmra.mxu0 %v10588
      %v10784 = vpop.f32.mrf.mxu0
      %v10785 = vadd.f32 0.0, %v10784
      %v10786 = vpop.f32.mrf.mxu0
      %10787 = vmatprep.mubr.f32.mxu0 0.0
      %10788 = vmatmul.mubr.f32.gmra.mxu0 %v10591
      %v10789 = vpop.f32.mrf.mxu0
      %v10790 = vadd.f32 0.0, %v10789
      %v10791 = vpop.f32.mrf.mxu0
      %10792 = vmatprep.mubr.f32.mxu0 0.0
      %10793 = vmatmul.mubr.f32.gmra.mxu0 %v10594
      %v10794 = vpop.f32.mrf.mxu0
      %v10795 = vadd.f32 0.0, %v10794
      %v10796 = vpop.f32.mrf.mxu0
      %10797 = vmatprep.mubr.f32.mxu0 0.0
      %10798 = vmatmul.mubr.f32.gmra.mxu0 %v10597
      %v10799 = vpop.f32.mrf.mxu0
      %v10800 = vadd.f32 0.0, %v10799
      %v10801 = vpop.f32.mrf.mxu0
      %10802 = vmatprep.mubr.f32.mxu0 0.0
      %10803 = vmatmul.mubr.f32.gmra.mxu0 %v10600
      %v10804 = vpop.f32.mrf.mxu0
      %v10805 = vadd.f32 0.0, %v10804
      %v10806 = vpop.f32.mrf.mxu0
      %10807 = vmatprep.mubr.f32.mxu0 0.0
      %10808 = vmatmul.mubr.f32.gmra.mxu0 %v10603
      %v10809 = vpop.f32.mrf.mxu0
      %v10810 = vadd.f32 0.0, %v10809
      %v10811 = vpop.f32.mrf.mxu0
      %10812 = vmatprep.mubr.f32.mxu0 0.0
      %10813 = vmatmul.mubr.f32.gmra.mxu0 %v10606
      %v10814 = vpop.f32.mrf.mxu0
      %v10815 = vadd.f32 0.0, %v10814
      %v10816 = vpop.f32.mrf.mxu0
      %10817 = vmatprep.mubr.f32.mxu0 0.0
      %10818 = vmatmul.mubr.f32.gmra.mxu0 %v10609
      %v10819 = vpop.f32.mrf.mxu0
      %v10820 = vadd.f32 0.0, %v10819
      %v10821 = vpop.f32.mrf.mxu0
      %10822 = vmatprep.mubr.f32.mxu0 0.0
      %10823 = vmatmul.mubr.f32.gmra.mxu0 %v10612
      %v10824 = vpop.f32.mrf.mxu0
      %v10825 = vadd.f32 0.0, %v10824
      %v10826 = vpop.f32.mrf.mxu0
      %10827 = vmatprep.mubr.f32.mxu0 0.0
      %10828 = vmatmul.mubr.f32.gmra.mxu0 %v10615
      %v10829 = vpop.f32.mrf.mxu0
      %v10830 = vadd.f32 0.0, %v10829
      %v10831 = vpop.f32.mrf.mxu0
      %10832 = vmatprep.mubr.f32.mxu0 0.0
      %10833 = vmatmul.mubr.f32.gmra.mxu0 %v10618
      %v10834 = vpop.f32.mrf.mxu0
      %v10835 = vadd.f32 0.0, %v10834
      %v10836 = vpop.f32.mrf.mxu0
      %10837 = vmatprep.mubr.f32.mxu0 0.0
      %10838 = vmatmul.mubr.f32.gmra.mxu0 %v10621
      %v10839 = vpop.f32.mrf.mxu0
      %v10840 = vadd.f32 0.0, %v10839
      %v10841 = vpop.f32.mrf.mxu0
      %10842 = vmatprep.mubr.f32.mxu0 0.0
      %10843 = vmatmul.mubr.f32.gmra.mxu0 %v10624
      %v10844 = vpop.f32.mrf.mxu0
      %v10845 = vadd.f32 0.0, %v10844
      %v10846 = vpop.f32.mrf.mxu0
      %10847 = vmatprep.mubr.f32.mxu0 0.0
      %10848 = vmatmul.mubr.f32.gmra.mxu0 %v10627
      %v10849 = vpop.f32.mrf.mxu0
      %v10850 = vadd.f32 0.0, %v10849
      %v10851 = vpop.f32.mrf.mxu0
      %10852 = vmatprep.mubr.f32.mxu0 0.0
      %10853 = vmatmul.mubr.f32.gmra.mxu0 %v10630
      %v10854 = vpop.f32.mrf.mxu0
      %v10855 = vadd.f32 0.0, %v10854
      %v10856 = vpop.f32.mrf.mxu0
      %10857 = vmatprep.mubr.f32.mxu0 0.0
      %10858 = vmatmul.mubr.f32.gmra.mxu0 %v10633
      %v10859 = vpop.f32.mrf.mxu0
      %v10860 = vadd.f32 0.0, %v10859
      %v10861 = vpop.f32.mrf.mxu0
      %10862 = vmatprep.mubr.f32.mxu0 0.0
      %10863 = vmatmul.mubr.f32.gmra.mxu0 %v10636
      %v10864 = vpop.f32.mrf.mxu0
      %v10865 = vadd.f32 0.0, %v10864
      %v10866 = vpop.f32.mrf.mxu0
      %10867 = vmatprep.mubr.f32.mxu0 0.0
      %10868 = vmatmul.mubr.f32.gmra.mxu0 %v10639
      %v10869 = vpop.f32.mrf.mxu0
      %v10870 = vadd.f32 0.0, %v10869
      %v10871 = vpop.f32.mrf.mxu0
      %10872 = vmatprep.mubr.f32.mxu0 0.0
      %10873 = vmatmul.mubr.f32.gmra.mxu0 %v10642
      %v10874 = vpop.f32.mrf.mxu0
      %v10875 = vadd.f32 0.0, %v10874
      %v10876 = vpop.f32.mrf.mxu0
      %10877 = vmatprep.mubr.f32.mxu0 0.0
      %10878 = vmatmul.mubr.f32.gmra.mxu0 %v10645
      %v10879 = vpop.f32.mrf.mxu0
      %v10880 = vadd.f32 0.0, %v10879
      %v10881 = vpop.f32.mrf.mxu0
      %10882 = vmatprep.mubr.f32.mxu0 0.0
      %10883 = vmatmul.mubr.f32.gmra.mxu0 %v10648
      %v10884 = vpop.f32.mrf.mxu0
      %v10885 = vadd.f32 0.0, %v10884
      %v10886 = vpop.f32.mrf.mxu0
      %10887 = vmatprep.mubr.f32.mxu0 0.0
      %10888 = vmatmul.mubr.f32.gmra.mxu0 %v10651
      %v10889 = vpop.f32.mrf.mxu0
      %v10890 = vadd.f32 0.0, %v10889
      %v10891 = vpop.f32.mrf.mxu0
      %10892 = vmatprep.mubr.f32.mxu0 0.0
      %10893 = vmatmul.mubr.f32.gmra.mxu0 %v10654
      %v10894 = vpop.f32.mrf.mxu0
      %v10895 = vadd.f32 0.0, %v10894
      %v10896 = vpop.f32.mrf.mxu0
      %10897 = vmatprep.mubr.f32.mxu0 0.0
      %10898 = vmatmul.mubr.f32.gmra.mxu0 %v10657
      %v10899 = vpop.f32.mrf.mxu0
      %v10900 = vadd.f32 0.0, %v10899
      %v10901 = vpop.f32.mrf.mxu0
      %10902 = vmatprep.mubr.f32.mxu0 0.0
      %10903 = vmatmul.mubr.f32.gmra.mxu0 %v10660
      %v10904 = vpop.f32.mrf.mxu0
      %v10905 = vadd.f32 0.0, %v10904
      %v10906 = vpop.f32.mrf.mxu0
      %10907 = vmatprep.mubr.f32.mxu0 0.0
      %10908 = vmatmul.mubr.f32.gmra.mxu0 %v10663
      %v10909 = vpop.f32.mrf.mxu0
      %v10910 = vadd.f32 0.0, %v10909
      %v10911 = vpop.f32.mrf.mxu0
      %10912 = vdwg.mxu0
      %v10913 = vadd.f32 %v10483, %v10735
      %v10914 = vadd.f32 %v10484, %v10740
      %v10915 = vadd.f32 %v10485, %v10745
      %v10916 = vadd.f32 %v10486, %v10750
      %v10917 = vadd.f32 %v10487, %v10755
      %v10918 = vadd.f32 %v10488, %v10760
      %v10919 = vadd.f32 %v10489, %v10765
      %v10920 = vadd.f32 %v10490, %v10770
      %v10921 = vadd.f32 %v10491, %v10775
      %v10922 = vadd.f32 %v10492, %v10780
      %v10923 = vadd.f32 %v10493, %v10785
      %v10924 = vadd.f32 %v10494, %v10790
      %v10925 = vadd.f32 %v10495, %v10795
      %v10926 = vadd.f32 %v10496, %v10800
      %v10927 = vadd.f32 %v10497, %v10805
      %v10928 = vadd.f32 %v10498, %v10810
      %v10929 = vadd.f32 %v10499, %v10815
      %v10930 = vadd.f32 %v10500, %v10820
      %v10931 = vadd.f32 %v10501, %v10825
      %v10932 = vadd.f32 %v10502, %v10830
      %v10933 = vadd.f32 %v10503, %v10835
      %v10934 = vadd.f32 %v10504, %v10840
      %v10935 = vadd.f32 %v10505, %v10845
      %v10936 = vadd.f32 %v10506, %v10850
      %v10937 = vadd.f32 %v10507, %v10855
      %v10938 = vadd.f32 %v10508, %v10860
      %v10939 = vadd.f32 %v10509, %v10865
      %v10940 = vadd.f32 %v10510, %v10870
      %v10941 = vadd.f32 %v10511, %v10875
      %v10942 = vadd.f32 %v10512, %v10880
      %v10943 = vadd.f32 %v10513, %v10885
      %v10944 = vadd.f32 %v10514, %v10890
      %v10945 = vadd.f32 %v10515, %v10895
      %v10946 = vadd.f32 %v10516, %v10900
      %v10947 = vadd.f32 %v10517, %v10905
      %v10948 = vadd.f32 %v10518, %v10910
      %v10949 = vld [vmem:[#allocation2 + $0x29] sm:$0xff]
      %v10950 = vld [vmem:[#allocation2 + $0x31] sm:$0xff]
      %v10951 = vld [vmem:[#allocation2 + $0x39] sm:$0xff]
      %v10952 = vld [vmem:[#allocation2 + $0x41] sm:$0xff]
      %v10953 = vld [vmem:[#allocation2 + $0x49] sm:$0xff]
      %v10954 = vld [vmem:[#allocation2 + $0x51] sm:$0xff]
      %v10955 = vld [vmem:[#allocation2 + $0x59] sm:$0xff]
      %v10956 = vld [vmem:[#allocation2 + $0x61] sm:$0xff]
      %v10957 = vld [vmem:[#allocation2 + $0x69] sm:$0xff]
      %v10958 = vld [vmem:[#allocation2 + $0x71] sm:$0xff]
      %v10959 = vld [vmem:[#allocation2 + $0x79] sm:$0xff]
      %v10960 = vld [vmem:[#allocation2 + $0x81] sm:$0xff]
      %v10961 = vld [vmem:[#allocation2 + $0x89] sm:$0xff]
      %v10962 = vld [vmem:[#allocation2 + $0x91] sm:$0xff]
      %v10963 = vld [vmem:[#allocation2 + $0x99] sm:$0xff]
      %v10964 = vld [vmem:[#allocation2 + $0xa1] sm:$0xff]
      %v10965 = vld [vmem:[#allocation2 + $0xa9] sm:$0xff]
      %v10966 = vld [vmem:[#allocation2 + $0xb1] sm:$0xff]
      %v10967 = vld [vmem:[#allocation2 + $0xb9] sm:$0xff]
      %v10968 = vld [vmem:[#allocation2 + $0xc1] sm:$0xff]
      %v10969 = vld [vmem:[#allocation2 + $0xc9] sm:$0xff]
      %v10970 = vld [vmem:[#allocation2 + $0xd1] sm:$0xff]
      %v10971 = vld [vmem:[#allocation2 + $0xd9] sm:$0xff]
      %v10972 = vld [vmem:[#allocation2 + $0xe1] sm:$0xff]
      %v10973 = vld [vmem:[#allocation2 + $0xe9] sm:$0xff]
      %v10974 = vld [vmem:[#allocation2 + $0xf1] sm:$0xff]
      %v10975 = vld [vmem:[#allocation2 + $0xf9] sm:$0xff]
      %v10976 = vld [vmem:[#allocation2 + $0x101] sm:$0xff]
      %v10977 = vld [vmem:[#allocation2 + $0x109] sm:$0xff]
      %v10978 = vld [vmem:[#allocation2 + $0x111] sm:$0xff]
      %v10979 = vld [vmem:[#allocation2 + $0x119] sm:$0xff]
      %v10980 = vld [vmem:[#allocation2 + $0x121] sm:$0xff]
      %v10981 = vld [vmem:[#allocation2 + $0x129] sm:$0xff]
      %v10982 = vld [vmem:[#allocation2 + $0x131] sm:$0xff]
      %v10983 = vld [vmem:[#allocation2 + $0x139] sm:$0xff]
      %v10984 = vld [vmem:[#allocation2 + $0x141] sm:$0xff]
      %s10985 = scalar_lea.vmem %s6, 24
      %v10986 = vld [vmem:[%s10985] sm:$0xf]
      %v10988 = vsel %vm401, %v10949, 0
      %v10991 = vsel %vm401, %v10950, 0
      %v10994 = vsel %vm401, %v10951, 0
      %v10997 = vsel %vm401, %v10952, 0
      %v11000 = vsel %vm401, %v10953, 0
      %v11003 = vsel %vm401, %v10954, 0
      %v11006 = vsel %vm401, %v10955, 0
      %v11009 = vsel %vm401, %v10956, 0
      %v11012 = vsel %vm401, %v10957, 0
      %v11015 = vsel %vm401, %v10958, 0
      %v11018 = vsel %vm401, %v10959, 0
      %v11021 = vsel %vm401, %v10960, 0
      %v11024 = vsel %vm401, %v10961, 0
      %v11027 = vsel %vm401, %v10962, 0
      %v11030 = vsel %vm401, %v10963, 0
      %v11033 = vsel %vm401, %v10964, 0
      %v11036 = vsel %vm401, %v10965, 0
      %v11039 = vsel %vm401, %v10966, 0
      %v11042 = vsel %vm401, %v10967, 0
      %v11045 = vsel %vm401, %v10968, 0
      %v11048 = vsel %vm401, %v10969, 0
      %v11051 = vsel %vm401, %v10970, 0
      %v11054 = vsel %vm401, %v10971, 0
      %v11057 = vsel %vm401, %v10972, 0
      %v11060 = vsel %vm401, %v10973, 0
      %v11063 = vsel %vm401, %v10974, 0
      %v11066 = vsel %vm401, %v10975, 0
      %v11069 = vsel %vm401, %v10976, 0
      %v11072 = vsel %vm401, %v10977, 0
      %v11075 = vsel %vm401, %v10978, 0
      %v11078 = vsel %vm401, %v10979, 0
      %v11081 = vsel %vm401, %v10980, 0
      %v11084 = vsel %vm401, %v10981, 0
      %v11087 = vsel %vm401, %v10982, 0
      %v11090 = vsel %vm401, %v10983, 0
      %v11093 = vsel %vm401, %v10984, 0
      %v11096 = vsel %vm510, %v10986, 0
      %11098 = vmatprep.subr.mxu0 0.0
      %11099 = vmatpush1.msra.mxu0 0.0
      %11100 = vmatprep.subr.mxu0 0.0
      %11101 = vmatpush1.msra.mxu0 0.0
      %11102 = vmatprep.subr.mxu0 0.0
      %11103 = vmatpush1.msra.mxu0 0.0
      %11104 = vmatprep.subr.mxu0 0.0
      %11105 = vmatpush1.msra.mxu0 0.0
      %11106 = vmatprep.subr.mxu0 0.0
      %11107 = vmatpush1.msra.mxu0 0.0
      %11108 = vmatprep.subr.mxu0 0.0
      %11109 = vmatpush1.msra.mxu0 0.0
      %11110 = vmatprep.subr.mxu0 0.0
      %11111 = vmatpush1.msra.mxu0 0.0
      %11112 = vmatprep.subr.mxu0 0.0
      %11113 = vmatpush1.msra.mxu0 0.0
      %11114 = vmatprep.subr.mxu0 0.0
      %11115 = vmatpush1.msra.mxu0 0.0
      %11116 = vmatprep.subr.mxu0 0.0
      %11117 = vmatpush1.msra.mxu0 0.0
      %11118 = vmatprep.subr.mxu0 0.0
      %11119 = vmatpush1.msra.mxu0 0.0
      %11120 = vmatprep.subr.mxu0 0.0
      %11121 = vmatpush1.msra.mxu0 0.0
      %11122 = vmatprep.subr.mxu0 0.0
      %11123 = vmatpush1.msra.mxu0 0.0
      %11124 = vmatprep.subr.mxu0 0.0
      %11125 = vmatpush1.msra.mxu0 0.0
      %11126 = vmatprep.subr.mxu0 0.0
      %11127 = vmatpush1.msra.mxu0 0.0
      %11128 = vmatprep.subr.mxu0 0.0
      %11129 = vmatpush1.msra.mxu0 %v11096
      %11130 = vmatprep.subr.mxu0 0.0
      %11131 = vmatpush2.msra.mxu0 0.0
      %11132 = vmatprep.subr.mxu0 0.0
      %11133 = vmatpush2.msra.mxu0 0.0
      %11134 = vmatprep.subr.mxu0 0.0
      %11135 = vmatpush2.msra.mxu0 0.0
      %11136 = vmatprep.subr.mxu0 0.0
      %11137 = vmatpush2.msra.mxu0 0.0
      %11138 = vmatprep.subr.mxu0 0.0
      %11139 = vmatpush2.msra.mxu0 0.0
      %11140 = vmatprep.subr.mxu0 0.0
      %11141 = vmatpush2.msra.mxu0 0.0
      %11142 = vmatprep.subr.mxu0 0.0
      %11143 = vmatpush2.msra.mxu0 0.0
      %11144 = vmatprep.subr.mxu0 0.0
      %11145 = vmatpush2.msra.mxu0 0.0
      %11146 = vmatprep.subr.mxu0 0.0
      %11147 = vmatpush2.msra.mxu0 0.0
      %11148 = vmatprep.subr.mxu0 0.0
      %11149 = vmatpush2.msra.mxu0 0.0
      %11150 = vmatprep.subr.mxu0 0.0
      %11151 = vmatpush2.msra.mxu0 0.0
      %11152 = vmatprep.subr.mxu0 0.0
      %11153 = vmatpush2.msra.mxu0 0.0
      %11154 = vmatprep.subr.mxu0 0.0
      %11155 = vmatpush2.msra.mxu0 0.0
      %11156 = vmatprep.subr.mxu0 0.0
      %11157 = vmatpush2.msra.mxu0 0.0
      %11158 = vmatprep.subr.mxu0 0.0
      %11159 = vmatpush2.msra.mxu0 0.0
      %11160 = vmatprep.subr.mxu0 0.0
      %11161 = vmatpush2.msra.mxu0 0.0
      %11162 = vmatprep.mubr.f32.mxu0 0.0
      %11163 = vmatmul.mubr.f32.gmra.mxu0 %v10988
      %v11164 = vpop.f32.mrf.mxu0
      %v11165 = vadd.f32 0.0, %v11164
      %v11166 = vpop.f32.mrf.mxu0
      %11167 = vmatprep.mubr.f32.mxu0 0.0
      %11168 = vmatmul.mubr.f32.gmra.mxu0 %v10991
      %v11169 = vpop.f32.mrf.mxu0
      %v11170 = vadd.f32 0.0, %v11169
      %v11171 = vpop.f32.mrf.mxu0
      %11172 = vmatprep.mubr.f32.mxu0 0.0
      %11173 = vmatmul.mubr.f32.gmra.mxu0 %v10994
      %v11174 = vpop.f32.mrf.mxu0
      %v11175 = vadd.f32 0.0, %v11174
      %v11176 = vpop.f32.mrf.mxu0
      %11177 = vmatprep.mubr.f32.mxu0 0.0
      %11178 = vmatmul.mubr.f32.gmra.mxu0 %v10997
      %v11179 = vpop.f32.mrf.mxu0
      %v11180 = vadd.f32 0.0, %v11179
      %v11181 = vpop.f32.mrf.mxu0
      %11182 = vmatprep.mubr.f32.mxu0 0.0
      %11183 = vmatmul.mubr.f32.gmra.mxu0 %v11000
      %v11184 = vpop.f32.mrf.mxu0
      %v11185 = vadd.f32 0.0, %v11184
      %v11186 = vpop.f32.mrf.mxu0
      %11187 = vmatprep.mubr.f32.mxu0 0.0
      %11188 = vmatmul.mubr.f32.gmra.mxu0 %v11003
      %v11189 = vpop.f32.mrf.mxu0
      %v11190 = vadd.f32 0.0, %v11189
      %v11191 = vpop.f32.mrf.mxu0
      %11192 = vmatprep.mubr.f32.mxu0 0.0
      %11193 = vmatmul.mubr.f32.gmra.mxu0 %v11006
      %v11194 = vpop.f32.mrf.mxu0
      %v11195 = vadd.f32 0.0, %v11194
      %v11196 = vpop.f32.mrf.mxu0
      %11197 = vmatprep.mubr.f32.mxu0 0.0
      %11198 = vmatmul.mubr.f32.gmra.mxu0 %v11009
      %v11199 = vpop.f32.mrf.mxu0
      %v11200 = vadd.f32 0.0, %v11199
      %v11201 = vpop.f32.mrf.mxu0
      %11202 = vmatprep.mubr.f32.mxu0 0.0
      %11203 = vmatmul.mubr.f32.gmra.mxu0 %v11012
      %v11204 = vpop.f32.mrf.mxu0
      %v11205 = vadd.f32 0.0, %v11204
      %v11206 = vpop.f32.mrf.mxu0
      %11207 = vmatprep.mubr.f32.mxu0 0.0
      %11208 = vmatmul.mubr.f32.gmra.mxu0 %v11015
      %v11209 = vpop.f32.mrf.mxu0
      %v11210 = vadd.f32 0.0, %v11209
      %v11211 = vpop.f32.mrf.mxu0
      %11212 = vmatprep.mubr.f32.mxu0 0.0
      %11213 = vmatmul.mubr.f32.gmra.mxu0 %v11018
      %v11214 = vpop.f32.mrf.mxu0
      %v11215 = vadd.f32 0.0, %v11214
      %v11216 = vpop.f32.mrf.mxu0
      %11217 = vmatprep.mubr.f32.mxu0 0.0
      %11218 = vmatmul.mubr.f32.gmra.mxu0 %v11021
      %v11219 = vpop.f32.mrf.mxu0
      %v11220 = vadd.f32 0.0, %v11219
      %v11221 = vpop.f32.mrf.mxu0
      %11222 = vmatprep.mubr.f32.mxu0 0.0
      %11223 = vmatmul.mubr.f32.gmra.mxu0 %v11024
      %v11224 = vpop.f32.mrf.mxu0
      %v11225 = vadd.f32 0.0, %v11224
      %v11226 = vpop.f32.mrf.mxu0
      %11227 = vmatprep.mubr.f32.mxu0 0.0
      %11228 = vmatmul.mubr.f32.gmra.mxu0 %v11027
      %v11229 = vpop.f32.mrf.mxu0
      %v11230 = vadd.f32 0.0, %v11229
      %v11231 = vpop.f32.mrf.mxu0
      %11232 = vmatprep.mubr.f32.mxu0 0.0
      %11233 = vmatmul.mubr.f32.gmra.mxu0 %v11030
      %v11234 = vpop.f32.mrf.mxu0
      %v11235 = vadd.f32 0.0, %v11234
      %v11236 = vpop.f32.mrf.mxu0
      %11237 = vmatprep.mubr.f32.mxu0 0.0
      %11238 = vmatmul.mubr.f32.gmra.mxu0 %v11033
      %v11239 = vpop.f32.mrf.mxu0
      %v11240 = vadd.f32 0.0, %v11239
      %v11241 = vpop.f32.mrf.mxu0
      %11242 = vmatprep.mubr.f32.mxu0 0.0
      %11243 = vmatmul.mubr.f32.gmra.mxu0 %v11036
      %v11244 = vpop.f32.mrf.mxu0
      %v11245 = vadd.f32 0.0, %v11244
      %v11246 = vpop.f32.mrf.mxu0
      %11247 = vmatprep.mubr.f32.mxu0 0.0
      %11248 = vmatmul.mubr.f32.gmra.mxu0 %v11039
      %v11249 = vpop.f32.mrf.mxu0
      %v11250 = vadd.f32 0.0, %v11249
      %v11251 = vpop.f32.mrf.mxu0
      %11252 = vmatprep.mubr.f32.mxu0 0.0
      %11253 = vmatmul.mubr.f32.gmra.mxu0 %v11042
      %v11254 = vpop.f32.mrf.mxu0
      %v11255 = vadd.f32 0.0, %v11254
      %v11256 = vpop.f32.mrf.mxu0
      %11257 = vmatprep.mubr.f32.mxu0 0.0
      %11258 = vmatmul.mubr.f32.gmra.mxu0 %v11045
      %v11259 = vpop.f32.mrf.mxu0
      %v11260 = vadd.f32 0.0, %v11259
      %v11261 = vpop.f32.mrf.mxu0
      %11262 = vmatprep.mubr.f32.mxu0 0.0
      %11263 = vmatmul.mubr.f32.gmra.mxu0 %v11048
      %v11264 = vpop.f32.mrf.mxu0
      %v11265 = vadd.f32 0.0, %v11264
      %v11266 = vpop.f32.mrf.mxu0
      %11267 = vmatprep.mubr.f32.mxu0 0.0
      %11268 = vmatmul.mubr.f32.gmra.mxu0 %v11051
      %v11269 = vpop.f32.mrf.mxu0
      %v11270 = vadd.f32 0.0, %v11269
      %v11271 = vpop.f32.mrf.mxu0
      %11272 = vmatprep.mubr.f32.mxu0 0.0
      %11273 = vmatmul.mubr.f32.gmra.mxu0 %v11054
      %v11274 = vpop.f32.mrf.mxu0
      %v11275 = vadd.f32 0.0, %v11274
      %v11276 = vpop.f32.mrf.mxu0
      %11277 = vmatprep.mubr.f32.mxu0 0.0
      %11278 = vmatmul.mubr.f32.gmra.mxu0 %v11057
      %v11279 = vpop.f32.mrf.mxu0
      %v11280 = vadd.f32 0.0, %v11279
      %v11281 = vpop.f32.mrf.mxu0
      %11282 = vmatprep.mubr.f32.mxu0 0.0
      %11283 = vmatmul.mubr.f32.gmra.mxu0 %v11060
      %v11284 = vpop.f32.mrf.mxu0
      %v11285 = vadd.f32 0.0, %v11284
      %v11286 = vpop.f32.mrf.mxu0
      %11287 = vmatprep.mubr.f32.mxu0 0.0
      %11288 = vmatmul.mubr.f32.gmra.mxu0 %v11063
      %v11289 = vpop.f32.mrf.mxu0
      %v11290 = vadd.f32 0.0, %v11289
      %v11291 = vpop.f32.mrf.mxu0
      %11292 = vmatprep.mubr.f32.mxu0 0.0
      %11293 = vmatmul.mubr.f32.gmra.mxu0 %v11066
      %v11294 = vpop.f32.mrf.mxu0
      %v11295 = vadd.f32 0.0, %v11294
      %v11296 = vpop.f32.mrf.mxu0
      %11297 = vmatprep.mubr.f32.mxu0 0.0
      %11298 = vmatmul.mubr.f32.gmra.mxu0 %v11069
      %v11299 = vpop.f32.mrf.mxu0
      %v11300 = vadd.f32 0.0, %v11299
      %v11301 = vpop.f32.mrf.mxu0
      %11302 = vmatprep.mubr.f32.mxu0 0.0
      %11303 = vmatmul.mubr.f32.gmra.mxu0 %v11072
      %v11304 = vpop.f32.mrf.mxu0
      %v11305 = vadd.f32 0.0, %v11304
      %v11306 = vpop.f32.mrf.mxu0
      %11307 = vmatprep.mubr.f32.mxu0 0.0
      %11308 = vmatmul.mubr.f32.gmra.mxu0 %v11075
      %v11309 = vpop.f32.mrf.mxu0
      %v11310 = vadd.f32 0.0, %v11309
      %v11311 = vpop.f32.mrf.mxu0
      %11312 = vmatprep.mubr.f32.mxu0 0.0
      %11313 = vmatmul.mubr.f32.gmra.mxu0 %v11078
      %v11314 = vpop.f32.mrf.mxu0
      %v11315 = vadd.f32 0.0, %v11314
      %v11316 = vpop.f32.mrf.mxu0
      %11317 = vmatprep.mubr.f32.mxu0 0.0
      %11318 = vmatmul.mubr.f32.gmra.mxu0 %v11081
      %v11319 = vpop.f32.mrf.mxu0
      %v11320 = vadd.f32 0.0, %v11319
      %v11321 = vpop.f32.mrf.mxu0
      %11322 = vmatprep.mubr.f32.mxu0 0.0
      %11323 = vmatmul.mubr.f32.gmra.mxu0 %v11084
      %v11324 = vpop.f32.mrf.mxu0
      %v11325 = vadd.f32 0.0, %v11324
      %v11326 = vpop.f32.mrf.mxu0
      %11327 = vmatprep.mubr.f32.mxu0 0.0
      %11328 = vmatmul.mubr.f32.gmra.mxu0 %v11087
      %v11329 = vpop.f32.mrf.mxu0
      %v11330 = vadd.f32 0.0, %v11329
      %v11331 = vpop.f32.mrf.mxu0
      %11332 = vmatprep.mubr.f32.mxu0 0.0
      %11333 = vmatmul.mubr.f32.gmra.mxu0 %v11090
      %v11334 = vpop.f32.mrf.mxu0
      %v11335 = vadd.f32 0.0, %v11334
      %v11336 = vpop.f32.mrf.mxu0
      %11337 = vmatprep.mubr.f32.mxu0 0.0
      %11338 = vmatmul.mubr.f32.gmra.mxu0 %v11093
      %v11339 = vpop.f32.mrf.mxu0
      %v11340 = vadd.f32 0.0, %v11339
      %v11341 = vpop.f32.mrf.mxu0
      %11342 = vdwg.mxu0
      %v11343 = vadd.f32 %v10913, %v11165
      %v11344 = vadd.f32 %v10914, %v11170
      %v11345 = vadd.f32 %v10915, %v11175
      %v11346 = vadd.f32 %v10916, %v11180
      %v11347 = vadd.f32 %v10917, %v11185
      %v11348 = vadd.f32 %v10918, %v11190
      %v11349 = vadd.f32 %v10919, %v11195
      %v11350 = vadd.f32 %v10920, %v11200
      %v11351 = vadd.f32 %v10921, %v11205
      %v11352 = vadd.f32 %v10922, %v11210
      %v11353 = vadd.f32 %v10923, %v11215
      %v11354 = vadd.f32 %v10924, %v11220
      %v11355 = vadd.f32 %v10925, %v11225
      %v11356 = vadd.f32 %v10926, %v11230
      %v11357 = vadd.f32 %v10927, %v11235
      %v11358 = vadd.f32 %v10928, %v11240
      %v11359 = vadd.f32 %v10929, %v11245
      %v11360 = vadd.f32 %v10930, %v11250
      %v11361 = vadd.f32 %v10931, %v11255
      %v11362 = vadd.f32 %v10932, %v11260
      %v11363 = vadd.f32 %v10933, %v11265
      %v11364 = vadd.f32 %v10934, %v11270
      %v11365 = vadd.f32 %v10935, %v11275
      %v11366 = vadd.f32 %v10936, %v11280
      %v11367 = vadd.f32 %v10937, %v11285
      %v11368 = vadd.f32 %v10938, %v11290
      %v11369 = vadd.f32 %v10939, %v11295
      %v11370 = vadd.f32 %v10940, %v11300
      %v11371 = vadd.f32 %v10941, %v11305
      %v11372 = vadd.f32 %v10942, %v11310
      %v11373 = vadd.f32 %v10943, %v11315
      %v11374 = vadd.f32 %v10944, %v11320
      %v11375 = vadd.f32 %v10945, %v11325
      %v11376 = vadd.f32 %v10946, %v11330
      %v11377 = vadd.f32 %v10947, %v11335
      %v11378 = vadd.f32 %v10948, %v11340
      %v11379 = vld [vmem:[#allocation2 + $0x2a] sm:$0xff]
      %v11380 = vld [vmem:[#allocation2 + $0x32] sm:$0xff]
      %v11381 = vld [vmem:[#allocation2 + $0x3a] sm:$0xff]
      %v11382 = vld [vmem:[#allocation2 + $0x42] sm:$0xff]
      %v11383 = vld [vmem:[#allocation2 + $0x4a] sm:$0xff]
      %v11384 = vld [vmem:[#allocation2 + $0x52] sm:$0xff]
      %v11385 = vld [vmem:[#allocation2 + $0x5a] sm:$0xff]
      %v11386 = vld [vmem:[#allocation2 + $0x62] sm:$0xff]
      %v11387 = vld [vmem:[#allocation2 + $0x6a] sm:$0xff]
      %v11388 = vld [vmem:[#allocation2 + $0x72] sm:$0xff]
      %v11389 = vld [vmem:[#allocation2 + $0x7a] sm:$0xff]
      %v11390 = vld [vmem:[#allocation2 + $0x82] sm:$0xff]
      %v11391 = vld [vmem:[#allocation2 + $0x8a] sm:$0xff]
      %v11392 = vld [vmem:[#allocation2 + $0x92] sm:$0xff]
      %v11393 = vld [vmem:[#allocation2 + $0x9a] sm:$0xff]
      %v11394 = vld [vmem:[#allocation2 + $0xa2] sm:$0xff]
      %v11395 = vld [vmem:[#allocation2 + $0xaa] sm:$0xff]
      %v11396 = vld [vmem:[#allocation2 + $0xb2] sm:$0xff]
      %v11397 = vld [vmem:[#allocation2 + $0xba] sm:$0xff]
      %v11398 = vld [vmem:[#allocation2 + $0xc2] sm:$0xff]
      %v11399 = vld [vmem:[#allocation2 + $0xca] sm:$0xff]
      %v11400 = vld [vmem:[#allocation2 + $0xd2] sm:$0xff]
      %v11401 = vld [vmem:[#allocation2 + $0xda] sm:$0xff]
      %v11402 = vld [vmem:[#allocation2 + $0xe2] sm:$0xff]
      %v11403 = vld [vmem:[#allocation2 + $0xea] sm:$0xff]
      %v11404 = vld [vmem:[#allocation2 + $0xf2] sm:$0xff]
      %v11405 = vld [vmem:[#allocation2 + $0xfa] sm:$0xff]
      %v11406 = vld [vmem:[#allocation2 + $0x102] sm:$0xff]
      %v11407 = vld [vmem:[#allocation2 + $0x10a] sm:$0xff]
      %v11408 = vld [vmem:[#allocation2 + $0x112] sm:$0xff]
      %v11409 = vld [vmem:[#allocation2 + $0x11a] sm:$0xff]
      %v11410 = vld [vmem:[#allocation2 + $0x122] sm:$0xff]
      %v11411 = vld [vmem:[#allocation2 + $0x12a] sm:$0xff]
      %v11412 = vld [vmem:[#allocation2 + $0x132] sm:$0xff]
      %v11413 = vld [vmem:[#allocation2 + $0x13a] sm:$0xff]
      %v11414 = vld [vmem:[#allocation2 + $0x142] sm:$0xff]
      %s11415 = scalar_lea.vmem %s6, 28
      %v11416 = vld [vmem:[%s11415] sm:$0xf]
      %v11418 = vsel %vm401, %v11379, 0
      %v11421 = vsel %vm401, %v11380, 0
      %v11424 = vsel %vm401, %v11381, 0
      %v11427 = vsel %vm401, %v11382, 0
      %v11430 = vsel %vm401, %v11383, 0
      %v11433 = vsel %vm401, %v11384, 0
      %v11436 = vsel %vm401, %v11385, 0
      %v11439 = vsel %vm401, %v11386, 0
      %v11442 = vsel %vm401, %v11387, 0
      %v11445 = vsel %vm401, %v11388, 0
      %v11448 = vsel %vm401, %v11389, 0
      %v11451 = vsel %vm401, %v11390, 0
      %v11454 = vsel %vm401, %v11391, 0
      %v11457 = vsel %vm401, %v11392, 0
      %v11460 = vsel %vm401, %v11393, 0
      %v11463 = vsel %vm401, %v11394, 0
      %v11466 = vsel %vm401, %v11395, 0
      %v11469 = vsel %vm401, %v11396, 0
      %v11472 = vsel %vm401, %v11397, 0
      %v11475 = vsel %vm401, %v11398, 0
      %v11478 = vsel %vm401, %v11399, 0
      %v11481 = vsel %vm401, %v11400, 0
      %v11484 = vsel %vm401, %v11401, 0
      %v11487 = vsel %vm401, %v11402, 0
      %v11490 = vsel %vm401, %v11403, 0
      %v11493 = vsel %vm401, %v11404, 0
      %v11496 = vsel %vm401, %v11405, 0
      %v11499 = vsel %vm401, %v11406, 0
      %v11502 = vsel %vm401, %v11407, 0
      %v11505 = vsel %vm401, %v11408, 0
      %v11508 = vsel %vm401, %v11409, 0
      %v11511 = vsel %vm401, %v11410, 0
      %v11514 = vsel %vm401, %v11411, 0
      %v11517 = vsel %vm401, %v11412, 0
      %v11520 = vsel %vm401, %v11413, 0
      %v11523 = vsel %vm401, %v11414, 0
      %v11526 = vsel %vm510, %v11416, 0
      %11528 = vmatprep.subr.mxu0 0.0
      %11529 = vmatpush1.msra.mxu0 0.0
      %11530 = vmatprep.subr.mxu0 0.0
      %11531 = vmatpush1.msra.mxu0 0.0
      %11532 = vmatprep.subr.mxu0 0.0
      %11533 = vmatpush1.msra.mxu0 0.0
      %11534 = vmatprep.subr.mxu0 0.0
      %11535 = vmatpush1.msra.mxu0 0.0
      %11536 = vmatprep.subr.mxu0 0.0
      %11537 = vmatpush1.msra.mxu0 0.0
      %11538 = vmatprep.subr.mxu0 0.0
      %11539 = vmatpush1.msra.mxu0 0.0
      %11540 = vmatprep.subr.mxu0 0.0
      %11541 = vmatpush1.msra.mxu0 0.0
      %11542 = vmatprep.subr.mxu0 0.0
      %11543 = vmatpush1.msra.mxu0 0.0
      %11544 = vmatprep.subr.mxu0 0.0
      %11545 = vmatpush1.msra.mxu0 0.0
      %11546 = vmatprep.subr.mxu0 0.0
      %11547 = vmatpush1.msra.mxu0 0.0
      %11548 = vmatprep.subr.mxu0 0.0
      %11549 = vmatpush1.msra.mxu0 0.0
      %11550 = vmatprep.subr.mxu0 0.0
      %11551 = vmatpush1.msra.mxu0 0.0
      %11552 = vmatprep.subr.mxu0 0.0
      %11553 = vmatpush1.msra.mxu0 0.0
      %11554 = vmatprep.subr.mxu0 0.0
      %11555 = vmatpush1.msra.mxu0 0.0
      %11556 = vmatprep.subr.mxu0 0.0
      %11557 = vmatpush1.msra.mxu0 0.0
      %11558 = vmatprep.subr.mxu0 0.0
      %11559 = vmatpush1.msra.mxu0 %v11526
      %11560 = vmatprep.subr.mxu0 0.0
      %11561 = vmatpush2.msra.mxu0 0.0
      %11562 = vmatprep.subr.mxu0 0.0
      %11563 = vmatpush2.msra.mxu0 0.0
      %11564 = vmatprep.subr.mxu0 0.0
      %11565 = vmatpush2.msra.mxu0 0.0
      %11566 = vmatprep.subr.mxu0 0.0
      %11567 = vmatpush2.msra.mxu0 0.0
      %11568 = vmatprep.subr.mxu0 0.0
      %11569 = vmatpush2.msra.mxu0 0.0
      %11570 = vmatprep.subr.mxu0 0.0
      %11571 = vmatpush2.msra.mxu0 0.0
      %11572 = vmatprep.subr.mxu0 0.0
      %11573 = vmatpush2.msra.mxu0 0.0
      %11574 = vmatprep.subr.mxu0 0.0
      %11575 = vmatpush2.msra.mxu0 0.0
      %11576 = vmatprep.subr.mxu0 0.0
      %11577 = vmatpush2.msra.mxu0 0.0
      %11578 = vmatprep.subr.mxu0 0.0
      %11579 = vmatpush2.msra.mxu0 0.0
      %11580 = vmatprep.subr.mxu0 0.0
      %11581 = vmatpush2.msra.mxu0 0.0
      %11582 = vmatprep.subr.mxu0 0.0
      %11583 = vmatpush2.msra.mxu0 0.0
      %11584 = vmatprep.subr.mxu0 0.0
      %11585 = vmatpush2.msra.mxu0 0.0
      %11586 = vmatprep.subr.mxu0 0.0
      %11587 = vmatpush2.msra.mxu0 0.0
      %11588 = vmatprep.subr.mxu0 0.0
      %11589 = vmatpush2.msra.mxu0 0.0
      %11590 = vmatprep.subr.mxu0 0.0
      %11591 = vmatpush2.msra.mxu0 0.0
      %11592 = vmatprep.mubr.f32.mxu0 0.0
      %11593 = vmatmul.mubr.f32.gmra.mxu0 %v11418
      %v11594 = vpop.f32.mrf.mxu0
      %v11595 = vadd.f32 0.0, %v11594
      %v11596 = vpop.f32.mrf.mxu0
      %11597 = vmatprep.mubr.f32.mxu0 0.0
      %11598 = vmatmul.mubr.f32.gmra.mxu0 %v11421
      %v11599 = vpop.f32.mrf.mxu0
      %v11600 = vadd.f32 0.0, %v11599
      %v11601 = vpop.f32.mrf.mxu0
      %11602 = vmatprep.mubr.f32.mxu0 0.0
      %11603 = vmatmul.mubr.f32.gmra.mxu0 %v11424
      %v11604 = vpop.f32.mrf.mxu0
      %v11605 = vadd.f32 0.0, %v11604
      %v11606 = vpop.f32.mrf.mxu0
      %11607 = vmatprep.mubr.f32.mxu0 0.0
      %11608 = vmatmul.mubr.f32.gmra.mxu0 %v11427
      %v11609 = vpop.f32.mrf.mxu0
      %v11610 = vadd.f32 0.0, %v11609
      %v11611 = vpop.f32.mrf.mxu0
      %11612 = vmatprep.mubr.f32.mxu0 0.0
      %11613 = vmatmul.mubr.f32.gmra.mxu0 %v11430
      %v11614 = vpop.f32.mrf.mxu0
      %v11615 = vadd.f32 0.0, %v11614
      %v11616 = vpop.f32.mrf.mxu0
      %11617 = vmatprep.mubr.f32.mxu0 0.0
      %11618 = vmatmul.mubr.f32.gmra.mxu0 %v11433
      %v11619 = vpop.f32.mrf.mxu0
      %v11620 = vadd.f32 0.0, %v11619
      %v11621 = vpop.f32.mrf.mxu0
      %11622 = vmatprep.mubr.f32.mxu0 0.0
      %11623 = vmatmul.mubr.f32.gmra.mxu0 %v11436
      %v11624 = vpop.f32.mrf.mxu0
      %v11625 = vadd.f32 0.0, %v11624
      %v11626 = vpop.f32.mrf.mxu0
      %11627 = vmatprep.mubr.f32.mxu0 0.0
      %11628 = vmatmul.mubr.f32.gmra.mxu0 %v11439
      %v11629 = vpop.f32.mrf.mxu0
      %v11630 = vadd.f32 0.0, %v11629
      %v11631 = vpop.f32.mrf.mxu0
      %11632 = vmatprep.mubr.f32.mxu0 0.0
      %11633 = vmatmul.mubr.f32.gmra.mxu0 %v11442
      %v11634 = vpop.f32.mrf.mxu0
      %v11635 = vadd.f32 0.0, %v11634
      %v11636 = vpop.f32.mrf.mxu0
      %11637 = vmatprep.mubr.f32.mxu0 0.0
      %11638 = vmatmul.mubr.f32.gmra.mxu0 %v11445
      %v11639 = vpop.f32.mrf.mxu0
      %v11640 = vadd.f32 0.0, %v11639
      %v11641 = vpop.f32.mrf.mxu0
      %11642 = vmatprep.mubr.f32.mxu0 0.0
      %11643 = vmatmul.mubr.f32.gmra.mxu0 %v11448
      %v11644 = vpop.f32.mrf.mxu0
      %v11645 = vadd.f32 0.0, %v11644
      %v11646 = vpop.f32.mrf.mxu0
      %11647 = vmatprep.mubr.f32.mxu0 0.0
      %11648 = vmatmul.mubr.f32.gmra.mxu0 %v11451
      %v11649 = vpop.f32.mrf.mxu0
      %v11650 = vadd.f32 0.0, %v11649
      %v11651 = vpop.f32.mrf.mxu0
      %11652 = vmatprep.mubr.f32.mxu0 0.0
      %11653 = vmatmul.mubr.f32.gmra.mxu0 %v11454
      %v11654 = vpop.f32.mrf.mxu0
      %v11655 = vadd.f32 0.0, %v11654
      %v11656 = vpop.f32.mrf.mxu0
      %11657 = vmatprep.mubr.f32.mxu0 0.0
      %11658 = vmatmul.mubr.f32.gmra.mxu0 %v11457
      %v11659 = vpop.f32.mrf.mxu0
      %v11660 = vadd.f32 0.0, %v11659
      %v11661 = vpop.f32.mrf.mxu0
      %11662 = vmatprep.mubr.f32.mxu0 0.0
      %11663 = vmatmul.mubr.f32.gmra.mxu0 %v11460
      %v11664 = vpop.f32.mrf.mxu0
      %v11665 = vadd.f32 0.0, %v11664
      %v11666 = vpop.f32.mrf.mxu0
      %11667 = vmatprep.mubr.f32.mxu0 0.0
      %11668 = vmatmul.mubr.f32.gmra.mxu0 %v11463
      %v11669 = vpop.f32.mrf.mxu0
      %v11670 = vadd.f32 0.0, %v11669
      %v11671 = vpop.f32.mrf.mxu0
      %11672 = vmatprep.mubr.f32.mxu0 0.0
      %11673 = vmatmul.mubr.f32.gmra.mxu0 %v11466
      %v11674 = vpop.f32.mrf.mxu0
      %v11675 = vadd.f32 0.0, %v11674
      %v11676 = vpop.f32.mrf.mxu0
      %11677 = vmatprep.mubr.f32.mxu0 0.0
      %11678 = vmatmul.mubr.f32.gmra.mxu0 %v11469
      %v11679 = vpop.f32.mrf.mxu0
      %v11680 = vadd.f32 0.0, %v11679
      %v11681 = vpop.f32.mrf.mxu0
      %11682 = vmatprep.mubr.f32.mxu0 0.0
      %11683 = vmatmul.mubr.f32.gmra.mxu0 %v11472
      %v11684 = vpop.f32.mrf.mxu0
      %v11685 = vadd.f32 0.0, %v11684
      %v11686 = vpop.f32.mrf.mxu0
      %11687 = vmatprep.mubr.f32.mxu0 0.0
      %11688 = vmatmul.mubr.f32.gmra.mxu0 %v11475
      %v11689 = vpop.f32.mrf.mxu0
      %v11690 = vadd.f32 0.0, %v11689
      %v11691 = vpop.f32.mrf.mxu0
      %11692 = vmatprep.mubr.f32.mxu0 0.0
      %11693 = vmatmul.mubr.f32.gmra.mxu0 %v11478
      %v11694 = vpop.f32.mrf.mxu0
      %v11695 = vadd.f32 0.0, %v11694
      %v11696 = vpop.f32.mrf.mxu0
      %11697 = vmatprep.mubr.f32.mxu0 0.0
      %11698 = vmatmul.mubr.f32.gmra.mxu0 %v11481
      %v11699 = vpop.f32.mrf.mxu0
      %v11700 = vadd.f32 0.0, %v11699
      %v11701 = vpop.f32.mrf.mxu0
      %11702 = vmatprep.mubr.f32.mxu0 0.0
      %11703 = vmatmul.mubr.f32.gmra.mxu0 %v11484
      %v11704 = vpop.f32.mrf.mxu0
      %v11705 = vadd.f32 0.0, %v11704
      %v11706 = vpop.f32.mrf.mxu0
      %11707 = vmatprep.mubr.f32.mxu0 0.0
      %11708 = vmatmul.mubr.f32.gmra.mxu0 %v11487
      %v11709 = vpop.f32.mrf.mxu0
      %v11710 = vadd.f32 0.0, %v11709
      %v11711 = vpop.f32.mrf.mxu0
      %11712 = vmatprep.mubr.f32.mxu0 0.0
      %11713 = vmatmul.mubr.f32.gmra.mxu0 %v11490
      %v11714 = vpop.f32.mrf.mxu0
      %v11715 = vadd.f32 0.0, %v11714
      %v11716 = vpop.f32.mrf.mxu0
      %11717 = vmatprep.mubr.f32.mxu0 0.0
      %11718 = vmatmul.mubr.f32.gmra.mxu0 %v11493
      %v11719 = vpop.f32.mrf.mxu0
      %v11720 = vadd.f32 0.0, %v11719
      %v11721 = vpop.f32.mrf.mxu0
      %11722 = vmatprep.mubr.f32.mxu0 0.0
      %11723 = vmatmul.mubr.f32.gmra.mxu0 %v11496
      %v11724 = vpop.f32.mrf.mxu0
      %v11725 = vadd.f32 0.0, %v11724
      %v11726 = vpop.f32.mrf.mxu0
      %11727 = vmatprep.mubr.f32.mxu0 0.0
      %11728 = vmatmul.mubr.f32.gmra.mxu0 %v11499
      %v11729 = vpop.f32.mrf.mxu0
      %v11730 = vadd.f32 0.0, %v11729
      %v11731 = vpop.f32.mrf.mxu0
      %11732 = vmatprep.mubr.f32.mxu0 0.0
      %11733 = vmatmul.mubr.f32.gmra.mxu0 %v11502
      %v11734 = vpop.f32.mrf.mxu0
      %v11735 = vadd.f32 0.0, %v11734
      %v11736 = vpop.f32.mrf.mxu0
      %11737 = vmatprep.mubr.f32.mxu0 0.0
      %11738 = vmatmul.mubr.f32.gmra.mxu0 %v11505
      %v11739 = vpop.f32.mrf.mxu0
      %v11740 = vadd.f32 0.0, %v11739
      %v11741 = vpop.f32.mrf.mxu0
      %11742 = vmatprep.mubr.f32.mxu0 0.0
      %11743 = vmatmul.mubr.f32.gmra.mxu0 %v11508
      %v11744 = vpop.f32.mrf.mxu0
      %v11745 = vadd.f32 0.0, %v11744
      %v11746 = vpop.f32.mrf.mxu0
      %11747 = vmatprep.mubr.f32.mxu0 0.0
      %11748 = vmatmul.mubr.f32.gmra.mxu0 %v11511
      %v11749 = vpop.f32.mrf.mxu0
      %v11750 = vadd.f32 0.0, %v11749
      %v11751 = vpop.f32.mrf.mxu0
      %11752 = vmatprep.mubr.f32.mxu0 0.0
      %11753 = vmatmul.mubr.f32.gmra.mxu0 %v11514
      %v11754 = vpop.f32.mrf.mxu0
      %v11755 = vadd.f32 0.0, %v11754
      %v11756 = vpop.f32.mrf.mxu0
      %11757 = vmatprep.mubr.f32.mxu0 0.0
      %11758 = vmatmul.mubr.f32.gmra.mxu0 %v11517
      %v11759 = vpop.f32.mrf.mxu0
      %v11760 = vadd.f32 0.0, %v11759
      %v11761 = vpop.f32.mrf.mxu0
      %11762 = vmatprep.mubr.f32.mxu0 0.0
      %11763 = vmatmul.mubr.f32.gmra.mxu0 %v11520
      %v11764 = vpop.f32.mrf.mxu0
      %v11765 = vadd.f32 0.0, %v11764
      %v11766 = vpop.f32.mrf.mxu0
      %11767 = vmatprep.mubr.f32.mxu0 0.0
      %11768 = vmatmul.mubr.f32.gmra.mxu0 %v11523
      %v11769 = vpop.f32.mrf.mxu0
      %v11770 = vadd.f32 0.0, %v11769
      %v11771 = vpop.f32.mrf.mxu0
      %11772 = vdwg.mxu0
      %v11773 = vadd.f32 %v11343, %v11595
      %v11774 = vadd.f32 %v11344, %v11600
      %v11775 = vadd.f32 %v11345, %v11605
      %v11776 = vadd.f32 %v11346, %v11610
      %v11777 = vadd.f32 %v11347, %v11615
      %v11778 = vadd.f32 %v11348, %v11620
      %v11779 = vadd.f32 %v11349, %v11625
      %v11780 = vadd.f32 %v11350, %v11630
      %v11781 = vadd.f32 %v11351, %v11635
      %v11782 = vadd.f32 %v11352, %v11640
      %v11783 = vadd.f32 %v11353, %v11645
      %v11784 = vadd.f32 %v11354, %v11650
      %v11785 = vadd.f32 %v11355, %v11655
      %v11786 = vadd.f32 %v11356, %v11660
      %v11787 = vadd.f32 %v11357, %v11665
      %v11788 = vadd.f32 %v11358, %v11670
      %v11789 = vadd.f32 %v11359, %v11675
      %v11790 = vadd.f32 %v11360, %v11680
      %v11791 = vadd.f32 %v11361, %v11685
      %v11792 = vadd.f32 %v11362, %v11690
      %v11793 = vadd.f32 %v11363, %v11695
      %v11794 = vadd.f32 %v11364, %v11700
      %v11795 = vadd.f32 %v11365, %v11705
      %v11796 = vadd.f32 %v11366, %v11710
      %v11797 = vadd.f32 %v11367, %v11715
      %v11798 = vadd.f32 %v11368, %v11720
      %v11799 = vadd.f32 %v11369, %v11725
      %v11800 = vadd.f32 %v11370, %v11730
      %v11801 = vadd.f32 %v11371, %v11735
      %v11802 = vadd.f32 %v11372, %v11740
      %v11803 = vadd.f32 %v11373, %v11745
      %v11804 = vadd.f32 %v11374, %v11750
      %v11805 = vadd.f32 %v11375, %v11755
      %v11806 = vadd.f32 %v11376, %v11760
      %v11807 = vadd.f32 %v11377, %v11765
      %v11808 = vadd.f32 %v11378, %v11770
      %v11809 = vld [vmem:[#allocation2 + $0x2b] sm:$0xff]
      %v11810 = vld [vmem:[#allocation2 + $0x33] sm:$0xff]
      %v11811 = vld [vmem:[#allocation2 + $0x3b] sm:$0xff]
      %v11812 = vld [vmem:[#allocation2 + $0x43] sm:$0xff]
      %v11813 = vld [vmem:[#allocation2 + $0x4b] sm:$0xff]
      %v11814 = vld [vmem:[#allocation2 + $0x53] sm:$0xff]
      %v11815 = vld [vmem:[#allocation2 + $0x5b] sm:$0xff]
      %v11816 = vld [vmem:[#allocation2 + $0x63] sm:$0xff]
      %v11817 = vld [vmem:[#allocation2 + $0x6b] sm:$0xff]
      %v11818 = vld [vmem:[#allocation2 + $0x73] sm:$0xff]
      %v11819 = vld [vmem:[#allocation2 + $0x7b] sm:$0xff]
      %v11820 = vld [vmem:[#allocation2 + $0x83] sm:$0xff]
      %v11821 = vld [vmem:[#allocation2 + $0x8b] sm:$0xff]
      %v11822 = vld [vmem:[#allocation2 + $0x93] sm:$0xff]
      %v11823 = vld [vmem:[#allocation2 + $0x9b] sm:$0xff]
      %v11824 = vld [vmem:[#allocation2 + $0xa3] sm:$0xff]
      %v11825 = vld [vmem:[#allocation2 + $0xab] sm:$0xff]
      %v11826 = vld [vmem:[#allocation2 + $0xb3] sm:$0xff]
      %v11827 = vld [vmem:[#allocation2 + $0xbb] sm:$0xff]
      %v11828 = vld [vmem:[#allocation2 + $0xc3] sm:$0xff]
      %v11829 = vld [vmem:[#allocation2 + $0xcb] sm:$0xff]
      %v11830 = vld [vmem:[#allocation2 + $0xd3] sm:$0xff]
      %v11831 = vld [vmem:[#allocation2 + $0xdb] sm:$0xff]
      %v11832 = vld [vmem:[#allocation2 + $0xe3] sm:$0xff]
      %v11833 = vld [vmem:[#allocation2 + $0xeb] sm:$0xff]
      %v11834 = vld [vmem:[#allocation2 + $0xf3] sm:$0xff]
      %v11835 = vld [vmem:[#allocation2 + $0xfb] sm:$0xff]
      %v11836 = vld [vmem:[#allocation2 + $0x103] sm:$0xff]
      %v11837 = vld [vmem:[#allocation2 + $0x10b] sm:$0xff]
      %v11838 = vld [vmem:[#allocation2 + $0x113] sm:$0xff]
      %v11839 = vld [vmem:[#allocation2 + $0x11b] sm:$0xff]
      %v11840 = vld [vmem:[#allocation2 + $0x123] sm:$0xff]
      %v11841 = vld [vmem:[#allocation2 + $0x12b] sm:$0xff]
      %v11842 = vld [vmem:[#allocation2 + $0x133] sm:$0xff]
      %v11843 = vld [vmem:[#allocation2 + $0x13b] sm:$0xff]
      %v11844 = vld [vmem:[#allocation2 + $0x143] sm:$0xff]
      %s11845 = scalar_lea.vmem %s6, 32
      %v11846 = vld [vmem:[%s11845] sm:$0xf]
      %v11848 = vsel %vm401, %v11809, 0
      %v11851 = vsel %vm401, %v11810, 0
      %v11854 = vsel %vm401, %v11811, 0
      %v11857 = vsel %vm401, %v11812, 0
      %v11860 = vsel %vm401, %v11813, 0
      %v11863 = vsel %vm401, %v11814, 0
      %v11866 = vsel %vm401, %v11815, 0
      %v11869 = vsel %vm401, %v11816, 0
      %v11872 = vsel %vm401, %v11817, 0
      %v11875 = vsel %vm401, %v11818, 0
      %v11878 = vsel %vm401, %v11819, 0
      %v11881 = vsel %vm401, %v11820, 0
      %v11884 = vsel %vm401, %v11821, 0
      %v11887 = vsel %vm401, %v11822, 0
      %v11890 = vsel %vm401, %v11823, 0
      %v11893 = vsel %vm401, %v11824, 0
      %v11896 = vsel %vm401, %v11825, 0
      %v11899 = vsel %vm401, %v11826, 0
      %v11902 = vsel %vm401, %v11827, 0
      %v11905 = vsel %vm401, %v11828, 0
      %v11908 = vsel %vm401, %v11829, 0
      %v11911 = vsel %vm401, %v11830, 0
      %v11914 = vsel %vm401, %v11831, 0
      %v11917 = vsel %vm401, %v11832, 0
      %v11920 = vsel %vm401, %v11833, 0
      %v11923 = vsel %vm401, %v11834, 0
      %v11926 = vsel %vm401, %v11835, 0
      %v11929 = vsel %vm401, %v11836, 0
      %v11932 = vsel %vm401, %v11837, 0
      %v11935 = vsel %vm401, %v11838, 0
      %v11938 = vsel %vm401, %v11839, 0
      %v11941 = vsel %vm401, %v11840, 0
      %v11944 = vsel %vm401, %v11841, 0
      %v11947 = vsel %vm401, %v11842, 0
      %v11950 = vsel %vm401, %v11843, 0
      %v11953 = vsel %vm401, %v11844, 0
      %v11956 = vsel %vm510, %v11846, 0
      %11958 = vmatprep.subr.mxu0 0.0
      %11959 = vmatpush1.msra.mxu0 0.0
      %11960 = vmatprep.subr.mxu0 0.0
      %11961 = vmatpush1.msra.mxu0 0.0
      %11962 = vmatprep.subr.mxu0 0.0
      %11963 = vmatpush1.msra.mxu0 0.0
      %11964 = vmatprep.subr.mxu0 0.0
      %11965 = vmatpush1.msra.mxu0 0.0
      %11966 = vmatprep.subr.mxu0 0.0
      %11967 = vmatpush1.msra.mxu0 0.0
      %11968 = vmatprep.subr.mxu0 0.0
      %11969 = vmatpush1.msra.mxu0 0.0
      %11970 = vmatprep.subr.mxu0 0.0
      %11971 = vmatpush1.msra.mxu0 0.0
      %11972 = vmatprep.subr.mxu0 0.0
      %11973 = vmatpush1.msra.mxu0 0.0
      %11974 = vmatprep.subr.mxu0 0.0
      %11975 = vmatpush1.msra.mxu0 0.0
      %11976 = vmatprep.subr.mxu0 0.0
      %11977 = vmatpush1.msra.mxu0 0.0
      %11978 = vmatprep.subr.mxu0 0.0
      %11979 = vmatpush1.msra.mxu0 0.0
      %11980 = vmatprep.subr.mxu0 0.0
      %11981 = vmatpush1.msra.mxu0 0.0
      %11982 = vmatprep.subr.mxu0 0.0
      %11983 = vmatpush1.msra.mxu0 0.0
      %11984 = vmatprep.subr.mxu0 0.0
      %11985 = vmatpush1.msra.mxu0 0.0
      %11986 = vmatprep.subr.mxu0 0.0
      %11987 = vmatpush1.msra.mxu0 0.0
      %11988 = vmatprep.subr.mxu0 0.0
      %11989 = vmatpush1.msra.mxu0 %v11956
      %11990 = vmatprep.subr.mxu0 0.0
      %11991 = vmatpush2.msra.mxu0 0.0
      %11992 = vmatprep.subr.mxu0 0.0
      %11993 = vmatpush2.msra.mxu0 0.0
      %11994 = vmatprep.subr.mxu0 0.0
      %11995 = vmatpush2.msra.mxu0 0.0
      %11996 = vmatprep.subr.mxu0 0.0
      %11997 = vmatpush2.msra.mxu0 0.0
      %11998 = vmatprep.subr.mxu0 0.0
      %11999 = vmatpush2.msra.mxu0 0.0
      %12000 = vmatprep.subr.mxu0 0.0
      %12001 = vmatpush2.msra.mxu0 0.0
      %12002 = vmatprep.subr.mxu0 0.0
      %12003 = vmatpush2.msra.mxu0 0.0
      %12004 = vmatprep.subr.mxu0 0.0
      %12005 = vmatpush2.msra.mxu0 0.0
      %12006 = vmatprep.subr.mxu0 0.0
      %12007 = vmatpush2.msra.mxu0 0.0
      %12008 = vmatprep.subr.mxu0 0.0
      %12009 = vmatpush2.msra.mxu0 0.0
      %12010 = vmatprep.subr.mxu0 0.0
      %12011 = vmatpush2.msra.mxu0 0.0
      %12012 = vmatprep.subr.mxu0 0.0
      %12013 = vmatpush2.msra.mxu0 0.0
      %12014 = vmatprep.subr.mxu0 0.0
      %12015 = vmatpush2.msra.mxu0 0.0
      %12016 = vmatprep.subr.mxu0 0.0
      %12017 = vmatpush2.msra.mxu0 0.0
      %12018 = vmatprep.subr.mxu0 0.0
      %12019 = vmatpush2.msra.mxu0 0.0
      %12020 = vmatprep.subr.mxu0 0.0
      %12021 = vmatpush2.msra.mxu0 0.0
      %12022 = vmatprep.mubr.f32.mxu0 0.0
      %12023 = vmatmul.mubr.f32.gmra.mxu0 %v11848
      %v12024 = vpop.f32.mrf.mxu0
      %v12025 = vadd.f32 0.0, %v12024
      %v12026 = vpop.f32.mrf.mxu0
      %12027 = vmatprep.mubr.f32.mxu0 0.0
      %12028 = vmatmul.mubr.f32.gmra.mxu0 %v11851
      %v12029 = vpop.f32.mrf.mxu0
      %v12030 = vadd.f32 0.0, %v12029
      %v12031 = vpop.f32.mrf.mxu0
      %12032 = vmatprep.mubr.f32.mxu0 0.0
      %12033 = vmatmul.mubr.f32.gmra.mxu0 %v11854
      %v12034 = vpop.f32.mrf.mxu0
      %v12035 = vadd.f32 0.0, %v12034
      %v12036 = vpop.f32.mrf.mxu0
      %12037 = vmatprep.mubr.f32.mxu0 0.0
      %12038 = vmatmul.mubr.f32.gmra.mxu0 %v11857
      %v12039 = vpop.f32.mrf.mxu0
      %v12040 = vadd.f32 0.0, %v12039
      %v12041 = vpop.f32.mrf.mxu0
      %12042 = vmatprep.mubr.f32.mxu0 0.0
      %12043 = vmatmul.mubr.f32.gmra.mxu0 %v11860
      %v12044 = vpop.f32.mrf.mxu0
      %v12045 = vadd.f32 0.0, %v12044
      %v12046 = vpop.f32.mrf.mxu0
      %12047 = vmatprep.mubr.f32.mxu0 0.0
      %12048 = vmatmul.mubr.f32.gmra.mxu0 %v11863
      %v12049 = vpop.f32.mrf.mxu0
      %v12050 = vadd.f32 0.0, %v12049
      %v12051 = vpop.f32.mrf.mxu0
      %12052 = vmatprep.mubr.f32.mxu0 0.0
      %12053 = vmatmul.mubr.f32.gmra.mxu0 %v11866
      %v12054 = vpop.f32.mrf.mxu0
      %v12055 = vadd.f32 0.0, %v12054
      %v12056 = vpop.f32.mrf.mxu0
      %12057 = vmatprep.mubr.f32.mxu0 0.0
      %12058 = vmatmul.mubr.f32.gmra.mxu0 %v11869
      %v12059 = vpop.f32.mrf.mxu0
      %v12060 = vadd.f32 0.0, %v12059
      %v12061 = vpop.f32.mrf.mxu0
      %12062 = vmatprep.mubr.f32.mxu0 0.0
      %12063 = vmatmul.mubr.f32.gmra.mxu0 %v11872
      %v12064 = vpop.f32.mrf.mxu0
      %v12065 = vadd.f32 0.0, %v12064
      %v12066 = vpop.f32.mrf.mxu0
      %12067 = vmatprep.mubr.f32.mxu0 0.0
      %12068 = vmatmul.mubr.f32.gmra.mxu0 %v11875
      %v12069 = vpop.f32.mrf.mxu0
      %v12070 = vadd.f32 0.0, %v12069
      %v12071 = vpop.f32.mrf.mxu0
      %12072 = vmatprep.mubr.f32.mxu0 0.0
      %12073 = vmatmul.mubr.f32.gmra.mxu0 %v11878
      %v12074 = vpop.f32.mrf.mxu0
      %v12075 = vadd.f32 0.0, %v12074
      %v12076 = vpop.f32.mrf.mxu0
      %12077 = vmatprep.mubr.f32.mxu0 0.0
      %12078 = vmatmul.mubr.f32.gmra.mxu0 %v11881
      %v12079 = vpop.f32.mrf.mxu0
      %v12080 = vadd.f32 0.0, %v12079
      %v12081 = vpop.f32.mrf.mxu0
      %12082 = vmatprep.mubr.f32.mxu0 0.0
      %12083 = vmatmul.mubr.f32.gmra.mxu0 %v11884
      %v12084 = vpop.f32.mrf.mxu0
      %v12085 = vadd.f32 0.0, %v12084
      %v12086 = vpop.f32.mrf.mxu0
      %12087 = vmatprep.mubr.f32.mxu0 0.0
      %12088 = vmatmul.mubr.f32.gmra.mxu0 %v11887
      %v12089 = vpop.f32.mrf.mxu0
      %v12090 = vadd.f32 0.0, %v12089
      %v12091 = vpop.f32.mrf.mxu0
      %12092 = vmatprep.mubr.f32.mxu0 0.0
      %12093 = vmatmul.mubr.f32.gmra.mxu0 %v11890
      %v12094 = vpop.f32.mrf.mxu0
      %v12095 = vadd.f32 0.0, %v12094
      %v12096 = vpop.f32.mrf.mxu0
      %12097 = vmatprep.mubr.f32.mxu0 0.0
      %12098 = vmatmul.mubr.f32.gmra.mxu0 %v11893
      %v12099 = vpop.f32.mrf.mxu0
      %v12100 = vadd.f32 0.0, %v12099
      %v12101 = vpop.f32.mrf.mxu0
      %12102 = vmatprep.mubr.f32.mxu0 0.0
      %12103 = vmatmul.mubr.f32.gmra.mxu0 %v11896
      %v12104 = vpop.f32.mrf.mxu0
      %v12105 = vadd.f32 0.0, %v12104
      %v12106 = vpop.f32.mrf.mxu0
      %12107 = vmatprep.mubr.f32.mxu0 0.0
      %12108 = vmatmul.mubr.f32.gmra.mxu0 %v11899
      %v12109 = vpop.f32.mrf.mxu0
      %v12110 = vadd.f32 0.0, %v12109
      %v12111 = vpop.f32.mrf.mxu0
      %12112 = vmatprep.mubr.f32.mxu0 0.0
      %12113 = vmatmul.mubr.f32.gmra.mxu0 %v11902
      %v12114 = vpop.f32.mrf.mxu0
      %v12115 = vadd.f32 0.0, %v12114
      %v12116 = vpop.f32.mrf.mxu0
      %12117 = vmatprep.mubr.f32.mxu0 0.0
      %12118 = vmatmul.mubr.f32.gmra.mxu0 %v11905
      %v12119 = vpop.f32.mrf.mxu0
      %v12120 = vadd.f32 0.0, %v12119
      %v12121 = vpop.f32.mrf.mxu0
      %12122 = vmatprep.mubr.f32.mxu0 0.0
      %12123 = vmatmul.mubr.f32.gmra.mxu0 %v11908
      %v12124 = vpop.f32.mrf.mxu0
      %v12125 = vadd.f32 0.0, %v12124
      %v12126 = vpop.f32.mrf.mxu0
      %12127 = vmatprep.mubr.f32.mxu0 0.0
      %12128 = vmatmul.mubr.f32.gmra.mxu0 %v11911
      %v12129 = vpop.f32.mrf.mxu0
      %v12130 = vadd.f32 0.0, %v12129
      %v12131 = vpop.f32.mrf.mxu0
      %12132 = vmatprep.mubr.f32.mxu0 0.0
      %12133 = vmatmul.mubr.f32.gmra.mxu0 %v11914
      %v12134 = vpop.f32.mrf.mxu0
      %v12135 = vadd.f32 0.0, %v12134
      %v12136 = vpop.f32.mrf.mxu0
      %12137 = vmatprep.mubr.f32.mxu0 0.0
      %12138 = vmatmul.mubr.f32.gmra.mxu0 %v11917
      %v12139 = vpop.f32.mrf.mxu0
      %v12140 = vadd.f32 0.0, %v12139
      %v12141 = vpop.f32.mrf.mxu0
      %12142 = vmatprep.mubr.f32.mxu0 0.0
      %12143 = vmatmul.mubr.f32.gmra.mxu0 %v11920
      %v12144 = vpop.f32.mrf.mxu0
      %v12145 = vadd.f32 0.0, %v12144
      %v12146 = vpop.f32.mrf.mxu0
      %12147 = vmatprep.mubr.f32.mxu0 0.0
      %12148 = vmatmul.mubr.f32.gmra.mxu0 %v11923
      %v12149 = vpop.f32.mrf.mxu0
      %v12150 = vadd.f32 0.0, %v12149
      %v12151 = vpop.f32.mrf.mxu0
      %12152 = vmatprep.mubr.f32.mxu0 0.0
      %12153 = vmatmul.mubr.f32.gmra.mxu0 %v11926
      %v12154 = vpop.f32.mrf.mxu0
      %v12155 = vadd.f32 0.0, %v12154
      %v12156 = vpop.f32.mrf.mxu0
      %12157 = vmatprep.mubr.f32.mxu0 0.0
      %12158 = vmatmul.mubr.f32.gmra.mxu0 %v11929
      %v12159 = vpop.f32.mrf.mxu0
      %v12160 = vadd.f32 0.0, %v12159
      %v12161 = vpop.f32.mrf.mxu0
      %12162 = vmatprep.mubr.f32.mxu0 0.0
      %12163 = vmatmul.mubr.f32.gmra.mxu0 %v11932
      %v12164 = vpop.f32.mrf.mxu0
      %v12165 = vadd.f32 0.0, %v12164
      %v12166 = vpop.f32.mrf.mxu0
      %12167 = vmatprep.mubr.f32.mxu0 0.0
      %12168 = vmatmul.mubr.f32.gmra.mxu0 %v11935
      %v12169 = vpop.f32.mrf.mxu0
      %v12170 = vadd.f32 0.0, %v12169
      %v12171 = vpop.f32.mrf.mxu0
      %12172 = vmatprep.mubr.f32.mxu0 0.0
      %12173 = vmatmul.mubr.f32.gmra.mxu0 %v11938
      %v12174 = vpop.f32.mrf.mxu0
      %v12175 = vadd.f32 0.0, %v12174
      %v12176 = vpop.f32.mrf.mxu0
      %12177 = vmatprep.mubr.f32.mxu0 0.0
      %12178 = vmatmul.mubr.f32.gmra.mxu0 %v11941
      %v12179 = vpop.f32.mrf.mxu0
      %v12180 = vadd.f32 0.0, %v12179
      %v12181 = vpop.f32.mrf.mxu0
      %12182 = vmatprep.mubr.f32.mxu0 0.0
      %12183 = vmatmul.mubr.f32.gmra.mxu0 %v11944
      %v12184 = vpop.f32.mrf.mxu0
      %v12185 = vadd.f32 0.0, %v12184
      %v12186 = vpop.f32.mrf.mxu0
      %12187 = vmatprep.mubr.f32.mxu0 0.0
      %12188 = vmatmul.mubr.f32.gmra.mxu0 %v11947
      %v12189 = vpop.f32.mrf.mxu0
      %v12190 = vadd.f32 0.0, %v12189
      %v12191 = vpop.f32.mrf.mxu0
      %12192 = vmatprep.mubr.f32.mxu0 0.0
      %12193 = vmatmul.mubr.f32.gmra.mxu0 %v11950
      %v12194 = vpop.f32.mrf.mxu0
      %v12195 = vadd.f32 0.0, %v12194
      %v12196 = vpop.f32.mrf.mxu0
      %12197 = vmatprep.mubr.f32.mxu0 0.0
      %12198 = vmatmul.mubr.f32.gmra.mxu0 %v11953
      %v12199 = vpop.f32.mrf.mxu0
      %v12200 = vadd.f32 0.0, %v12199
      %v12201 = vpop.f32.mrf.mxu0
      %12202 = vdwg.mxu0
      %v12203 = vadd.f32 %v11773, %v12025
      %v12204 = vadd.f32 %v11774, %v12030
      %v12205 = vadd.f32 %v11775, %v12035
      %v12206 = vadd.f32 %v11776, %v12040
      %v12207 = vadd.f32 %v11777, %v12045
      %v12208 = vadd.f32 %v11778, %v12050
      %v12209 = vadd.f32 %v11779, %v12055
      %v12210 = vadd.f32 %v11780, %v12060
      %v12211 = vadd.f32 %v11781, %v12065
      %v12212 = vadd.f32 %v11782, %v12070
      %v12213 = vadd.f32 %v11783, %v12075
      %v12214 = vadd.f32 %v11784, %v12080
      %v12215 = vadd.f32 %v11785, %v12085
      %v12216 = vadd.f32 %v11786, %v12090
      %v12217 = vadd.f32 %v11787, %v12095
      %v12218 = vadd.f32 %v11788, %v12100
      %v12219 = vadd.f32 %v11789, %v12105
      %v12220 = vadd.f32 %v11790, %v12110
      %v12221 = vadd.f32 %v11791, %v12115
      %v12222 = vadd.f32 %v11792, %v12120
      %v12223 = vadd.f32 %v11793, %v12125
      %v12224 = vadd.f32 %v11794, %v12130
      %v12225 = vadd.f32 %v11795, %v12135
      %v12226 = vadd.f32 %v11796, %v12140
      %v12227 = vadd.f32 %v11797, %v12145
      %v12228 = vadd.f32 %v11798, %v12150
      %v12229 = vadd.f32 %v11799, %v12155
      %v12230 = vadd.f32 %v11800, %v12160
      %v12231 = vadd.f32 %v11801, %v12165
      %v12232 = vadd.f32 %v11802, %v12170
      %v12233 = vadd.f32 %v11803, %v12175
      %v12234 = vadd.f32 %v11804, %v12180
      %v12235 = vadd.f32 %v11805, %v12185
      %v12236 = vadd.f32 %v11806, %v12190
      %v12237 = vadd.f32 %v11807, %v12195
      %v12238 = vadd.f32 %v11808, %v12200
      %v12239 = vld [vmem:[%s7] sm:$0x1]
      %v12241 = vlaneseq
      %v12242 = vshrl.u32 %v12241, 7
      %v12243 = vsub.s32 0, %v12242
      %v12244 = vrot.slane %v12239, %v12243
      %v12246 = vadd.f32 %v12203, %v12244
      %v12247 = vadd.f32 %v12204, %v12244
      %v12248 = vadd.f32 %v12205, %v12244
      %v12249 = vadd.f32 %v12206, %v12244
      %v12250 = vadd.f32 %v12207, %v12244
      %v12251 = vadd.f32 %v12208, %v12244
      %v12252 = vadd.f32 %v12209, %v12244
      %v12253 = vadd.f32 %v12210, %v12244
      %v12254 = vadd.f32 %v12211, %v12244
      %v12255 = vadd.f32 %v12212, %v12244
      %v12256 = vadd.f32 %v12213, %v12244
      %v12257 = vadd.f32 %v12214, %v12244
      %v12258 = vadd.f32 %v12215, %v12244
      %v12259 = vadd.f32 %v12216, %v12244
      %v12260 = vadd.f32 %v12217, %v12244
      %v12261 = vadd.f32 %v12218, %v12244
      %v12262 = vadd.f32 %v12219, %v12244
      %v12263 = vadd.f32 %v12220, %v12244
      %v12264 = vadd.f32 %v12221, %v12244
      %v12265 = vadd.f32 %v12222, %v12244
      %v12266 = vadd.f32 %v12223, %v12244
      %v12267 = vadd.f32 %v12224, %v12244
      %v12268 = vadd.f32 %v12225, %v12244
      %v12269 = vadd.f32 %v12226, %v12244
      %v12270 = vadd.f32 %v12227, %v12244
      %v12271 = vadd.f32 %v12228, %v12244
      %v12272 = vadd.f32 %v12229, %v12244
      %v12273 = vadd.f32 %v12230, %v12244
      %v12274 = vadd.f32 %v12231, %v12244
      %v12275 = vadd.f32 %v12232, %v12244
      %v12276 = vadd.f32 %v12233, %v12244
      %v12277 = vadd.f32 %v12234, %v12244
      %v12278 = vadd.f32 %v12235, %v12244
      %v12279 = vadd.f32 %v12236, %v12244
      %v12280 = vadd.f32 %v12237, %v12244
      %v12281 = vadd.f32 %v12238, %v12244
      %v12282 = vmul.f32 %v12246, 0.01
      %v12283 = vmul.f32 %v12247, 0.01
      %v12284 = vmul.f32 %v12248, 0.01
      %v12285 = vmul.f32 %v12249, 0.01
      %v12286 = vmul.f32 %v12250, 0.01
      %v12287 = vmul.f32 %v12251, 0.01
      %v12288 = vmul.f32 %v12252, 0.01
      %v12289 = vmul.f32 %v12253, 0.01
      %v12290 = vmul.f32 %v12254, 0.01
      %v12291 = vmul.f32 %v12255, 0.01
      %v12292 = vmul.f32 %v12256, 0.01
      %v12293 = vmul.f32 %v12257, 0.01
      %v12294 = vmul.f32 %v12258, 0.01
      %v12295 = vmul.f32 %v12259, 0.01
      %v12296 = vmul.f32 %v12260, 0.01
      %v12297 = vmul.f32 %v12261, 0.01
      %v12298 = vmul.f32 %v12262, 0.01
      %v12299 = vmul.f32 %v12263, 0.01
      %v12300 = vmul.f32 %v12264, 0.01
      %v12301 = vmul.f32 %v12265, 0.01
      %v12302 = vmul.f32 %v12266, 0.01
      %v12303 = vmul.f32 %v12267, 0.01
      %v12304 = vmul.f32 %v12268, 0.01
      %v12305 = vmul.f32 %v12269, 0.01
      %v12306 = vmul.f32 %v12270, 0.01
      %v12307 = vmul.f32 %v12271, 0.01
      %v12308 = vmul.f32 %v12272, 0.01
      %v12309 = vmul.f32 %v12273, 0.01
      %v12310 = vmul.f32 %v12274, 0.01
      %v12311 = vmul.f32 %v12275, 0.01
      %v12312 = vmul.f32 %v12276, 0.01
      %v12313 = vmul.f32 %v12277, 0.01
      %v12314 = vmul.f32 %v12278, 0.01
      %v12315 = vmul.f32 %v12279, 0.01
      %v12316 = vmul.f32 %v12280, 0.01
      %v12317 = vmul.f32 %v12281, 0.01
      %v12318 = vmax.f32 %v12246, %v12282
      %v12319 = vmax.f32 %v12247, %v12283
      %v12320 = vmax.f32 %v12248, %v12284
      %v12321 = vmax.f32 %v12249, %v12285
      %v12322 = vmax.f32 %v12250, %v12286
      %v12323 = vmax.f32 %v12251, %v12287
      %v12324 = vmax.f32 %v12252, %v12288
      %v12325 = vmax.f32 %v12253, %v12289
      %v12326 = vmax.f32 %v12254, %v12290
      %v12327 = vmax.f32 %v12255, %v12291
      %v12328 = vmax.f32 %v12256, %v12292
      %v12329 = vmax.f32 %v12257, %v12293
      %v12330 = vmax.f32 %v12258, %v12294
      %v12331 = vmax.f32 %v12259, %v12295
      %v12332 = vmax.f32 %v12260, %v12296
      %v12333 = vmax.f32 %v12261, %v12297
      %v12334 = vmax.f32 %v12262, %v12298
      %v12335 = vmax.f32 %v12263, %v12299
      %v12336 = vmax.f32 %v12264, %v12300
      %v12337 = vmax.f32 %v12265, %v12301
      %v12338 = vmax.f32 %v12266, %v12302
      %v12339 = vmax.f32 %v12267, %v12303
      %v12340 = vmax.f32 %v12268, %v12304
      %v12341 = vmax.f32 %v12269, %v12305
      %v12342 = vmax.f32 %v12270, %v12306
      %v12343 = vmax.f32 %v12271, %v12307
      %v12344 = vmax.f32 %v12272, %v12308
      %v12345 = vmax.f32 %v12273, %v12309
      %v12346 = vmax.f32 %v12274, %v12310
      %v12347 = vmax.f32 %v12275, %v12311
      %v12348 = vmax.f32 %v12276, %v12312
      %v12349 = vmax.f32 %v12277, %v12313
      %v12350 = vmax.f32 %v12278, %v12314
      %v12351 = vmax.f32 %v12279, %v12315
      %v12352 = vmax.f32 %v12280, %v12316
      %v12353 = vmax.f32 %v12281, %v12317
      %12354 = vst.msk [vmem:[%s325] sm:$0xff] %vm401, %v12318
      %12355 = vst.msk [vmem:[%s325 + $0x8] sm:$0xff] %vm401, %v12319
      %12356 = vst.msk [vmem:[%s325 + $0x10] sm:$0xff] %vm401, %v12320
      %12357 = vst.msk [vmem:[%s325 + $0x18] sm:$0xff] %vm401, %v12321
      %12358 = vst.msk [vmem:[%s325 + $0x20] sm:$0xff] %vm401, %v12322
      %12359 = vst.msk [vmem:[%s325 + $0x28] sm:$0xff] %vm401, %v12323
      %12360 = vst.msk [vmem:[%s325 + $0x30] sm:$0xff] %vm401, %v12324
      %12361 = vst.msk [vmem:[%s325 + $0x38] sm:$0xff] %vm401, %v12325
      %12362 = vst.msk [vmem:[%s325 + $0x40] sm:$0xff] %vm401, %v12326
      %12363 = vst.msk [vmem:[%s325 + $0x48] sm:$0xff] %vm401, %v12327
      %12364 = vst.msk [vmem:[%s325 + $0x50] sm:$0xff] %vm401, %v12328
      %12365 = vst.msk [vmem:[%s325 + $0x58] sm:$0xff] %vm401, %v12329
      %12366 = vst.msk [vmem:[%s325 + $0x60] sm:$0xff] %vm401, %v12330
      %12367 = vst.msk [vmem:[%s325 + $0x68] sm:$0xff] %vm401, %v12331
      %12368 = vst.msk [vmem:[%s325 + $0x70] sm:$0xff] %vm401, %v12332
      %12369 = vst.msk [vmem:[%s325 + $0x78] sm:$0xff] %vm401, %v12333
      %12370 = vst.msk [vmem:[%s325 + $0x80] sm:$0xff] %vm401, %v12334
      %12371 = vst.msk [vmem:[%s325 + $0x88] sm:$0xff] %vm401, %v12335
      %12372 = vst.msk [vmem:[%s325 + $0x90] sm:$0xff] %vm401, %v12336
      %12373 = vst.msk [vmem:[%s325 + $0x98] sm:$0xff] %vm401, %v12337
      %12374 = vst.msk [vmem:[%s325 + $0xa0] sm:$0xff] %vm401, %v12338
      %12375 = vst.msk [vmem:[%s325 + $0xa8] sm:$0xff] %vm401, %v12339
      %12376 = vst.msk [vmem:[%s325 + $0xb0] sm:$0xff] %vm401, %v12340
      %12377 = vst.msk [vmem:[%s325 + $0xb8] sm:$0xff] %vm401, %v12341
      %12378 = vst.msk [vmem:[%s325 + $0xc0] sm:$0xff] %vm401, %v12342
      %12379 = vst.msk [vmem:[%s325 + $0xc8] sm:$0xff] %vm401, %v12343
      %12380 = vst.msk [vmem:[%s325 + $0xd0] sm:$0xff] %vm401, %v12344
      %12381 = vst.msk [vmem:[%s325 + $0xd8] sm:$0xff] %vm401, %v12345
      %12382 = vst.msk [vmem:[%s325 + $0xe0] sm:$0xff] %vm401, %v12346
      %12383 = vst.msk [vmem:[%s325 + $0xe8] sm:$0xff] %vm401, %v12347
      %12384 = vst.msk [vmem:[%s325 + $0xf0] sm:$0xff] %vm401, %v12348
      %12385 = vst.msk [vmem:[%s325 + $0xf8] sm:$0xff] %vm401, %v12349
      %12386 = vst.msk [vmem:[%s325 + $0x100] sm:$0xff] %vm401, %v12350
      %12387 = vst.msk [vmem:[%s325 + $0x108] sm:$0xff] %vm401, %v12351
      %12388 = vst.msk [vmem:[%s325 + $0x110] sm:$0xff] %vm401, %v12352
      %12389 = vst.msk [vmem:[%s325 + $0x118] sm:$0xff] %vm401, %v12353
      %p12390 = scmp.lt.s32.totalorder %s19, 1
      %s12391 = scalar_select %p12390, %s19, 1
      %s12392 = smul.addr %s12391, 36
      %s12393 = smul.addr %s12392, 8
      %s12394 = scalar_lea.vmem %s8, %s12393
      // Predicated region
      $region53: #{up_forward_pallas.3} parent=51 // pred_check
        %p12395 = pneg %p215
      $region54: #{up_forward_pallas.3} parent=51 // pred_check_branch
        %12397 = sbr.rel (%p12395) target = $region56
      $region55: #{up_forward_pallas.3} parent=51 // pred_region
        _
      $region56: #{up_forward_pallas.3} parent=51 // pred_fallthru
        _
    $region52: #{up_forward_pallas.3} parent=5 // pred_fallthru
      _
    %p12398 = scmp.le.s32.totalorder 2, %s14
    // Predicated region
    $region57: #{up_forward_pallas.3} parent=5 // pred_check
      %p12399 = pneg %p12398
    $region58: #{up_forward_pallas.3} parent=5 // pred_check_branch
      %12401 = sbr.rel (%p12399) target = $region60
    $region59: #{up_forward_pallas.3} parent=5 // pred_region
      %s12402 = ssub.s32 %s14, 2
      // Predicated region
      $region61: #{up_forward_pallas.3} parent=59 // pred_check
        %p12403 = pneg %p221
      $region62: #{up_forward_pallas.3} parent=59 // pred_check_branch
        %12405 = sbr.rel (%p12403) target = $region64
      $region63: #{up_forward_pallas.3} parent=59 // pred_region
        %p12406 = scmp.lt.s32.totalorder %s20, 1
        %s12407 = scalar_select %p12406, %s20, 1
        %s12408 = smul.addr %s12407, 36
        %s12409 = smul.addr %s12408, 8
        %s12410 = scalar_lea.vmem %s8, %s12409
      $region64: #{up_forward_pallas.3} parent=59 // pred_fallthru
        _
    $region60: #{up_forward_pallas.3} parent=5 // pred_fallthru
      _
  $region6: #{up_forward_pallas.3} parent=0 // loop_footer
    %s18 = sadd.s32 1, %s14
  $region7: #{up_forward_pallas.3} parent=0 // loop_footer_branch
    %13 = sbr.rel target = $region3
  $region8: #{up_forward_pallas.3} parent=0 // loop_exit
    _

</llo_original>
